<compile_context>
chip_gen: v7x
topology: tpu7x:2x2x1
jax: 0.10.0
libtpu: 0.0.40
codegen_flags: <defaults>
</compile_context>

<pallas_src>
import functools
import math

import jax
import jax.numpy as jnp
from jax.experimental import pallas as pl
from jax.experimental.pallas import tpu as pltpu


def _round_up(x, m):
    return ((x + m - 1) // m) * m


def _vae_kernel(
    x_ref,        # (TB, D)      flattened input block (f32 or bf16)
    eps_ref,      # (TB, LP)     standard-normal noise, zero in padded lanes (f32)
    w1_ref, b1_ref,   # (D, 512) bf16,    (1, 512) f32
    w2_ref, b2_ref,   # (512, 2LP) bf16,  (1, 2LP) f32   (fc21 | fc22 fused, lane padded)
    w3_ref, b3_ref,   # (LP, 128) bf16,   (1, 128) f32   (zero rows in padded latent lanes)
    w4_ref, b4_ref,   # (128, 512) bf16,  (1, 512) f32
    w5_ref, b5_ref,   # (512, D) bf16,    (1, D) f32
    recon_ref,    # (TB, D)      output: sigmoid reconstruction (bf16 store)
    mlv_ref,      # (TB, 2LP)    output: [mu | log_var], lane-dense (f32)
):
    lp = eps_ref.shape[-1]                       # padded latent width (multiple of 128)

    # ---- encode -------------------------------------------------------------
    x = x_ref[...].astype(jnp.bfloat16)
    h1 = jnp.dot(x, w1_ref[...], preferred_element_type=jnp.float32) + b1_ref[...]
    h1 = jnp.maximum(h1, 0.0).astype(jnp.bfloat16)            # ReLU, single bf16 copy live

    # fused mu | log_var projection; slices land on 128-lane boundaries
    mlv = jnp.dot(h1, w2_ref[...], preferred_element_type=jnp.float32) + b2_ref[...]
    mu = mlv[:, :lp]
    log_var = mlv[:, lp:]

    # ---- reparameterize (kept in f32) ---------------------------------------
    std = jnp.exp(0.5 * log_var)                 # padded lanes: exp(0) = 1 (harmless)
    z = (mu + eps_ref[...] * std).astype(jnp.bfloat16)

    # ---- decode -------------------------------------------------------------
    h3 = jnp.maximum(
        jnp.dot(z, w3_ref[...], preferred_element_type=jnp.float32) + b3_ref[...], 0.0
    ).astype(jnp.bfloat16)
    h4 = jnp.maximum(
        jnp.dot(h3, w4_ref[...], preferred_element_type=jnp.float32) + b4_ref[...], 0.0
    ).astype(jnp.bfloat16)
    logits = jnp.dot(h4, w5_ref[...], preferred_element_type=jnp.float32) + b5_ref[...]

    # Sigmoid kept in f32 (safe on v5e, cost hidden under the HBM-bound step);
    # the bf16 store is what halves the recon HBM write traffic everywhere.
    recon_ref[...] = jax.nn.sigmoid(logits).astype(recon_ref.dtype)
    mlv_ref[...] = mlv.astype(mlv_ref.dtype)


def _vmem_limit_bytes():
    """Generation-aware scoped-VMEM limit: stay well below physical VMEM
    (v7x has only 64 MiB / TC); the kernel footprint is only a few MiB."""
    try:
        phys = int(pltpu.get_tpu_info().vmem_capacity_bytes)
        return int(min(48 << 20, (phys * 3) // 4))
    except Exception:  # conservative fallback, safe on every generation
        return 32 << 20


@functools.partial(jax.jit, static_argnames=("latent_dim", "single_buffer_weights"))
def vae_mlp_forward(x_nchw, eps, params, *, latent_dim, single_buffer_weights=True):
    """Full VAE-MLP forward pass inside one Pallas kernel.

    x_nchw: (B, C, H, W) float32 (or bfloat16)
    eps:    (B, latent_dim) float32 standard-normal noise
    params: dict from init_params (bf16 (in,out) weights, f32 (1,out) biases;
            fc21/fc22 fused & lane-padded to "w2"/"b2", fc3 row-padded "w3").
    Returns (recon, mu, log_var); recon has shape (B, C*H*W), float32.
    """
    B = x_nchw.shape[0]
    D = int(x_nchw.shape[1] * x_nchw.shape[2] * x_nchw.shape[3])
    L = latent_dim
    LP = params["w3"].shape[0]            # padded latent width (multiple of 128)

    # x kept in its incoming dtype: converting to bf16 in the wrapper would add
    # an extra full HBM pass over x; the kernel casts to bf16 internally.
    x_flat = x_nchw.reshape(B, D)         # same row-major flatten as nn.Flatten

    # eps zero-padded to LP lanes (padded z lanes hit zero rows of padded w3).
    eps_p = jnp.zeros((B, LP), jnp.float32).at[:, :L].set(eps.astype(jnp.float32))

    # Batch tile: single full-batch block when small; when B > 256 guarantee
    # >= 2 grid steps so the "parallel" axis shards across v7x's 2 TensorCores.
    if B <= 256:
        tb = B
    else:
        tb = min(512, _round_up(pl.cdiv(B, 2), 256))
    Bp = _round_up(B, tb)
    if Bp != B:  # pad batch so no partial tail block runs exp/sigmoid on garbage
        x_flat = jnp.pad(x_flat, ((0, Bp - B), (0, 0)))
        eps_p = jnp.pad(eps_p, ((0, Bp - B), (0, 0)))
    grid = (Bp // tb,)

    def batch_spec(cols):
        return pl.BlockSpec((tb, cols), lambda i: (i, 0))

    def resident_spec(shape):
        # constant index_map -> DMA'd once, stays resident across grid steps;
        # single-buffered to avoid wasting VMEM on a never-used second buffer.
        if single_buffer_weights:
            return pl.BlockSpec(shape, lambda i: (0, 0),
                                pipeline_mode=pl.Buffered(1))
        return pl.BlockSpec(shape, lambda i: (0, 0))

    in_specs = [
        batch_spec(D),                                    # x
        batch_spec(LP),                                   # eps (padded)
        resident_spec(params["w1"].shape), resident_spec(params["b1"].shape),
        resident_spec(params["w2"].shape), resident_spec(params["b2"].shape),
        resident_spec(params["w3"].shape), resident_spec(params["b3"].shape),
        resident_spec(params["w4"].shape), resident_spec(params["b4"].shape),
        resident_spec(params["w5"].shape), resident_spec(params["b5"].shape),
    ]
    out_specs = (batch_spec(D), batch_spec(2 * LP))
    out_shapes = (
        jax.ShapeDtypeStruct((Bp, D), jnp.bfloat16),      # reconstruction (bf16 store)
        jax.ShapeDtypeStruct((Bp, 2 * LP), jnp.float32),  # [mu | log_var], lane-dense
    )

    # Advisory cost estimate so XLA schedules wrapper ops around the call.
    mm_flops = D * 512 + 512 * (2 * LP) + LP * 128 + 128 * 512 + 512 * D
    weight_bytes = (2 * mm_flops) + 4 * (512 + 2 * LP + 128 + 512 + D)
    cost = pl.CostEstimate(
        flops=2 * Bp * mm_flops,
        transcendentals=Bp * (LP + D),                    # exp (reparam) + sigmoid
        bytes_accessed=Bp * (4 * D + 4 * LP + 2 * D + 8 * LP) + weight_bytes,
    )

    recon_p, mlv_p = pl.pallas_call(
        _vae_kernel,
        out_shape=out_shapes,
        grid=grid,
        in_specs=in_specs,
        out_specs=out_specs,
        compiler_params=pltpu.CompilerParams(
            dimension_semantics=("parallel",),
            vmem_limit_bytes=_vmem_limit_bytes(),
        ),
        cost_estimate=cost,
    )(
        x_flat,
        eps_p,
        params["w1"], params["b1"],
        params["w2"], params["b2"],
        params["w3"], params["b3"],
        params["w4"], params["b4"],
        params["w5"], params["b5"],
    )

    # Strip batch/lane padding; upcast recon only for f32 API parity (callers
    # that can consume bf16 should skip this upcast to save a wrapper HBM pass).
    recon = recon_p[:B].astype(jnp.float32)
    mu = mlv_p[:B, :L]
    log_var = mlv_p[:B, LP:LP + L]
    return recon, mu, log_var


def init_params(key, input_dim, latent_dim):
    """Parameter init matching PyTorch Linear defaults.

    Weights stored as (in, out) in bfloat16; biases as (1, out) in float32.
    fc21/fc22 are fused into a single lane-padded (512, 2*LP) projection
    ("w2"/"b2") with mu in lanes [0, latent_dim) and log_var in lanes
    [LP, LP+latent_dim); fc3 is row-padded to (LP, 128) with zero rows so the
    padded latent lanes are inert.  LP = round_up(latent_dim, 128).
    """
    LP = _round_up(max(latent_dim, 1), 128)

    def linear(k, fan_in, fan_out):
        kw, kb = jax.random.split(k)
        bound = 1.0 / math.sqrt(float(fan_in))
        w = jax.random.uniform(kw, (fan_in, fan_out), jnp.float32,
                               minval=-bound, maxval=bound)
        b = jax.random.uniform(kb, (1, fan_out), jnp.float32,
                               minval=-bound, maxval=bound)
        return w, b

    keys = jax.random.split(key, 6)
    w1, b1 = linear(keys[0], input_dim, 512)
    w21, b21 = linear(keys[1], 512, latent_dim)
    w22, b22 = linear(keys[2], 512, latent_dim)
    w3, b3 = linear(keys[3], latent_dim, 128)
    w4, b4 = linear(keys[4], 128, 512)
    w5, b5 = linear(keys[5], 512, input_dim)

    w2 = jnp.zeros((512, 2 * LP), jnp.float32)
    w2 = w2.at[:, :latent_dim].set(w21).at[:, LP:LP + latent_dim].set(w22)
    b2 = jnp.zeros((1, 2 * LP), jnp.float32)
    b2 = b2.at[:, :latent_dim].set(b21).at[:, LP:LP + latent_dim].set(b22)
    w3p = jnp.zeros((LP, 128), jnp.float32).at[:latent_dim, :].set(w3)

    return {
        "w1": w1.astype(jnp.bfloat16), "b1": b1,
        "w2": w2.astype(jnp.bfloat16), "b2": b2,
        "w3": w3p.astype(jnp.bfloat16), "b3": b3,
        "w4": w4.astype(jnp.bfloat16), "b4": b4,
        "w5": w5.astype(jnp.bfloat16), "b5": b5,
    }


def reference_forward(x_nchw, eps, params, latent_dim):
    """Pure-JAX reference using the same mixed precision as the kernel."""
    L = latent_dim
    LP = params["w3"].shape[0]
    B = x_nchw.shape[0]

    def mm(a, w, b):
        return jnp.dot(a.astype(jnp.bfloat16), w,
                       preferred_element_type=jnp.float32) + b

    x = x_nchw.reshape(B, -1)
    h1 = jnp.maximum(mm(x, params["w1"], params["b1"]), 0.0).astype(jnp.bfloat16)
    mlv = mm(h1, params["w2"], params["b2"])
    mu_f, lv_f = mlv[:, :LP], mlv[:, LP:]
    eps_p = jnp.zeros((B, LP), jnp.float32).at[:, :L].set(eps)
    z = (mu_f + eps_p * jnp.exp(0.5 * lv_f)).astype(jnp.bfloat16)
    h3 = jnp.maximum(mm(z, params["w3"], params["b3"]), 0.0).astype(jnp.bfloat16)
    h4 = jnp.maximum(mm(h3, params["w4"], params["b4"]), 0.0).astype(jnp.bfloat16)
    logits = mm(h4, params["w5"], params["b5"])
    recon = jax.nn.sigmoid(logits).astype(jnp.bfloat16).astype(jnp.float32)
    return recon, mu_f[:, :L], lv_f[:, :L]


if __name__ == "__main__":
    # Small shapes consistent with the module: image_size = (C, H, W) = (4, 16, 16)
    B, C, H, W = 2, 4, 16, 16
    LATENT = 32
    D = C * H * W  # 1024

    key = jax.random.PRNGKey(0)
    k_params, k_x, k_eps = jax.random.split(key, 3)

    params = init_params(k_params, D, LATENT)
    x = jax.random.uniform(k_x, (B, C, H, W), jnp.float32)     # image-like input
    eps = jax.random.normal(k_eps, (B, LATENT), jnp.float32)   # reparam noise

    recon = mu = log_var = None
    last_err = None
    # Prefer single-buffered resident weights; fall back to default buffering
    # if this JAX build rejects pipeline_mode on top-level BlockSpecs.
    for sbw in (True, False):
        try:
            recon, mu, log_var = vae_mlp_forward(
                x, eps, params, latent_dim=LATENT, single_buffer_weights=sbw)
            jax.block_until_ready((recon, mu, log_var))
            break
        except Exception as err:
            last_err = err
    if recon is None:
        raise last_err

    # sanity check against mixed-precision pure-JAX reference
    r_ref, mu_ref, lv_ref = reference_forward(x, eps, params, LATENT)
    assert recon.shape == (B, D) and mu.shape == (B, LATENT) and log_var.shape == (B, LATENT)
    assert bool(jnp.all(jnp.isfinite(recon))) and bool(jnp.all(jnp.isfinite(mu)))
    assert jnp.allclose(recon, r_ref, atol=1e-2, rtol=1e-2)
    assert jnp.allclose(mu, mu_ref, atol=1e-2, rtol=1e-2)
    assert jnp.allclose(log_var, lv_ref, atol=1e-2, rtol=1e-2)

    print("KERNEL_OK")
</pallas_src>

<mosaic_0001>
module attributes {stable_mosaic.version = 11 : i64} {
  func.func @_vae_kernel(%arg0: i32, %arg1: memref<2x1024xf32, #tpu.memory_space<vmem>>, %arg2: memref<2x128xf32, #tpu.memory_space<vmem>>, %arg3: memref<1024x512xbf16, #tpu.memory_space<vmem>>, %arg4: memref<1x512xf32, #tpu.memory_space<vmem>>, %arg5: memref<512x256xbf16, #tpu.memory_space<vmem>>, %arg6: memref<1x256xf32, #tpu.memory_space<vmem>>, %arg7: memref<128x128xbf16, #tpu.memory_space<vmem>>, %arg8: memref<1x128xf32, #tpu.memory_space<vmem>>, %arg9: memref<128x512xbf16, #tpu.memory_space<vmem>>, %arg10: memref<1x512xf32, #tpu.memory_space<vmem>>, %arg11: memref<512x1024xbf16, #tpu.memory_space<vmem>>, %arg12: memref<1x1024xf32, #tpu.memory_space<vmem>>, %arg13: memref<2x1024xbf16, #tpu.memory_space<vmem>>, %arg14: memref<2x256xf32, #tpu.memory_space<vmem>>) attributes {dimension_semantics = [#tpu.dimension_semantics<parallel>], iteration_bounds = array<i64: 1>, scalar_prefetch = 0 : i64, scratch_operands = 0 : i64, tpu.core_type = #tpu.core_type<tc>, window_params = [{transform_indices = @transform_0, window_bounds = array<i64: 2, 1024>}, {transform_indices = @transform_1, window_bounds = array<i64: 2, 128>}, {pipeline_mode = #tpu.pipeline_mode<synchronous>, transform_indices = @transform_2, window_bounds = array<i64: 1024, 512>}, {pipeline_mode = #tpu.pipeline_mode<synchronous>, transform_indices = @transform_3, window_bounds = array<i64: 1, 512>}, {pipeline_mode = #tpu.pipeline_mode<synchronous>, transform_indices = @transform_4, window_bounds = array<i64: 512, 256>}, {pipeline_mode = #tpu.pipeline_mode<synchronous>, transform_indices = @transform_5, window_bounds = array<i64: 1, 256>}, {pipeline_mode = #tpu.pipeline_mode<synchronous>, transform_indices = @transform_6, window_bounds = array<i64: 128, 128>}, {pipeline_mode = #tpu.pipeline_mode<synchronous>, transform_indices = @transform_7, window_bounds = array<i64: 1, 128>}, {pipeline_mode = #tpu.pipeline_mode<synchronous>, transform_indices = @transform_8, window_bounds = array<i64: 128, 512>}, {pipeline_mode = #tpu.pipeline_mode<synchronous>, transform_indices = @transform_9, window_bounds = array<i64: 1, 512>}, {pipeline_mode = #tpu.pipeline_mode<synchronous>, transform_indices = @transform_10, window_bounds = array<i64: 512, 1024>}, {pipeline_mode = #tpu.pipeline_mode<synchronous>, transform_indices = @transform_11, window_bounds = array<i64: 1, 1024>}, {transform_indices = @transform_12, window_bounds = array<i64: 2, 1024>}, {transform_indices = @transform_13, window_bounds = array<i64: 2, 256>}]} {
    %c0 = arith.constant 0 : index
    %c0_0 = arith.constant 0 : index
    %0 = vector.load %arg1[%c0, %c0_0] : memref<2x1024xf32, #tpu.memory_space<vmem>>, vector<2x1024xf32>
    %1 = arith.truncf %0 : vector<2x1024xf32> to vector<2x1024xbf16>
    %c0_1 = arith.constant 0 : index
    %c0_2 = arith.constant 0 : index
    %2 = vector.load %arg3[%c0_1, %c0_2] : memref<1024x512xbf16, #tpu.memory_space<vmem>>, vector<1024x512xbf16>
    %cst = arith.constant dense<0.000000e+00> : vector<2x512xf32>
    %3 = tpu.matmul %1, %2, %cst {dimension_numbers = #tpu.dot_dimension_numbers<[1], [0], [0], [1], [0, 0, 1, 1], [], []>} : vector<2x1024xbf16>, vector<1024x512xbf16>, vector<2x512xf32> -> vector<2x512xf32>
    %c0_3 = arith.constant 0 : index
    %c0_4 = arith.constant 0 : index
    %4 = vector.load %arg4[%c0_3, %c0_4] : memref<1x512xf32, #tpu.memory_space<vmem>>, vector<1x512xf32>
    %5 = vector.broadcast %4 : vector<1x512xf32> to vector<2x512xf32>
    %6 = arith.addf %3, %5 : vector<2x512xf32>
    %cst_5 = arith.constant 0.000000e+00 : f32
    %7 = vector.broadcast %cst_5 : f32 to vector<2x512xf32>
    %8 = arith.maximumf %6, %7 : vector<2x512xf32>
    %9 = arith.truncf %8 : vector<2x512xf32> to vector<2x512xbf16>
    %c0_6 = arith.constant 0 : index
    %c0_7 = arith.constant 0 : index
    %10 = vector.load %arg5[%c0_6, %c0_7] : memref<512x256xbf16, #tpu.memory_space<vmem>>, vector<512x256xbf16>
    %cst_8 = arith.constant dense<0.000000e+00> : vector<2x256xf32>
    %11 = tpu.matmul %9, %10, %cst_8 {dimension_numbers = #tpu.dot_dimension_numbers<[1], [0], [0], [1], [0, 0, 1, 1], [], []>} : vector<2x512xbf16>, vector<512x256xbf16>, vector<2x256xf32> -> vector<2x256xf32>
    %c0_9 = arith.constant 0 : index
    %c0_10 = arith.constant 0 : index
    %12 = vector.load %arg6[%c0_9, %c0_10] : memref<1x256xf32, #tpu.memory_space<vmem>>, vector<1x256xf32>
    %13 = vector.broadcast %12 : vector<1x256xf32> to vector<2x256xf32>
    %14 = arith.addf %11, %13 : vector<2x256xf32>
    %15 = vector.extract_strided_slice %14 {offsets = [0, 0], sizes = [2, 128], strides = [1, 1]} : vector<2x256xf32> to vector<2x128xf32>
    %16 = vector.extract_strided_slice %14 {offsets = [0, 128], sizes = [2, 128], strides = [1, 1]} : vector<2x256xf32> to vector<2x128xf32>
    %cst_11 = arith.constant 5.000000e-01 : f32
    %17 = vector.broadcast %cst_11 : f32 to vector<2x128xf32>
    %18 = arith.mulf %17, %16 : vector<2x128xf32>
    %19 = math.exp %18 : vector<2x128xf32>
    %c0_12 = arith.constant 0 : index
    %c0_13 = arith.constant 0 : index
    %20 = vector.load %arg2[%c0_12, %c0_13] : memref<2x128xf32, #tpu.memory_space<vmem>>, vector<2x128xf32>
    %21 = arith.mulf %20, %19 : vector<2x128xf32>
    %22 = arith.addf %15, %21 : vector<2x128xf32>
    %23 = arith.truncf %22 : vector<2x128xf32> to vector<2x128xbf16>
    %c0_14 = arith.constant 0 : index
    %c0_15 = arith.constant 0 : index
    %24 = vector.load %arg7[%c0_14, %c0_15] : memref<128x128xbf16, #tpu.memory_space<vmem>>, vector<128x128xbf16>
    %cst_16 = arith.constant dense<0.000000e+00> : vector<2x128xf32>
    %25 = tpu.matmul %23, %24, %cst_16 {dimension_numbers = #tpu.dot_dimension_numbers<[1], [0], [0], [1], [0, 0, 1, 1], [], []>} : vector<2x128xbf16>, vector<128x128xbf16>, vector<2x128xf32> -> vector<2x128xf32>
    %c0_17 = arith.constant 0 : index
    %c0_18 = arith.constant 0 : index
    %26 = vector.load %arg8[%c0_17, %c0_18] : memref<1x128xf32, #tpu.memory_space<vmem>>, vector<1x128xf32>
    %27 = vector.broadcast %26 : vector<1x128xf32> to vector<2x128xf32>
    %28 = arith.addf %25, %27 : vector<2x128xf32>
    %cst_19 = arith.constant 0.000000e+00 : f32
    %29 = vector.broadcast %cst_19 : f32 to vector<2x128xf32>
    %30 = arith.maximumf %28, %29 : vector<2x128xf32>
    %31 = arith.truncf %30 : vector<2x128xf32> to vector<2x128xbf16>
    %c0_20 = arith.constant 0 : index
    %c0_21 = arith.constant 0 : index
    %32 = vector.load %arg9[%c0_20, %c0_21] : memref<128x512xbf16, #tpu.memory_space<vmem>>, vector<128x512xbf16>
    %cst_22 = arith.constant dense<0.000000e+00> : vector<2x512xf32>
    %33 = tpu.matmul %31, %32, %cst_22 {dimension_numbers = #tpu.dot_dimension_numbers<[1], [0], [0], [1], [0, 0, 1, 1], [], []>} : vector<2x128xbf16>, vector<128x512xbf16>, vector<2x512xf32> -> vector<2x512xf32>
    %c0_23 = arith.constant 0 : index
    %c0_24 = arith.constant 0 : index
    %34 = vector.load %arg10[%c0_23, %c0_24] : memref<1x512xf32, #tpu.memory_space<vmem>>, vector<1x512xf32>
    %35 = vector.broadcast %34 : vector<1x512xf32> to vector<2x512xf32>
    %36 = arith.addf %33, %35 : vector<2x512xf32>
    %cst_25 = arith.constant 0.000000e+00 : f32
    %37 = vector.broadcast %cst_25 : f32 to vector<2x512xf32>
    %38 = arith.maximumf %36, %37 : vector<2x512xf32>
    %39 = arith.truncf %38 : vector<2x512xf32> to vector<2x512xbf16>
    %c0_26 = arith.constant 0 : index
    %c0_27 = arith.constant 0 : index
    %40 = vector.load %arg11[%c0_26, %c0_27] : memref<512x1024xbf16, #tpu.memory_space<vmem>>, vector<512x1024xbf16>
    %cst_28 = arith.constant dense<0.000000e+00> : vector<2x1024xf32>
    %41 = tpu.matmul %39, %40, %cst_28 {dimension_numbers = #tpu.dot_dimension_numbers<[1], [0], [0], [1], [0, 0, 1, 1], [], []>} : vector<2x512xbf16>, vector<512x1024xbf16>, vector<2x1024xf32> -> vector<2x1024xf32>
    %c0_29 = arith.constant 0 : index
    %c0_30 = arith.constant 0 : index
    %42 = vector.load %arg12[%c0_29, %c0_30] : memref<1x1024xf32, #tpu.memory_space<vmem>>, vector<1x1024xf32>
    %43 = vector.broadcast %42 : vector<1x1024xf32> to vector<2x1024xf32>
    %44 = arith.addf %41, %43 : vector<2x1024xf32>
    %45 = arith.negf %44 : vector<2x1024xf32>
    %46 = math.exp %45 : vector<2x1024xf32>
    %cst_31 = arith.constant 1.000000e+00 : f32
    %47 = vector.broadcast %cst_31 : f32 to vector<2x1024xf32>
    %48 = arith.addf %47, %46 : vector<2x1024xf32>
    %49 = arith.divf %47, %48 : vector<2x1024xf32>
    %50 = arith.truncf %49 : vector<2x1024xf32> to vector<2x1024xbf16>
    %c0_32 = arith.constant 0 : index
    %c0_33 = arith.constant 0 : index
    %51 = vector.load %arg13[%c0_32, %c0_33] : memref<2x1024xbf16, #tpu.memory_space<vmem>>, vector<2x1024xbf16>
    tpu.vector_store %arg13[%c0_32, %c0_33], %50 {strides = array<i32>} : memref<2x1024xbf16, #tpu.memory_space<vmem>>, vector<2x1024xbf16>,
    %c0_34 = arith.constant 0 : index
    %c0_35 = arith.constant 0 : index
    %52 = vector.load %arg14[%c0_34, %c0_35] : memref<2x256xf32, #tpu.memory_space<vmem>>, vector<2x256xf32>
    tpu.vector_store %arg14[%c0_34, %c0_35], %14 {strides = array<i32>} : memref<2x256xf32, #tpu.memory_space<vmem>>, vector<2x256xf32>,
    return
  }
  func.func @transform_0(%arg0: i32) -> (i32, i32) {
    %c0_i32 = arith.constant 0 : i32
    %c0_i32_0 = arith.constant 0 : i32
    return %arg0, %c0_i32 : i32, i32
  }
  func.func @transform_1(%arg0: i32) -> (i32, i32) {
    %c0_i32 = arith.constant 0 : i32
    %c0_i32_0 = arith.constant 0 : i32
    return %arg0, %c0_i32 : i32, i32
  }
  func.func @transform_2(%arg0: i32) -> (i32, i32) {
    %c0_i32 = arith.constant 0 : i32
    %c0_i32_0 = arith.constant 0 : i32
    %c0_i32_1 = arith.constant 0 : i32
    return %c0_i32, %c0_i32_0 : i32, i32
  }
  func.func @transform_3(%arg0: i32) -> (i32, i32) {
    %c0_i32 = arith.constant 0 : i32
    %c0_i32_0 = arith.constant 0 : i32
    %c0_i32_1 = arith.constant 0 : i32
    return %c0_i32, %c0_i32_0 : i32, i32
  }
  func.func @transform_4(%arg0: i32) -> (i32, i32) {
    %c0_i32 = arith.constant 0 : i32
    %c0_i32_0 = arith.constant 0 : i32
    %c0_i32_1 = arith.constant 0 : i32
    return %c0_i32, %c0_i32_0 : i32, i32
  }
  func.func @transform_5(%arg0: i32) -> (i32, i32) {
    %c0_i32 = arith.constant 0 : i32
    %c0_i32_0 = arith.constant 0 : i32
    %c0_i32_1 = arith.constant 0 : i32
    return %c0_i32, %c0_i32_0 : i32, i32
  }
  func.func @transform_6(%arg0: i32) -> (i32, i32) {
    %c0_i32 = arith.constant 0 : i32
    %c0_i32_0 = arith.constant 0 : i32
    %c0_i32_1 = arith.constant 0 : i32
    return %c0_i32, %c0_i32_0 : i32, i32
  }
  func.func @transform_7(%arg0: i32) -> (i32, i32) {
    %c0_i32 = arith.constant 0 : i32
    %c0_i32_0 = arith.constant 0 : i32
    %c0_i32_1 = arith.constant 0 : i32
    return %c0_i32, %c0_i32_0 : i32, i32
  }
  func.func @transform_8(%arg0: i32) -> (i32, i32) {
    %c0_i32 = arith.constant 0 : i32
    %c0_i32_0 = arith.constant 0 : i32
    %c0_i32_1 = arith.constant 0 : i32
    return %c0_i32, %c0_i32_0 : i32, i32
  }
  func.func @transform_9(%arg0: i32) -> (i32, i32) {
    %c0_i32 = arith.constant 0 : i32
    %c0_i32_0 = arith.constant 0 : i32
    %c0_i32_1 = arith.constant 0 : i32
    return %c0_i32, %c0_i32_0 : i32, i32
  }
  func.func @transform_10(%arg0: i32) -> (i32, i32) {
    %c0_i32 = arith.constant 0 : i32
    %c0_i32_0 = arith.constant 0 : i32
    %c0_i32_1 = arith.constant 0 : i32
    return %c0_i32, %c0_i32_0 : i32, i32
  }
  func.func @transform_11(%arg0: i32) -> (i32, i32) {
    %c0_i32 = arith.constant 0 : i32
    %c0_i32_0 = arith.constant 0 : i32
    %c0_i32_1 = arith.constant 0 : i32
    return %c0_i32, %c0_i32_0 : i32, i32
  }
  func.func @transform_12(%arg0: i32) -> (i32, i32) {
    %c0_i32 = arith.constant 0 : i32
    %c0_i32_0 = arith.constant 0 : i32
    return %arg0, %c0_i32 : i32, i32
  }
  func.func @transform_13(%arg0: i32) -> (i32, i32) {
    %c0_i32 = arith.constant 0 : i32
    %c0_i32_0 = arith.constant 0 : i32
    return %arg0, %c0_i32 : i32, i32
  }
}

module attributes {stable_mosaic.version = 11 : i64} {
  func.func @_vae_kernel(%arg0: i32, %arg1: memref<2x1024xf32, #tpu.memory_space<vmem>>, %arg2: memref<2x128xf32, #tpu.memory_space<vmem>>, %arg3: memref<1024x512xbf16, #tpu.memory_space<vmem>>, %arg4: memref<1x512xf32, #tpu.memory_space<vmem>>, %arg5: memref<512x256xbf16, #tpu.memory_space<vmem>>, %arg6: memref<1x256xf32, #tpu.memory_space<vmem>>, %arg7: memref<128x128xbf16, #tpu.memory_space<vmem>>, %arg8: memref<1x128xf32, #tpu.memory_space<vmem>>, %arg9: memref<128x512xbf16, #tpu.memory_space<vmem>>, %arg10: memref<1x512xf32, #tpu.memory_space<vmem>>, %arg11: memref<512x1024xbf16, #tpu.memory_space<vmem>>, %arg12: memref<1x1024xf32, #tpu.memory_space<vmem>>, %arg13: memref<2x1024xbf16, #tpu.memory_space<vmem>>, %arg14: memref<2x256xf32, #tpu.memory_space<vmem>>) attributes {dimension_semantics = [#tpu.dimension_semantics<parallel>], iteration_bounds = array<i64: 1>, scalar_prefetch = 0 : i64, scratch_operands = 0 : i64, tpu.core_type = #tpu.core_type<tc>, window_params = [{transform_indices = @transform_0, window_bounds = array<i64: 2, 1024>}, {transform_indices = @transform_1, window_bounds = array<i64: 2, 128>}, {pipeline_mode = #tpu.pipeline_mode<synchronous>, transform_indices = @transform_2, window_bounds = array<i64: 1024, 512>}, {pipeline_mode = #tpu.pipeline_mode<synchronous>, transform_indices = @transform_3, window_bounds = array<i64: 1, 512>}, {pipeline_mode = #tpu.pipeline_mode<synchronous>, transform_indices = @transform_4, window_bounds = array<i64: 512, 256>}, {pipeline_mode = #tpu.pipeline_mode<synchronous>, transform_indices = @transform_5, window_bounds = array<i64: 1, 256>}, {pipeline_mode = #tpu.pipeline_mode<synchronous>, transform_indices = @transform_6, window_bounds = array<i64: 128, 128>}, {pipeline_mode = #tpu.pipeline_mode<synchronous>, transform_indices = @transform_7, window_bounds = array<i64: 1, 128>}, {pipeline_mode = #tpu.pipeline_mode<synchronous>, transform_indices = @transform_8, window_bounds = array<i64: 128, 512>}, {pipeline_mode = #tpu.pipeline_mode<synchronous>, transform_indices = @transform_9, window_bounds = array<i64: 1, 512>}, {pipeline_mode = #tpu.pipeline_mode<synchronous>, transform_indices = @transform_10, window_bounds = array<i64: 512, 1024>}, {pipeline_mode = #tpu.pipeline_mode<synchronous>, transform_indices = @transform_11, window_bounds = array<i64: 1, 1024>}, {transform_indices = @transform_12, window_bounds = array<i64: 2, 1024>}, {transform_indices = @transform_13, window_bounds = array<i64: 2, 256>}]} {
    %c0 = arith.constant 0 : index
    %c0_0 = arith.constant 0 : index
    %0 = vector.load %arg1[%c0, %c0_0] : memref<2x1024xf32, #tpu.memory_space<vmem>>, vector<2x1024xf32>
    %1 = arith.truncf %0 : vector<2x1024xf32> to vector<2x1024xbf16>
    %c0_1 = arith.constant 0 : index
    %c0_2 = arith.constant 0 : index
    %2 = vector.load %arg3[%c0_1, %c0_2] : memref<1024x512xbf16, #tpu.memory_space<vmem>>, vector<1024x512xbf16>
    %cst = arith.constant dense<0.000000e+00> : vector<2x512xf32>
    %3 = tpu.matmul %1, %2, %cst {dimension_numbers = #tpu.dot_dimension_numbers<[1], [0], [0], [1], [0, 0, 1, 1], [], []>} : vector<2x1024xbf16>, vector<1024x512xbf16>, vector<2x512xf32> -> vector<2x512xf32>
    %c0_3 = arith.constant 0 : index
    %c0_4 = arith.constant 0 : index
    %4 = vector.load %arg4[%c0_3, %c0_4] : memref<1x512xf32, #tpu.memory_space<vmem>>, vector<1x512xf32>
    %5 = vector.broadcast %4 : vector<1x512xf32> to vector<2x512xf32>
    %6 = arith.addf %3, %5 : vector<2x512xf32>
    %cst_5 = arith.constant 0.000000e+00 : f32
    %7 = vector.broadcast %cst_5 : f32 to vector<2x512xf32>
    %8 = arith.maximumf %6, %7 : vector<2x512xf32>
    %9 = arith.truncf %8 : vector<2x512xf32> to vector<2x512xbf16>
    %c0_6 = arith.constant 0 : index
    %c0_7 = arith.constant 0 : index
    %10 = vector.load %arg5[%c0_6, %c0_7] : memref<512x256xbf16, #tpu.memory_space<vmem>>, vector<512x256xbf16>
    %cst_8 = arith.constant dense<0.000000e+00> : vector<2x256xf32>
    %11 = tpu.matmul %9, %10, %cst_8 {dimension_numbers = #tpu.dot_dimension_numbers<[1], [0], [0], [1], [0, 0, 1, 1], [], []>} : vector<2x512xbf16>, vector<512x256xbf16>, vector<2x256xf32> -> vector<2x256xf32>
    %c0_9 = arith.constant 0 : index
    %c0_10 = arith.constant 0 : index
    %12 = vector.load %arg6[%c0_9, %c0_10] : memref<1x256xf32, #tpu.memory_space<vmem>>, vector<1x256xf32>
    %13 = vector.broadcast %12 : vector<1x256xf32> to vector<2x256xf32>
    %14 = arith.addf %11, %13 : vector<2x256xf32>
    %15 = vector.extract_strided_slice %14 {offsets = [0, 0], sizes = [2, 128], strides = [1, 1]} : vector<2x256xf32> to vector<2x128xf32>
    %16 = vector.extract_strided_slice %14 {offsets = [0, 128], sizes = [2, 128], strides = [1, 1]} : vector<2x256xf32> to vector<2x128xf32>
    %cst_11 = arith.constant 5.000000e-01 : f32
    %17 = vector.broadcast %cst_11 : f32 to vector<2x128xf32>
    %18 = arith.mulf %17, %16 : vector<2x128xf32>
    %19 = math.exp %18 : vector<2x128xf32>
    %c0_12 = arith.constant 0 : index
    %c0_13 = arith.constant 0 : index
    %20 = vector.load %arg2[%c0_12, %c0_13] : memref<2x128xf32, #tpu.memory_space<vmem>>, vector<2x128xf32>
    %21 = arith.mulf %20, %19 : vector<2x128xf32>
    %22 = arith.addf %15, %21 : vector<2x128xf32>
    %23 = arith.truncf %22 : vector<2x128xf32> to vector<2x128xbf16>
    %c0_14 = arith.constant 0 : index
    %c0_15 = arith.constant 0 : index
    %24 = vector.load %arg7[%c0_14, %c0_15] : memref<128x128xbf16, #tpu.memory_space<vmem>>, vector<128x128xbf16>
    %cst_16 = arith.constant dense<0.000000e+00> : vector<2x128xf32>
    %25 = tpu.matmul %23, %24, %cst_16 {dimension_numbers = #tpu.dot_dimension_numbers<[1], [0], [0], [1], [0, 0, 1, 1], [], []>} : vector<2x128xbf16>, vector<128x128xbf16>, vector<2x128xf32> -> vector<2x128xf32>
    %c0_17 = arith.constant 0 : index
    %c0_18 = arith.constant 0 : index
    %26 = vector.load %arg8[%c0_17, %c0_18] : memref<1x128xf32, #tpu.memory_space<vmem>>, vector<1x128xf32>
    %27 = vector.broadcast %26 : vector<1x128xf32> to vector<2x128xf32>
    %28 = arith.addf %25, %27 : vector<2x128xf32>
    %cst_19 = arith.constant 0.000000e+00 : f32
    %29 = vector.broadcast %cst_19 : f32 to vector<2x128xf32>
    %30 = arith.maximumf %28, %29 : vector<2x128xf32>
    %31 = arith.truncf %30 : vector<2x128xf32> to vector<2x128xbf16>
    %c0_20 = arith.constant 0 : index
    %c0_21 = arith.constant 0 : index
    %32 = vector.load %arg9[%c0_20, %c0_21] : memref<128x512xbf16, #tpu.memory_space<vmem>>, vector<128x512xbf16>
    %cst_22 = arith.constant dense<0.000000e+00> : vector<2x512xf32>
    %33 = tpu.matmul %31, %32, %cst_22 {dimension_numbers = #tpu.dot_dimension_numbers<[1], [0], [0], [1], [0, 0, 1, 1], [], []>} : vector<2x128xbf16>, vector<128x512xbf16>, vector<2x512xf32> -> vector<2x512xf32>
    %c0_23 = arith.constant 0 : index
    %c0_24 = arith.constant 0 : index
    %34 = vector.load %arg10[%c0_23, %c0_24] : memref<1x512xf32, #tpu.memory_space<vmem>>, vector<1x512xf32>
    %35 = vector.broadcast %34 : vector<1x512xf32> to vector<2x512xf32>
    %36 = arith.addf %33, %35 : vector<2x512xf32>
    %cst_25 = arith.constant 0.000000e+00 : f32
    %37 = vector.broadcast %cst_25 : f32 to vector<2x512xf32>
    %38 = arith.maximumf %36, %37 : vector<2x512xf32>
    %39 = arith.truncf %38 : vector<2x512xf32> to vector<2x512xbf16>
    %c0_26 = arith.constant 0 : index
    %c0_27 = arith.constant 0 : index
    %40 = vector.load %arg11[%c0_26, %c0_27] : memref<512x1024xbf16, #tpu.memory_space<vmem>>, vector<512x1024xbf16>
    %cst_28 = arith.constant dense<0.000000e+00> : vector<2x1024xf32>
    %41 = tpu.matmul %39, %40, %cst_28 {dimension_numbers = #tpu.dot_dimension_numbers<[1], [0], [0], [1], [0, 0, 1, 1], [], []>} : vector<2x512xbf16>, vector<512x1024xbf16>, vector<2x1024xf32> -> vector<2x1024xf32>
    %c0_29 = arith.constant 0 : index
    %c0_30 = arith.constant 0 : index
    %42 = vector.load %arg12[%c0_29, %c0_30] : memref<1x1024xf32, #tpu.memory_space<vmem>>, vector<1x1024xf32>
    %43 = vector.broadcast %42 : vector<1x1024xf32> to vector<2x1024xf32>
    %44 = arith.addf %41, %43 : vector<2x1024xf32>
    %45 = arith.negf %44 : vector<2x1024xf32>
    %46 = math.exp %45 : vector<2x1024xf32>
    %cst_31 = arith.constant 1.000000e+00 : f32
    %47 = vector.broadcast %cst_31 : f32 to vector<2x1024xf32>
    %48 = arith.addf %47, %46 : vector<2x1024xf32>
    %49 = arith.divf %47, %48 : vector<2x1024xf32>
    %50 = arith.truncf %49 : vector<2x1024xf32> to vector<2x1024xbf16>
    %c0_32 = arith.constant 0 : index
    %c0_33 = arith.constant 0 : index
    %51 = vector.load %arg13[%c0_32, %c0_33] : memref<2x1024xbf16, #tpu.memory_space<vmem>>, vector<2x1024xbf16>
    tpu.vector_store %arg13[%c0_32, %c0_33], %50 {strides = array<i32>} : memref<2x1024xbf16, #tpu.memory_space<vmem>>, vector<2x1024xbf16>,
    %c0_34 = arith.constant 0 : index
    %c0_35 = arith.constant 0 : index
    %52 = vector.load %arg14[%c0_34, %c0_35] : memref<2x256xf32, #tpu.memory_space<vmem>>, vector<2x256xf32>
    tpu.vector_store %arg14[%c0_34, %c0_35], %14 {strides = array<i32>} : memref<2x256xf32, #tpu.memory_space<vmem>>, vector<2x256xf32>,
    return
  }
  func.func @transform_0(%arg0: i32) -> (i32, i32) {
    %c0_i32 = arith.constant 0 : i32
    %c0_i32_0 = arith.constant 0 : i32
    return %arg0, %c0_i32 : i32, i32
  }
  func.func @transform_1(%arg0: i32) -> (i32, i32) {
    %c0_i32 = arith.constant 0 : i32
    %c0_i32_0 = arith.constant 0 : i32
    return %arg0, %c0_i32 : i32, i32
  }
  func.func @transform_2(%arg0: i32) -> (i32, i32) {
    %c0_i32 = arith.constant 0 : i32
    %c0_i32_0 = arith.constant 0 : i32
    %c0_i32_1 = arith.constant 0 : i32
    return %c0_i32, %c0_i32_0 : i32, i32
  }
  func.func @transform_3(%arg0: i32) -> (i32, i32) {
    %c0_i32 = arith.constant 0 : i32
    %c0_i32_0 = arith.constant 0 : i32
    %c0_i32_1 = arith.constant 0 : i32
    return %c0_i32, %c0_i32_0 : i32, i32
  }
  func.func @transform_4(%arg0: i32) -> (i32, i32) {
    %c0_i32 = arith.constant 0 : i32
    %c0_i32_0 = arith.constant 0 : i32
    %c0_i32_1 = arith.constant 0 : i32
    return %c0_i32, %c0_i32_0 : i32, i32
  }
  func.func @transform_5(%arg0: i32) -> (i32, i32) {
    %c0_i32 = arith.constant 0 : i32
    %c0_i32_0 = arith.constant 0 : i32
    %c0_i32_1 = arith.constant 0 : i32
    return %c0_i32, %c0_i32_0 : i32, i32
  }
  func.func @transform_6(%arg0: i32) -> (i32, i32) {
    %c0_i32 = arith.constant 0 : i32
    %c0_i32_0 = arith.constant 0 : i32
    %c0_i32_1 = arith.constant 0 : i32
    return %c0_i32, %c0_i32_0 : i32, i32
  }
  func.func @transform_7(%arg0: i32) -> (i32, i32) {
    %c0_i32 = arith.constant 0 : i32
    %c0_i32_0 = arith.constant 0 : i32
    %c0_i32_1 = arith.constant 0 : i32
    return %c0_i32, %c0_i32_0 : i32, i32
  }
  func.func @transform_8(%arg0: i32) -> (i32, i32) {
    %c0_i32 = arith.constant 0 : i32
    %c0_i32_0 = arith.constant 0 : i32
    %c0_i32_1 = arith.constant 0 : i32
    return %c0_i32, %c0_i32_0 : i32, i32
  }
  func.func @transform_9(%arg0: i32) -> (i32, i32) {
    %c0_i32 = arith.constant 0 : i32
    %c0_i32_0 = arith.constant 0 : i32
    %c0_i32_1 = arith.constant 0 : i32
    return %c0_i32, %c0_i32_0 : i32, i32
  }
  func.func @transform_10(%arg0: i32) -> (i32, i32) {
    %c0_i32 = arith.constant 0 : i32
    %c0_i32_0 = arith.constant 0 : i32
    %c0_i32_1 = arith.constant 0 : i32
    return %c0_i32, %c0_i32_0 : i32, i32
  }
  func.func @transform_11(%arg0: i32) -> (i32, i32) {
    %c0_i32 = arith.constant 0 : i32
    %c0_i32_0 = arith.constant 0 : i32
    %c0_i32_1 = arith.constant 0 : i32
    return %c0_i32, %c0_i32_0 : i32, i32
  }
  func.func @transform_12(%arg0: i32) -> (i32, i32) {
    %c0_i32 = arith.constant 0 : i32
    %c0_i32_0 = arith.constant 0 : i32
    return %arg0, %c0_i32 : i32, i32
  }
  func.func @transform_13(%arg0: i32) -> (i32, i32) {
    %c0_i32 = arith.constant 0 : i32
    %c0_i32_0 = arith.constant 0 : i32
    return %arg0, %c0_i32 : i32, i32
  }
}

</mosaic_0001>

<llo_original>
// kernel: vae_mlp_forward.1
$region0: #{vae_mlp_forward.1}
  #allocation0 [shape = 'u32[]', space=smem, size = 0x4, offset = 0x4, fixed_abs, tag = 'smem constant byte address 0x4 - core index']
  #allocation1 [shape = 'u32[144,128]{1,0:T(1,128)}', space=vmem, size = 0x12000, scoped, tag = 'internal scratch']
  %s0 = inlined_call_operand.vmem [shape: f32[2,1024], index: 0, kind: input, shape index: {}]
  %s1 = inlined_call_operand.vmem [shape: f32[2,128], index: 1, kind: input, shape index: {}]
  %s2 = inlined_call_operand.hbm [shape: bf16[1024,512], index: 2, kind: input, shape index: {}]
  %s3 = inlined_call_operand.vmem [shape: f32[1,512], index: 3, kind: input, shape index: {}]
  %s4 = inlined_call_operand.hbm [shape: bf16[512,256], index: 4, kind: input, shape index: {}]
  %s5 = inlined_call_operand.vmem [shape: f32[1,256], index: 5, kind: input, shape index: {}]
  %s6 = inlined_call_operand.vmem [shape: bf16[128,128], index: 6, kind: input, shape index: {}]
  %s7 = inlined_call_operand.vmem [shape: f32[1,128], index: 7, kind: input, shape index: {}]
  %s8 = inlined_call_operand.hbm [shape: bf16[128,512], index: 8, kind: input, shape index: {}]
  %s9 = inlined_call_operand.vmem [shape: f32[1,512], index: 9, kind: input, shape index: {}]
  %s10 = inlined_call_operand.hbm [shape: bf16[512,1024], index: 10, kind: input, shape index: {}]
  %s11 = inlined_call_operand.vmem [shape: f32[1,1024], index: 11, kind: input, shape index: {}]
  %s12 = inlined_call_operand.vmem [shape: bf16[2,1024], index: 12, kind: output, shape index: {0}]
  %s13 = inlined_call_operand.vmem [shape: f32[2,256], index: 13, kind: output, shape index: {1}]
  %14 = xla_tuple %s12, %s13
  %s15 = sld [smem:[#allocation0]]
  $region82: #{vae_mlp_forward.1} parent=0
    _
  %s17 = ssub.s32 1, %s15
  %s18 = scalar_select 0, %s17, %s15
  $region1: #{vae_mlp_forward.1} parent=0
    #allocation2 [shape = 'u8[1048576]{0}', space=vmem, size = 0x100000, scoped, tag = 'input window, operand 2, single buffered']
    #allocation3 [shape = 's32[1]{0}', space=sflag, size = 0x4, scoped, tag = 'scoped memory for vae_mlp_forward.1']
    #allocation4 [shape = 'u8[262144]{0}', space=vmem, size = 0x40000, scoped, tag = 'input window, operand 4, single buffered']
    #allocation5 [shape = 's32[1]{0}', space=sflag, size = 0x4, scoped, tag = 'scoped memory for vae_mlp_forward.1']
    #allocation6 [shape = 'u8[131072]{0}', space=vmem, size = 0x20000, scoped, tag = 'input window, operand 8, single buffered']
    #allocation7 [shape = 'u8[1048576]{0}', space=vmem, size = 0x100000, scoped, tag = 'input window, operand 10, single buffered']
    #allocation8 [shape = 's32[1]{0}', space=sflag, size = 0x4, scoped, tag = 'scoped memory for vae_mlp_forward.1']
    %19 = vsyncpa [#allocation3], 0
    %20 = vsyncpa [#allocation5], 0
    %21 = vsyncpa [#allocation8], 0
    // Predicated region
    $region2: #{vae_mlp_forward.1} parent=1 // pred_check
      _
    $region3: #{vae_mlp_forward.1} parent=1 // pred_check_branch
      %23 = sbr.rel (0) target = $region5
    $region4: #{vae_mlp_forward.1} parent=1 // pred_region
      _
    $region5: #{vae_mlp_forward.1} parent=1 // pred_fallthru
      _
    // Predicated region
    $region6: #{vae_mlp_forward.1} parent=1 // pred_check
      _
    $region7: #{vae_mlp_forward.1} parent=1 // pred_check_branch
      %25 = sbr.rel (0) target = $region9
    $region8: #{vae_mlp_forward.1} parent=1 // pred_region
      _
    $region9: #{vae_mlp_forward.1} parent=1 // pred_fallthru
      _
    // Predicated region
    $region10: #{vae_mlp_forward.1} parent=1 // pred_check
      _
    $region11: #{vae_mlp_forward.1} parent=1 // pred_check_branch
      %27 = sbr.rel (0) target = $region13
    $region12: #{vae_mlp_forward.1} parent=1 // pred_region
      %s29 = ssub.s32 32768, 32768
      %30 = vsyncadd [#allocation3], %s29
      %s31 = sshll.u32 [#allocation2], 4
      %s32 = int_to_ptr.vmem [resolvable:$true] %s31
      %37 = dma.hbm_to_vmem [thread:$0]  %s2, 32768, %s32, [#allocation3], 256, 256, 16
    $region13: #{vae_mlp_forward.1} parent=1 // pred_fallthru
      _
    // Predicated region
    $region14: #{vae_mlp_forward.1} parent=1 // pred_check
      _
    $region15: #{vae_mlp_forward.1} parent=1 // pred_check_branch
      %39 = sbr.rel (0) target = $region17
    $region16: #{vae_mlp_forward.1} parent=1 // pred_region
      _
    $region17: #{vae_mlp_forward.1} parent=1 // pred_fallthru
      _
    // Predicated region
    $region18: #{vae_mlp_forward.1} parent=1 // pred_check
      _
    $region19: #{vae_mlp_forward.1} parent=1 // pred_check_branch
      %41 = sbr.rel (0) target = $region21
    $region20: #{vae_mlp_forward.1} parent=1 // pred_region
      %s43 = ssub.s32 8192, 8192
      %44 = vsyncadd [#allocation5], %s43
      %s45 = sshll.u32 [#allocation4], 4
      %s46 = int_to_ptr.vmem [resolvable:$true] %s45
      %51 = dma.hbm_to_vmem [thread:$0]  %s4, 8192, %s46, [#allocation5], 128, 128, 8
    $region21: #{vae_mlp_forward.1} parent=1 // pred_fallthru
      _
    // Predicated region
    $region22: #{vae_mlp_forward.1} parent=1 // pred_check
      _
    $region23: #{vae_mlp_forward.1} parent=1 // pred_check_branch
      %53 = sbr.rel (0) target = $region25
    $region24: #{vae_mlp_forward.1} parent=1 // pred_region
      _
    $region25: #{vae_mlp_forward.1} parent=1 // pred_fallthru
      _
    // Predicated region
    $region26: #{vae_mlp_forward.1} parent=1 // pred_check
      _
    $region27: #{vae_mlp_forward.1} parent=1 // pred_check_branch
      %55 = sbr.rel (0) target = $region29
    $region28: #{vae_mlp_forward.1} parent=1 // pred_region
      _
    $region29: #{vae_mlp_forward.1} parent=1 // pred_fallthru
      _
    // Predicated region
    $region30: #{vae_mlp_forward.1} parent=1 // pred_check
      _
    $region31: #{vae_mlp_forward.1} parent=1 // pred_check_branch
      %57 = sbr.rel (0) target = $region33
    $region32: #{vae_mlp_forward.1} parent=1 // pred_region
      _
    $region33: #{vae_mlp_forward.1} parent=1 // pred_fallthru
      _
    // Predicated region
    $region34: #{vae_mlp_forward.1} parent=1 // pred_check
      _
    $region35: #{vae_mlp_forward.1} parent=1 // pred_check_branch
      %59 = sbr.rel (0) target = $region37
    $region36: #{vae_mlp_forward.1} parent=1 // pred_region
      %s61 = ssub.s32 4096, 4096
      %62 = vsyncadd [#allocation5], %s61
      %s63 = sshll.u32 [#allocation6], 4
      %s64 = int_to_ptr.vmem [resolvable:$true] %s63
      %69 = dma.hbm_to_vmem [thread:$0]  %s8, 4096, %s64, [#allocation5], 256, 256, 16
    $region37: #{vae_mlp_forward.1} parent=1 // pred_fallthru
      _
    // Predicated region
    $region38: #{vae_mlp_forward.1} parent=1 // pred_check
      _
    $region39: #{vae_mlp_forward.1} parent=1 // pred_check_branch
      %71 = sbr.rel (0) target = $region41
    $region40: #{vae_mlp_forward.1} parent=1 // pred_region
      _
    $region41: #{vae_mlp_forward.1} parent=1 // pred_fallthru
      _
    // Predicated region
    $region42: #{vae_mlp_forward.1} parent=1 // pred_check
      _
    $region43: #{vae_mlp_forward.1} parent=1 // pred_check_branch
      %73 = sbr.rel (0) target = $region45
    $region44: #{vae_mlp_forward.1} parent=1 // pred_region
      %s75 = ssub.s32 32768, 32768
      %76 = vsyncadd [#allocation8], %s75
      %s77 = sshll.u32 [#allocation7], 4
      %s78 = int_to_ptr.vmem [resolvable:$true] %s77
      %83 = dma.hbm_to_vmem [thread:$0]  %s10, 32768, %s78, [#allocation8], 512, 512, 32
    $region45: #{vae_mlp_forward.1} parent=1 // pred_fallthru
      _
    // Predicated region
    $region46: #{vae_mlp_forward.1} parent=1 // pred_check
      _
    $region47: #{vae_mlp_forward.1} parent=1 // pred_check_branch
      %85 = sbr.rel (0) target = $region49
    $region48: #{vae_mlp_forward.1} parent=1 // pred_region
      _
    $region49: #{vae_mlp_forward.1} parent=1 // pred_fallthru
      _
    // Predicated region
    $region50: #{vae_mlp_forward.1} parent=1 // pred_check
      _
    $region51: #{vae_mlp_forward.1} parent=1 // pred_check_branch
      %87 = sbr.rel (0) target = $region53
    $region52: #{vae_mlp_forward.1} parent=1 // pred_region
      %88 = dma.done [#allocation3], 32768
    $region53: #{vae_mlp_forward.1} parent=1 // pred_fallthru
      _
    // Predicated region
    $region54: #{vae_mlp_forward.1} parent=1 // pred_check
      _
    $region55: #{vae_mlp_forward.1} parent=1 // pred_check_branch
      %90 = sbr.rel (0) target = $region57
    $region56: #{vae_mlp_forward.1} parent=1 // pred_region
      %91 = dma.done [#allocation5], 8192
    $region57: #{vae_mlp_forward.1} parent=1 // pred_fallthru
      _
    // Predicated region
    $region58: #{vae_mlp_forward.1} parent=1 // pred_check
      _
    $region59: #{vae_mlp_forward.1} parent=1 // pred_check_branch
      %93 = sbr.rel (0) target = $region61
    $region60: #{vae_mlp_forward.1} parent=1 // pred_region
      %94 = dma.done [#allocation5], 4096
    $region61: #{vae_mlp_forward.1} parent=1 // pred_fallthru
      _
    // Predicated region
    $region62: #{vae_mlp_forward.1} parent=1 // pred_check
      _
    $region63: #{vae_mlp_forward.1} parent=1 // pred_check_branch
      %96 = sbr.rel (0) target = $region65
    $region64: #{vae_mlp_forward.1} parent=1 // pred_region
      %97 = dma.done [#allocation8], 32768
    $region65: #{vae_mlp_forward.1} parent=1 // pred_fallthru
      _
    %v99 = vld [vmem:[%s0] sm:$0xff]
    %v100 = vld [vmem:[%s0 + $0x8] sm:$0xff]
    %v103 = vcombine.high %v99, %v99
    %v105 = vunpack.c.l.s4 1983009808
    %v106 = vunpack.c.0.s8 %v105
    %v107 = vlaneseq
    %v108 = vshrl.u32 %v107, 7
    %v109 = vsub.s32 %v106, %v108
    %v110 = vrot.slane %v99, %v109
    %v112 = vunpack.c.l.s4 1983009808
    %v113 = vunpack.c.0.s8 %v112
    %v114 = vlaneseq
    %v115 = vshrl.u32 %v114, 7
    %v116 = vsub.s32 %v113, %v115
    %v117 = vrot.slane %v103, %v116
    %v118 = vcombine.high %v110, %v110
    %v119 = vcombine.high %v117, %v117
    %v120 = vcombine.high %v100, %v100
    %v122 = vunpack.c.l.s4 1983009808
    %v123 = vunpack.c.0.s8 %v122
    %v124 = vlaneseq
    %v125 = vshrl.u32 %v124, 7
    %v126 = vsub.s32 %v123, %v125
    %v127 = vrot.slane %v100, %v126
    %v129 = vunpack.c.l.s4 1983009808
    %v130 = vunpack.c.0.s8 %v129
    %v131 = vlaneseq
    %v132 = vshrl.u32 %v131, 7
    %v133 = vsub.s32 %v130, %v132
    %v134 = vrot.slane %v120, %v133
    %v135 = vcombine.high %v127, %v127
    %v136 = vcombine.high %v134, %v134
    %v145 = vpack.c.bf16 %v110, %v110
    %v146 = vpack.c.bf16 %v118, %v118
    %v147 = vpack.c.bf16 %v117, %v117
    %v148 = vpack.c.bf16 %v119, %v119
    %v149 = vpack.c.bf16 %v127, %v127
    %v150 = vpack.c.bf16 %v135, %v135
    %v151 = vpack.c.bf16 %v134, %v134
    %v152 = vpack.c.bf16 %v136, %v136
    %v153 = vld [vmem:[#allocation2] sm:$0xff]
    %v154 = vld [vmem:[#allocation2 + $0x8] sm:$0xff]
    %v155 = vld [vmem:[#allocation2 + $0x10] sm:$0xff]
    %v156 = vld [vmem:[#allocation2 + $0x18] sm:$0xff]
    %v157 = vld [vmem:[#allocation2 + $0x20] sm:$0xff]
    %v158 = vld [vmem:[#allocation2 + $0x28] sm:$0xff]
    %v159 = vld [vmem:[#allocation2 + $0x30] sm:$0xff]
    %v160 = vld [vmem:[#allocation2 + $0x38] sm:$0xff]
    %v161 = vld [vmem:[#allocation2 + $0x40] sm:$0xff]
    %v162 = vld [vmem:[#allocation2 + $0x48] sm:$0xff]
    %v163 = vld [vmem:[#allocation2 + $0x50] sm:$0xff]
    %v164 = vld [vmem:[#allocation2 + $0x58] sm:$0xff]
    %v165 = vld [vmem:[#allocation2 + $0x60] sm:$0xff]
    %v166 = vld [vmem:[#allocation2 + $0x68] sm:$0xff]
    %v167 = vld [vmem:[#allocation2 + $0x70] sm:$0xff]
    %v168 = vld [vmem:[#allocation2 + $0x78] sm:$0xff]
    %v169 = vld [vmem:[#allocation2 + $0x80] sm:$0xff]
    %v170 = vld [vmem:[#allocation2 + $0x88] sm:$0xff]
    %v171 = vld [vmem:[#allocation2 + $0x90] sm:$0xff]
    %v172 = vld [vmem:[#allocation2 + $0x98] sm:$0xff]
    %v173 = vld [vmem:[#allocation2 + $0xa0] sm:$0xff]
    %v174 = vld [vmem:[#allocation2 + $0xa8] sm:$0xff]
    %v175 = vld [vmem:[#allocation2 + $0xb0] sm:$0xff]
    %v176 = vld [vmem:[#allocation2 + $0xb8] sm:$0xff]
    %v177 = vld [vmem:[#allocation2 + $0xc0] sm:$0xff]
    %v178 = vld [vmem:[#allocation2 + $0xc8] sm:$0xff]
    %v179 = vld [vmem:[#allocation2 + $0xd0] sm:$0xff]
    %v180 = vld [vmem:[#allocation2 + $0xd8] sm:$0xff]
    %v181 = vld [vmem:[#allocation2 + $0xe0] sm:$0xff]
    %v182 = vld [vmem:[#allocation2 + $0xe8] sm:$0xff]
    %v183 = vld [vmem:[#allocation2 + $0xf0] sm:$0xff]
    %v184 = vld [vmem:[#allocation2 + $0xf8] sm:$0xff]
    %v185 = vld [vmem:[#allocation2 + $0x100] sm:$0xff]
    %v186 = vld [vmem:[#allocation2 + $0x108] sm:$0xff]
    %v187 = vld [vmem:[#allocation2 + $0x110] sm:$0xff]
    %v188 = vld [vmem:[#allocation2 + $0x118] sm:$0xff]
    %v189 = vld [vmem:[#allocation2 + $0x120] sm:$0xff]
    %v190 = vld [vmem:[#allocation2 + $0x128] sm:$0xff]
    %v191 = vld [vmem:[#allocation2 + $0x130] sm:$0xff]
    %v192 = vld [vmem:[#allocation2 + $0x138] sm:$0xff]
    %v193 = vld [vmem:[#allocation2 + $0x140] sm:$0xff]
    %v194 = vld [vmem:[#allocation2 + $0x148] sm:$0xff]
    %v195 = vld [vmem:[#allocation2 + $0x150] sm:$0xff]
    %v196 = vld [vmem:[#allocation2 + $0x158] sm:$0xff]
    %v197 = vld [vmem:[#allocation2 + $0x160] sm:$0xff]
    %v198 = vld [vmem:[#allocation2 + $0x168] sm:$0xff]
    %v199 = vld [vmem:[#allocation2 + $0x170] sm:$0xff]
    %v200 = vld [vmem:[#allocation2 + $0x178] sm:$0xff]
    %v201 = vld [vmem:[#allocation2 + $0x180] sm:$0xff]
    %v202 = vld [vmem:[#allocation2 + $0x188] sm:$0xff]
    %v203 = vld [vmem:[#allocation2 + $0x190] sm:$0xff]
    %v204 = vld [vmem:[#allocation2 + $0x198] sm:$0xff]
    %v205 = vld [vmem:[#allocation2 + $0x1a0] sm:$0xff]
    %v206 = vld [vmem:[#allocation2 + $0x1a8] sm:$0xff]
    %v207 = vld [vmem:[#allocation2 + $0x1b0] sm:$0xff]
    %v208 = vld [vmem:[#allocation2 + $0x1b8] sm:$0xff]
    %v209 = vld [vmem:[#allocation2 + $0x1c0] sm:$0xff]
    %v210 = vld [vmem:[#allocation2 + $0x1c8] sm:$0xff]
    %v211 = vld [vmem:[#allocation2 + $0x1d0] sm:$0xff]
    %v212 = vld [vmem:[#allocation2 + $0x1d8] sm:$0xff]
    %v213 = vld [vmem:[#allocation2 + $0x1e0] sm:$0xff]
    %v214 = vld [vmem:[#allocation2 + $0x1e8] sm:$0xff]
    %v215 = vld [vmem:[#allocation2 + $0x1f0] sm:$0xff]
    %v216 = vld [vmem:[#allocation2 + $0x1f8] sm:$0xff]
    %v217 = vld [vmem:[#allocation2 + $0x200] sm:$0xff]
    %v218 = vld [vmem:[#allocation2 + $0x208] sm:$0xff]
    %v219 = vld [vmem:[#allocation2 + $0x210] sm:$0xff]
    %v220 = vld [vmem:[#allocation2 + $0x218] sm:$0xff]
    %v221 = vld [vmem:[#allocation2 + $0x220] sm:$0xff]
    %v222 = vld [vmem:[#allocation2 + $0x228] sm:$0xff]
    %v223 = vld [vmem:[#allocation2 + $0x230] sm:$0xff]
    %v224 = vld [vmem:[#allocation2 + $0x238] sm:$0xff]
    %v225 = vld [vmem:[#allocation2 + $0x240] sm:$0xff]
    %v226 = vld [vmem:[#allocation2 + $0x248] sm:$0xff]
    %v227 = vld [vmem:[#allocation2 + $0x250] sm:$0xff]
    %v228 = vld [vmem:[#allocation2 + $0x258] sm:$0xff]
    %v229 = vld [vmem:[#allocation2 + $0x260] sm:$0xff]
    %v230 = vld [vmem:[#allocation2 + $0x268] sm:$0xff]
    %v231 = vld [vmem:[#allocation2 + $0x270] sm:$0xff]
    %v232 = vld [vmem:[#allocation2 + $0x278] sm:$0xff]
    %v233 = vld [vmem:[#allocation2 + $0x280] sm:$0xff]
    %v234 = vld [vmem:[#allocation2 + $0x288] sm:$0xff]
    %v235 = vld [vmem:[#allocation2 + $0x290] sm:$0xff]
    %v236 = vld [vmem:[#allocation2 + $0x298] sm:$0xff]
    %v237 = vld [vmem:[#allocation2 + $0x2a0] sm:$0xff]
    %v238 = vld [vmem:[#allocation2 + $0x2a8] sm:$0xff]
    %v239 = vld [vmem:[#allocation2 + $0x2b0] sm:$0xff]
    %v240 = vld [vmem:[#allocation2 + $0x2b8] sm:$0xff]
    %v241 = vld [vmem:[#allocation2 + $0x2c0] sm:$0xff]
    %v242 = vld [vmem:[#allocation2 + $0x2c8] sm:$0xff]
    %v243 = vld [vmem:[#allocation2 + $0x2d0] sm:$0xff]
    %v244 = vld [vmem:[#allocation2 + $0x2d8] sm:$0xff]
    %v245 = vld [vmem:[#allocation2 + $0x2e0] sm:$0xff]
    %v246 = vld [vmem:[#allocation2 + $0x2e8] sm:$0xff]
    %v247 = vld [vmem:[#allocation2 + $0x2f0] sm:$0xff]
    %v248 = vld [vmem:[#allocation2 + $0x2f8] sm:$0xff]
    %v249 = vld [vmem:[#allocation2 + $0x300] sm:$0xff]
    %v250 = vld [vmem:[#allocation2 + $0x308] sm:$0xff]
    %v251 = vld [vmem:[#allocation2 + $0x310] sm:$0xff]
    %v252 = vld [vmem:[#allocation2 + $0x318] sm:$0xff]
    %v253 = vld [vmem:[#allocation2 + $0x320] sm:$0xff]
    %v254 = vld [vmem:[#allocation2 + $0x328] sm:$0xff]
    %v255 = vld [vmem:[#allocation2 + $0x330] sm:$0xff]
    %v256 = vld [vmem:[#allocation2 + $0x338] sm:$0xff]
    %v257 = vld [vmem:[#allocation2 + $0x340] sm:$0xff]
    %v258 = vld [vmem:[#allocation2 + $0x348] sm:$0xff]
    %v259 = vld [vmem:[#allocation2 + $0x350] sm:$0xff]
    %v260 = vld [vmem:[#allocation2 + $0x358] sm:$0xff]
    %v261 = vld [vmem:[#allocation2 + $0x360] sm:$0xff]
    %v262 = vld [vmem:[#allocation2 + $0x368] sm:$0xff]
    %v263 = vld [vmem:[#allocation2 + $0x370] sm:$0xff]
    %v264 = vld [vmem:[#allocation2 + $0x378] sm:$0xff]
    %v265 = vld [vmem:[#allocation2 + $0x380] sm:$0xff]
    %v266 = vld [vmem:[#allocation2 + $0x388] sm:$0xff]
    %v267 = vld [vmem:[#allocation2 + $0x390] sm:$0xff]
    %v268 = vld [vmem:[#allocation2 + $0x398] sm:$0xff]
    %v269 = vld [vmem:[#allocation2 + $0x3a0] sm:$0xff]
    %v270 = vld [vmem:[#allocation2 + $0x3a8] sm:$0xff]
    %v271 = vld [vmem:[#allocation2 + $0x3b0] sm:$0xff]
    %v272 = vld [vmem:[#allocation2 + $0x3b8] sm:$0xff]
    %v273 = vld [vmem:[#allocation2 + $0x3c0] sm:$0xff]
    %v274 = vld [vmem:[#allocation2 + $0x3c8] sm:$0xff]
    %v275 = vld [vmem:[#allocation2 + $0x3d0] sm:$0xff]
    %v276 = vld [vmem:[#allocation2 + $0x3d8] sm:$0xff]
    %v277 = vld [vmem:[#allocation2 + $0x3e0] sm:$0xff]
    %v278 = vld [vmem:[#allocation2 + $0x3e8] sm:$0xff]
    %v279 = vld [vmem:[#allocation2 + $0x3f0] sm:$0xff]
    %v280 = vld [vmem:[#allocation2 + $0x3f8] sm:$0xff]
    %v281 = vld [vmem:[#allocation2 + $0x400] sm:$0xff]
    %v282 = vld [vmem:[#allocation2 + $0x408] sm:$0xff]
    %v283 = vld [vmem:[#allocation2 + $0x410] sm:$0xff]
    %v284 = vld [vmem:[#allocation2 + $0x418] sm:$0xff]
    %v285 = vld [vmem:[#allocation2 + $0x420] sm:$0xff]
    %v286 = vld [vmem:[#allocation2 + $0x428] sm:$0xff]
    %v287 = vld [vmem:[#allocation2 + $0x430] sm:$0xff]
    %v288 = vld [vmem:[#allocation2 + $0x438] sm:$0xff]
    %v289 = vld [vmem:[#allocation2 + $0x440] sm:$0xff]
    %v290 = vld [vmem:[#allocation2 + $0x448] sm:$0xff]
    %v291 = vld [vmem:[#allocation2 + $0x450] sm:$0xff]
    %v292 = vld [vmem:[#allocation2 + $0x458] sm:$0xff]
    %v293 = vld [vmem:[#allocation2 + $0x460] sm:$0xff]
    %v294 = vld [vmem:[#allocation2 + $0x468] sm:$0xff]
    %v295 = vld [vmem:[#allocation2 + $0x470] sm:$0xff]
    %v296 = vld [vmem:[#allocation2 + $0x478] sm:$0xff]
    %v297 = vld [vmem:[#allocation2 + $0x480] sm:$0xff]
    %v298 = vld [vmem:[#allocation2 + $0x488] sm:$0xff]
    %v299 = vld [vmem:[#allocation2 + $0x490] sm:$0xff]
    %v300 = vld [vmem:[#allocation2 + $0x498] sm:$0xff]
    %v301 = vld [vmem:[#allocation2 + $0x4a0] sm:$0xff]
    %v302 = vld [vmem:[#allocation2 + $0x4a8] sm:$0xff]
    %v303 = vld [vmem:[#allocation2 + $0x4b0] sm:$0xff]
    %v304 = vld [vmem:[#allocation2 + $0x4b8] sm:$0xff]
    %v305 = vld [vmem:[#allocation2 + $0x4c0] sm:$0xff]
    %v306 = vld [vmem:[#allocation2 + $0x4c8] sm:$0xff]
    %v307 = vld [vmem:[#allocation2 + $0x4d0] sm:$0xff]
    %v308 = vld [vmem:[#allocation2 + $0x4d8] sm:$0xff]
    %v309 = vld [vmem:[#allocation2 + $0x4e0] sm:$0xff]
    %v310 = vld [vmem:[#allocation2 + $0x4e8] sm:$0xff]
    %v311 = vld [vmem:[#allocation2 + $0x4f0] sm:$0xff]
    %v312 = vld [vmem:[#allocation2 + $0x4f8] sm:$0xff]
    %v313 = vld [vmem:[#allocation2 + $0x500] sm:$0xff]
    %v314 = vld [vmem:[#allocation2 + $0x508] sm:$0xff]
    %v315 = vld [vmem:[#allocation2 + $0x510] sm:$0xff]
    %v316 = vld [vmem:[#allocation2 + $0x518] sm:$0xff]
    %v317 = vld [vmem:[#allocation2 + $0x520] sm:$0xff]
    %v318 = vld [vmem:[#allocation2 + $0x528] sm:$0xff]
    %v319 = vld [vmem:[#allocation2 + $0x530] sm:$0xff]
    %v320 = vld [vmem:[#allocation2 + $0x538] sm:$0xff]
    %v321 = vld [vmem:[#allocation2 + $0x540] sm:$0xff]
    %v322 = vld [vmem:[#allocation2 + $0x548] sm:$0xff]
    %v323 = vld [vmem:[#allocation2 + $0x550] sm:$0xff]
    %v324 = vld [vmem:[#allocation2 + $0x558] sm:$0xff]
    %v325 = vld [vmem:[#allocation2 + $0x560] sm:$0xff]
    %v326 = vld [vmem:[#allocation2 + $0x568] sm:$0xff]
    %v327 = vld [vmem:[#allocation2 + $0x570] sm:$0xff]
    %v328 = vld [vmem:[#allocation2 + $0x578] sm:$0xff]
    %v329 = vld [vmem:[#allocation2 + $0x580] sm:$0xff]
    %v330 = vld [vmem:[#allocation2 + $0x588] sm:$0xff]
    %v331 = vld [vmem:[#allocation2 + $0x590] sm:$0xff]
    %v332 = vld [vmem:[#allocation2 + $0x598] sm:$0xff]
    %v333 = vld [vmem:[#allocation2 + $0x5a0] sm:$0xff]
    %v334 = vld [vmem:[#allocation2 + $0x5a8] sm:$0xff]
    %v335 = vld [vmem:[#allocation2 + $0x5b0] sm:$0xff]
    %v336 = vld [vmem:[#allocation2 + $0x5b8] sm:$0xff]
    %v337 = vld [vmem:[#allocation2 + $0x5c0] sm:$0xff]
    %v338 = vld [vmem:[#allocation2 + $0x5c8] sm:$0xff]
    %v339 = vld [vmem:[#allocation2 + $0x5d0] sm:$0xff]
    %v340 = vld [vmem:[#allocation2 + $0x5d8] sm:$0xff]
    %v341 = vld [vmem:[#allocation2 + $0x5e0] sm:$0xff]
    %v342 = vld [vmem:[#allocation2 + $0x5e8] sm:$0xff]
    %v343 = vld [vmem:[#allocation2 + $0x5f0] sm:$0xff]
    %v344 = vld [vmem:[#allocation2 + $0x5f8] sm:$0xff]
    %v345 = vld [vmem:[#allocation2 + $0x600] sm:$0xff]
    %v346 = vld [vmem:[#allocation2 + $0x608] sm:$0xff]
    %v347 = vld [vmem:[#allocation2 + $0x610] sm:$0xff]
    %v348 = vld [vmem:[#allocation2 + $0x618] sm:$0xff]
    %v349 = vld [vmem:[#allocation2 + $0x620] sm:$0xff]
    %v350 = vld [vmem:[#allocation2 + $0x628] sm:$0xff]
    %v351 = vld [vmem:[#allocation2 + $0x630] sm:$0xff]
    %v352 = vld [vmem:[#allocation2 + $0x638] sm:$0xff]
    %v353 = vld [vmem:[#allocation2 + $0x640] sm:$0xff]
    %v354 = vld [vmem:[#allocation2 + $0x648] sm:$0xff]
    %v355 = vld [vmem:[#allocation2 + $0x650] sm:$0xff]
    %v356 = vld [vmem:[#allocation2 + $0x658] sm:$0xff]
    %v357 = vld [vmem:[#allocation2 + $0x660] sm:$0xff]
    %v358 = vld [vmem:[#allocation2 + $0x668] sm:$0xff]
    %v359 = vld [vmem:[#allocation2 + $0x670] sm:$0xff]
    %v360 = vld [vmem:[#allocation2 + $0x678] sm:$0xff]
    %v361 = vld [vmem:[#allocation2 + $0x680] sm:$0xff]
    %v362 = vld [vmem:[#allocation2 + $0x688] sm:$0xff]
    %v363 = vld [vmem:[#allocation2 + $0x690] sm:$0xff]
    %v364 = vld [vmem:[#allocation2 + $0x698] sm:$0xff]
    %v365 = vld [vmem:[#allocation2 + $0x6a0] sm:$0xff]
    %v366 = vld [vmem:[#allocation2 + $0x6a8] sm:$0xff]
    %v367 = vld [vmem:[#allocation2 + $0x6b0] sm:$0xff]
    %v368 = vld [vmem:[#allocation2 + $0x6b8] sm:$0xff]
    %v369 = vld [vmem:[#allocation2 + $0x6c0] sm:$0xff]
    %v370 = vld [vmem:[#allocation2 + $0x6c8] sm:$0xff]
    %v371 = vld [vmem:[#allocation2 + $0x6d0] sm:$0xff]
    %v372 = vld [vmem:[#allocation2 + $0x6d8] sm:$0xff]
    %v373 = vld [vmem:[#allocation2 + $0x6e0] sm:$0xff]
    %v374 = vld [vmem:[#allocation2 + $0x6e8] sm:$0xff]
    %v375 = vld [vmem:[#allocation2 + $0x6f0] sm:$0xff]
    %v376 = vld [vmem:[#allocation2 + $0x6f8] sm:$0xff]
    %v377 = vld [vmem:[#allocation2 + $0x700] sm:$0xff]
    %v378 = vld [vmem:[#allocation2 + $0x708] sm:$0xff]
    %v379 = vld [vmem:[#allocation2 + $0x710] sm:$0xff]
    %v380 = vld [vmem:[#allocation2 + $0x718] sm:$0xff]
    %v381 = vld [vmem:[#allocation2 + $0x720] sm:$0xff]
    %v382 = vld [vmem:[#allocation2 + $0x728] sm:$0xff]
    %v383 = vld [vmem:[#allocation2 + $0x730] sm:$0xff]
    %v384 = vld [vmem:[#allocation2 + $0x738] sm:$0xff]
    %v385 = vld [vmem:[#allocation2 + $0x740] sm:$0xff]
    %v386 = vld [vmem:[#allocation2 + $0x748] sm:$0xff]
    %v387 = vld [vmem:[#allocation2 + $0x750] sm:$0xff]
    %v388 = vld [vmem:[#allocation2 + $0x758] sm:$0xff]
    %v389 = vld [vmem:[#allocation2 + $0x760] sm:$0xff]
    %v390 = vld [vmem:[#allocation2 + $0x768] sm:$0xff]
    %v391 = vld [vmem:[#allocation2 + $0x770] sm:$0xff]
    %v392 = vld [vmem:[#allocation2 + $0x778] sm:$0xff]
    %v393 = vld [vmem:[#allocation2 + $0x780] sm:$0xff]
    %v394 = vld [vmem:[#allocation2 + $0x788] sm:$0xff]
    %v395 = vld [vmem:[#allocation2 + $0x790] sm:$0xff]
    %v396 = vld [vmem:[#allocation2 + $0x798] sm:$0xff]
    %v397 = vld [vmem:[#allocation2 + $0x7a0] sm:$0xff]
    %v398 = vld [vmem:[#allocation2 + $0x7a8] sm:$0xff]
    %v399 = vld [vmem:[#allocation2 + $0x7b0] sm:$0xff]
    %v400 = vld [vmem:[#allocation2 + $0x7b8] sm:$0xff]
    %v401 = vld [vmem:[#allocation2 + $0x7c0] sm:$0xff]
    %v402 = vld [vmem:[#allocation2 + $0x7c8] sm:$0xff]
    %v403 = vld [vmem:[#allocation2 + $0x7d0] sm:$0xff]
    %v404 = vld [vmem:[#allocation2 + $0x7d8] sm:$0xff]
    %v405 = vld [vmem:[#allocation2 + $0x7e0] sm:$0xff]
    %v406 = vld [vmem:[#allocation2 + $0x7e8] sm:$0xff]
    %v407 = vld [vmem:[#allocation2 + $0x7f0] sm:$0xff]
    %v408 = vld [vmem:[#allocation2 + $0x7f8] sm:$0xff]
    %v409 = vld [vmem:[%s3] sm:$0xf]
    %v411 = vlaneseq
    %v412 = vshrl.u32 %v411, 7
    %v413 = vsub.s32 0, %v412
    %v414 = vrot.slane %v409, %v413
    %v415 = vlaneseq
    %v416 = vshrl.u32 %v415, 7
    %v417 = vsub.s32 1, %v416
    %v418 = vrot.slane %v409, %v417
    %v419 = vlaneseq
    %v420 = vshrl.u32 %v419, 7
    %v421 = vsub.s32 2, %v420
    %v422 = vrot.slane %v409, %v421
    %v423 = vlaneseq
    %v424 = vshrl.u32 %v423, 7
    %v425 = vsub.s32 3, %v424
    %v426 = vrot.slane %v409, %v425
    %v687 = vunpack.c.l.b16 %v153
    %v688 = vunpack.c.h.b16 %v153
    %v689 = vunpack.c.l.b16 %v154
    %v690 = vunpack.c.h.b16 %v154
    %v691 = vunpack.c.l.b16 %v155
    %v692 = vunpack.c.h.b16 %v155
    %v693 = vunpack.c.l.b16 %v156
    %v694 = vunpack.c.h.b16 %v156
    %v695 = vunpack.c.l.b16 %v157
    %v696 = vunpack.c.h.b16 %v157
    %v697 = vunpack.c.l.b16 %v158
    %v698 = vunpack.c.h.b16 %v158
    %v699 = vunpack.c.l.b16 %v159
    %v700 = vunpack.c.h.b16 %v159
    %v701 = vunpack.c.l.b16 %v160
    %v702 = vunpack.c.h.b16 %v160
    %v703 = vunpack.c.l.b16 %v161
    %v704 = vunpack.c.h.b16 %v161
    %v705 = vunpack.c.l.b16 %v162
    %v706 = vunpack.c.h.b16 %v162
    %v707 = vunpack.c.l.b16 %v163
    %v708 = vunpack.c.h.b16 %v163
    %v709 = vunpack.c.l.b16 %v164
    %v710 = vunpack.c.h.b16 %v164
    %v711 = vunpack.c.l.b16 %v165
    %v712 = vunpack.c.h.b16 %v165
    %v713 = vunpack.c.l.b16 %v166
    %v714 = vunpack.c.h.b16 %v166
    %v715 = vunpack.c.l.b16 %v167
    %v716 = vunpack.c.h.b16 %v167
    %v717 = vunpack.c.l.b16 %v168
    %v718 = vunpack.c.h.b16 %v168
    %v719 = vunpack.c.l.b16 %v169
    %v720 = vunpack.c.h.b16 %v169
    %v721 = vunpack.c.l.b16 %v170
    %v722 = vunpack.c.h.b16 %v170
    %v723 = vunpack.c.l.b16 %v171
    %v724 = vunpack.c.h.b16 %v171
    %v725 = vunpack.c.l.b16 %v172
    %v726 = vunpack.c.h.b16 %v172
    %v727 = vunpack.c.l.b16 %v173
    %v728 = vunpack.c.h.b16 %v173
    %v729 = vunpack.c.l.b16 %v174
    %v730 = vunpack.c.h.b16 %v174
    %v731 = vunpack.c.l.b16 %v175
    %v732 = vunpack.c.h.b16 %v175
    %v733 = vunpack.c.l.b16 %v176
    %v734 = vunpack.c.h.b16 %v176
    %v735 = vunpack.c.l.b16 %v177
    %v736 = vunpack.c.h.b16 %v177
    %v737 = vunpack.c.l.b16 %v178
    %v738 = vunpack.c.h.b16 %v178
    %v739 = vunpack.c.l.b16 %v179
    %v740 = vunpack.c.h.b16 %v179
    %v741 = vunpack.c.l.b16 %v180
    %v742 = vunpack.c.h.b16 %v180
    %v743 = vunpack.c.l.b16 %v181
    %v744 = vunpack.c.h.b16 %v181
    %v745 = vunpack.c.l.b16 %v182
    %v746 = vunpack.c.h.b16 %v182
    %v747 = vunpack.c.l.b16 %v183
    %v748 = vunpack.c.h.b16 %v183
    %v749 = vunpack.c.l.b16 %v184
    %v750 = vunpack.c.h.b16 %v184
    %v751 = vunpack.c.l.b16 %v185
    %v752 = vunpack.c.h.b16 %v185
    %v753 = vunpack.c.l.b16 %v186
    %v754 = vunpack.c.h.b16 %v186
    %v755 = vunpack.c.l.b16 %v187
    %v756 = vunpack.c.h.b16 %v187
    %v757 = vunpack.c.l.b16 %v188
    %v758 = vunpack.c.h.b16 %v188
    %v759 = vunpack.c.l.b16 %v189
    %v760 = vunpack.c.h.b16 %v189
    %v761 = vunpack.c.l.b16 %v190
    %v762 = vunpack.c.h.b16 %v190
    %v763 = vunpack.c.l.b16 %v191
    %v764 = vunpack.c.h.b16 %v191
    %v765 = vunpack.c.l.b16 %v192
    %v766 = vunpack.c.h.b16 %v192
    %v767 = vunpack.c.l.b16 %v193
    %v768 = vunpack.c.h.b16 %v193
    %v769 = vunpack.c.l.b16 %v194
    %v770 = vunpack.c.h.b16 %v194
    %v771 = vunpack.c.l.b16 %v195
    %v772 = vunpack.c.h.b16 %v195
    %v773 = vunpack.c.l.b16 %v196
    %v774 = vunpack.c.h.b16 %v196
    %v775 = vunpack.c.l.b16 %v197
    %v776 = vunpack.c.h.b16 %v197
    %v777 = vunpack.c.l.b16 %v198
    %v778 = vunpack.c.h.b16 %v198
    %v779 = vunpack.c.l.b16 %v199
    %v780 = vunpack.c.h.b16 %v199
    %v781 = vunpack.c.l.b16 %v200
    %v782 = vunpack.c.h.b16 %v200
    %v783 = vunpack.c.l.b16 %v201
    %v784 = vunpack.c.h.b16 %v201
    %v785 = vunpack.c.l.b16 %v202
    %v786 = vunpack.c.h.b16 %v202
    %v787 = vunpack.c.l.b16 %v203
    %v788 = vunpack.c.h.b16 %v203
    %v789 = vunpack.c.l.b16 %v204
    %v790 = vunpack.c.h.b16 %v204
    %v791 = vunpack.c.l.b16 %v205
    %v792 = vunpack.c.h.b16 %v205
    %v793 = vunpack.c.l.b16 %v206
    %v794 = vunpack.c.h.b16 %v206
    %v795 = vunpack.c.l.b16 %v207
    %v796 = vunpack.c.h.b16 %v207
    %v797 = vunpack.c.l.b16 %v208
    %v798 = vunpack.c.h.b16 %v208
    %v799 = vunpack.c.l.b16 %v209
    %v800 = vunpack.c.h.b16 %v209
    %v801 = vunpack.c.l.b16 %v210
    %v802 = vunpack.c.h.b16 %v210
    %v803 = vunpack.c.l.b16 %v211
    %v804 = vunpack.c.h.b16 %v211
    %v805 = vunpack.c.l.b16 %v212
    %v806 = vunpack.c.h.b16 %v212
    %v807 = vunpack.c.l.b16 %v213
    %v808 = vunpack.c.h.b16 %v213
    %v809 = vunpack.c.l.b16 %v214
    %v810 = vunpack.c.h.b16 %v214
    %v811 = vunpack.c.l.b16 %v215
    %v812 = vunpack.c.h.b16 %v215
    %v813 = vunpack.c.l.b16 %v216
    %v814 = vunpack.c.h.b16 %v216
    %v815 = vunpack.c.l.b16 %v217
    %v816 = vunpack.c.h.b16 %v217
    %v817 = vunpack.c.l.b16 %v218
    %v818 = vunpack.c.h.b16 %v218
    %v819 = vunpack.c.l.b16 %v219
    %v820 = vunpack.c.h.b16 %v219
    %v821 = vunpack.c.l.b16 %v220
    %v822 = vunpack.c.h.b16 %v220
    %v823 = vunpack.c.l.b16 %v221
    %v824 = vunpack.c.h.b16 %v221
    %v825 = vunpack.c.l.b16 %v222
    %v826 = vunpack.c.h.b16 %v222
    %v827 = vunpack.c.l.b16 %v223
    %v828 = vunpack.c.h.b16 %v223
    %v829 = vunpack.c.l.b16 %v224
    %v830 = vunpack.c.h.b16 %v224
    %v831 = vunpack.c.l.b16 %v225
    %v832 = vunpack.c.h.b16 %v225
    %v833 = vunpack.c.l.b16 %v226
    %v834 = vunpack.c.h.b16 %v226
    %v835 = vunpack.c.l.b16 %v227
    %v836 = vunpack.c.h.b16 %v227
    %v837 = vunpack.c.l.b16 %v228
    %v838 = vunpack.c.h.b16 %v228
    %v839 = vunpack.c.l.b16 %v229
    %v840 = vunpack.c.h.b16 %v229
    %v841 = vunpack.c.l.b16 %v230
    %v842 = vunpack.c.h.b16 %v230
    %v843 = vunpack.c.l.b16 %v231
    %v844 = vunpack.c.h.b16 %v231
    %v845 = vunpack.c.l.b16 %v232
    %v846 = vunpack.c.h.b16 %v232
    %v847 = vunpack.c.l.b16 %v233
    %v848 = vunpack.c.h.b16 %v233
    %v849 = vunpack.c.l.b16 %v234
    %v850 = vunpack.c.h.b16 %v234
    %v851 = vunpack.c.l.b16 %v235
    %v852 = vunpack.c.h.b16 %v235
    %v853 = vunpack.c.l.b16 %v236
    %v854 = vunpack.c.h.b16 %v236
    %v855 = vunpack.c.l.b16 %v237
    %v856 = vunpack.c.h.b16 %v237
    %v857 = vunpack.c.l.b16 %v238
    %v858 = vunpack.c.h.b16 %v238
    %v859 = vunpack.c.l.b16 %v239
    %v860 = vunpack.c.h.b16 %v239
    %v861 = vunpack.c.l.b16 %v240
    %v862 = vunpack.c.h.b16 %v240
    %v863 = vunpack.c.l.b16 %v241
    %v864 = vunpack.c.h.b16 %v241
    %v865 = vunpack.c.l.b16 %v242
    %v866 = vunpack.c.h.b16 %v242
    %v867 = vunpack.c.l.b16 %v243
    %v868 = vunpack.c.h.b16 %v243
    %v869 = vunpack.c.l.b16 %v244
    %v870 = vunpack.c.h.b16 %v244
    %v871 = vunpack.c.l.b16 %v245
    %v872 = vunpack.c.h.b16 %v245
    %v873 = vunpack.c.l.b16 %v246
    %v874 = vunpack.c.h.b16 %v246
    %v875 = vunpack.c.l.b16 %v247
    %v876 = vunpack.c.h.b16 %v247
    %v877 = vunpack.c.l.b16 %v248
    %v878 = vunpack.c.h.b16 %v248
    %v879 = vunpack.c.l.b16 %v249
    %v880 = vunpack.c.h.b16 %v249
    %v881 = vunpack.c.l.b16 %v250
    %v882 = vunpack.c.h.b16 %v250
    %v883 = vunpack.c.l.b16 %v251
    %v884 = vunpack.c.h.b16 %v251
    %v885 = vunpack.c.l.b16 %v252
    %v886 = vunpack.c.h.b16 %v252
    %v887 = vunpack.c.l.b16 %v253
    %v888 = vunpack.c.h.b16 %v253
    %v889 = vunpack.c.l.b16 %v254
    %v890 = vunpack.c.h.b16 %v254
    %v891 = vunpack.c.l.b16 %v255
    %v892 = vunpack.c.h.b16 %v255
    %v893 = vunpack.c.l.b16 %v256
    %v894 = vunpack.c.h.b16 %v256
    %v895 = vunpack.c.l.b16 %v257
    %v896 = vunpack.c.h.b16 %v257
    %v897 = vunpack.c.l.b16 %v258
    %v898 = vunpack.c.h.b16 %v258
    %v899 = vunpack.c.l.b16 %v259
    %v900 = vunpack.c.h.b16 %v259
    %v901 = vunpack.c.l.b16 %v260
    %v902 = vunpack.c.h.b16 %v260
    %v903 = vunpack.c.l.b16 %v261
    %v904 = vunpack.c.h.b16 %v261
    %v905 = vunpack.c.l.b16 %v262
    %v906 = vunpack.c.h.b16 %v262
    %v907 = vunpack.c.l.b16 %v263
    %v908 = vunpack.c.h.b16 %v263
    %v909 = vunpack.c.l.b16 %v264
    %v910 = vunpack.c.h.b16 %v264
    %v911 = vunpack.c.l.b16 %v265
    %v912 = vunpack.c.h.b16 %v265
    %v913 = vunpack.c.l.b16 %v266
    %v914 = vunpack.c.h.b16 %v266
    %v915 = vunpack.c.l.b16 %v267
    %v916 = vunpack.c.h.b16 %v267
    %v917 = vunpack.c.l.b16 %v268
    %v918 = vunpack.c.h.b16 %v268
    %v919 = vunpack.c.l.b16 %v269
    %v920 = vunpack.c.h.b16 %v269
    %v921 = vunpack.c.l.b16 %v270
    %v922 = vunpack.c.h.b16 %v270
    %v923 = vunpack.c.l.b16 %v271
    %v924 = vunpack.c.h.b16 %v271
    %v925 = vunpack.c.l.b16 %v272
    %v926 = vunpack.c.h.b16 %v272
    %v927 = vunpack.c.l.b16 %v273
    %v928 = vunpack.c.h.b16 %v273
    %v929 = vunpack.c.l.b16 %v274
    %v930 = vunpack.c.h.b16 %v274
    %v931 = vunpack.c.l.b16 %v275
    %v932 = vunpack.c.h.b16 %v275
    %v933 = vunpack.c.l.b16 %v276
    %v934 = vunpack.c.h.b16 %v276
    %v935 = vunpack.c.l.b16 %v277
    %v936 = vunpack.c.h.b16 %v277
    %v937 = vunpack.c.l.b16 %v278
    %v938 = vunpack.c.h.b16 %v278
    %v939 = vunpack.c.l.b16 %v279
    %v940 = vunpack.c.h.b16 %v279
    %v941 = vunpack.c.l.b16 %v280
    %v942 = vunpack.c.h.b16 %v280
    %v943 = vunpack.c.l.b16 %v281
    %v944 = vunpack.c.h.b16 %v281
    %v945 = vunpack.c.l.b16 %v282
    %v946 = vunpack.c.h.b16 %v282
    %v947 = vunpack.c.l.b16 %v283
    %v948 = vunpack.c.h.b16 %v283
    %v949 = vunpack.c.l.b16 %v284
    %v950 = vunpack.c.h.b16 %v284
    %v951 = vunpack.c.l.b16 %v285
    %v952 = vunpack.c.h.b16 %v285
    %v953 = vunpack.c.l.b16 %v286
    %v954 = vunpack.c.h.b16 %v286
    %v955 = vunpack.c.l.b16 %v287
    %v956 = vunpack.c.h.b16 %v287
    %v957 = vunpack.c.l.b16 %v288
    %v958 = vunpack.c.h.b16 %v288
    %v959 = vunpack.c.l.b16 %v289
    %v960 = vunpack.c.h.b16 %v289
    %v961 = vunpack.c.l.b16 %v290
    %v962 = vunpack.c.h.b16 %v290
    %v963 = vunpack.c.l.b16 %v291
    %v964 = vunpack.c.h.b16 %v291
    %v965 = vunpack.c.l.b16 %v292
    %v966 = vunpack.c.h.b16 %v292
    %v967 = vunpack.c.l.b16 %v293
    %v968 = vunpack.c.h.b16 %v293
    %v969 = vunpack.c.l.b16 %v294
    %v970 = vunpack.c.h.b16 %v294
    %v971 = vunpack.c.l.b16 %v295
    %v972 = vunpack.c.h.b16 %v295
    %v973 = vunpack.c.l.b16 %v296
    %v974 = vunpack.c.h.b16 %v296
    %v975 = vunpack.c.l.b16 %v297
    %v976 = vunpack.c.h.b16 %v297
    %v977 = vunpack.c.l.b16 %v298
    %v978 = vunpack.c.h.b16 %v298
    %v979 = vunpack.c.l.b16 %v299
    %v980 = vunpack.c.h.b16 %v299
    %v981 = vunpack.c.l.b16 %v300
    %v982 = vunpack.c.h.b16 %v300
    %v983 = vunpack.c.l.b16 %v301
    %v984 = vunpack.c.h.b16 %v301
    %v985 = vunpack.c.l.b16 %v302
    %v986 = vunpack.c.h.b16 %v302
    %v987 = vunpack.c.l.b16 %v303
    %v988 = vunpack.c.h.b16 %v303
    %v989 = vunpack.c.l.b16 %v304
    %v990 = vunpack.c.h.b16 %v304
    %v991 = vunpack.c.l.b16 %v305
    %v992 = vunpack.c.h.b16 %v305
    %v993 = vunpack.c.l.b16 %v306
    %v994 = vunpack.c.h.b16 %v306
    %v995 = vunpack.c.l.b16 %v307
    %v996 = vunpack.c.h.b16 %v307
    %v997 = vunpack.c.l.b16 %v308
    %v998 = vunpack.c.h.b16 %v308
    %v999 = vunpack.c.l.b16 %v309
    %v1000 = vunpack.c.h.b16 %v309
    %v1001 = vunpack.c.l.b16 %v310
    %v1002 = vunpack.c.h.b16 %v310
    %v1003 = vunpack.c.l.b16 %v311
    %v1004 = vunpack.c.h.b16 %v311
    %v1005 = vunpack.c.l.b16 %v312
    %v1006 = vunpack.c.h.b16 %v312
    %v1007 = vunpack.c.l.b16 %v313
    %v1008 = vunpack.c.h.b16 %v313
    %v1009 = vunpack.c.l.b16 %v314
    %v1010 = vunpack.c.h.b16 %v314
    %v1011 = vunpack.c.l.b16 %v315
    %v1012 = vunpack.c.h.b16 %v315
    %v1013 = vunpack.c.l.b16 %v316
    %v1014 = vunpack.c.h.b16 %v316
    %v1015 = vunpack.c.l.b16 %v317
    %v1016 = vunpack.c.h.b16 %v317
    %v1017 = vunpack.c.l.b16 %v318
    %v1018 = vunpack.c.h.b16 %v318
    %v1019 = vunpack.c.l.b16 %v319
    %v1020 = vunpack.c.h.b16 %v319
    %v1021 = vunpack.c.l.b16 %v320
    %v1022 = vunpack.c.h.b16 %v320
    %v1023 = vunpack.c.l.b16 %v321
    %v1024 = vunpack.c.h.b16 %v321
    %v1025 = vunpack.c.l.b16 %v322
    %v1026 = vunpack.c.h.b16 %v322
    %v1027 = vunpack.c.l.b16 %v323
    %v1028 = vunpack.c.h.b16 %v323
    %v1029 = vunpack.c.l.b16 %v324
    %v1030 = vunpack.c.h.b16 %v324
    %v1031 = vunpack.c.l.b16 %v325
    %v1032 = vunpack.c.h.b16 %v325
    %v1033 = vunpack.c.l.b16 %v326
    %v1034 = vunpack.c.h.b16 %v326
    %v1035 = vunpack.c.l.b16 %v327
    %v1036 = vunpack.c.h.b16 %v327
    %v1037 = vunpack.c.l.b16 %v328
    %v1038 = vunpack.c.h.b16 %v328
    %v1039 = vunpack.c.l.b16 %v329
    %v1040 = vunpack.c.h.b16 %v329
    %v1041 = vunpack.c.l.b16 %v330
    %v1042 = vunpack.c.h.b16 %v330
    %v1043 = vunpack.c.l.b16 %v331
    %v1044 = vunpack.c.h.b16 %v331
    %v1045 = vunpack.c.l.b16 %v332
    %v1046 = vunpack.c.h.b16 %v332
    %v1047 = vunpack.c.l.b16 %v333
    %v1048 = vunpack.c.h.b16 %v333
    %v1049 = vunpack.c.l.b16 %v334
    %v1050 = vunpack.c.h.b16 %v334
    %v1051 = vunpack.c.l.b16 %v335
    %v1052 = vunpack.c.h.b16 %v335
    %v1053 = vunpack.c.l.b16 %v336
    %v1054 = vunpack.c.h.b16 %v336
    %v1055 = vunpack.c.l.b16 %v337
    %v1056 = vunpack.c.h.b16 %v337
    %v1057 = vunpack.c.l.b16 %v338
    %v1058 = vunpack.c.h.b16 %v338
    %v1059 = vunpack.c.l.b16 %v339
    %v1060 = vunpack.c.h.b16 %v339
    %v1061 = vunpack.c.l.b16 %v340
    %v1062 = vunpack.c.h.b16 %v340
    %v1063 = vunpack.c.l.b16 %v341
    %v1064 = vunpack.c.h.b16 %v341
    %v1065 = vunpack.c.l.b16 %v342
    %v1066 = vunpack.c.h.b16 %v342
    %v1067 = vunpack.c.l.b16 %v343
    %v1068 = vunpack.c.h.b16 %v343
    %v1069 = vunpack.c.l.b16 %v344
    %v1070 = vunpack.c.h.b16 %v344
    %v1071 = vunpack.c.l.b16 %v345
    %v1072 = vunpack.c.h.b16 %v345
    %v1073 = vunpack.c.l.b16 %v346
    %v1074 = vunpack.c.h.b16 %v346
    %v1075 = vunpack.c.l.b16 %v347
    %v1076 = vunpack.c.h.b16 %v347
    %v1077 = vunpack.c.l.b16 %v348
    %v1078 = vunpack.c.h.b16 %v348
    %v1079 = vunpack.c.l.b16 %v349
    %v1080 = vunpack.c.h.b16 %v349
    %v1081 = vunpack.c.l.b16 %v350
    %v1082 = vunpack.c.h.b16 %v350
    %v1083 = vunpack.c.l.b16 %v351
    %v1084 = vunpack.c.h.b16 %v351
    %v1085 = vunpack.c.l.b16 %v352
    %v1086 = vunpack.c.h.b16 %v352
    %v1087 = vunpack.c.l.b16 %v353
    %v1088 = vunpack.c.h.b16 %v353
    %v1089 = vunpack.c.l.b16 %v354
    %v1090 = vunpack.c.h.b16 %v354
    %v1091 = vunpack.c.l.b16 %v355
    %v1092 = vunpack.c.h.b16 %v355
    %v1093 = vunpack.c.l.b16 %v356
    %v1094 = vunpack.c.h.b16 %v356
    %v1095 = vunpack.c.l.b16 %v357
    %v1096 = vunpack.c.h.b16 %v357
    %v1097 = vunpack.c.l.b16 %v358
    %v1098 = vunpack.c.h.b16 %v358
    %v1099 = vunpack.c.l.b16 %v359
    %v1100 = vunpack.c.h.b16 %v359
    %v1101 = vunpack.c.l.b16 %v360
    %v1102 = vunpack.c.h.b16 %v360
    %v1103 = vunpack.c.l.b16 %v361
    %v1104 = vunpack.c.h.b16 %v361
    %v1105 = vunpack.c.l.b16 %v362
    %v1106 = vunpack.c.h.b16 %v362
    %v1107 = vunpack.c.l.b16 %v363
    %v1108 = vunpack.c.h.b16 %v363
    %v1109 = vunpack.c.l.b16 %v364
    %v1110 = vunpack.c.h.b16 %v364
    %v1111 = vunpack.c.l.b16 %v365
    %v1112 = vunpack.c.h.b16 %v365
    %v1113 = vunpack.c.l.b16 %v366
    %v1114 = vunpack.c.h.b16 %v366
    %v1115 = vunpack.c.l.b16 %v367
    %v1116 = vunpack.c.h.b16 %v367
    %v1117 = vunpack.c.l.b16 %v368
    %v1118 = vunpack.c.h.b16 %v368
    %v1119 = vunpack.c.l.b16 %v369
    %v1120 = vunpack.c.h.b16 %v369
    %v1121 = vunpack.c.l.b16 %v370
    %v1122 = vunpack.c.h.b16 %v370
    %v1123 = vunpack.c.l.b16 %v371
    %v1124 = vunpack.c.h.b16 %v371
    %v1125 = vunpack.c.l.b16 %v372
    %v1126 = vunpack.c.h.b16 %v372
    %v1127 = vunpack.c.l.b16 %v373
    %v1128 = vunpack.c.h.b16 %v373
    %v1129 = vunpack.c.l.b16 %v374
    %v1130 = vunpack.c.h.b16 %v374
    %v1131 = vunpack.c.l.b16 %v375
    %v1132 = vunpack.c.h.b16 %v375
    %v1133 = vunpack.c.l.b16 %v376
    %v1134 = vunpack.c.h.b16 %v376
    %v1135 = vunpack.c.l.b16 %v377
    %v1136 = vunpack.c.h.b16 %v377
    %v1137 = vunpack.c.l.b16 %v378
    %v1138 = vunpack.c.h.b16 %v378
    %v1139 = vunpack.c.l.b16 %v379
    %v1140 = vunpack.c.h.b16 %v379
    %v1141 = vunpack.c.l.b16 %v380
    %v1142 = vunpack.c.h.b16 %v380
    %v1143 = vunpack.c.l.b16 %v381
    %v1144 = vunpack.c.h.b16 %v381
    %v1145 = vunpack.c.l.b16 %v382
    %v1146 = vunpack.c.h.b16 %v382
    %v1147 = vunpack.c.l.b16 %v383
    %v1148 = vunpack.c.h.b16 %v383
    %v1149 = vunpack.c.l.b16 %v384
    %v1150 = vunpack.c.h.b16 %v384
    %v1151 = vunpack.c.l.b16 %v385
    %v1152 = vunpack.c.h.b16 %v385
    %v1153 = vunpack.c.l.b16 %v386
    %v1154 = vunpack.c.h.b16 %v386
    %v1155 = vunpack.c.l.b16 %v387
    %v1156 = vunpack.c.h.b16 %v387
    %v1157 = vunpack.c.l.b16 %v388
    %v1158 = vunpack.c.h.b16 %v388
    %v1159 = vunpack.c.l.b16 %v389
    %v1160 = vunpack.c.h.b16 %v389
    %v1161 = vunpack.c.l.b16 %v390
    %v1162 = vunpack.c.h.b16 %v390
    %v1163 = vunpack.c.l.b16 %v391
    %v1164 = vunpack.c.h.b16 %v391
    %v1165 = vunpack.c.l.b16 %v392
    %v1166 = vunpack.c.h.b16 %v392
    %v1167 = vunpack.c.l.b16 %v393
    %v1168 = vunpack.c.h.b16 %v393
    %v1169 = vunpack.c.l.b16 %v394
    %v1170 = vunpack.c.h.b16 %v394
    %v1171 = vunpack.c.l.b16 %v395
    %v1172 = vunpack.c.h.b16 %v395
    %v1173 = vunpack.c.l.b16 %v396
    %v1174 = vunpack.c.h.b16 %v396
    %v1175 = vunpack.c.l.b16 %v397
    %v1176 = vunpack.c.h.b16 %v397
    %v1177 = vunpack.c.l.b16 %v398
    %v1178 = vunpack.c.h.b16 %v398
    %v1179 = vunpack.c.l.b16 %v399
    %v1180 = vunpack.c.h.b16 %v399
    %v1181 = vunpack.c.l.b16 %v400
    %v1182 = vunpack.c.h.b16 %v400
    %v1183 = vunpack.c.l.b16 %v401
    %v1184 = vunpack.c.h.b16 %v401
    %v1185 = vunpack.c.l.b16 %v402
    %v1186 = vunpack.c.h.b16 %v402
    %v1187 = vunpack.c.l.b16 %v403
    %v1188 = vunpack.c.h.b16 %v403
    %v1189 = vunpack.c.l.b16 %v404
    %v1190 = vunpack.c.h.b16 %v404
    %v1191 = vunpack.c.l.b16 %v405
    %v1192 = vunpack.c.h.b16 %v405
    %v1193 = vunpack.c.l.b16 %v406
    %v1194 = vunpack.c.h.b16 %v406
    %v1195 = vunpack.c.l.b16 %v407
    %v1196 = vunpack.c.h.b16 %v407
    %v1197 = vunpack.c.l.b16 %v408
    %v1198 = vunpack.c.h.b16 %v408
    %v1199 = vpack.c.b16 %v691, %v687
    %v1200 = vpack.c.b16 %v692, %v688
    %v1201 = vpack.c.b16 %v693, %v689
    %v1202 = vpack.c.b16 %v694, %v690
    %v1203 = vpack.c.b16 %v699, %v695
    %v1204 = vpack.c.b16 %v700, %v696
    %v1205 = vpack.c.b16 %v701, %v697
    %v1206 = vpack.c.b16 %v702, %v698
    %v1207 = vpack.c.b16 %v707, %v703
    %v1208 = vpack.c.b16 %v708, %v704
    %v1209 = vpack.c.b16 %v709, %v705
    %v1210 = vpack.c.b16 %v710, %v706
    %v1211 = vpack.c.b16 %v715, %v711
    %v1212 = vpack.c.b16 %v716, %v712
    %v1213 = vpack.c.b16 %v717, %v713
    %v1214 = vpack.c.b16 %v718, %v714
    %v1215 = vpack.c.b16 %v723, %v719
    %v1216 = vpack.c.b16 %v724, %v720
    %v1217 = vpack.c.b16 %v725, %v721
    %v1218 = vpack.c.b16 %v726, %v722
    %v1219 = vpack.c.b16 %v731, %v727
    %v1220 = vpack.c.b16 %v732, %v728
    %v1221 = vpack.c.b16 %v733, %v729
    %v1222 = vpack.c.b16 %v734, %v730
    %v1223 = vpack.c.b16 %v739, %v735
    %v1224 = vpack.c.b16 %v740, %v736
    %v1225 = vpack.c.b16 %v741, %v737
    %v1226 = vpack.c.b16 %v742, %v738
    %v1227 = vpack.c.b16 %v747, %v743
    %v1228 = vpack.c.b16 %v748, %v744
    %v1229 = vpack.c.b16 %v749, %v745
    %v1230 = vpack.c.b16 %v750, %v746
    %v1231 = vpack.c.b16 %v755, %v751
    %v1232 = vpack.c.b16 %v756, %v752
    %v1233 = vpack.c.b16 %v757, %v753
    %v1234 = vpack.c.b16 %v758, %v754
    %v1235 = vpack.c.b16 %v763, %v759
    %v1236 = vpack.c.b16 %v764, %v760
    %v1237 = vpack.c.b16 %v765, %v761
    %v1238 = vpack.c.b16 %v766, %v762
    %v1239 = vpack.c.b16 %v771, %v767
    %v1240 = vpack.c.b16 %v772, %v768
    %v1241 = vpack.c.b16 %v773, %v769
    %v1242 = vpack.c.b16 %v774, %v770
    %v1243 = vpack.c.b16 %v779, %v775
    %v1244 = vpack.c.b16 %v780, %v776
    %v1245 = vpack.c.b16 %v781, %v777
    %v1246 = vpack.c.b16 %v782, %v778
    %v1247 = vpack.c.b16 %v787, %v783
    %v1248 = vpack.c.b16 %v788, %v784
    %v1249 = vpack.c.b16 %v789, %v785
    %v1250 = vpack.c.b16 %v790, %v786
    %v1251 = vpack.c.b16 %v795, %v791
    %v1252 = vpack.c.b16 %v796, %v792
    %v1253 = vpack.c.b16 %v797, %v793
    %v1254 = vpack.c.b16 %v798, %v794
    %v1255 = vpack.c.b16 %v803, %v799
    %v1256 = vpack.c.b16 %v804, %v800
    %v1257 = vpack.c.b16 %v805, %v801
    %v1258 = vpack.c.b16 %v806, %v802
    %v1259 = vpack.c.b16 %v811, %v807
    %v1260 = vpack.c.b16 %v812, %v808
    %v1261 = vpack.c.b16 %v813, %v809
    %v1262 = vpack.c.b16 %v814, %v810
    %v1263 = vpack.c.b16 %v819, %v815
    %v1264 = vpack.c.b16 %v820, %v816
    %v1265 = vpack.c.b16 %v821, %v817
    %v1266 = vpack.c.b16 %v822, %v818
    %v1267 = vpack.c.b16 %v827, %v823
    %v1268 = vpack.c.b16 %v828, %v824
    %v1269 = vpack.c.b16 %v829, %v825
    %v1270 = vpack.c.b16 %v830, %v826
    %v1271 = vpack.c.b16 %v835, %v831
    %v1272 = vpack.c.b16 %v836, %v832
    %v1273 = vpack.c.b16 %v837, %v833
    %v1274 = vpack.c.b16 %v838, %v834
    %v1275 = vpack.c.b16 %v843, %v839
    %v1276 = vpack.c.b16 %v844, %v840
    %v1277 = vpack.c.b16 %v845, %v841
    %v1278 = vpack.c.b16 %v846, %v842
    %v1279 = vpack.c.b16 %v851, %v847
    %v1280 = vpack.c.b16 %v852, %v848
    %v1281 = vpack.c.b16 %v853, %v849
    %v1282 = vpack.c.b16 %v854, %v850
    %v1283 = vpack.c.b16 %v859, %v855
    %v1284 = vpack.c.b16 %v860, %v856
    %v1285 = vpack.c.b16 %v861, %v857
    %v1286 = vpack.c.b16 %v862, %v858
    %v1287 = vpack.c.b16 %v867, %v863
    %v1288 = vpack.c.b16 %v868, %v864
    %v1289 = vpack.c.b16 %v869, %v865
    %v1290 = vpack.c.b16 %v870, %v866
    %v1291 = vpack.c.b16 %v875, %v871
    %v1292 = vpack.c.b16 %v876, %v872
    %v1293 = vpack.c.b16 %v877, %v873
    %v1294 = vpack.c.b16 %v878, %v874
    %v1295 = vpack.c.b16 %v883, %v879
    %v1296 = vpack.c.b16 %v884, %v880
    %v1297 = vpack.c.b16 %v885, %v881
    %v1298 = vpack.c.b16 %v886, %v882
    %v1299 = vpack.c.b16 %v891, %v887
    %v1300 = vpack.c.b16 %v892, %v888
    %v1301 = vpack.c.b16 %v893, %v889
    %v1302 = vpack.c.b16 %v894, %v890
    %v1303 = vpack.c.b16 %v899, %v895
    %v1304 = vpack.c.b16 %v900, %v896
    %v1305 = vpack.c.b16 %v901, %v897
    %v1306 = vpack.c.b16 %v902, %v898
    %v1307 = vpack.c.b16 %v907, %v903
    %v1308 = vpack.c.b16 %v908, %v904
    %v1309 = vpack.c.b16 %v909, %v905
    %v1310 = vpack.c.b16 %v910, %v906
    %v1311 = vpack.c.b16 %v915, %v911
    %v1312 = vpack.c.b16 %v916, %v912
    %v1313 = vpack.c.b16 %v917, %v913
    %v1314 = vpack.c.b16 %v918, %v914
    %v1315 = vpack.c.b16 %v923, %v919
    %v1316 = vpack.c.b16 %v924, %v920
    %v1317 = vpack.c.b16 %v925, %v921
    %v1318 = vpack.c.b16 %v926, %v922
    %v1319 = vpack.c.b16 %v931, %v927
    %v1320 = vpack.c.b16 %v932, %v928
    %v1321 = vpack.c.b16 %v933, %v929
    %v1322 = vpack.c.b16 %v934, %v930
    %v1323 = vpack.c.b16 %v939, %v935
    %v1324 = vpack.c.b16 %v940, %v936
    %v1325 = vpack.c.b16 %v941, %v937
    %v1326 = vpack.c.b16 %v942, %v938
    %v1327 = vpack.c.b16 %v947, %v943
    %v1328 = vpack.c.b16 %v948, %v944
    %v1329 = vpack.c.b16 %v949, %v945
    %v1330 = vpack.c.b16 %v950, %v946
    %v1331 = vpack.c.b16 %v955, %v951
    %v1332 = vpack.c.b16 %v956, %v952
    %v1333 = vpack.c.b16 %v957, %v953
    %v1334 = vpack.c.b16 %v958, %v954
    %v1335 = vpack.c.b16 %v963, %v959
    %v1336 = vpack.c.b16 %v964, %v960
    %v1337 = vpack.c.b16 %v965, %v961
    %v1338 = vpack.c.b16 %v966, %v962
    %v1339 = vpack.c.b16 %v971, %v967
    %v1340 = vpack.c.b16 %v972, %v968
    %v1341 = vpack.c.b16 %v973, %v969
    %v1342 = vpack.c.b16 %v974, %v970
    %v1343 = vpack.c.b16 %v979, %v975
    %v1344 = vpack.c.b16 %v980, %v976
    %v1345 = vpack.c.b16 %v981, %v977
    %v1346 = vpack.c.b16 %v982, %v978
    %v1347 = vpack.c.b16 %v987, %v983
    %v1348 = vpack.c.b16 %v988, %v984
    %v1349 = vpack.c.b16 %v989, %v985
    %v1350 = vpack.c.b16 %v990, %v986
    %v1351 = vpack.c.b16 %v995, %v991
    %v1352 = vpack.c.b16 %v996, %v992
    %v1353 = vpack.c.b16 %v997, %v993
    %v1354 = vpack.c.b16 %v998, %v994
    %v1355 = vpack.c.b16 %v1003, %v999
    %v1356 = vpack.c.b16 %v1004, %v1000
    %v1357 = vpack.c.b16 %v1005, %v1001
    %v1358 = vpack.c.b16 %v1006, %v1002
    %v1359 = vpack.c.b16 %v1011, %v1007
    %v1360 = vpack.c.b16 %v1012, %v1008
    %v1361 = vpack.c.b16 %v1013, %v1009
    %v1362 = vpack.c.b16 %v1014, %v1010
    %v1363 = vpack.c.b16 %v1019, %v1015
    %v1364 = vpack.c.b16 %v1020, %v1016
    %v1365 = vpack.c.b16 %v1021, %v1017
    %v1366 = vpack.c.b16 %v1022, %v1018
    %v1367 = vpack.c.b16 %v1027, %v1023
    %v1368 = vpack.c.b16 %v1028, %v1024
    %v1369 = vpack.c.b16 %v1029, %v1025
    %v1370 = vpack.c.b16 %v1030, %v1026
    %v1371 = vpack.c.b16 %v1035, %v1031
    %v1372 = vpack.c.b16 %v1036, %v1032
    %v1373 = vpack.c.b16 %v1037, %v1033
    %v1374 = vpack.c.b16 %v1038, %v1034
    %v1375 = vpack.c.b16 %v1043, %v1039
    %v1376 = vpack.c.b16 %v1044, %v1040
    %v1377 = vpack.c.b16 %v1045, %v1041
    %v1378 = vpack.c.b16 %v1046, %v1042
    %v1379 = vpack.c.b16 %v1051, %v1047
    %v1380 = vpack.c.b16 %v1052, %v1048
    %v1381 = vpack.c.b16 %v1053, %v1049
    %v1382 = vpack.c.b16 %v1054, %v1050
    %v1383 = vpack.c.b16 %v1059, %v1055
    %v1384 = vpack.c.b16 %v1060, %v1056
    %v1385 = vpack.c.b16 %v1061, %v1057
    %v1386 = vpack.c.b16 %v1062, %v1058
    %v1387 = vpack.c.b16 %v1067, %v1063
    %v1388 = vpack.c.b16 %v1068, %v1064
    %v1389 = vpack.c.b16 %v1069, %v1065
    %v1390 = vpack.c.b16 %v1070, %v1066
    %v1391 = vpack.c.b16 %v1075, %v1071
    %v1392 = vpack.c.b16 %v1076, %v1072
    %v1393 = vpack.c.b16 %v1077, %v1073
    %v1394 = vpack.c.b16 %v1078, %v1074
    %v1395 = vpack.c.b16 %v1083, %v1079
    %v1396 = vpack.c.b16 %v1084, %v1080
    %v1397 = vpack.c.b16 %v1085, %v1081
    %v1398 = vpack.c.b16 %v1086, %v1082
    %v1399 = vpack.c.b16 %v1091, %v1087
    %v1400 = vpack.c.b16 %v1092, %v1088
    %v1401 = vpack.c.b16 %v1093, %v1089
    %v1402 = vpack.c.b16 %v1094, %v1090
    %v1403 = vpack.c.b16 %v1099, %v1095
    %v1404 = vpack.c.b16 %v1100, %v1096
    %v1405 = vpack.c.b16 %v1101, %v1097
    %v1406 = vpack.c.b16 %v1102, %v1098
    %v1407 = vpack.c.b16 %v1107, %v1103
    %v1408 = vpack.c.b16 %v1108, %v1104
    %v1409 = vpack.c.b16 %v1109, %v1105
    %v1410 = vpack.c.b16 %v1110, %v1106
    %v1411 = vpack.c.b16 %v1115, %v1111
    %v1412 = vpack.c.b16 %v1116, %v1112
    %v1413 = vpack.c.b16 %v1117, %v1113
    %v1414 = vpack.c.b16 %v1118, %v1114
    %v1415 = vpack.c.b16 %v1123, %v1119
    %v1416 = vpack.c.b16 %v1124, %v1120
    %v1417 = vpack.c.b16 %v1125, %v1121
    %v1418 = vpack.c.b16 %v1126, %v1122
    %v1419 = vpack.c.b16 %v1131, %v1127
    %v1420 = vpack.c.b16 %v1132, %v1128
    %v1421 = vpack.c.b16 %v1133, %v1129
    %v1422 = vpack.c.b16 %v1134, %v1130
    %v1423 = vpack.c.b16 %v1139, %v1135
    %v1424 = vpack.c.b16 %v1140, %v1136
    %v1425 = vpack.c.b16 %v1141, %v1137
    %v1426 = vpack.c.b16 %v1142, %v1138
    %v1427 = vpack.c.b16 %v1147, %v1143
    %v1428 = vpack.c.b16 %v1148, %v1144
    %v1429 = vpack.c.b16 %v1149, %v1145
    %v1430 = vpack.c.b16 %v1150, %v1146
    %v1431 = vpack.c.b16 %v1155, %v1151
    %v1432 = vpack.c.b16 %v1156, %v1152
    %v1433 = vpack.c.b16 %v1157, %v1153
    %v1434 = vpack.c.b16 %v1158, %v1154
    %v1435 = vpack.c.b16 %v1163, %v1159
    %v1436 = vpack.c.b16 %v1164, %v1160
    %v1437 = vpack.c.b16 %v1165, %v1161
    %v1438 = vpack.c.b16 %v1166, %v1162
    %v1439 = vpack.c.b16 %v1171, %v1167
    %v1440 = vpack.c.b16 %v1172, %v1168
    %v1441 = vpack.c.b16 %v1173, %v1169
    %v1442 = vpack.c.b16 %v1174, %v1170
    %v1443 = vpack.c.b16 %v1179, %v1175
    %v1444 = vpack.c.b16 %v1180, %v1176
    %v1445 = vpack.c.b16 %v1181, %v1177
    %v1446 = vpack.c.b16 %v1182, %v1178
    %v1447 = vpack.c.b16 %v1187, %v1183
    %v1448 = vpack.c.b16 %v1188, %v1184
    %v1449 = vpack.c.b16 %v1189, %v1185
    %v1450 = vpack.c.b16 %v1190, %v1186
    %v1451 = vpack.c.b16 %v1195, %v1191
    %v1452 = vpack.c.b16 %v1196, %v1192
    %v1453 = vpack.c.b16 %v1197, %v1193
    %v1454 = vpack.c.b16 %v1198, %v1194
    %1711 = vmatprep.subr.bf16.mxu0 %v1200
    %1712 = vmatpush1.bf16.msra.mxu0 %v1199
    %1713 = vmatprep.subr.bf16.mxu0 %v1204
    %1714 = vmatpush1.bf16.msra.mxu0 %v1203
    %1715 = vmatprep.subr.bf16.mxu0 %v1208
    %1716 = vmatpush1.bf16.msra.mxu0 %v1207
    %1717 = vmatprep.subr.bf16.mxu0 %v1212
    %1718 = vmatpush1.bf16.msra.mxu0 %v1211
    %1719 = vmatprep.subr.bf16.mxu0 %v1216
    %1720 = vmatpush1.bf16.msra.mxu0 %v1215
    %1721 = vmatprep.subr.bf16.mxu0 %v1220
    %1722 = vmatpush1.bf16.msra.mxu0 %v1219
    %1723 = vmatprep.subr.bf16.mxu0 %v1224
    %1724 = vmatpush1.bf16.msra.mxu0 %v1223
    %1725 = vmatprep.subr.bf16.mxu0 %v1228
    %1726 = vmatpush1.bf16.msra.mxu0 %v1227
    %1727 = vmatprep.subr.bf16.mxu0 %v1232
    %1728 = vmatpush1.bf16.msra.mxu0 %v1231
    %1729 = vmatprep.subr.bf16.mxu0 %v1236
    %1730 = vmatpush1.bf16.msra.mxu0 %v1235
    %1731 = vmatprep.subr.bf16.mxu0 %v1240
    %1732 = vmatpush1.bf16.msra.mxu0 %v1239
    %1733 = vmatprep.subr.bf16.mxu0 %v1244
    %1734 = vmatpush1.bf16.msra.mxu0 %v1243
    %1735 = vmatprep.subr.bf16.mxu0 %v1248
    %1736 = vmatpush1.bf16.msra.mxu0 %v1247
    %1737 = vmatprep.subr.bf16.mxu0 %v1252
    %1738 = vmatpush1.bf16.msra.mxu0 %v1251
    %1739 = vmatprep.subr.bf16.mxu0 %v1256
    %1740 = vmatpush1.bf16.msra.mxu0 %v1255
    %1741 = vmatprep.subr.bf16.mxu0 %v1260
    %1742 = vmatpush1.bf16.msra.mxu0 %v1259
    %1743 = vmatprep.mubr.bf16.mxu0 %v146
    %1744 = vmatmul.mubr.bf16.gmra.mrb[0].mxu0 %v145
    %v1745 = vpop.f32.mrb[0].mxu0
    %v1746 = vadd.f32 %v414, %v1745
    %v1747 = vpop.f32.mrb[0].mxu0
    %v1748 = vadd.f32 %v418, %v1747
    %v1749 = vpop.f32.mrb[0].mxu0
    %v1750 = vpop.f32.mrb[0].mxu0
    %1751 = vdwg.mxu0
    %1752 = vmatprep.subr.bf16.mxu0 %v1264
    %1753 = vmatpush1.bf16.msra.mxu0 %v1263
    %1754 = vmatprep.subr.bf16.mxu0 %v1268
    %1755 = vmatpush1.bf16.msra.mxu0 %v1267
    %1756 = vmatprep.subr.bf16.mxu0 %v1272
    %1757 = vmatpush1.bf16.msra.mxu0 %v1271
    %1758 = vmatprep.subr.bf16.mxu0 %v1276
    %1759 = vmatpush1.bf16.msra.mxu0 %v1275
    %1760 = vmatprep.subr.bf16.mxu0 %v1280
    %1761 = vmatpush1.bf16.msra.mxu0 %v1279
    %1762 = vmatprep.subr.bf16.mxu0 %v1284
    %1763 = vmatpush1.bf16.msra.mxu0 %v1283
    %1764 = vmatprep.subr.bf16.mxu0 %v1288
    %1765 = vmatpush1.bf16.msra.mxu0 %v1287
    %1766 = vmatprep.subr.bf16.mxu0 %v1292
    %1767 = vmatpush1.bf16.msra.mxu0 %v1291
    %1768 = vmatprep.subr.bf16.mxu0 %v1296
    %1769 = vmatpush1.bf16.msra.mxu0 %v1295
    %1770 = vmatprep.subr.bf16.mxu0 %v1300
    %1771 = vmatpush1.bf16.msra.mxu0 %v1299
    %1772 = vmatprep.subr.bf16.mxu0 %v1304
    %1773 = vmatpush1.bf16.msra.mxu0 %v1303
    %1774 = vmatprep.subr.bf16.mxu0 %v1308
    %1775 = vmatpush1.bf16.msra.mxu0 %v1307
    %1776 = vmatprep.subr.bf16.mxu0 %v1312
    %1777 = vmatpush1.bf16.msra.mxu0 %v1311
    %1778 = vmatprep.subr.bf16.mxu0 %v1316
    %1779 = vmatpush1.bf16.msra.mxu0 %v1315
    %1780 = vmatprep.subr.bf16.mxu0 %v1320
    %1781 = vmatpush1.bf16.msra.mxu0 %v1319
    %1782 = vmatprep.subr.bf16.mxu0 %v1324
    %1783 = vmatpush1.bf16.msra.mxu0 %v1323
    %1784 = vmatprep.mubr.bf16.mxu0 %v148
    %1785 = vmatmul.mubr.bf16.gmra.mrb[0].mxu0 %v147
    %v1786 = vpop.f32.mrb[0].mxu0
    %v1787 = vadd.f32 %v1746, %v1786
    %v1788 = vpop.f32.mrb[0].mxu0
    %v1789 = vadd.f32 %v1748, %v1788
    %v1790 = vpop.f32.mrb[0].mxu0
    %v1791 = vpop.f32.mrb[0].mxu0
    %1792 = vdwg.mxu0
    %1793 = vmatprep.subr.bf16.mxu0 %v1328
    %1794 = vmatpush1.bf16.msra.mxu0 %v1327
    %1795 = vmatprep.subr.bf16.mxu0 %v1332
    %1796 = vmatpush1.bf16.msra.mxu0 %v1331
    %1797 = vmatprep.subr.bf16.mxu0 %v1336
    %1798 = vmatpush1.bf16.msra.mxu0 %v1335
    %1799 = vmatprep.subr.bf16.mxu0 %v1340
    %1800 = vmatpush1.bf16.msra.mxu0 %v1339
    %1801 = vmatprep.subr.bf16.mxu0 %v1344
    %1802 = vmatpush1.bf16.msra.mxu0 %v1343
    %1803 = vmatprep.subr.bf16.mxu0 %v1348
    %1804 = vmatpush1.bf16.msra.mxu0 %v1347
    %1805 = vmatprep.subr.bf16.mxu0 %v1352
    %1806 = vmatpush1.bf16.msra.mxu0 %v1351
    %1807 = vmatprep.subr.bf16.mxu0 %v1356
    %1808 = vmatpush1.bf16.msra.mxu0 %v1355
    %1809 = vmatprep.subr.bf16.mxu0 %v1360
    %1810 = vmatpush1.bf16.msra.mxu0 %v1359
    %1811 = vmatprep.subr.bf16.mxu0 %v1364
    %1812 = vmatpush1.bf16.msra.mxu0 %v1363
    %1813 = vmatprep.subr.bf16.mxu0 %v1368
    %1814 = vmatpush1.bf16.msra.mxu0 %v1367
    %1815 = vmatprep.subr.bf16.mxu0 %v1372
    %1816 = vmatpush1.bf16.msra.mxu0 %v1371
    %1817 = vmatprep.subr.bf16.mxu0 %v1376
    %1818 = vmatpush1.bf16.msra.mxu0 %v1375
    %1819 = vmatprep.subr.bf16.mxu0 %v1380
    %1820 = vmatpush1.bf16.msra.mxu0 %v1379
    %1821 = vmatprep.subr.bf16.mxu0 %v1384
    %1822 = vmatpush1.bf16.msra.mxu0 %v1383
    %1823 = vmatprep.subr.bf16.mxu0 %v1388
    %1824 = vmatpush1.bf16.msra.mxu0 %v1387
    %1825 = vmatprep.mubr.bf16.mxu0 %v150
    %1826 = vmatmul.mubr.bf16.gmra.mrb[0].mxu0 %v149
    %v1827 = vpop.f32.mrb[0].mxu0
    %v1828 = vadd.f32 %v1787, %v1827
    %v1829 = vpop.f32.mrb[0].mxu0
    %v1830 = vadd.f32 %v1789, %v1829
    %v1831 = vpop.f32.mrb[0].mxu0
    %v1832 = vpop.f32.mrb[0].mxu0
    %1833 = vdwg.mxu0
    %1834 = vmatprep.subr.bf16.mxu0 %v1392
    %1835 = vmatpush1.bf16.msra.mxu0 %v1391
    %1836 = vmatprep.subr.bf16.mxu0 %v1396
    %1837 = vmatpush1.bf16.msra.mxu0 %v1395
    %1838 = vmatprep.subr.bf16.mxu0 %v1400
    %1839 = vmatpush1.bf16.msra.mxu0 %v1399
    %1840 = vmatprep.subr.bf16.mxu0 %v1404
    %1841 = vmatpush1.bf16.msra.mxu0 %v1403
    %1842 = vmatprep.subr.bf16.mxu0 %v1408
    %1843 = vmatpush1.bf16.msra.mxu0 %v1407
    %1844 = vmatprep.subr.bf16.mxu0 %v1412
    %1845 = vmatpush1.bf16.msra.mxu0 %v1411
    %1846 = vmatprep.subr.bf16.mxu0 %v1416
    %1847 = vmatpush1.bf16.msra.mxu0 %v1415
    %1848 = vmatprep.subr.bf16.mxu0 %v1420
    %1849 = vmatpush1.bf16.msra.mxu0 %v1419
    %1850 = vmatprep.subr.bf16.mxu0 %v1424
    %1851 = vmatpush1.bf16.msra.mxu0 %v1423
    %1852 = vmatprep.subr.bf16.mxu0 %v1428
    %1853 = vmatpush1.bf16.msra.mxu0 %v1427
    %1854 = vmatprep.subr.bf16.mxu0 %v1432
    %1855 = vmatpush1.bf16.msra.mxu0 %v1431
    %1856 = vmatprep.subr.bf16.mxu0 %v1436
    %1857 = vmatpush1.bf16.msra.mxu0 %v1435
    %1858 = vmatprep.subr.bf16.mxu0 %v1440
    %1859 = vmatpush1.bf16.msra.mxu0 %v1439
    %1860 = vmatprep.subr.bf16.mxu0 %v1444
    %1861 = vmatpush1.bf16.msra.mxu0 %v1443
    %1862 = vmatprep.subr.bf16.mxu0 %v1448
    %1863 = vmatpush1.bf16.msra.mxu0 %v1447
    %1864 = vmatprep.subr.bf16.mxu0 %v1452
    %1865 = vmatpush1.bf16.msra.mxu0 %v1451
    %1866 = vmatprep.mubr.bf16.mxu0 %v152
    %1867 = vmatmul.mubr.bf16.gmra.mrb[0].mxu0 %v151
    %v1868 = vpop.f32.mrb[0].mxu0
    %v1869 = vadd.f32 %v1828, %v1868
    %v1870 = vpop.f32.mrb[0].mxu0
    %v1871 = vadd.f32 %v1830, %v1870
    %v1872 = vpop.f32.mrb[0].mxu0
    %v1873 = vpop.f32.mrb[0].mxu0
    %1874 = vdwg.mxu0
    %1875 = vmatprep.subr.bf16.mxu0 %v1202
    %1876 = vmatpush1.bf16.msra.mxu0 %v1201
    %1877 = vmatprep.subr.bf16.mxu0 %v1206
    %1878 = vmatpush1.bf16.msra.mxu0 %v1205
    %1879 = vmatprep.subr.bf16.mxu0 %v1210
    %1880 = vmatpush1.bf16.msra.mxu0 %v1209
    %1881 = vmatprep.subr.bf16.mxu0 %v1214
    %1882 = vmatpush1.bf16.msra.mxu0 %v1213
    %1883 = vmatprep.subr.bf16.mxu0 %v1218
    %1884 = vmatpush1.bf16.msra.mxu0 %v1217
    %1885 = vmatprep.subr.bf16.mxu0 %v1222
    %1886 = vmatpush1.bf16.msra.mxu0 %v1221
    %1887 = vmatprep.subr.bf16.mxu0 %v1226
    %1888 = vmatpush1.bf16.msra.mxu0 %v1225
    %1889 = vmatprep.subr.bf16.mxu0 %v1230
    %1890 = vmatpush1.bf16.msra.mxu0 %v1229
    %1891 = vmatprep.subr.bf16.mxu0 %v1234
    %1892 = vmatpush1.bf16.msra.mxu0 %v1233
    %1893 = vmatprep.subr.bf16.mxu0 %v1238
    %1894 = vmatpush1.bf16.msra.mxu0 %v1237
    %1895 = vmatprep.subr.bf16.mxu0 %v1242
    %1896 = vmatpush1.bf16.msra.mxu0 %v1241
    %1897 = vmatprep.subr.bf16.mxu0 %v1246
    %1898 = vmatpush1.bf16.msra.mxu0 %v1245
    %1899 = vmatprep.subr.bf16.mxu0 %v1250
    %1900 = vmatpush1.bf16.msra.mxu0 %v1249
    %1901 = vmatprep.subr.bf16.mxu0 %v1254
    %1902 = vmatpush1.bf16.msra.mxu0 %v1253
    %1903 = vmatprep.subr.bf16.mxu0 %v1258
    %1904 = vmatpush1.bf16.msra.mxu0 %v1257
    %1905 = vmatprep.subr.bf16.mxu0 %v1262
    %1906 = vmatpush1.bf16.msra.mxu0 %v1261
    %1907 = vmatprep.mubr.bf16.mxu0 %v146
    %1908 = vmatmul.mubr.bf16.gmra.mrb[0].mxu0 %v145
    %v1909 = vpop.f32.mrb[0].mxu0
    %v1910 = vadd.f32 %v422, %v1909
    %v1911 = vpop.f32.mrb[0].mxu0
    %v1912 = vadd.f32 %v426, %v1911
    %v1913 = vpop.f32.mrb[0].mxu0
    %v1914 = vpop.f32.mrb[0].mxu0
    %1915 = vdwg.mxu0
    %1916 = vmatprep.subr.bf16.mxu0 %v1266
    %1917 = vmatpush1.bf16.msra.mxu0 %v1265
    %1918 = vmatprep.subr.bf16.mxu0 %v1270
    %1919 = vmatpush1.bf16.msra.mxu0 %v1269
    %1920 = vmatprep.subr.bf16.mxu0 %v1274
    %1921 = vmatpush1.bf16.msra.mxu0 %v1273
    %1922 = vmatprep.subr.bf16.mxu0 %v1278
    %1923 = vmatpush1.bf16.msra.mxu0 %v1277
    %1924 = vmatprep.subr.bf16.mxu0 %v1282
    %1925 = vmatpush1.bf16.msra.mxu0 %v1281
    %1926 = vmatprep.subr.bf16.mxu0 %v1286
    %1927 = vmatpush1.bf16.msra.mxu0 %v1285
    %1928 = vmatprep.subr.bf16.mxu0 %v1290
    %1929 = vmatpush1.bf16.msra.mxu0 %v1289
    %1930 = vmatprep.subr.bf16.mxu0 %v1294
    %1931 = vmatpush1.bf16.msra.mxu0 %v1293
    %1932 = vmatprep.subr.bf16.mxu0 %v1298
    %1933 = vmatpush1.bf16.msra.mxu0 %v1297
    %1934 = vmatprep.subr.bf16.mxu0 %v1302
    %1935 = vmatpush1.bf16.msra.mxu0 %v1301
    %1936 = vmatprep.subr.bf16.mxu0 %v1306
    %1937 = vmatpush1.bf16.msra.mxu0 %v1305
    %1938 = vmatprep.subr.bf16.mxu0 %v1310
    %1939 = vmatpush1.bf16.msra.mxu0 %v1309
    %1940 = vmatprep.subr.bf16.mxu0 %v1314
    %1941 = vmatpush1.bf16.msra.mxu0 %v1313
    %1942 = vmatprep.subr.bf16.mxu0 %v1318
    %1943 = vmatpush1.bf16.msra.mxu0 %v1317
    %1944 = vmatprep.subr.bf16.mxu0 %v1322
    %1945 = vmatpush1.bf16.msra.mxu0 %v1321
    %1946 = vmatprep.subr.bf16.mxu0 %v1326
    %1947 = vmatpush1.bf16.msra.mxu0 %v1325
    %1948 = vmatprep.mubr.bf16.mxu0 %v148
    %1949 = vmatmul.mubr.bf16.gmra.mrb[0].mxu0 %v147
    %v1950 = vpop.f32.mrb[0].mxu0
    %v1951 = vadd.f32 %v1910, %v1950
    %v1952 = vpop.f32.mrb[0].mxu0
    %v1953 = vadd.f32 %v1912, %v1952
    %v1954 = vpop.f32.mrb[0].mxu0
    %v1955 = vpop.f32.mrb[0].mxu0
    %1956 = vdwg.mxu0
    %1957 = vmatprep.subr.bf16.mxu0 %v1330
    %1958 = vmatpush1.bf16.msra.mxu0 %v1329
    %1959 = vmatprep.subr.bf16.mxu0 %v1334
    %1960 = vmatpush1.bf16.msra.mxu0 %v1333
    %1961 = vmatprep.subr.bf16.mxu0 %v1338
    %1962 = vmatpush1.bf16.msra.mxu0 %v1337
    %1963 = vmatprep.subr.bf16.mxu0 %v1342
    %1964 = vmatpush1.bf16.msra.mxu0 %v1341
    %1965 = vmatprep.subr.bf16.mxu0 %v1346
    %1966 = vmatpush1.bf16.msra.mxu0 %v1345
    %1967 = vmatprep.subr.bf16.mxu0 %v1350
    %1968 = vmatpush1.bf16.msra.mxu0 %v1349
    %1969 = vmatprep.subr.bf16.mxu0 %v1354
    %1970 = vmatpush1.bf16.msra.mxu0 %v1353
    %1971 = vmatprep.subr.bf16.mxu0 %v1358
    %1972 = vmatpush1.bf16.msra.mxu0 %v1357
    %1973 = vmatprep.subr.bf16.mxu0 %v1362
    %1974 = vmatpush1.bf16.msra.mxu0 %v1361
    %1975 = vmatprep.subr.bf16.mxu0 %v1366
    %1976 = vmatpush1.bf16.msra.mxu0 %v1365
    %1977 = vmatprep.subr.bf16.mxu0 %v1370
    %1978 = vmatpush1.bf16.msra.mxu0 %v1369
    %1979 = vmatprep.subr.bf16.mxu0 %v1374
    %1980 = vmatpush1.bf16.msra.mxu0 %v1373
    %1981 = vmatprep.subr.bf16.mxu0 %v1378
    %1982 = vmatpush1.bf16.msra.mxu0 %v1377
    %1983 = vmatprep.subr.bf16.mxu0 %v1382
    %1984 = vmatpush1.bf16.msra.mxu0 %v1381
    %1985 = vmatprep.subr.bf16.mxu0 %v1386
    %1986 = vmatpush1.bf16.msra.mxu0 %v1385
    %1987 = vmatprep.subr.bf16.mxu0 %v1390
    %1988 = vmatpush1.bf16.msra.mxu0 %v1389
    %1989 = vmatprep.mubr.bf16.mxu0 %v150
    %1990 = vmatmul.mubr.bf16.gmra.mrb[0].mxu0 %v149
    %v1991 = vpop.f32.mrb[0].mxu0
    %v1992 = vadd.f32 %v1951, %v1991
    %v1993 = vpop.f32.mrb[0].mxu0
    %v1994 = vadd.f32 %v1953, %v1993
    %v1995 = vpop.f32.mrb[0].mxu0
    %v1996 = vpop.f32.mrb[0].mxu0
    %1997 = vdwg.mxu0
    %1998 = vmatprep.subr.bf16.mxu0 %v1394
    %1999 = vmatpush1.bf16.msra.mxu0 %v1393
    %2000 = vmatprep.subr.bf16.mxu0 %v1398
    %2001 = vmatpush1.bf16.msra.mxu0 %v1397
    %2002 = vmatprep.subr.bf16.mxu0 %v1402
    %2003 = vmatpush1.bf16.msra.mxu0 %v1401
    %2004 = vmatprep.subr.bf16.mxu0 %v1406
    %2005 = vmatpush1.bf16.msra.mxu0 %v1405
    %2006 = vmatprep.subr.bf16.mxu0 %v1410
    %2007 = vmatpush1.bf16.msra.mxu0 %v1409
    %2008 = vmatprep.subr.bf16.mxu0 %v1414
    %2009 = vmatpush1.bf16.msra.mxu0 %v1413
    %2010 = vmatprep.subr.bf16.mxu0 %v1418
    %2011 = vmatpush1.bf16.msra.mxu0 %v1417
    %2012 = vmatprep.subr.bf16.mxu0 %v1422
    %2013 = vmatpush1.bf16.msra.mxu0 %v1421
    %2014 = vmatprep.subr.bf16.mxu0 %v1426
    %2015 = vmatpush1.bf16.msra.mxu0 %v1425
    %2016 = vmatprep.subr.bf16.mxu0 %v1430
    %2017 = vmatpush1.bf16.msra.mxu0 %v1429
    %2018 = vmatprep.subr.bf16.mxu0 %v1434
    %2019 = vmatpush1.bf16.msra.mxu0 %v1433
    %2020 = vmatprep.subr.bf16.mxu0 %v1438
    %2021 = vmatpush1.bf16.msra.mxu0 %v1437
    %2022 = vmatprep.subr.bf16.mxu0 %v1442
    %2023 = vmatpush1.bf16.msra.mxu0 %v1441
    %2024 = vmatprep.subr.bf16.mxu0 %v1446
    %2025 = vmatpush1.bf16.msra.mxu0 %v1445
    %2026 = vmatprep.subr.bf16.mxu0 %v1450
    %2027 = vmatpush1.bf16.msra.mxu0 %v1449
    %2028 = vmatprep.subr.bf16.mxu0 %v1454
    %2029 = vmatpush1.bf16.msra.mxu0 %v1453
    %2030 = vmatprep.mubr.bf16.mxu0 %v152
    %2031 = vmatmul.mubr.bf16.gmra.mrb[0].mxu0 %v151
    %v2032 = vpop.f32.mrb[0].mxu0
    %v2033 = vadd.f32 %v1992, %v2032
    %v2034 = vpop.f32.mrb[0].mxu0
    %v2035 = vadd.f32 %v1994, %v2034
    %v2036 = vpop.f32.mrb[0].mxu0
    %v2037 = vpop.f32.mrb[0].mxu0
    %2038 = vdwg.mxu0
    %v2039 = vmax.f32 %v1869, 0.0
    %v2040 = vmax.f32 %v1871, 0.0
    %v2041 = vmax.f32 %v2033, 0.0
    %v2042 = vmax.f32 %v2035, 0.0
    %v2043 = vpack.c.bf16 %v2039, %v2039
    %v2044 = vpack.c.bf16 %v2040, %v2040
    %v2045 = vpack.c.bf16 %v2041, %v2041
    %v2046 = vpack.c.bf16 %v2042, %v2042
    %v2047 = vld [vmem:[#allocation4] sm:$0xff]
    %v2048 = vld [vmem:[#allocation4 + $0x8] sm:$0xff]
    %v2049 = vld [vmem:[#allocation4 + $0x10] sm:$0xff]
    %v2050 = vld [vmem:[#allocation4 + $0x18] sm:$0xff]
    %v2051 = vld [vmem:[#allocation4 + $0x20] sm:$0xff]
    %v2052 = vld [vmem:[#allocation4 + $0x28] sm:$0xff]
    %v2053 = vld [vmem:[#allocation4 + $0x30] sm:$0xff]
    %v2054 = vld [vmem:[#allocation4 + $0x38] sm:$0xff]
    %v2055 = vld [vmem:[#allocation4 + $0x40] sm:$0xff]
    %v2056 = vld [vmem:[#allocation4 + $0x48] sm:$0xff]
    %v2057 = vld [vmem:[#allocation4 + $0x50] sm:$0xff]
    %v2058 = vld [vmem:[#allocation4 + $0x58] sm:$0xff]
    %v2059 = vld [vmem:[#allocation4 + $0x60] sm:$0xff]
    %v2060 = vld [vmem:[#allocation4 + $0x68] sm:$0xff]
    %v2061 = vld [vmem:[#allocation4 + $0x70] sm:$0xff]
    %v2062 = vld [vmem:[#allocation4 + $0x78] sm:$0xff]
    %v2063 = vld [vmem:[#allocation4 + $0x80] sm:$0xff]
    %v2064 = vld [vmem:[#allocation4 + $0x88] sm:$0xff]
    %v2065 = vld [vmem:[#allocation4 + $0x90] sm:$0xff]
    %v2066 = vld [vmem:[#allocation4 + $0x98] sm:$0xff]
    %v2067 = vld [vmem:[#allocation4 + $0xa0] sm:$0xff]
    %v2068 = vld [vmem:[#allocation4 + $0xa8] sm:$0xff]
    %v2069 = vld [vmem:[#allocation4 + $0xb0] sm:$0xff]
    %v2070 = vld [vmem:[#allocation4 + $0xb8] sm:$0xff]
    %v2071 = vld [vmem:[#allocation4 + $0xc0] sm:$0xff]
    %v2072 = vld [vmem:[#allocation4 + $0xc8] sm:$0xff]
    %v2073 = vld [vmem:[#allocation4 + $0xd0] sm:$0xff]
    %v2074 = vld [vmem:[#allocation4 + $0xd8] sm:$0xff]
    %v2075 = vld [vmem:[#allocation4 + $0xe0] sm:$0xff]
    %v2076 = vld [vmem:[#allocation4 + $0xe8] sm:$0xff]
    %v2077 = vld [vmem:[#allocation4 + $0xf0] sm:$0xff]
    %v2078 = vld [vmem:[#allocation4 + $0xf8] sm:$0xff]
    %v2079 = vld [vmem:[#allocation4 + $0x100] sm:$0xff]
    %v2080 = vld [vmem:[#allocation4 + $0x108] sm:$0xff]
    %v2081 = vld [vmem:[#allocation4 + $0x110] sm:$0xff]
    %v2082 = vld [vmem:[#allocation4 + $0x118] sm:$0xff]
    %v2083 = vld [vmem:[#allocation4 + $0x120] sm:$0xff]
    %v2084 = vld [vmem:[#allocation4 + $0x128] sm:$0xff]
    %v2085 = vld [vmem:[#allocation4 + $0x130] sm:$0xff]
    %v2086 = vld [vmem:[#allocation4 + $0x138] sm:$0xff]
    %v2087 = vld [vmem:[#allocation4 + $0x140] sm:$0xff]
    %v2088 = vld [vmem:[#allocation4 + $0x148] sm:$0xff]
    %v2089 = vld [vmem:[#allocation4 + $0x150] sm:$0xff]
    %v2090 = vld [vmem:[#allocation4 + $0x158] sm:$0xff]
    %v2091 = vld [vmem:[#allocation4 + $0x160] sm:$0xff]
    %v2092 = vld [vmem:[#allocation4 + $0x168] sm:$0xff]
    %v2093 = vld [vmem:[#allocation4 + $0x170] sm:$0xff]
    %v2094 = vld [vmem:[#allocation4 + $0x178] sm:$0xff]
    %v2095 = vld [vmem:[#allocation4 + $0x180] sm:$0xff]
    %v2096 = vld [vmem:[#allocation4 + $0x188] sm:$0xff]
    %v2097 = vld [vmem:[#allocation4 + $0x190] sm:$0xff]
    %v2098 = vld [vmem:[#allocation4 + $0x198] sm:$0xff]
    %v2099 = vld [vmem:[#allocation4 + $0x1a0] sm:$0xff]
    %v2100 = vld [vmem:[#allocation4 + $0x1a8] sm:$0xff]
    %v2101 = vld [vmem:[#allocation4 + $0x1b0] sm:$0xff]
    %v2102 = vld [vmem:[#allocation4 + $0x1b8] sm:$0xff]
    %v2103 = vld [vmem:[#allocation4 + $0x1c0] sm:$0xff]
    %v2104 = vld [vmem:[#allocation4 + $0x1c8] sm:$0xff]
    %v2105 = vld [vmem:[#allocation4 + $0x1d0] sm:$0xff]
    %v2106 = vld [vmem:[#allocation4 + $0x1d8] sm:$0xff]
    %v2107 = vld [vmem:[#allocation4 + $0x1e0] sm:$0xff]
    %v2108 = vld [vmem:[#allocation4 + $0x1e8] sm:$0xff]
    %v2109 = vld [vmem:[#allocation4 + $0x1f0] sm:$0xff]
    %v2110 = vld [vmem:[#allocation4 + $0x1f8] sm:$0xff]
    %v2111 = vld [vmem:[%s5] sm:$0x3]
    %v2113 = vlaneseq
    %v2114 = vshrl.u32 %v2113, 7
    %v2115 = vsub.s32 0, %v2114
    %v2116 = vrot.slane %v2111, %v2115
    %v2117 = vlaneseq
    %v2118 = vshrl.u32 %v2117, 7
    %v2119 = vsub.s32 1, %v2118
    %v2120 = vrot.slane %v2111, %v2119
    %v2187 = vunpack.c.l.b16 %v2047
    %v2188 = vunpack.c.h.b16 %v2047
    %v2189 = vunpack.c.l.b16 %v2048
    %v2190 = vunpack.c.h.b16 %v2048
    %v2191 = vunpack.c.l.b16 %v2049
    %v2192 = vunpack.c.h.b16 %v2049
    %v2193 = vunpack.c.l.b16 %v2050
    %v2194 = vunpack.c.h.b16 %v2050
    %v2195 = vunpack.c.l.b16 %v2051
    %v2196 = vunpack.c.h.b16 %v2051
    %v2197 = vunpack.c.l.b16 %v2052
    %v2198 = vunpack.c.h.b16 %v2052
    %v2199 = vunpack.c.l.b16 %v2053
    %v2200 = vunpack.c.h.b16 %v2053
    %v2201 = vunpack.c.l.b16 %v2054
    %v2202 = vunpack.c.h.b16 %v2054
    %v2203 = vunpack.c.l.b16 %v2055
    %v2204 = vunpack.c.h.b16 %v2055
    %v2205 = vunpack.c.l.b16 %v2056
    %v2206 = vunpack.c.h.b16 %v2056
    %v2207 = vunpack.c.l.b16 %v2057
    %v2208 = vunpack.c.h.b16 %v2057
    %v2209 = vunpack.c.l.b16 %v2058
    %v2210 = vunpack.c.h.b16 %v2058
    %v2211 = vunpack.c.l.b16 %v2059
    %v2212 = vunpack.c.h.b16 %v2059
    %v2213 = vunpack.c.l.b16 %v2060
    %v2214 = vunpack.c.h.b16 %v2060
    %v2215 = vunpack.c.l.b16 %v2061
    %v2216 = vunpack.c.h.b16 %v2061
    %v2217 = vunpack.c.l.b16 %v2062
    %v2218 = vunpack.c.h.b16 %v2062
    %v2219 = vunpack.c.l.b16 %v2063
    %v2220 = vunpack.c.h.b16 %v2063
    %v2221 = vunpack.c.l.b16 %v2064
    %v2222 = vunpack.c.h.b16 %v2064
    %v2223 = vunpack.c.l.b16 %v2065
    %v2224 = vunpack.c.h.b16 %v2065
    %v2225 = vunpack.c.l.b16 %v2066
    %v2226 = vunpack.c.h.b16 %v2066
    %v2227 = vunpack.c.l.b16 %v2067
    %v2228 = vunpack.c.h.b16 %v2067
    %v2229 = vunpack.c.l.b16 %v2068
    %v2230 = vunpack.c.h.b16 %v2068
    %v2231 = vunpack.c.l.b16 %v2069
    %v2232 = vunpack.c.h.b16 %v2069
    %v2233 = vunpack.c.l.b16 %v2070
    %v2234 = vunpack.c.h.b16 %v2070
    %v2235 = vunpack.c.l.b16 %v2071
    %v2236 = vunpack.c.h.b16 %v2071
    %v2237 = vunpack.c.l.b16 %v2072
    %v2238 = vunpack.c.h.b16 %v2072
    %v2239 = vunpack.c.l.b16 %v2073
    %v2240 = vunpack.c.h.b16 %v2073
    %v2241 = vunpack.c.l.b16 %v2074
    %v2242 = vunpack.c.h.b16 %v2074
    %v2243 = vunpack.c.l.b16 %v2075
    %v2244 = vunpack.c.h.b16 %v2075
    %v2245 = vunpack.c.l.b16 %v2076
    %v2246 = vunpack.c.h.b16 %v2076
    %v2247 = vunpack.c.l.b16 %v2077
    %v2248 = vunpack.c.h.b16 %v2077
    %v2249 = vunpack.c.l.b16 %v2078
    %v2250 = vunpack.c.h.b16 %v2078
    %v2251 = vunpack.c.l.b16 %v2079
    %v2252 = vunpack.c.h.b16 %v2079
    %v2253 = vunpack.c.l.b16 %v2080
    %v2254 = vunpack.c.h.b16 %v2080
    %v2255 = vunpack.c.l.b16 %v2081
    %v2256 = vunpack.c.h.b16 %v2081
    %v2257 = vunpack.c.l.b16 %v2082
    %v2258 = vunpack.c.h.b16 %v2082
    %v2259 = vunpack.c.l.b16 %v2083
    %v2260 = vunpack.c.h.b16 %v2083
    %v2261 = vunpack.c.l.b16 %v2084
    %v2262 = vunpack.c.h.b16 %v2084
    %v2263 = vunpack.c.l.b16 %v2085
    %v2264 = vunpack.c.h.b16 %v2085
    %v2265 = vunpack.c.l.b16 %v2086
    %v2266 = vunpack.c.h.b16 %v2086
    %v2267 = vunpack.c.l.b16 %v2087
    %v2268 = vunpack.c.h.b16 %v2087
    %v2269 = vunpack.c.l.b16 %v2088
    %v2270 = vunpack.c.h.b16 %v2088
    %v2271 = vunpack.c.l.b16 %v2089
    %v2272 = vunpack.c.h.b16 %v2089
    %v2273 = vunpack.c.l.b16 %v2090
    %v2274 = vunpack.c.h.b16 %v2090
    %v2275 = vunpack.c.l.b16 %v2091
    %v2276 = vunpack.c.h.b16 %v2091
    %v2277 = vunpack.c.l.b16 %v2092
    %v2278 = vunpack.c.h.b16 %v2092
    %v2279 = vunpack.c.l.b16 %v2093
    %v2280 = vunpack.c.h.b16 %v2093
    %v2281 = vunpack.c.l.b16 %v2094
    %v2282 = vunpack.c.h.b16 %v2094
    %v2283 = vunpack.c.l.b16 %v2095
    %v2284 = vunpack.c.h.b16 %v2095
    %v2285 = vunpack.c.l.b16 %v2096
    %v2286 = vunpack.c.h.b16 %v2096
    %v2287 = vunpack.c.l.b16 %v2097
    %v2288 = vunpack.c.h.b16 %v2097
    %v2289 = vunpack.c.l.b16 %v2098
    %v2290 = vunpack.c.h.b16 %v2098
    %v2291 = vunpack.c.l.b16 %v2099
    %v2292 = vunpack.c.h.b16 %v2099
    %v2293 = vunpack.c.l.b16 %v2100
    %v2294 = vunpack.c.h.b16 %v2100
    %v2295 = vunpack.c.l.b16 %v2101
    %v2296 = vunpack.c.h.b16 %v2101
    %v2297 = vunpack.c.l.b16 %v2102
    %v2298 = vunpack.c.h.b16 %v2102
    %v2299 = vunpack.c.l.b16 %v2103
    %v2300 = vunpack.c.h.b16 %v2103
    %v2301 = vunpack.c.l.b16 %v2104
    %v2302 = vunpack.c.h.b16 %v2104
    %v2303 = vunpack.c.l.b16 %v2105
    %v2304 = vunpack.c.h.b16 %v2105
    %v2305 = vunpack.c.l.b16 %v2106
    %v2306 = vunpack.c.h.b16 %v2106
    %v2307 = vunpack.c.l.b16 %v2107
    %v2308 = vunpack.c.h.b16 %v2107
    %v2309 = vunpack.c.l.b16 %v2108
    %v2310 = vunpack.c.h.b16 %v2108
    %v2311 = vunpack.c.l.b16 %v2109
    %v2312 = vunpack.c.h.b16 %v2109
    %v2313 = vunpack.c.l.b16 %v2110
    %v2314 = vunpack.c.h.b16 %v2110
    %v2315 = vpack.c.b16 %v2189, %v2187
    %v2316 = vpack.c.b16 %v2190, %v2188
    %v2317 = vpack.c.b16 %v2193, %v2191
    %v2318 = vpack.c.b16 %v2194, %v2192
    %v2319 = vpack.c.b16 %v2197, %v2195
    %v2320 = vpack.c.b16 %v2198, %v2196
    %v2321 = vpack.c.b16 %v2201, %v2199
    %v2322 = vpack.c.b16 %v2202, %v2200
    %v2323 = vpack.c.b16 %v2205, %v2203
    %v2324 = vpack.c.b16 %v2206, %v2204
    %v2325 = vpack.c.b16 %v2209, %v2207
    %v2326 = vpack.c.b16 %v2210, %v2208
    %v2327 = vpack.c.b16 %v2213, %v2211
    %v2328 = vpack.c.b16 %v2214, %v2212
    %v2329 = vpack.c.b16 %v2217, %v2215
    %v2330 = vpack.c.b16 %v2218, %v2216
    %v2331 = vpack.c.b16 %v2221, %v2219
    %v2332 = vpack.c.b16 %v2222, %v2220
    %v2333 = vpack.c.b16 %v2225, %v2223
    %v2334 = vpack.c.b16 %v2226, %v2224
    %v2335 = vpack.c.b16 %v2229, %v2227
    %v2336 = vpack.c.b16 %v2230, %v2228
    %v2337 = vpack.c.b16 %v2233, %v2231
    %v2338 = vpack.c.b16 %v2234, %v2232
    %v2339 = vpack.c.b16 %v2237, %v2235
    %v2340 = vpack.c.b16 %v2238, %v2236
    %v2341 = vpack.c.b16 %v2241, %v2239
    %v2342 = vpack.c.b16 %v2242, %v2240
    %v2343 = vpack.c.b16 %v2245, %v2243
    %v2344 = vpack.c.b16 %v2246, %v2244
    %v2345 = vpack.c.b16 %v2249, %v2247
    %v2346 = vpack.c.b16 %v2250, %v2248
    %v2347 = vpack.c.b16 %v2253, %v2251
    %v2348 = vpack.c.b16 %v2254, %v2252
    %v2349 = vpack.c.b16 %v2257, %v2255
    %v2350 = vpack.c.b16 %v2258, %v2256
    %v2351 = vpack.c.b16 %v2261, %v2259
    %v2352 = vpack.c.b16 %v2262, %v2260
    %v2353 = vpack.c.b16 %v2265, %v2263
    %v2354 = vpack.c.b16 %v2266, %v2264
    %v2355 = vpack.c.b16 %v2269, %v2267
    %v2356 = vpack.c.b16 %v2270, %v2268
    %v2357 = vpack.c.b16 %v2273, %v2271
    %v2358 = vpack.c.b16 %v2274, %v2272
    %v2359 = vpack.c.b16 %v2277, %v2275
    %v2360 = vpack.c.b16 %v2278, %v2276
    %v2361 = vpack.c.b16 %v2281, %v2279
    %v2362 = vpack.c.b16 %v2282, %v2280
    %v2363 = vpack.c.b16 %v2285, %v2283
    %v2364 = vpack.c.b16 %v2286, %v2284
    %v2365 = vpack.c.b16 %v2289, %v2287
    %v2366 = vpack.c.b16 %v2290, %v2288
    %v2367 = vpack.c.b16 %v2293, %v2291
    %v2368 = vpack.c.b16 %v2294, %v2292
    %v2369 = vpack.c.b16 %v2297, %v2295
    %v2370 = vpack.c.b16 %v2298, %v2296
    %v2371 = vpack.c.b16 %v2301, %v2299
    %v2372 = vpack.c.b16 %v2302, %v2300
    %v2373 = vpack.c.b16 %v2305, %v2303
    %v2374 = vpack.c.b16 %v2306, %v2304
    %v2375 = vpack.c.b16 %v2309, %v2307
    %v2376 = vpack.c.b16 %v2310, %v2308
    %v2377 = vpack.c.b16 %v2313, %v2311
    %v2378 = vpack.c.b16 %v2314, %v2312
    %2443 = vmatprep.subr.bf16.mxu0 %v2316
    %2444 = vmatpush1.bf16.msra.mxu0 %v2315
    %2445 = vmatprep.subr.bf16.mxu0 %v2318
    %2446 = vmatpush1.bf16.msra.mxu0 %v2317
    %2447 = vmatprep.subr.bf16.mxu0 %v2320
    %2448 = vmatpush1.bf16.msra.mxu0 %v2319
    %2449 = vmatprep.subr.bf16.mxu0 %v2322
    %2450 = vmatpush1.bf16.msra.mxu0 %v2321
    %2451 = vmatprep.subr.bf16.mxu0 %v2324
    %2452 = vmatpush1.bf16.msra.mxu0 %v2323
    %2453 = vmatprep.subr.bf16.mxu0 %v2326
    %2454 = vmatpush1.bf16.msra.mxu0 %v2325
    %2455 = vmatprep.subr.bf16.mxu0 %v2328
    %2456 = vmatpush1.bf16.msra.mxu0 %v2327
    %2457 = vmatprep.subr.bf16.mxu0 %v2330
    %2458 = vmatpush1.bf16.msra.mxu0 %v2329
    %2459 = vmatprep.subr.bf16.mxu0 %v2332
    %2460 = vmatpush1.bf16.msra.mxu0 %v2331
    %2461 = vmatprep.subr.bf16.mxu0 %v2334
    %2462 = vmatpush1.bf16.msra.mxu0 %v2333
    %2463 = vmatprep.subr.bf16.mxu0 %v2336
    %2464 = vmatpush1.bf16.msra.mxu0 %v2335
    %2465 = vmatprep.subr.bf16.mxu0 %v2338
    %2466 = vmatpush1.bf16.msra.mxu0 %v2337
    %2467 = vmatprep.subr.bf16.mxu0 %v2340
    %2468 = vmatpush1.bf16.msra.mxu0 %v2339
    %2469 = vmatprep.subr.bf16.mxu0 %v2342
    %2470 = vmatpush1.bf16.msra.mxu0 %v2341
    %2471 = vmatprep.subr.bf16.mxu0 %v2344
    %2472 = vmatpush1.bf16.msra.mxu0 %v2343
    %2473 = vmatprep.subr.bf16.mxu0 %v2346
    %2474 = vmatpush1.bf16.msra.mxu0 %v2345
    %2475 = vmatprep.mubr.bf16.mxu0 %v2044
    %2476 = vmatmul.mubr.bf16.gmra.mrb[0].mxu0 %v2043
    %v2477 = vpop.f32.mrb[0].mxu0
    %v2478 = vadd.f32 %v2116, %v2477
    %v2479 = vpop.f32.mrb[0].mxu0
    %v2480 = vadd.f32 %v2120, %v2479
    %v2481 = vpop.f32.mrb[0].mxu0
    %v2482 = vpop.f32.mrb[0].mxu0
    %2483 = vdwg.mxu0
    %2484 = vmatprep.subr.bf16.mxu0 %v2348
    %2485 = vmatpush1.bf16.msra.mxu0 %v2347
    %2486 = vmatprep.subr.bf16.mxu0 %v2350
    %2487 = vmatpush1.bf16.msra.mxu0 %v2349
    %2488 = vmatprep.subr.bf16.mxu0 %v2352
    %2489 = vmatpush1.bf16.msra.mxu0 %v2351
    %2490 = vmatprep.subr.bf16.mxu0 %v2354
    %2491 = vmatpush1.bf16.msra.mxu0 %v2353
    %2492 = vmatprep.subr.bf16.mxu0 %v2356
    %2493 = vmatpush1.bf16.msra.mxu0 %v2355
    %2494 = vmatprep.subr.bf16.mxu0 %v2358
    %2495 = vmatpush1.bf16.msra.mxu0 %v2357
    %2496 = vmatprep.subr.bf16.mxu0 %v2360
    %2497 = vmatpush1.bf16.msra.mxu0 %v2359
    %2498 = vmatprep.subr.bf16.mxu0 %v2362
    %2499 = vmatpush1.bf16.msra.mxu0 %v2361
    %2500 = vmatprep.subr.bf16.mxu0 %v2364
    %2501 = vmatpush1.bf16.msra.mxu0 %v2363
    %2502 = vmatprep.subr.bf16.mxu0 %v2366
    %2503 = vmatpush1.bf16.msra.mxu0 %v2365
    %2504 = vmatprep.subr.bf16.mxu0 %v2368
    %2505 = vmatpush1.bf16.msra.mxu0 %v2367
    %2506 = vmatprep.subr.bf16.mxu0 %v2370
    %2507 = vmatpush1.bf16.msra.mxu0 %v2369
    %2508 = vmatprep.subr.bf16.mxu0 %v2372
    %2509 = vmatpush1.bf16.msra.mxu0 %v2371
    %2510 = vmatprep.subr.bf16.mxu0 %v2374
    %2511 = vmatpush1.bf16.msra.mxu0 %v2373
    %2512 = vmatprep.subr.bf16.mxu0 %v2376
    %2513 = vmatpush1.bf16.msra.mxu0 %v2375
    %2514 = vmatprep.subr.bf16.mxu0 %v2378
    %2515 = vmatpush1.bf16.msra.mxu0 %v2377
    %2516 = vmatprep.mubr.bf16.mxu0 %v2046
    %2517 = vmatmul.mubr.bf16.gmra.mrb[0].mxu0 %v2045
    %v2518 = vpop.f32.mrb[0].mxu0
    %v2519 = vadd.f32 %v2478, %v2518
    %v2520 = vpop.f32.mrb[0].mxu0
    %v2521 = vadd.f32 %v2480, %v2520
    %v2522 = vpop.f32.mrb[0].mxu0
    %v2523 = vpop.f32.mrb[0].mxu0
    %2524 = vdwg.mxu0
    %v2525 = vmul.f32 %v2521, 0.5
    %v2526 = vmul.f32 %v2525, 1.442695
    %v2527 = vpow.pop %v2526
    %v2528 = vld [vmem:[%s1] sm:$0x3]
    %v2529 = vmul.f32 %v2528, %v2527
    %v2530 = vadd.f32 %v2519, %v2529
    %v2531 = vpack.c.bf16 %v2530, %v2530
    %v2532 = vld [vmem:[%s6] sm:$0xf]
    %v2533 = vld [vmem:[%s6 + $0x4] sm:$0xf]
    %v2534 = vld [vmem:[%s6 + $0x8] sm:$0xf]
    %v2535 = vld [vmem:[%s6 + $0xc] sm:$0xf]
    %v2536 = vld [vmem:[%s6 + $0x10] sm:$0xf]
    %v2537 = vld [vmem:[%s6 + $0x14] sm:$0xf]
    %v2538 = vld [vmem:[%s6 + $0x18] sm:$0xf]
    %v2539 = vld [vmem:[%s6 + $0x1c] sm:$0xf]
    %v2540 = vld [vmem:[%s6 + $0x20] sm:$0xf]
    %v2541 = vld [vmem:[%s6 + $0x24] sm:$0xf]
    %v2542 = vld [vmem:[%s6 + $0x28] sm:$0xf]
    %v2543 = vld [vmem:[%s6 + $0x2c] sm:$0xf]
    %v2544 = vld [vmem:[%s6 + $0x30] sm:$0xf]
    %v2545 = vld [vmem:[%s6 + $0x34] sm:$0xf]
    %v2546 = vld [vmem:[%s6 + $0x38] sm:$0xf]
    %v2547 = vld [vmem:[%s6 + $0x3c] sm:$0xf]
    %v2548 = vld [vmem:[%s7] sm:$0x1]
    %v2550 = vlaneseq
    %v2551 = vshrl.u32 %v2550, 7
    %v2552 = vsub.s32 0, %v2551
    %v2553 = vrot.slane %v2548, %v2552
    %v2571 = vunpack.c.l.b16 %v2532
    %v2572 = vunpack.c.l.b16 %v2533
    %v2573 = vunpack.c.l.b16 %v2534
    %v2574 = vunpack.c.l.b16 %v2535
    %v2575 = vunpack.c.l.b16 %v2536
    %v2576 = vunpack.c.l.b16 %v2537
    %v2577 = vunpack.c.l.b16 %v2538
    %v2578 = vunpack.c.l.b16 %v2539
    %v2579 = vunpack.c.l.b16 %v2540
    %v2580 = vunpack.c.l.b16 %v2541
    %v2581 = vunpack.c.l.b16 %v2542
    %v2582 = vunpack.c.l.b16 %v2543
    %v2583 = vunpack.c.l.b16 %v2544
    %v2584 = vunpack.c.l.b16 %v2545
    %v2585 = vunpack.c.l.b16 %v2546
    %v2586 = vunpack.c.l.b16 %v2547
    %v2587 = vpack.c.b16 %v2572, %v2571
    %v2588 = vpack.c.b16 %v2574, %v2573
    %v2589 = vpack.c.b16 %v2576, %v2575
    %v2590 = vpack.c.b16 %v2578, %v2577
    %v2591 = vpack.c.b16 %v2580, %v2579
    %v2592 = vpack.c.b16 %v2582, %v2581
    %v2593 = vpack.c.b16 %v2584, %v2583
    %v2594 = vpack.c.b16 %v2586, %v2585
    %2603 = vmatprep.subr.bf16.mxu0 0
    %2604 = vmatpush1.bf16.msra.mxu0 %v2587
    %2605 = vmatprep.subr.bf16.mxu0 0
    %2606 = vmatpush1.bf16.msra.mxu0 %v2588
    %2607 = vmatprep.subr.bf16.mxu0 0
    %2608 = vmatpush1.bf16.msra.mxu0 %v2589
    %2609 = vmatprep.subr.bf16.mxu0 0
    %2610 = vmatpush1.bf16.msra.mxu0 %v2590
    %2611 = vmatprep.subr.bf16.mxu0 0
    %2612 = vmatpush1.bf16.msra.mxu0 %v2591
    %2613 = vmatprep.subr.bf16.mxu0 0
    %2614 = vmatpush1.bf16.msra.mxu0 %v2592
    %2615 = vmatprep.subr.bf16.mxu0 0
    %2616 = vmatpush1.bf16.msra.mxu0 %v2593
    %2617 = vmatprep.subr.bf16.mxu0 0
    %2618 = vmatpush1.bf16.msra.mxu0 %v2594
    %2619 = vmatprep.subr.bf16.mxu0 0
    %2620 = vmatpush1.bf16.msra.mxu0 0
    %2621 = vmatprep.subr.bf16.mxu0 0
    %2622 = vmatpush1.bf16.msra.mxu0 0
    %2623 = vmatprep.subr.bf16.mxu0 0
    %2624 = vmatpush1.bf16.msra.mxu0 0
    %2625 = vmatprep.subr.bf16.mxu0 0
    %2626 = vmatpush1.bf16.msra.mxu0 0
    %2627 = vmatprep.subr.bf16.mxu0 0
    %2628 = vmatpush1.bf16.msra.mxu0 0
    %2629 = vmatprep.subr.bf16.mxu0 0
    %2630 = vmatpush1.bf16.msra.mxu0 0
    %2631 = vmatprep.subr.bf16.mxu0 0
    %2632 = vmatpush1.bf16.msra.mxu0 0
    %2633 = vmatprep.subr.bf16.mxu0 0
    %2634 = vmatpush1.bf16.msra.mxu0 0
    %2635 = vmatprep.mubr.bf16.mxu0 0
    %2636 = vmatmul.mubr.bf16.gmra.mrb[0].mxu0 %v2531
    %v2637 = vpop.f32.mrb[0].mxu0
    %v2638 = vadd.f32 %v2553, %v2637
    %v2639 = vpop.f32.mrb[0].mxu0
    %v2640 = vpop.f32.mrb[0].mxu0
    %v2641 = vpop.f32.mrb[0].mxu0
    %2642 = vdwg.mxu0
    %v2643 = vmax.f32 %v2638, 0.0
    %v2644 = vpack.c.bf16 %v2643, %v2643
    %v2645 = vld [vmem:[#allocation6] sm:$0xff]
    %v2646 = vld [vmem:[#allocation6 + $0x8] sm:$0xff]
    %v2647 = vld [vmem:[#allocation6 + $0x10] sm:$0xff]
    %v2648 = vld [vmem:[#allocation6 + $0x18] sm:$0xff]
    %v2649 = vld [vmem:[#allocation6 + $0x20] sm:$0xff]
    %v2650 = vld [vmem:[#allocation6 + $0x28] sm:$0xff]
    %v2651 = vld [vmem:[#allocation6 + $0x30] sm:$0xff]
    %v2652 = vld [vmem:[#allocation6 + $0x38] sm:$0xff]
    %v2653 = vld [vmem:[#allocation6 + $0x40] sm:$0xff]
    %v2654 = vld [vmem:[#allocation6 + $0x48] sm:$0xff]
    %v2655 = vld [vmem:[#allocation6 + $0x50] sm:$0xff]
    %v2656 = vld [vmem:[#allocation6 + $0x58] sm:$0xff]
    %v2657 = vld [vmem:[#allocation6 + $0x60] sm:$0xff]
    %v2658 = vld [vmem:[#allocation6 + $0x68] sm:$0xff]
    %v2659 = vld [vmem:[#allocation6 + $0x70] sm:$0xff]
    %v2660 = vld [vmem:[#allocation6 + $0x78] sm:$0xff]
    %v2661 = vld [vmem:[#allocation6 + $0x80] sm:$0xff]
    %v2662 = vld [vmem:[#allocation6 + $0x88] sm:$0xff]
    %v2663 = vld [vmem:[#allocation6 + $0x90] sm:$0xff]
    %v2664 = vld [vmem:[#allocation6 + $0x98] sm:$0xff]
    %v2665 = vld [vmem:[#allocation6 + $0xa0] sm:$0xff]
    %v2666 = vld [vmem:[#allocation6 + $0xa8] sm:$0xff]
    %v2667 = vld [vmem:[#allocation6 + $0xb0] sm:$0xff]
    %v2668 = vld [vmem:[#allocation6 + $0xb8] sm:$0xff]
    %v2669 = vld [vmem:[#allocation6 + $0xc0] sm:$0xff]
    %v2670 = vld [vmem:[#allocation6 + $0xc8] sm:$0xff]
    %v2671 = vld [vmem:[#allocation6 + $0xd0] sm:$0xff]
    %v2672 = vld [vmem:[#allocation6 + $0xd8] sm:$0xff]
    %v2673 = vld [vmem:[#allocation6 + $0xe0] sm:$0xff]
    %v2674 = vld [vmem:[#allocation6 + $0xe8] sm:$0xff]
    %v2675 = vld [vmem:[#allocation6 + $0xf0] sm:$0xff]
    %v2676 = vld [vmem:[#allocation6 + $0xf8] sm:$0xff]
    %v2677 = vld [vmem:[%s9] sm:$0xf]
    %v2679 = vlaneseq
    %v2680 = vshrl.u32 %v2679, 7
    %v2681 = vsub.s32 0, %v2680
    %v2682 = vrot.slane %v2677, %v2681
    %v2683 = vlaneseq
    %v2684 = vshrl.u32 %v2683, 7
    %v2685 = vsub.s32 1, %v2684
    %v2686 = vrot.slane %v2677, %v2685
    %v2687 = vlaneseq
    %v2688 = vshrl.u32 %v2687, 7
    %v2689 = vsub.s32 2, %v2688
    %v2690 = vrot.slane %v2677, %v2689
    %v2691 = vlaneseq
    %v2692 = vshrl.u32 %v2691, 7
    %v2693 = vsub.s32 3, %v2692
    %v2694 = vrot.slane %v2677, %v2693
    %v2731 = vunpack.c.l.b16 %v2645
    %v2732 = vunpack.c.h.b16 %v2645
    %v2733 = vunpack.c.l.b16 %v2646
    %v2734 = vunpack.c.h.b16 %v2646
    %v2735 = vunpack.c.l.b16 %v2647
    %v2736 = vunpack.c.h.b16 %v2647
    %v2737 = vunpack.c.l.b16 %v2648
    %v2738 = vunpack.c.h.b16 %v2648
    %v2739 = vunpack.c.l.b16 %v2649
    %v2740 = vunpack.c.h.b16 %v2649
    %v2741 = vunpack.c.l.b16 %v2650
    %v2742 = vunpack.c.h.b16 %v2650
    %v2743 = vunpack.c.l.b16 %v2651
    %v2744 = vunpack.c.h.b16 %v2651
    %v2745 = vunpack.c.l.b16 %v2652
    %v2746 = vunpack.c.h.b16 %v2652
    %v2747 = vunpack.c.l.b16 %v2653
    %v2748 = vunpack.c.h.b16 %v2653
    %v2749 = vunpack.c.l.b16 %v2654
    %v2750 = vunpack.c.h.b16 %v2654
    %v2751 = vunpack.c.l.b16 %v2655
    %v2752 = vunpack.c.h.b16 %v2655
    %v2753 = vunpack.c.l.b16 %v2656
    %v2754 = vunpack.c.h.b16 %v2656
    %v2755 = vunpack.c.l.b16 %v2657
    %v2756 = vunpack.c.h.b16 %v2657
    %v2757 = vunpack.c.l.b16 %v2658
    %v2758 = vunpack.c.h.b16 %v2658
    %v2759 = vunpack.c.l.b16 %v2659
    %v2760 = vunpack.c.h.b16 %v2659
    %v2761 = vunpack.c.l.b16 %v2660
    %v2762 = vunpack.c.h.b16 %v2660
    %v2763 = vunpack.c.l.b16 %v2661
    %v2764 = vunpack.c.h.b16 %v2661
    %v2765 = vunpack.c.l.b16 %v2662
    %v2766 = vunpack.c.h.b16 %v2662
    %v2767 = vunpack.c.l.b16 %v2663
    %v2768 = vunpack.c.h.b16 %v2663
    %v2769 = vunpack.c.l.b16 %v2664
    %v2770 = vunpack.c.h.b16 %v2664
    %v2771 = vunpack.c.l.b16 %v2665
    %v2772 = vunpack.c.h.b16 %v2665
    %v2773 = vunpack.c.l.b16 %v2666
    %v2774 = vunpack.c.h.b16 %v2666
    %v2775 = vunpack.c.l.b16 %v2667
    %v2776 = vunpack.c.h.b16 %v2667
    %v2777 = vunpack.c.l.b16 %v2668
    %v2778 = vunpack.c.h.b16 %v2668
    %v2779 = vunpack.c.l.b16 %v2669
    %v2780 = vunpack.c.h.b16 %v2669
    %v2781 = vunpack.c.l.b16 %v2670
    %v2782 = vunpack.c.h.b16 %v2670
    %v2783 = vunpack.c.l.b16 %v2671
    %v2784 = vunpack.c.h.b16 %v2671
    %v2785 = vunpack.c.l.b16 %v2672
    %v2786 = vunpack.c.h.b16 %v2672
    %v2787 = vunpack.c.l.b16 %v2673
    %v2788 = vunpack.c.h.b16 %v2673
    %v2789 = vunpack.c.l.b16 %v2674
    %v2790 = vunpack.c.h.b16 %v2674
    %v2791 = vunpack.c.l.b16 %v2675
    %v2792 = vunpack.c.h.b16 %v2675
    %v2793 = vunpack.c.l.b16 %v2676
    %v2794 = vunpack.c.h.b16 %v2676
    %v2795 = vpack.c.b16 %v2735, %v2731
    %v2796 = vpack.c.b16 %v2736, %v2732
    %v2797 = vpack.c.b16 %v2737, %v2733
    %v2798 = vpack.c.b16 %v2738, %v2734
    %v2799 = vpack.c.b16 %v2743, %v2739
    %v2800 = vpack.c.b16 %v2744, %v2740
    %v2801 = vpack.c.b16 %v2745, %v2741
    %v2802 = vpack.c.b16 %v2746, %v2742
    %v2803 = vpack.c.b16 %v2751, %v2747
    %v2804 = vpack.c.b16 %v2752, %v2748
    %v2805 = vpack.c.b16 %v2753, %v2749
    %v2806 = vpack.c.b16 %v2754, %v2750
    %v2807 = vpack.c.b16 %v2759, %v2755
    %v2808 = vpack.c.b16 %v2760, %v2756
    %v2809 = vpack.c.b16 %v2761, %v2757
    %v2810 = vpack.c.b16 %v2762, %v2758
    %v2811 = vpack.c.b16 %v2767, %v2763
    %v2812 = vpack.c.b16 %v2768, %v2764
    %v2813 = vpack.c.b16 %v2769, %v2765
    %v2814 = vpack.c.b16 %v2770, %v2766
    %v2815 = vpack.c.b16 %v2775, %v2771
    %v2816 = vpack.c.b16 %v2776, %v2772
    %v2817 = vpack.c.b16 %v2777, %v2773
    %v2818 = vpack.c.b16 %v2778, %v2774
    %v2819 = vpack.c.b16 %v2783, %v2779
    %v2820 = vpack.c.b16 %v2784, %v2780
    %v2821 = vpack.c.b16 %v2785, %v2781
    %v2822 = vpack.c.b16 %v2786, %v2782
    %v2823 = vpack.c.b16 %v2791, %v2787
    %v2824 = vpack.c.b16 %v2792, %v2788
    %v2825 = vpack.c.b16 %v2793, %v2789
    %v2826 = vpack.c.b16 %v2794, %v2790
    %2859 = vmatprep.subr.bf16.mxu0 %v2796
    %2860 = vmatpush1.bf16.msra.mxu0 %v2795
    %2861 = vmatprep.subr.bf16.mxu0 %v2800
    %2862 = vmatpush1.bf16.msra.mxu0 %v2799
    %2863 = vmatprep.subr.bf16.mxu0 %v2804
    %2864 = vmatpush1.bf16.msra.mxu0 %v2803
    %2865 = vmatprep.subr.bf16.mxu0 %v2808
    %2866 = vmatpush1.bf16.msra.mxu0 %v2807
    %2867 = vmatprep.subr.bf16.mxu0 %v2812
    %2868 = vmatpush1.bf16.msra.mxu0 %v2811
    %2869 = vmatprep.subr.bf16.mxu0 %v2816
    %2870 = vmatpush1.bf16.msra.mxu0 %v2815
    %2871 = vmatprep.subr.bf16.mxu0 %v2820
    %2872 = vmatpush1.bf16.msra.mxu0 %v2819
    %2873 = vmatprep.subr.bf16.mxu0 %v2824
    %2874 = vmatpush1.bf16.msra.mxu0 %v2823
    %2875 = vmatprep.subr.bf16.mxu0 0
    %2876 = vmatpush1.bf16.msra.mxu0 0
    %2877 = vmatprep.subr.bf16.mxu0 0
    %2878 = vmatpush1.bf16.msra.mxu0 0
    %2879 = vmatprep.subr.bf16.mxu0 0
    %2880 = vmatpush1.bf16.msra.mxu0 0
    %2881 = vmatprep.subr.bf16.mxu0 0
    %2882 = vmatpush1.bf16.msra.mxu0 0
    %2883 = vmatprep.subr.bf16.mxu0 0
    %2884 = vmatpush1.bf16.msra.mxu0 0
    %2885 = vmatprep.subr.bf16.mxu0 0
    %2886 = vmatpush1.bf16.msra.mxu0 0
    %2887 = vmatprep.subr.bf16.mxu0 0
    %2888 = vmatpush1.bf16.msra.mxu0 0
    %2889 = vmatprep.subr.bf16.mxu0 0
    %2890 = vmatpush1.bf16.msra.mxu0 0
    %2891 = vmatprep.mubr.bf16.mxu0 0
    %2892 = vmatmul.mubr.bf16.gmra.mrb[0].mxu0 %v2644
    %v2893 = vpop.f32.mrb[0].mxu0
    %v2894 = vadd.f32 %v2682, %v2893
    %v2895 = vpop.f32.mrb[0].mxu0
    %v2896 = vadd.f32 %v2686, %v2895
    %v2897 = vpop.f32.mrb[0].mxu0
    %v2898 = vpop.f32.mrb[0].mxu0
    %2899 = vdwg.mxu0
    %2900 = vmatprep.subr.bf16.mxu0 %v2798
    %2901 = vmatpush1.bf16.msra.mxu0 %v2797
    %2902 = vmatprep.subr.bf16.mxu0 %v2802
    %2903 = vmatpush1.bf16.msra.mxu0 %v2801
    %2904 = vmatprep.subr.bf16.mxu0 %v2806
    %2905 = vmatpush1.bf16.msra.mxu0 %v2805
    %2906 = vmatprep.subr.bf16.mxu0 %v2810
    %2907 = vmatpush1.bf16.msra.mxu0 %v2809
    %2908 = vmatprep.subr.bf16.mxu0 %v2814
    %2909 = vmatpush1.bf16.msra.mxu0 %v2813
    %2910 = vmatprep.subr.bf16.mxu0 %v2818
    %2911 = vmatpush1.bf16.msra.mxu0 %v2817
    %2912 = vmatprep.subr.bf16.mxu0 %v2822
    %2913 = vmatpush1.bf16.msra.mxu0 %v2821
    %2914 = vmatprep.subr.bf16.mxu0 %v2826
    %2915 = vmatpush1.bf16.msra.mxu0 %v2825
    %2916 = vmatprep.subr.bf16.mxu0 0
    %2917 = vmatpush1.bf16.msra.mxu0 0
    %2918 = vmatprep.subr.bf16.mxu0 0
    %2919 = vmatpush1.bf16.msra.mxu0 0
    %2920 = vmatprep.subr.bf16.mxu0 0
    %2921 = vmatpush1.bf16.msra.mxu0 0
    %2922 = vmatprep.subr.bf16.mxu0 0
    %2923 = vmatpush1.bf16.msra.mxu0 0
    %2924 = vmatprep.subr.bf16.mxu0 0
    %2925 = vmatpush1.bf16.msra.mxu0 0
    %2926 = vmatprep.subr.bf16.mxu0 0
    %2927 = vmatpush1.bf16.msra.mxu0 0
    %2928 = vmatprep.subr.bf16.mxu0 0
    %2929 = vmatpush1.bf16.msra.mxu0 0
    %2930 = vmatprep.subr.bf16.mxu0 0
    %2931 = vmatpush1.bf16.msra.mxu0 0
    %2932 = vmatprep.mubr.bf16.mxu0 0
    %2933 = vmatmul.mubr.bf16.gmra.mrb[0].mxu0 %v2644
    %v2934 = vpop.f32.mrb[0].mxu0
    %v2935 = vadd.f32 %v2690, %v2934
    %v2936 = vpop.f32.mrb[0].mxu0
    %v2937 = vadd.f32 %v2694, %v2936
    %v2938 = vpop.f32.mrb[0].mxu0
    %v2939 = vpop.f32.mrb[0].mxu0
    %2940 = vdwg.mxu0
    %v2941 = vmax.f32 %v2894, 0.0
    %v2942 = vmax.f32 %v2896, 0.0
    %v2943 = vmax.f32 %v2935, 0.0
    %v2944 = vmax.f32 %v2937, 0.0
    %v2945 = vpack.c.bf16 %v2941, %v2941
    %v2946 = vpack.c.bf16 %v2942, %v2942
    %v2947 = vpack.c.bf16 %v2943, %v2943
    %v2948 = vpack.c.bf16 %v2944, %v2944
    %v2949 = vld [vmem:[#allocation7] sm:$0xff]
    %v2950 = vld [vmem:[#allocation7 + $0x8] sm:$0xff]
    %v2951 = vld [vmem:[#allocation7 + $0x10] sm:$0xff]
    %v2952 = vld [vmem:[#allocation7 + $0x18] sm:$0xff]
    %v2953 = vld [vmem:[#allocation7 + $0x20] sm:$0xff]
    %v2954 = vld [vmem:[#allocation7 + $0x28] sm:$0xff]
    %v2955 = vld [vmem:[#allocation7 + $0x30] sm:$0xff]
    %v2956 = vld [vmem:[#allocation7 + $0x38] sm:$0xff]
    %v2957 = vld [vmem:[#allocation7 + $0x40] sm:$0xff]
    %v2958 = vld [vmem:[#allocation7 + $0x48] sm:$0xff]
    %v2959 = vld [vmem:[#allocation7 + $0x50] sm:$0xff]
    %v2960 = vld [vmem:[#allocation7 + $0x58] sm:$0xff]
    %v2961 = vld [vmem:[#allocation7 + $0x60] sm:$0xff]
    %v2962 = vld [vmem:[#allocation7 + $0x68] sm:$0xff]
    %v2963 = vld [vmem:[#allocation7 + $0x70] sm:$0xff]
    %v2964 = vld [vmem:[#allocation7 + $0x78] sm:$0xff]
    %v2965 = vld [vmem:[#allocation7 + $0x80] sm:$0xff]
    %v2966 = vld [vmem:[#allocation7 + $0x88] sm:$0xff]
    %v2967 = vld [vmem:[#allocation7 + $0x90] sm:$0xff]
    %v2968 = vld [vmem:[#allocation7 + $0x98] sm:$0xff]
    %v2969 = vld [vmem:[#allocation7 + $0xa0] sm:$0xff]
    %v2970 = vld [vmem:[#allocation7 + $0xa8] sm:$0xff]
    %v2971 = vld [vmem:[#allocation7 + $0xb0] sm:$0xff]
    %v2972 = vld [vmem:[#allocation7 + $0xb8] sm:$0xff]
    %v2973 = vld [vmem:[#allocation7 + $0xc0] sm:$0xff]
    %v2974 = vld [vmem:[#allocation7 + $0xc8] sm:$0xff]
    %v2975 = vld [vmem:[#allocation7 + $0xd0] sm:$0xff]
    %v2976 = vld [vmem:[#allocation7 + $0xd8] sm:$0xff]
    %v2977 = vld [vmem:[#allocation7 + $0xe0] sm:$0xff]
    %v2978 = vld [vmem:[#allocation7 + $0xe8] sm:$0xff]
    %v2979 = vld [vmem:[#allocation7 + $0xf0] sm:$0xff]
    %v2980 = vld [vmem:[#allocation7 + $0xf8] sm:$0xff]
    %v2981 = vld [vmem:[#allocation7 + $0x100] sm:$0xff]
    %v2982 = vld [vmem:[#allocation7 + $0x108] sm:$0xff]
    %v2983 = vld [vmem:[#allocation7 + $0x110] sm:$0xff]
    %v2984 = vld [vmem:[#allocation7 + $0x118] sm:$0xff]
    %v2985 = vld [vmem:[#allocation7 + $0x120] sm:$0xff]
    %v2986 = vld [vmem:[#allocation7 + $0x128] sm:$0xff]
    %v2987 = vld [vmem:[#allocation7 + $0x130] sm:$0xff]
    %v2988 = vld [vmem:[#allocation7 + $0x138] sm:$0xff]
    %v2989 = vld [vmem:[#allocation7 + $0x140] sm:$0xff]
    %v2990 = vld [vmem:[#allocation7 + $0x148] sm:$0xff]
    %v2991 = vld [vmem:[#allocation7 + $0x150] sm:$0xff]
    %v2992 = vld [vmem:[#allocation7 + $0x158] sm:$0xff]
    %v2993 = vld [vmem:[#allocation7 + $0x160] sm:$0xff]
    %v2994 = vld [vmem:[#allocation7 + $0x168] sm:$0xff]
    %v2995 = vld [vmem:[#allocation7 + $0x170] sm:$0xff]
    %v2996 = vld [vmem:[#allocation7 + $0x178] sm:$0xff]
    %v2997 = vld [vmem:[#allocation7 + $0x180] sm:$0xff]
    %v2998 = vld [vmem:[#allocation7 + $0x188] sm:$0xff]
    %v2999 = vld [vmem:[#allocation7 + $0x190] sm:$0xff]
    %v3000 = vld [vmem:[#allocation7 + $0x198] sm:$0xff]
    %v3001 = vld [vmem:[#allocation7 + $0x1a0] sm:$0xff]
    %v3002 = vld [vmem:[#allocation7 + $0x1a8] sm:$0xff]
    %v3003 = vld [vmem:[#allocation7 + $0x1b0] sm:$0xff]
    %v3004 = vld [vmem:[#allocation7 + $0x1b8] sm:$0xff]
    %v3005 = vld [vmem:[#allocation7 + $0x1c0] sm:$0xff]
    %v3006 = vld [vmem:[#allocation7 + $0x1c8] sm:$0xff]
    %v3007 = vld [vmem:[#allocation7 + $0x1d0] sm:$0xff]
    %v3008 = vld [vmem:[#allocation7 + $0x1d8] sm:$0xff]
    %v3009 = vld [vmem:[#allocation7 + $0x1e0] sm:$0xff]
    %v3010 = vld [vmem:[#allocation7 + $0x1e8] sm:$0xff]
    %v3011 = vld [vmem:[#allocation7 + $0x1f0] sm:$0xff]
    %v3012 = vld [vmem:[#allocation7 + $0x1f8] sm:$0xff]
    %v3013 = vld [vmem:[#allocation7 + $0x200] sm:$0xff]
    %v3014 = vld [vmem:[#allocation7 + $0x208] sm:$0xff]
    %v3015 = vld [vmem:[#allocation7 + $0x210] sm:$0xff]
    %v3016 = vld [vmem:[#allocation7 + $0x218] sm:$0xff]
    %v3017 = vld [vmem:[#allocation7 + $0x220] sm:$0xff]
    %v3018 = vld [vmem:[#allocation7 + $0x228] sm:$0xff]
    %v3019 = vld [vmem:[#allocation7 + $0x230] sm:$0xff]
    %v3020 = vld [vmem:[#allocation7 + $0x238] sm:$0xff]
    %v3021 = vld [vmem:[#allocation7 + $0x240] sm:$0xff]
    %v3022 = vld [vmem:[#allocation7 + $0x248] sm:$0xff]
    %v3023 = vld [vmem:[#allocation7 + $0x250] sm:$0xff]
    %v3024 = vld [vmem:[#allocation7 + $0x258] sm:$0xff]
    %v3025 = vld [vmem:[#allocation7 + $0x260] sm:$0xff]
    %v3026 = vld [vmem:[#allocation7 + $0x268] sm:$0xff]
    %v3027 = vld [vmem:[#allocation7 + $0x270] sm:$0xff]
    %v3028 = vld [vmem:[#allocation7 + $0x278] sm:$0xff]
    %v3029 = vld [vmem:[#allocation7 + $0x280] sm:$0xff]
    %v3030 = vld [vmem:[#allocation7 + $0x288] sm:$0xff]
    %v3031 = vld [vmem:[#allocation7 + $0x290] sm:$0xff]
    %v3032 = vld [vmem:[#allocation7 + $0x298] sm:$0xff]
    %v3033 = vld [vmem:[#allocation7 + $0x2a0] sm:$0xff]
    %v3034 = vld [vmem:[#allocation7 + $0x2a8] sm:$0xff]
    %v3035 = vld [vmem:[#allocation7 + $0x2b0] sm:$0xff]
    %v3036 = vld [vmem:[#allocation7 + $0x2b8] sm:$0xff]
    %v3037 = vld [vmem:[#allocation7 + $0x2c0] sm:$0xff]
    %v3038 = vld [vmem:[#allocation7 + $0x2c8] sm:$0xff]
    %v3039 = vld [vmem:[#allocation7 + $0x2d0] sm:$0xff]
    %v3040 = vld [vmem:[#allocation7 + $0x2d8] sm:$0xff]
    %v3041 = vld [vmem:[#allocation7 + $0x2e0] sm:$0xff]
    %v3042 = vld [vmem:[#allocation7 + $0x2e8] sm:$0xff]
    %v3043 = vld [vmem:[#allocation7 + $0x2f0] sm:$0xff]
    %v3044 = vld [vmem:[#allocation7 + $0x2f8] sm:$0xff]
    %v3045 = vld [vmem:[#allocation7 + $0x300] sm:$0xff]
    %v3046 = vld [vmem:[#allocation7 + $0x308] sm:$0xff]
    %v3047 = vld [vmem:[#allocation7 + $0x310] sm:$0xff]
    %v3048 = vld [vmem:[#allocation7 + $0x318] sm:$0xff]
    %v3049 = vld [vmem:[#allocation7 + $0x320] sm:$0xff]
    %v3050 = vld [vmem:[#allocation7 + $0x328] sm:$0xff]
    %v3051 = vld [vmem:[#allocation7 + $0x330] sm:$0xff]
    %v3052 = vld [vmem:[#allocation7 + $0x338] sm:$0xff]
    %v3053 = vld [vmem:[#allocation7 + $0x340] sm:$0xff]
    %v3054 = vld [vmem:[#allocation7 + $0x348] sm:$0xff]
    %v3055 = vld [vmem:[#allocation7 + $0x350] sm:$0xff]
    %v3056 = vld [vmem:[#allocation7 + $0x358] sm:$0xff]
    %v3057 = vld [vmem:[#allocation7 + $0x360] sm:$0xff]
    %v3058 = vld [vmem:[#allocation7 + $0x368] sm:$0xff]
    %v3059 = vld [vmem:[#allocation7 + $0x370] sm:$0xff]
    %v3060 = vld [vmem:[#allocation7 + $0x378] sm:$0xff]
    %v3061 = vld [vmem:[#allocation7 + $0x380] sm:$0xff]
    %v3062 = vld [vmem:[#allocation7 + $0x388] sm:$0xff]
    %v3063 = vld [vmem:[#allocation7 + $0x390] sm:$0xff]
    %v3064 = vld [vmem:[#allocation7 + $0x398] sm:$0xff]
    %v3065 = vld [vmem:[#allocation7 + $0x3a0] sm:$0xff]
    %v3066 = vld [vmem:[#allocation7 + $0x3a8] sm:$0xff]
    %v3067 = vld [vmem:[#allocation7 + $0x3b0] sm:$0xff]
    %v3068 = vld [vmem:[#allocation7 + $0x3b8] sm:$0xff]
    %v3069 = vld [vmem:[#allocation7 + $0x3c0] sm:$0xff]
    %v3070 = vld [vmem:[#allocation7 + $0x3c8] sm:$0xff]
    %v3071 = vld [vmem:[#allocation7 + $0x3d0] sm:$0xff]
    %v3072 = vld [vmem:[#allocation7 + $0x3d8] sm:$0xff]
    %v3073 = vld [vmem:[#allocation7 + $0x3e0] sm:$0xff]
    %v3074 = vld [vmem:[#allocation7 + $0x3e8] sm:$0xff]
    %v3075 = vld [vmem:[#allocation7 + $0x3f0] sm:$0xff]
    %v3076 = vld [vmem:[#allocation7 + $0x3f8] sm:$0xff]
    %v3077 = vld [vmem:[#allocation7 + $0x400] sm:$0xff]
    %v3078 = vld [vmem:[#allocation7 + $0x408] sm:$0xff]
    %v3079 = vld [vmem:[#allocation7 + $0x410] sm:$0xff]
    %v3080 = vld [vmem:[#allocation7 + $0x418] sm:$0xff]
    %v3081 = vld [vmem:[#allocation7 + $0x420] sm:$0xff]
    %v3082 = vld [vmem:[#allocation7 + $0x428] sm:$0xff]
    %v3083 = vld [vmem:[#allocation7 + $0x430] sm:$0xff]
    %v3084 = vld [vmem:[#allocation7 + $0x438] sm:$0xff]
    %v3085 = vld [vmem:[#allocation7 + $0x440] sm:$0xff]
    %v3086 = vld [vmem:[#allocation7 + $0x448] sm:$0xff]
    %v3087 = vld [vmem:[#allocation7 + $0x450] sm:$0xff]
    %v3088 = vld [vmem:[#allocation7 + $0x458] sm:$0xff]
    %v3089 = vld [vmem:[#allocation7 + $0x460] sm:$0xff]
    %v3090 = vld [vmem:[#allocation7 + $0x468] sm:$0xff]
    %v3091 = vld [vmem:[#allocation7 + $0x470] sm:$0xff]
    %v3092 = vld [vmem:[#allocation7 + $0x478] sm:$0xff]
    %v3093 = vld [vmem:[#allocation7 + $0x480] sm:$0xff]
    %v3094 = vld [vmem:[#allocation7 + $0x488] sm:$0xff]
    %v3095 = vld [vmem:[#allocation7 + $0x490] sm:$0xff]
    %v3096 = vld [vmem:[#allocation7 + $0x498] sm:$0xff]
    %v3097 = vld [vmem:[#allocation7 + $0x4a0] sm:$0xff]
    %v3098 = vld [vmem:[#allocation7 + $0x4a8] sm:$0xff]
    %v3099 = vld [vmem:[#allocation7 + $0x4b0] sm:$0xff]
    %v3100 = vld [vmem:[#allocation7 + $0x4b8] sm:$0xff]
    %v3101 = vld [vmem:[#allocation7 + $0x4c0] sm:$0xff]
    %v3102 = vld [vmem:[#allocation7 + $0x4c8] sm:$0xff]
    %v3103 = vld [vmem:[#allocation7 + $0x4d0] sm:$0xff]
    %v3104 = vld [vmem:[#allocation7 + $0x4d8] sm:$0xff]
    %v3105 = vld [vmem:[#allocation7 + $0x4e0] sm:$0xff]
    %v3106 = vld [vmem:[#allocation7 + $0x4e8] sm:$0xff]
    %v3107 = vld [vmem:[#allocation7 + $0x4f0] sm:$0xff]
    %v3108 = vld [vmem:[#allocation7 + $0x4f8] sm:$0xff]
    %v3109 = vld [vmem:[#allocation7 + $0x500] sm:$0xff]
    %v3110 = vld [vmem:[#allocation7 + $0x508] sm:$0xff]
    %v3111 = vld [vmem:[#allocation7 + $0x510] sm:$0xff]
    %v3112 = vld [vmem:[#allocation7 + $0x518] sm:$0xff]
    %v3113 = vld [vmem:[#allocation7 + $0x520] sm:$0xff]
    %v3114 = vld [vmem:[#allocation7 + $0x528] sm:$0xff]
    %v3115 = vld [vmem:[#allocation7 + $0x530] sm:$0xff]
    %v3116 = vld [vmem:[#allocation7 + $0x538] sm:$0xff]
    %v3117 = vld [vmem:[#allocation7 + $0x540] sm:$0xff]
    %v3118 = vld [vmem:[#allocation7 + $0x548] sm:$0xff]
    %v3119 = vld [vmem:[#allocation7 + $0x550] sm:$0xff]
    %v3120 = vld [vmem:[#allocation7 + $0x558] sm:$0xff]
    %v3121 = vld [vmem:[#allocation7 + $0x560] sm:$0xff]
    %v3122 = vld [vmem:[#allocation7 + $0x568] sm:$0xff]
    %v3123 = vld [vmem:[#allocation7 + $0x570] sm:$0xff]
    %v3124 = vld [vmem:[#allocation7 + $0x578] sm:$0xff]
    %v3125 = vld [vmem:[#allocation7 + $0x580] sm:$0xff]
    %v3126 = vld [vmem:[#allocation7 + $0x588] sm:$0xff]
    %v3127 = vld [vmem:[#allocation7 + $0x590] sm:$0xff]
    %v3128 = vld [vmem:[#allocation7 + $0x598] sm:$0xff]
    %v3129 = vld [vmem:[#allocation7 + $0x5a0] sm:$0xff]
    %v3130 = vld [vmem:[#allocation7 + $0x5a8] sm:$0xff]
    %v3131 = vld [vmem:[#allocation7 + $0x5b0] sm:$0xff]
    %v3132 = vld [vmem:[#allocation7 + $0x5b8] sm:$0xff]
    %v3133 = vld [vmem:[#allocation7 + $0x5c0] sm:$0xff]
    %v3134 = vld [vmem:[#allocation7 + $0x5c8] sm:$0xff]
    %v3135 = vld [vmem:[#allocation7 + $0x5d0] sm:$0xff]
    %v3136 = vld [vmem:[#allocation7 + $0x5d8] sm:$0xff]
    %v3137 = vld [vmem:[#allocation7 + $0x5e0] sm:$0xff]
    %v3138 = vld [vmem:[#allocation7 + $0x5e8] sm:$0xff]
    %v3139 = vld [vmem:[#allocation7 + $0x5f0] sm:$0xff]
    %v3140 = vld [vmem:[#allocation7 + $0x5f8] sm:$0xff]
    %v3141 = vld [vmem:[#allocation7 + $0x600] sm:$0xff]
    %v3142 = vld [vmem:[#allocation7 + $0x608] sm:$0xff]
    %v3143 = vld [vmem:[#allocation7 + $0x610] sm:$0xff]
    %v3144 = vld [vmem:[#allocation7 + $0x618] sm:$0xff]
    %v3145 = vld [vmem:[#allocation7 + $0x620] sm:$0xff]
    %v3146 = vld [vmem:[#allocation7 + $0x628] sm:$0xff]
    %v3147 = vld [vmem:[#allocation7 + $0x630] sm:$0xff]
    %v3148 = vld [vmem:[#allocation7 + $0x638] sm:$0xff]
    %v3149 = vld [vmem:[#allocation7 + $0x640] sm:$0xff]
    %v3150 = vld [vmem:[#allocation7 + $0x648] sm:$0xff]
    %v3151 = vld [vmem:[#allocation7 + $0x650] sm:$0xff]
    %v3152 = vld [vmem:[#allocation7 + $0x658] sm:$0xff]
    %v3153 = vld [vmem:[#allocation7 + $0x660] sm:$0xff]
    %v3154 = vld [vmem:[#allocation7 + $0x668] sm:$0xff]
    %v3155 = vld [vmem:[#allocation7 + $0x670] sm:$0xff]
    %v3156 = vld [vmem:[#allocation7 + $0x678] sm:$0xff]
    %v3157 = vld [vmem:[#allocation7 + $0x680] sm:$0xff]
    %v3158 = vld [vmem:[#allocation7 + $0x688] sm:$0xff]
    %v3159 = vld [vmem:[#allocation7 + $0x690] sm:$0xff]
    %v3160 = vld [vmem:[#allocation7 + $0x698] sm:$0xff]
    %v3161 = vld [vmem:[#allocation7 + $0x6a0] sm:$0xff]
    %v3162 = vld [vmem:[#allocation7 + $0x6a8] sm:$0xff]
    %v3163 = vld [vmem:[#allocation7 + $0x6b0] sm:$0xff]
    %v3164 = vld [vmem:[#allocation7 + $0x6b8] sm:$0xff]
    %v3165 = vld [vmem:[#allocation7 + $0x6c0] sm:$0xff]
    %v3166 = vld [vmem:[#allocation7 + $0x6c8] sm:$0xff]
    %v3167 = vld [vmem:[#allocation7 + $0x6d0] sm:$0xff]
    %v3168 = vld [vmem:[#allocation7 + $0x6d8] sm:$0xff]
    %v3169 = vld [vmem:[#allocation7 + $0x6e0] sm:$0xff]
    %v3170 = vld [vmem:[#allocation7 + $0x6e8] sm:$0xff]
    %v3171 = vld [vmem:[#allocation7 + $0x6f0] sm:$0xff]
    %v3172 = vld [vmem:[#allocation7 + $0x6f8] sm:$0xff]
    %v3173 = vld [vmem:[#allocation7 + $0x700] sm:$0xff]
    %v3174 = vld [vmem:[#allocation7 + $0x708] sm:$0xff]
    %v3175 = vld [vmem:[#allocation7 + $0x710] sm:$0xff]
    %v3176 = vld [vmem:[#allocation7 + $0x718] sm:$0xff]
    %v3177 = vld [vmem:[#allocation7 + $0x720] sm:$0xff]
    %v3178 = vld [vmem:[#allocation7 + $0x728] sm:$0xff]
    %v3179 = vld [vmem:[#allocation7 + $0x730] sm:$0xff]
    %v3180 = vld [vmem:[#allocation7 + $0x738] sm:$0xff]
    %v3181 = vld [vmem:[#allocation7 + $0x740] sm:$0xff]
    %v3182 = vld [vmem:[#allocation7 + $0x748] sm:$0xff]
    %v3183 = vld [vmem:[#allocation7 + $0x750] sm:$0xff]
    %v3184 = vld [vmem:[#allocation7 + $0x758] sm:$0xff]
    %v3185 = vld [vmem:[#allocation7 + $0x760] sm:$0xff]
    %v3186 = vld [vmem:[#allocation7 + $0x768] sm:$0xff]
    %v3187 = vld [vmem:[#allocation7 + $0x770] sm:$0xff]
    %v3188 = vld [vmem:[#allocation7 + $0x778] sm:$0xff]
    %v3189 = vld [vmem:[#allocation7 + $0x780] sm:$0xff]
    %v3190 = vld [vmem:[#allocation7 + $0x788] sm:$0xff]
    %v3191 = vld [vmem:[#allocation7 + $0x790] sm:$0xff]
    %v3192 = vld [vmem:[#allocation7 + $0x798] sm:$0xff]
    %v3193 = vld [vmem:[#allocation7 + $0x7a0] sm:$0xff]
    %v3194 = vld [vmem:[#allocation7 + $0x7a8] sm:$0xff]
    %v3195 = vld [vmem:[#allocation7 + $0x7b0] sm:$0xff]
    %v3196 = vld [vmem:[#allocation7 + $0x7b8] sm:$0xff]
    %v3197 = vld [vmem:[#allocation7 + $0x7c0] sm:$0xff]
    %v3198 = vld [vmem:[#allocation7 + $0x7c8] sm:$0xff]
    %v3199 = vld [vmem:[#allocation7 + $0x7d0] sm:$0xff]
    %v3200 = vld [vmem:[#allocation7 + $0x7d8] sm:$0xff]
    %v3201 = vld [vmem:[#allocation7 + $0x7e0] sm:$0xff]
    %v3202 = vld [vmem:[#allocation7 + $0x7e8] sm:$0xff]
    %v3203 = vld [vmem:[#allocation7 + $0x7f0] sm:$0xff]
    %v3204 = vld [vmem:[#allocation7 + $0x7f8] sm:$0xff]
    %v3205 = vld [vmem:[%s11] sm:$0xff]
    %v3207 = vlaneseq
    %v3208 = vshrl.u32 %v3207, 7
    %v3209 = vsub.s32 0, %v3208
    %v3210 = vrot.slane %v3205, %v3209
    %v3211 = vlaneseq
    %v3212 = vshrl.u32 %v3211, 7
    %v3213 = vsub.s32 1, %v3212
    %v3214 = vrot.slane %v3205, %v3213
    %v3215 = vlaneseq
    %v3216 = vshrl.u32 %v3215, 7
    %v3217 = vsub.s32 2, %v3216
    %v3218 = vrot.slane %v3205, %v3217
    %v3219 = vlaneseq
    %v3220 = vshrl.u32 %v3219, 7
    %v3221 = vsub.s32 3, %v3220
    %v3222 = vrot.slane %v3205, %v3221
    %v3223 = vlaneseq
    %v3224 = vshrl.u32 %v3223, 7
    %v3225 = vsub.s32 4, %v3224
    %v3226 = vrot.slane %v3205, %v3225
    %v3227 = vlaneseq
    %v3228 = vshrl.u32 %v3227, 7
    %v3229 = vsub.s32 5, %v3228
    %v3230 = vrot.slane %v3205, %v3229
    %v3231 = vlaneseq
    %v3232 = vshrl.u32 %v3231, 7
    %v3233 = vsub.s32 6, %v3232
    %v3234 = vrot.slane %v3205, %v3233
    %v3235 = vlaneseq
    %v3236 = vshrl.u32 %v3235, 7
    %v3237 = vsub.s32 7, %v3236
    %v3238 = vrot.slane %v3205, %v3237
    %v3503 = vunpack.c.l.b16 %v2949
    %v3504 = vunpack.c.h.b16 %v2949
    %v3505 = vunpack.c.l.b16 %v2950
    %v3506 = vunpack.c.h.b16 %v2950
    %v3507 = vunpack.c.l.b16 %v2951
    %v3508 = vunpack.c.h.b16 %v2951
    %v3509 = vunpack.c.l.b16 %v2952
    %v3510 = vunpack.c.h.b16 %v2952
    %v3511 = vunpack.c.l.b16 %v2953
    %v3512 = vunpack.c.h.b16 %v2953
    %v3513 = vunpack.c.l.b16 %v2954
    %v3514 = vunpack.c.h.b16 %v2954
    %v3515 = vunpack.c.l.b16 %v2955
    %v3516 = vunpack.c.h.b16 %v2955
    %v3517 = vunpack.c.l.b16 %v2956
    %v3518 = vunpack.c.h.b16 %v2956
    %v3519 = vunpack.c.l.b16 %v2957
    %v3520 = vunpack.c.h.b16 %v2957
    %v3521 = vunpack.c.l.b16 %v2958
    %v3522 = vunpack.c.h.b16 %v2958
    %v3523 = vunpack.c.l.b16 %v2959
    %v3524 = vunpack.c.h.b16 %v2959
    %v3525 = vunpack.c.l.b16 %v2960
    %v3526 = vunpack.c.h.b16 %v2960
    %v3527 = vunpack.c.l.b16 %v2961
    %v3528 = vunpack.c.h.b16 %v2961
    %v3529 = vunpack.c.l.b16 %v2962
    %v3530 = vunpack.c.h.b16 %v2962
    %v3531 = vunpack.c.l.b16 %v2963
    %v3532 = vunpack.c.h.b16 %v2963
    %v3533 = vunpack.c.l.b16 %v2964
    %v3534 = vunpack.c.h.b16 %v2964
    %v3535 = vunpack.c.l.b16 %v2965
    %v3536 = vunpack.c.h.b16 %v2965
    %v3537 = vunpack.c.l.b16 %v2966
    %v3538 = vunpack.c.h.b16 %v2966
    %v3539 = vunpack.c.l.b16 %v2967
    %v3540 = vunpack.c.h.b16 %v2967
    %v3541 = vunpack.c.l.b16 %v2968
    %v3542 = vunpack.c.h.b16 %v2968
    %v3543 = vunpack.c.l.b16 %v2969
    %v3544 = vunpack.c.h.b16 %v2969
    %v3545 = vunpack.c.l.b16 %v2970
    %v3546 = vunpack.c.h.b16 %v2970
    %v3547 = vunpack.c.l.b16 %v2971
    %v3548 = vunpack.c.h.b16 %v2971
    %v3549 = vunpack.c.l.b16 %v2972
    %v3550 = vunpack.c.h.b16 %v2972
    %v3551 = vunpack.c.l.b16 %v2973
    %v3552 = vunpack.c.h.b16 %v2973
    %v3553 = vunpack.c.l.b16 %v2974
    %v3554 = vunpack.c.h.b16 %v2974
    %v3555 = vunpack.c.l.b16 %v2975
    %v3556 = vunpack.c.h.b16 %v2975
    %v3557 = vunpack.c.l.b16 %v2976
    %v3558 = vunpack.c.h.b16 %v2976
    %v3559 = vunpack.c.l.b16 %v2977
    %v3560 = vunpack.c.h.b16 %v2977
    %v3561 = vunpack.c.l.b16 %v2978
    %v3562 = vunpack.c.h.b16 %v2978
    %v3563 = vunpack.c.l.b16 %v2979
    %v3564 = vunpack.c.h.b16 %v2979
    %v3565 = vunpack.c.l.b16 %v2980
    %v3566 = vunpack.c.h.b16 %v2980
    %v3567 = vunpack.c.l.b16 %v2981
    %v3568 = vunpack.c.h.b16 %v2981
    %v3569 = vunpack.c.l.b16 %v2982
    %v3570 = vunpack.c.h.b16 %v2982
    %v3571 = vunpack.c.l.b16 %v2983
    %v3572 = vunpack.c.h.b16 %v2983
    %v3573 = vunpack.c.l.b16 %v2984
    %v3574 = vunpack.c.h.b16 %v2984
    %v3575 = vunpack.c.l.b16 %v2985
    %v3576 = vunpack.c.h.b16 %v2985
    %v3577 = vunpack.c.l.b16 %v2986
    %v3578 = vunpack.c.h.b16 %v2986
    %v3579 = vunpack.c.l.b16 %v2987
    %v3580 = vunpack.c.h.b16 %v2987
    %v3581 = vunpack.c.l.b16 %v2988
    %v3582 = vunpack.c.h.b16 %v2988
    %v3583 = vunpack.c.l.b16 %v2989
    %v3584 = vunpack.c.h.b16 %v2989
    %v3585 = vunpack.c.l.b16 %v2990
    %v3586 = vunpack.c.h.b16 %v2990
    %v3587 = vunpack.c.l.b16 %v2991
    %v3588 = vunpack.c.h.b16 %v2991
    %v3589 = vunpack.c.l.b16 %v2992
    %v3590 = vunpack.c.h.b16 %v2992
    %v3591 = vunpack.c.l.b16 %v2993
    %v3592 = vunpack.c.h.b16 %v2993
    %v3593 = vunpack.c.l.b16 %v2994
    %v3594 = vunpack.c.h.b16 %v2994
    %v3595 = vunpack.c.l.b16 %v2995
    %v3596 = vunpack.c.h.b16 %v2995
    %v3597 = vunpack.c.l.b16 %v2996
    %v3598 = vunpack.c.h.b16 %v2996
    %v3599 = vunpack.c.l.b16 %v2997
    %v3600 = vunpack.c.h.b16 %v2997
    %v3601 = vunpack.c.l.b16 %v2998
    %v3602 = vunpack.c.h.b16 %v2998
    %v3603 = vunpack.c.l.b16 %v2999
    %v3604 = vunpack.c.h.b16 %v2999
    %v3605 = vunpack.c.l.b16 %v3000
    %v3606 = vunpack.c.h.b16 %v3000
    %v3607 = vunpack.c.l.b16 %v3001
    %v3608 = vunpack.c.h.b16 %v3001
    %v3609 = vunpack.c.l.b16 %v3002
    %v3610 = vunpack.c.h.b16 %v3002
    %v3611 = vunpack.c.l.b16 %v3003
    %v3612 = vunpack.c.h.b16 %v3003
    %v3613 = vunpack.c.l.b16 %v3004
    %v3614 = vunpack.c.h.b16 %v3004
    %v3615 = vunpack.c.l.b16 %v3005
    %v3616 = vunpack.c.h.b16 %v3005
    %v3617 = vunpack.c.l.b16 %v3006
    %v3618 = vunpack.c.h.b16 %v3006
    %v3619 = vunpack.c.l.b16 %v3007
    %v3620 = vunpack.c.h.b16 %v3007
    %v3621 = vunpack.c.l.b16 %v3008
    %v3622 = vunpack.c.h.b16 %v3008
    %v3623 = vunpack.c.l.b16 %v3009
    %v3624 = vunpack.c.h.b16 %v3009
    %v3625 = vunpack.c.l.b16 %v3010
    %v3626 = vunpack.c.h.b16 %v3010
    %v3627 = vunpack.c.l.b16 %v3011
    %v3628 = vunpack.c.h.b16 %v3011
    %v3629 = vunpack.c.l.b16 %v3012
    %v3630 = vunpack.c.h.b16 %v3012
    %v3631 = vunpack.c.l.b16 %v3013
    %v3632 = vunpack.c.h.b16 %v3013
    %v3633 = vunpack.c.l.b16 %v3014
    %v3634 = vunpack.c.h.b16 %v3014
    %v3635 = vunpack.c.l.b16 %v3015
    %v3636 = vunpack.c.h.b16 %v3015
    %v3637 = vunpack.c.l.b16 %v3016
    %v3638 = vunpack.c.h.b16 %v3016
    %v3639 = vunpack.c.l.b16 %v3017
    %v3640 = vunpack.c.h.b16 %v3017
    %v3641 = vunpack.c.l.b16 %v3018
    %v3642 = vunpack.c.h.b16 %v3018
    %v3643 = vunpack.c.l.b16 %v3019
    %v3644 = vunpack.c.h.b16 %v3019
    %v3645 = vunpack.c.l.b16 %v3020
    %v3646 = vunpack.c.h.b16 %v3020
    %v3647 = vunpack.c.l.b16 %v3021
    %v3648 = vunpack.c.h.b16 %v3021
    %v3649 = vunpack.c.l.b16 %v3022
    %v3650 = vunpack.c.h.b16 %v3022
    %v3651 = vunpack.c.l.b16 %v3023
    %v3652 = vunpack.c.h.b16 %v3023
    %v3653 = vunpack.c.l.b16 %v3024
    %v3654 = vunpack.c.h.b16 %v3024
    %v3655 = vunpack.c.l.b16 %v3025
    %v3656 = vunpack.c.h.b16 %v3025
    %v3657 = vunpack.c.l.b16 %v3026
    %v3658 = vunpack.c.h.b16 %v3026
    %v3659 = vunpack.c.l.b16 %v3027
    %v3660 = vunpack.c.h.b16 %v3027
    %v3661 = vunpack.c.l.b16 %v3028
    %v3662 = vunpack.c.h.b16 %v3028
    %v3663 = vunpack.c.l.b16 %v3029
    %v3664 = vunpack.c.h.b16 %v3029
    %v3665 = vunpack.c.l.b16 %v3030
    %v3666 = vunpack.c.h.b16 %v3030
    %v3667 = vunpack.c.l.b16 %v3031
    %v3668 = vunpack.c.h.b16 %v3031
    %v3669 = vunpack.c.l.b16 %v3032
    %v3670 = vunpack.c.h.b16 %v3032
    %v3671 = vunpack.c.l.b16 %v3033
    %v3672 = vunpack.c.h.b16 %v3033
    %v3673 = vunpack.c.l.b16 %v3034
    %v3674 = vunpack.c.h.b16 %v3034
    %v3675 = vunpack.c.l.b16 %v3035
    %v3676 = vunpack.c.h.b16 %v3035
    %v3677 = vunpack.c.l.b16 %v3036
    %v3678 = vunpack.c.h.b16 %v3036
    %v3679 = vunpack.c.l.b16 %v3037
    %v3680 = vunpack.c.h.b16 %v3037
    %v3681 = vunpack.c.l.b16 %v3038
    %v3682 = vunpack.c.h.b16 %v3038
    %v3683 = vunpack.c.l.b16 %v3039
    %v3684 = vunpack.c.h.b16 %v3039
    %v3685 = vunpack.c.l.b16 %v3040
    %v3686 = vunpack.c.h.b16 %v3040
    %v3687 = vunpack.c.l.b16 %v3041
    %v3688 = vunpack.c.h.b16 %v3041
    %v3689 = vunpack.c.l.b16 %v3042
    %v3690 = vunpack.c.h.b16 %v3042
    %v3691 = vunpack.c.l.b16 %v3043
    %v3692 = vunpack.c.h.b16 %v3043
    %v3693 = vunpack.c.l.b16 %v3044
    %v3694 = vunpack.c.h.b16 %v3044
    %v3695 = vunpack.c.l.b16 %v3045
    %v3696 = vunpack.c.h.b16 %v3045
    %v3697 = vunpack.c.l.b16 %v3046
    %v3698 = vunpack.c.h.b16 %v3046
    %v3699 = vunpack.c.l.b16 %v3047
    %v3700 = vunpack.c.h.b16 %v3047
    %v3701 = vunpack.c.l.b16 %v3048
    %v3702 = vunpack.c.h.b16 %v3048
    %v3703 = vunpack.c.l.b16 %v3049
    %v3704 = vunpack.c.h.b16 %v3049
    %v3705 = vunpack.c.l.b16 %v3050
    %v3706 = vunpack.c.h.b16 %v3050
    %v3707 = vunpack.c.l.b16 %v3051
    %v3708 = vunpack.c.h.b16 %v3051
    %v3709 = vunpack.c.l.b16 %v3052
    %v3710 = vunpack.c.h.b16 %v3052
    %v3711 = vunpack.c.l.b16 %v3053
    %v3712 = vunpack.c.h.b16 %v3053
    %v3713 = vunpack.c.l.b16 %v3054
    %v3714 = vunpack.c.h.b16 %v3054
    %v3715 = vunpack.c.l.b16 %v3055
    %v3716 = vunpack.c.h.b16 %v3055
    %v3717 = vunpack.c.l.b16 %v3056
    %v3718 = vunpack.c.h.b16 %v3056
    %v3719 = vunpack.c.l.b16 %v3057
    %v3720 = vunpack.c.h.b16 %v3057
    %v3721 = vunpack.c.l.b16 %v3058
    %v3722 = vunpack.c.h.b16 %v3058
    %v3723 = vunpack.c.l.b16 %v3059
    %v3724 = vunpack.c.h.b16 %v3059
    %v3725 = vunpack.c.l.b16 %v3060
    %v3726 = vunpack.c.h.b16 %v3060
    %v3727 = vunpack.c.l.b16 %v3061
    %v3728 = vunpack.c.h.b16 %v3061
    %v3729 = vunpack.c.l.b16 %v3062
    %v3730 = vunpack.c.h.b16 %v3062
    %v3731 = vunpack.c.l.b16 %v3063
    %v3732 = vunpack.c.h.b16 %v3063
    %v3733 = vunpack.c.l.b16 %v3064
    %v3734 = vunpack.c.h.b16 %v3064
    %v3735 = vunpack.c.l.b16 %v3065
    %v3736 = vunpack.c.h.b16 %v3065
    %v3737 = vunpack.c.l.b16 %v3066
    %v3738 = vunpack.c.h.b16 %v3066
    %v3739 = vunpack.c.l.b16 %v3067
    %v3740 = vunpack.c.h.b16 %v3067
    %v3741 = vunpack.c.l.b16 %v3068
    %v3742 = vunpack.c.h.b16 %v3068
    %v3743 = vunpack.c.l.b16 %v3069
    %v3744 = vunpack.c.h.b16 %v3069
    %v3745 = vunpack.c.l.b16 %v3070
    %v3746 = vunpack.c.h.b16 %v3070
    %v3747 = vunpack.c.l.b16 %v3071
    %v3748 = vunpack.c.h.b16 %v3071
    %v3749 = vunpack.c.l.b16 %v3072
    %v3750 = vunpack.c.h.b16 %v3072
    %v3751 = vunpack.c.l.b16 %v3073
    %v3752 = vunpack.c.h.b16 %v3073
    %v3753 = vunpack.c.l.b16 %v3074
    %v3754 = vunpack.c.h.b16 %v3074
    %v3755 = vunpack.c.l.b16 %v3075
    %v3756 = vunpack.c.h.b16 %v3075
    %v3757 = vunpack.c.l.b16 %v3076
    %v3758 = vunpack.c.h.b16 %v3076
    %v3759 = vunpack.c.l.b16 %v3077
    %v3760 = vunpack.c.h.b16 %v3077
    %v3761 = vunpack.c.l.b16 %v3078
    %v3762 = vunpack.c.h.b16 %v3078
    %v3763 = vunpack.c.l.b16 %v3079
    %v3764 = vunpack.c.h.b16 %v3079
    %v3765 = vunpack.c.l.b16 %v3080
    %v3766 = vunpack.c.h.b16 %v3080
    %v3767 = vunpack.c.l.b16 %v3081
    %v3768 = vunpack.c.h.b16 %v3081
    %v3769 = vunpack.c.l.b16 %v3082
    %v3770 = vunpack.c.h.b16 %v3082
    %v3771 = vunpack.c.l.b16 %v3083
    %v3772 = vunpack.c.h.b16 %v3083
    %v3773 = vunpack.c.l.b16 %v3084
    %v3774 = vunpack.c.h.b16 %v3084
    %v3775 = vunpack.c.l.b16 %v3085
    %v3776 = vunpack.c.h.b16 %v3085
    %v3777 = vunpack.c.l.b16 %v3086
    %v3778 = vunpack.c.h.b16 %v3086
    %v3779 = vunpack.c.l.b16 %v3087
    %v3780 = vunpack.c.h.b16 %v3087
    %v3781 = vunpack.c.l.b16 %v3088
    %v3782 = vunpack.c.h.b16 %v3088
    %v3783 = vunpack.c.l.b16 %v3089
    %v3784 = vunpack.c.h.b16 %v3089
    %v3785 = vunpack.c.l.b16 %v3090
    %v3786 = vunpack.c.h.b16 %v3090
    %v3787 = vunpack.c.l.b16 %v3091
    %v3788 = vunpack.c.h.b16 %v3091
    %v3789 = vunpack.c.l.b16 %v3092
    %v3790 = vunpack.c.h.b16 %v3092
    %v3791 = vunpack.c.l.b16 %v3093
    %v3792 = vunpack.c.h.b16 %v3093
    %v3793 = vunpack.c.l.b16 %v3094
    %v3794 = vunpack.c.h.b16 %v3094
    %v3795 = vunpack.c.l.b16 %v3095
    %v3796 = vunpack.c.h.b16 %v3095
    %v3797 = vunpack.c.l.b16 %v3096
    %v3798 = vunpack.c.h.b16 %v3096
    %v3799 = vunpack.c.l.b16 %v3097
    %v3800 = vunpack.c.h.b16 %v3097
    %v3801 = vunpack.c.l.b16 %v3098
    %v3802 = vunpack.c.h.b16 %v3098
    %v3803 = vunpack.c.l.b16 %v3099
    %v3804 = vunpack.c.h.b16 %v3099
    %v3805 = vunpack.c.l.b16 %v3100
    %v3806 = vunpack.c.h.b16 %v3100
    %v3807 = vunpack.c.l.b16 %v3101
    %v3808 = vunpack.c.h.b16 %v3101
    %v3809 = vunpack.c.l.b16 %v3102
    %v3810 = vunpack.c.h.b16 %v3102
    %v3811 = vunpack.c.l.b16 %v3103
    %v3812 = vunpack.c.h.b16 %v3103
    %v3813 = vunpack.c.l.b16 %v3104
    %v3814 = vunpack.c.h.b16 %v3104
    %v3815 = vunpack.c.l.b16 %v3105
    %v3816 = vunpack.c.h.b16 %v3105
    %v3817 = vunpack.c.l.b16 %v3106
    %v3818 = vunpack.c.h.b16 %v3106
    %v3819 = vunpack.c.l.b16 %v3107
    %v3820 = vunpack.c.h.b16 %v3107
    %v3821 = vunpack.c.l.b16 %v3108
    %v3822 = vunpack.c.h.b16 %v3108
    %v3823 = vunpack.c.l.b16 %v3109
    %v3824 = vunpack.c.h.b16 %v3109
    %v3825 = vunpack.c.l.b16 %v3110
    %v3826 = vunpack.c.h.b16 %v3110
    %v3827 = vunpack.c.l.b16 %v3111
    %v3828 = vunpack.c.h.b16 %v3111
    %v3829 = vunpack.c.l.b16 %v3112
    %v3830 = vunpack.c.h.b16 %v3112
    %v3831 = vunpack.c.l.b16 %v3113
    %v3832 = vunpack.c.h.b16 %v3113
    %v3833 = vunpack.c.l.b16 %v3114
    %v3834 = vunpack.c.h.b16 %v3114
    %v3835 = vunpack.c.l.b16 %v3115
    %v3836 = vunpack.c.h.b16 %v3115
    %v3837 = vunpack.c.l.b16 %v3116
    %v3838 = vunpack.c.h.b16 %v3116
    %v3839 = vunpack.c.l.b16 %v3117
    %v3840 = vunpack.c.h.b16 %v3117
    %v3841 = vunpack.c.l.b16 %v3118
    %v3842 = vunpack.c.h.b16 %v3118
    %v3843 = vunpack.c.l.b16 %v3119
    %v3844 = vunpack.c.h.b16 %v3119
    %v3845 = vunpack.c.l.b16 %v3120
    %v3846 = vunpack.c.h.b16 %v3120
    %v3847 = vunpack.c.l.b16 %v3121
    %v3848 = vunpack.c.h.b16 %v3121
    %v3849 = vunpack.c.l.b16 %v3122
    %v3850 = vunpack.c.h.b16 %v3122
    %v3851 = vunpack.c.l.b16 %v3123
    %v3852 = vunpack.c.h.b16 %v3123
    %v3853 = vunpack.c.l.b16 %v3124
    %v3854 = vunpack.c.h.b16 %v3124
    %v3855 = vunpack.c.l.b16 %v3125
    %v3856 = vunpack.c.h.b16 %v3125
    %v3857 = vunpack.c.l.b16 %v3126
    %v3858 = vunpack.c.h.b16 %v3126
    %v3859 = vunpack.c.l.b16 %v3127
    %v3860 = vunpack.c.h.b16 %v3127
    %v3861 = vunpack.c.l.b16 %v3128
    %v3862 = vunpack.c.h.b16 %v3128
    %v3863 = vunpack.c.l.b16 %v3129
    %v3864 = vunpack.c.h.b16 %v3129
    %v3865 = vunpack.c.l.b16 %v3130
    %v3866 = vunpack.c.h.b16 %v3130
    %v3867 = vunpack.c.l.b16 %v3131
    %v3868 = vunpack.c.h.b16 %v3131
    %v3869 = vunpack.c.l.b16 %v3132
    %v3870 = vunpack.c.h.b16 %v3132
    %v3871 = vunpack.c.l.b16 %v3133
    %v3872 = vunpack.c.h.b16 %v3133
    %v3873 = vunpack.c.l.b16 %v3134
    %v3874 = vunpack.c.h.b16 %v3134
    %v3875 = vunpack.c.l.b16 %v3135
    %v3876 = vunpack.c.h.b16 %v3135
    %v3877 = vunpack.c.l.b16 %v3136
    %v3878 = vunpack.c.h.b16 %v3136
    %v3879 = vunpack.c.l.b16 %v3137
    %v3880 = vunpack.c.h.b16 %v3137
    %v3881 = vunpack.c.l.b16 %v3138
    %v3882 = vunpack.c.h.b16 %v3138
    %v3883 = vunpack.c.l.b16 %v3139
    %v3884 = vunpack.c.h.b16 %v3139
    %v3885 = vunpack.c.l.b16 %v3140
    %v3886 = vunpack.c.h.b16 %v3140
    %v3887 = vunpack.c.l.b16 %v3141
    %v3888 = vunpack.c.h.b16 %v3141
    %v3889 = vunpack.c.l.b16 %v3142
    %v3890 = vunpack.c.h.b16 %v3142
    %v3891 = vunpack.c.l.b16 %v3143
    %v3892 = vunpack.c.h.b16 %v3143
    %v3893 = vunpack.c.l.b16 %v3144
    %v3894 = vunpack.c.h.b16 %v3144
    %v3895 = vunpack.c.l.b16 %v3145
    %v3896 = vunpack.c.h.b16 %v3145
    %v3897 = vunpack.c.l.b16 %v3146
    %v3898 = vunpack.c.h.b16 %v3146
    %v3899 = vunpack.c.l.b16 %v3147
    %v3900 = vunpack.c.h.b16 %v3147
    %v3901 = vunpack.c.l.b16 %v3148
    %v3902 = vunpack.c.h.b16 %v3148
    %v3903 = vunpack.c.l.b16 %v3149
    %v3904 = vunpack.c.h.b16 %v3149
    %v3905 = vunpack.c.l.b16 %v3150
    %v3906 = vunpack.c.h.b16 %v3150
    %v3907 = vunpack.c.l.b16 %v3151
    %v3908 = vunpack.c.h.b16 %v3151
    %v3909 = vunpack.c.l.b16 %v3152
    %v3910 = vunpack.c.h.b16 %v3152
    %v3911 = vunpack.c.l.b16 %v3153
    %v3912 = vunpack.c.h.b16 %v3153
    %v3913 = vunpack.c.l.b16 %v3154
    %v3914 = vunpack.c.h.b16 %v3154
    %v3915 = vunpack.c.l.b16 %v3155
    %v3916 = vunpack.c.h.b16 %v3155
    %v3917 = vunpack.c.l.b16 %v3156
    %v3918 = vunpack.c.h.b16 %v3156
    %v3919 = vunpack.c.l.b16 %v3157
    %v3920 = vunpack.c.h.b16 %v3157
    %v3921 = vunpack.c.l.b16 %v3158
    %v3922 = vunpack.c.h.b16 %v3158
    %v3923 = vunpack.c.l.b16 %v3159
    %v3924 = vunpack.c.h.b16 %v3159
    %v3925 = vunpack.c.l.b16 %v3160
    %v3926 = vunpack.c.h.b16 %v3160
    %v3927 = vunpack.c.l.b16 %v3161
    %v3928 = vunpack.c.h.b16 %v3161
    %v3929 = vunpack.c.l.b16 %v3162
    %v3930 = vunpack.c.h.b16 %v3162
    %v3931 = vunpack.c.l.b16 %v3163
    %v3932 = vunpack.c.h.b16 %v3163
    %v3933 = vunpack.c.l.b16 %v3164
    %v3934 = vunpack.c.h.b16 %v3164
    %v3935 = vunpack.c.l.b16 %v3165
    %v3936 = vunpack.c.h.b16 %v3165
    %v3937 = vunpack.c.l.b16 %v3166
    %v3938 = vunpack.c.h.b16 %v3166
    %v3939 = vunpack.c.l.b16 %v3167
    %v3940 = vunpack.c.h.b16 %v3167
    %v3941 = vunpack.c.l.b16 %v3168
    %v3942 = vunpack.c.h.b16 %v3168
    %v3943 = vunpack.c.l.b16 %v3169
    %v3944 = vunpack.c.h.b16 %v3169
    %v3945 = vunpack.c.l.b16 %v3170
    %v3946 = vunpack.c.h.b16 %v3170
    %v3947 = vunpack.c.l.b16 %v3171
    %v3948 = vunpack.c.h.b16 %v3171
    %v3949 = vunpack.c.l.b16 %v3172
    %v3950 = vunpack.c.h.b16 %v3172
    %v3951 = vunpack.c.l.b16 %v3173
    %v3952 = vunpack.c.h.b16 %v3173
    %v3953 = vunpack.c.l.b16 %v3174
    %v3954 = vunpack.c.h.b16 %v3174
    %v3955 = vunpack.c.l.b16 %v3175
    %v3956 = vunpack.c.h.b16 %v3175
    %v3957 = vunpack.c.l.b16 %v3176
    %v3958 = vunpack.c.h.b16 %v3176
    %v3959 = vunpack.c.l.b16 %v3177
    %v3960 = vunpack.c.h.b16 %v3177
    %v3961 = vunpack.c.l.b16 %v3178
    %v3962 = vunpack.c.h.b16 %v3178
    %v3963 = vunpack.c.l.b16 %v3179
    %v3964 = vunpack.c.h.b16 %v3179
    %v3965 = vunpack.c.l.b16 %v3180
    %v3966 = vunpack.c.h.b16 %v3180
    %v3967 = vunpack.c.l.b16 %v3181
    %v3968 = vunpack.c.h.b16 %v3181
    %v3969 = vunpack.c.l.b16 %v3182
    %v3970 = vunpack.c.h.b16 %v3182
    %v3971 = vunpack.c.l.b16 %v3183
    %v3972 = vunpack.c.h.b16 %v3183
    %v3973 = vunpack.c.l.b16 %v3184
    %v3974 = vunpack.c.h.b16 %v3184
    %v3975 = vunpack.c.l.b16 %v3185
    %v3976 = vunpack.c.h.b16 %v3185
    %v3977 = vunpack.c.l.b16 %v3186
    %v3978 = vunpack.c.h.b16 %v3186
    %v3979 = vunpack.c.l.b16 %v3187
    %v3980 = vunpack.c.h.b16 %v3187
    %v3981 = vunpack.c.l.b16 %v3188
    %v3982 = vunpack.c.h.b16 %v3188
    %v3983 = vunpack.c.l.b16 %v3189
    %v3984 = vunpack.c.h.b16 %v3189
    %v3985 = vunpack.c.l.b16 %v3190
    %v3986 = vunpack.c.h.b16 %v3190
    %v3987 = vunpack.c.l.b16 %v3191
    %v3988 = vunpack.c.h.b16 %v3191
    %v3989 = vunpack.c.l.b16 %v3192
    %v3990 = vunpack.c.h.b16 %v3192
    %v3991 = vunpack.c.l.b16 %v3193
    %v3992 = vunpack.c.h.b16 %v3193
    %v3993 = vunpack.c.l.b16 %v3194
    %v3994 = vunpack.c.h.b16 %v3194
    %v3995 = vunpack.c.l.b16 %v3195
    %v3996 = vunpack.c.h.b16 %v3195
    %v3997 = vunpack.c.l.b16 %v3196
    %v3998 = vunpack.c.h.b16 %v3196
    %v3999 = vunpack.c.l.b16 %v3197
    %v4000 = vunpack.c.h.b16 %v3197
    %v4001 = vunpack.c.l.b16 %v3198
    %v4002 = vunpack.c.h.b16 %v3198
    %v4003 = vunpack.c.l.b16 %v3199
    %v4004 = vunpack.c.h.b16 %v3199
    %v4005 = vunpack.c.l.b16 %v3200
    %v4006 = vunpack.c.h.b16 %v3200
    %v4007 = vunpack.c.l.b16 %v3201
    %v4008 = vunpack.c.h.b16 %v3201
    %v4009 = vunpack.c.l.b16 %v3202
    %v4010 = vunpack.c.h.b16 %v3202
    %v4011 = vunpack.c.l.b16 %v3203
    %v4012 = vunpack.c.h.b16 %v3203
    %v4013 = vunpack.c.l.b16 %v3204
    %v4014 = vunpack.c.h.b16 %v3204
    %v4015 = vpack.c.b16 %v3511, %v3503
    %v4016 = vpack.c.b16 %v3512, %v3504
    %v4017 = vpack.c.b16 %v3513, %v3505
    %v4018 = vpack.c.b16 %v3514, %v3506
    %v4019 = vpack.c.b16 %v3515, %v3507
    %v4020 = vpack.c.b16 %v3516, %v3508
    %v4021 = vpack.c.b16 %v3517, %v3509
    %v4022 = vpack.c.b16 %v3518, %v3510
    %v4023 = vpack.c.b16 %v3527, %v3519
    %v4024 = vpack.c.b16 %v3528, %v3520
    %v4025 = vpack.c.b16 %v3529, %v3521
    %v4026 = vpack.c.b16 %v3530, %v3522
    %v4027 = vpack.c.b16 %v3531, %v3523
    %v4028 = vpack.c.b16 %v3532, %v3524
    %v4029 = vpack.c.b16 %v3533, %v3525
    %v4030 = vpack.c.b16 %v3534, %v3526
    %v4031 = vpack.c.b16 %v3543, %v3535
    %v4032 = vpack.c.b16 %v3544, %v3536
    %v4033 = vpack.c.b16 %v3545, %v3537
    %v4034 = vpack.c.b16 %v3546, %v3538
    %v4035 = vpack.c.b16 %v3547, %v3539
    %v4036 = vpack.c.b16 %v3548, %v3540
    %v4037 = vpack.c.b16 %v3549, %v3541
    %v4038 = vpack.c.b16 %v3550, %v3542
    %v4039 = vpack.c.b16 %v3559, %v3551
    %v4040 = vpack.c.b16 %v3560, %v3552
    %v4041 = vpack.c.b16 %v3561, %v3553
    %v4042 = vpack.c.b16 %v3562, %v3554
    %v4043 = vpack.c.b16 %v3563, %v3555
    %v4044 = vpack.c.b16 %v3564, %v3556
    %v4045 = vpack.c.b16 %v3565, %v3557
    %v4046 = vpack.c.b16 %v3566, %v3558
    %v4047 = vpack.c.b16 %v3575, %v3567
    %v4048 = vpack.c.b16 %v3576, %v3568
    %v4049 = vpack.c.b16 %v3577, %v3569
    %v4050 = vpack.c.b16 %v3578, %v3570
    %v4051 = vpack.c.b16 %v3579, %v3571
    %v4052 = vpack.c.b16 %v3580, %v3572
    %v4053 = vpack.c.b16 %v3581, %v3573
    %v4054 = vpack.c.b16 %v3582, %v3574
    %v4055 = vpack.c.b16 %v3591, %v3583
    %v4056 = vpack.c.b16 %v3592, %v3584
    %v4057 = vpack.c.b16 %v3593, %v3585
    %v4058 = vpack.c.b16 %v3594, %v3586
    %v4059 = vpack.c.b16 %v3595, %v3587
    %v4060 = vpack.c.b16 %v3596, %v3588
    %v4061 = vpack.c.b16 %v3597, %v3589
    %v4062 = vpack.c.b16 %v3598, %v3590
    %v4063 = vpack.c.b16 %v3607, %v3599
    %v4064 = vpack.c.b16 %v3608, %v3600
    %v4065 = vpack.c.b16 %v3609, %v3601
    %v4066 = vpack.c.b16 %v3610, %v3602
    %v4067 = vpack.c.b16 %v3611, %v3603
    %v4068 = vpack.c.b16 %v3612, %v3604
    %v4069 = vpack.c.b16 %v3613, %v3605
    %v4070 = vpack.c.b16 %v3614, %v3606
    %v4071 = vpack.c.b16 %v3623, %v3615
    %v4072 = vpack.c.b16 %v3624, %v3616
    %v4073 = vpack.c.b16 %v3625, %v3617
    %v4074 = vpack.c.b16 %v3626, %v3618
    %v4075 = vpack.c.b16 %v3627, %v3619
    %v4076 = vpack.c.b16 %v3628, %v3620
    %v4077 = vpack.c.b16 %v3629, %v3621
    %v4078 = vpack.c.b16 %v3630, %v3622
    %v4079 = vpack.c.b16 %v3639, %v3631
    %v4080 = vpack.c.b16 %v3640, %v3632
    %v4081 = vpack.c.b16 %v3641, %v3633
    %v4082 = vpack.c.b16 %v3642, %v3634
    %v4083 = vpack.c.b16 %v3643, %v3635
    %v4084 = vpack.c.b16 %v3644, %v3636
    %v4085 = vpack.c.b16 %v3645, %v3637
    %v4086 = vpack.c.b16 %v3646, %v3638
    %v4087 = vpack.c.b16 %v3655, %v3647
    %v4088 = vpack.c.b16 %v3656, %v3648
    %v4089 = vpack.c.b16 %v3657, %v3649
    %v4090 = vpack.c.b16 %v3658, %v3650
    %v4091 = vpack.c.b16 %v3659, %v3651
    %v4092 = vpack.c.b16 %v3660, %v3652
    %v4093 = vpack.c.b16 %v3661, %v3653
    %v4094 = vpack.c.b16 %v3662, %v3654
    %v4095 = vpack.c.b16 %v3671, %v3663
    %v4096 = vpack.c.b16 %v3672, %v3664
    %v4097 = vpack.c.b16 %v3673, %v3665
    %v4098 = vpack.c.b16 %v3674, %v3666
    %v4099 = vpack.c.b16 %v3675, %v3667
    %v4100 = vpack.c.b16 %v3676, %v3668
    %v4101 = vpack.c.b16 %v3677, %v3669
    %v4102 = vpack.c.b16 %v3678, %v3670
    %v4103 = vpack.c.b16 %v3687, %v3679
    %v4104 = vpack.c.b16 %v3688, %v3680
    %v4105 = vpack.c.b16 %v3689, %v3681
    %v4106 = vpack.c.b16 %v3690, %v3682
    %v4107 = vpack.c.b16 %v3691, %v3683
    %v4108 = vpack.c.b16 %v3692, %v3684
    %v4109 = vpack.c.b16 %v3693, %v3685
    %v4110 = vpack.c.b16 %v3694, %v3686
    %v4111 = vpack.c.b16 %v3703, %v3695
    %v4112 = vpack.c.b16 %v3704, %v3696
    %v4113 = vpack.c.b16 %v3705, %v3697
    %v4114 = vpack.c.b16 %v3706, %v3698
    %v4115 = vpack.c.b16 %v3707, %v3699
    %v4116 = vpack.c.b16 %v3708, %v3700
    %v4117 = vpack.c.b16 %v3709, %v3701
    %v4118 = vpack.c.b16 %v3710, %v3702
    %v4119 = vpack.c.b16 %v3719, %v3711
    %v4120 = vpack.c.b16 %v3720, %v3712
    %v4121 = vpack.c.b16 %v3721, %v3713
    %v4122 = vpack.c.b16 %v3722, %v3714
    %v4123 = vpack.c.b16 %v3723, %v3715
    %v4124 = vpack.c.b16 %v3724, %v3716
    %v4125 = vpack.c.b16 %v3725, %v3717
    %v4126 = vpack.c.b16 %v3726, %v3718
    %v4127 = vpack.c.b16 %v3735, %v3727
    %v4128 = vpack.c.b16 %v3736, %v3728
    %v4129 = vpack.c.b16 %v3737, %v3729
    %v4130 = vpack.c.b16 %v3738, %v3730
    %v4131 = vpack.c.b16 %v3739, %v3731
    %v4132 = vpack.c.b16 %v3740, %v3732
    %v4133 = vpack.c.b16 %v3741, %v3733
    %v4134 = vpack.c.b16 %v3742, %v3734
    %v4135 = vpack.c.b16 %v3751, %v3743
    %v4136 = vpack.c.b16 %v3752, %v3744
    %v4137 = vpack.c.b16 %v3753, %v3745
    %v4138 = vpack.c.b16 %v3754, %v3746
    %v4139 = vpack.c.b16 %v3755, %v3747
    %v4140 = vpack.c.b16 %v3756, %v3748
    %v4141 = vpack.c.b16 %v3757, %v3749
    %v4142 = vpack.c.b16 %v3758, %v3750
    %v4143 = vpack.c.b16 %v3767, %v3759
    %v4144 = vpack.c.b16 %v3768, %v3760
    %v4145 = vpack.c.b16 %v3769, %v3761
    %v4146 = vpack.c.b16 %v3770, %v3762
    %v4147 = vpack.c.b16 %v3771, %v3763
    %v4148 = vpack.c.b16 %v3772, %v3764
    %v4149 = vpack.c.b16 %v3773, %v3765
    %v4150 = vpack.c.b16 %v3774, %v3766
    %v4151 = vpack.c.b16 %v3783, %v3775
    %v4152 = vpack.c.b16 %v3784, %v3776
    %v4153 = vpack.c.b16 %v3785, %v3777
    %v4154 = vpack.c.b16 %v3786, %v3778
    %v4155 = vpack.c.b16 %v3787, %v3779
    %v4156 = vpack.c.b16 %v3788, %v3780
    %v4157 = vpack.c.b16 %v3789, %v3781
    %v4158 = vpack.c.b16 %v3790, %v3782
    %v4159 = vpack.c.b16 %v3799, %v3791
    %v4160 = vpack.c.b16 %v3800, %v3792
    %v4161 = vpack.c.b16 %v3801, %v3793
    %v4162 = vpack.c.b16 %v3802, %v3794
    %v4163 = vpack.c.b16 %v3803, %v3795
    %v4164 = vpack.c.b16 %v3804, %v3796
    %v4165 = vpack.c.b16 %v3805, %v3797
    %v4166 = vpack.c.b16 %v3806, %v3798
    %v4167 = vpack.c.b16 %v3815, %v3807
    %v4168 = vpack.c.b16 %v3816, %v3808
    %v4169 = vpack.c.b16 %v3817, %v3809
    %v4170 = vpack.c.b16 %v3818, %v3810
    %v4171 = vpack.c.b16 %v3819, %v3811
    %v4172 = vpack.c.b16 %v3820, %v3812
    %v4173 = vpack.c.b16 %v3821, %v3813
    %v4174 = vpack.c.b16 %v3822, %v3814
    %v4175 = vpack.c.b16 %v3831, %v3823
    %v4176 = vpack.c.b16 %v3832, %v3824
    %v4177 = vpack.c.b16 %v3833, %v3825
    %v4178 = vpack.c.b16 %v3834, %v3826
    %v4179 = vpack.c.b16 %v3835, %v3827
    %v4180 = vpack.c.b16 %v3836, %v3828
    %v4181 = vpack.c.b16 %v3837, %v3829
    %v4182 = vpack.c.b16 %v3838, %v3830
    %v4183 = vpack.c.b16 %v3847, %v3839
    %v4184 = vpack.c.b16 %v3848, %v3840
    %v4185 = vpack.c.b16 %v3849, %v3841
    %v4186 = vpack.c.b16 %v3850, %v3842
    %v4187 = vpack.c.b16 %v3851, %v3843
    %v4188 = vpack.c.b16 %v3852, %v3844
    %v4189 = vpack.c.b16 %v3853, %v3845
    %v4190 = vpack.c.b16 %v3854, %v3846
    %v4191 = vpack.c.b16 %v3863, %v3855
    %v4192 = vpack.c.b16 %v3864, %v3856
    %v4193 = vpack.c.b16 %v3865, %v3857
    %v4194 = vpack.c.b16 %v3866, %v3858
    %v4195 = vpack.c.b16 %v3867, %v3859
    %v4196 = vpack.c.b16 %v3868, %v3860
    %v4197 = vpack.c.b16 %v3869, %v3861
    %v4198 = vpack.c.b16 %v3870, %v3862
    %v4199 = vpack.c.b16 %v3879, %v3871
    %v4200 = vpack.c.b16 %v3880, %v3872
    %v4201 = vpack.c.b16 %v3881, %v3873
    %v4202 = vpack.c.b16 %v3882, %v3874
    %v4203 = vpack.c.b16 %v3883, %v3875
    %v4204 = vpack.c.b16 %v3884, %v3876
    %v4205 = vpack.c.b16 %v3885, %v3877
    %v4206 = vpack.c.b16 %v3886, %v3878
    %v4207 = vpack.c.b16 %v3895, %v3887
    %v4208 = vpack.c.b16 %v3896, %v3888
    %v4209 = vpack.c.b16 %v3897, %v3889
    %v4210 = vpack.c.b16 %v3898, %v3890
    %v4211 = vpack.c.b16 %v3899, %v3891
    %v4212 = vpack.c.b16 %v3900, %v3892
    %v4213 = vpack.c.b16 %v3901, %v3893
    %v4214 = vpack.c.b16 %v3902, %v3894
    %v4215 = vpack.c.b16 %v3911, %v3903
    %v4216 = vpack.c.b16 %v3912, %v3904
    %v4217 = vpack.c.b16 %v3913, %v3905
    %v4218 = vpack.c.b16 %v3914, %v3906
    %v4219 = vpack.c.b16 %v3915, %v3907
    %v4220 = vpack.c.b16 %v3916, %v3908
    %v4221 = vpack.c.b16 %v3917, %v3909
    %v4222 = vpack.c.b16 %v3918, %v3910
    %v4223 = vpack.c.b16 %v3927, %v3919
    %v4224 = vpack.c.b16 %v3928, %v3920
    %v4225 = vpack.c.b16 %v3929, %v3921
    %v4226 = vpack.c.b16 %v3930, %v3922
    %v4227 = vpack.c.b16 %v3931, %v3923
    %v4228 = vpack.c.b16 %v3932, %v3924
    %v4229 = vpack.c.b16 %v3933, %v3925
    %v4230 = vpack.c.b16 %v3934, %v3926
    %v4231 = vpack.c.b16 %v3943, %v3935
    %v4232 = vpack.c.b16 %v3944, %v3936
    %v4233 = vpack.c.b16 %v3945, %v3937
    %v4234 = vpack.c.b16 %v3946, %v3938
    %v4235 = vpack.c.b16 %v3947, %v3939
    %v4236 = vpack.c.b16 %v3948, %v3940
    %v4237 = vpack.c.b16 %v3949, %v3941
    %v4238 = vpack.c.b16 %v3950, %v3942
    %v4239 = vpack.c.b16 %v3959, %v3951
    %v4240 = vpack.c.b16 %v3960, %v3952
    %v4241 = vpack.c.b16 %v3961, %v3953
    %v4242 = vpack.c.b16 %v3962, %v3954
    %v4243 = vpack.c.b16 %v3963, %v3955
    %v4244 = vpack.c.b16 %v3964, %v3956
    %v4245 = vpack.c.b16 %v3965, %v3957
    %v4246 = vpack.c.b16 %v3966, %v3958
    %v4247 = vpack.c.b16 %v3975, %v3967
    %v4248 = vpack.c.b16 %v3976, %v3968
    %v4249 = vpack.c.b16 %v3977, %v3969
    %v4250 = vpack.c.b16 %v3978, %v3970
    %v4251 = vpack.c.b16 %v3979, %v3971
    %v4252 = vpack.c.b16 %v3980, %v3972
    %v4253 = vpack.c.b16 %v3981, %v3973
    %v4254 = vpack.c.b16 %v3982, %v3974
    %v4255 = vpack.c.b16 %v3991, %v3983
    %v4256 = vpack.c.b16 %v3992, %v3984
    %v4257 = vpack.c.b16 %v3993, %v3985
    %v4258 = vpack.c.b16 %v3994, %v3986
    %v4259 = vpack.c.b16 %v3995, %v3987
    %v4260 = vpack.c.b16 %v3996, %v3988
    %v4261 = vpack.c.b16 %v3997, %v3989
    %v4262 = vpack.c.b16 %v3998, %v3990
    %v4263 = vpack.c.b16 %v4007, %v3999
    %v4264 = vpack.c.b16 %v4008, %v4000
    %v4265 = vpack.c.b16 %v4009, %v4001
    %v4266 = vpack.c.b16 %v4010, %v4002
    %v4267 = vpack.c.b16 %v4011, %v4003
    %v4268 = vpack.c.b16 %v4012, %v4004
    %v4269 = vpack.c.b16 %v4013, %v4005
    %v4270 = vpack.c.b16 %v4014, %v4006
    %4527 = vmatprep.subr.bf16.mxu0 %v4016
    %4528 = vmatpush1.bf16.msra.mxu0 %v4015
    %4529 = vmatprep.subr.bf16.mxu0 %v4024
    %4530 = vmatpush1.bf16.msra.mxu0 %v4023
    %4531 = vmatprep.subr.bf16.mxu0 %v4032
    %4532 = vmatpush1.bf16.msra.mxu0 %v4031
    %4533 = vmatprep.subr.bf16.mxu0 %v4040
    %4534 = vmatpush1.bf16.msra.mxu0 %v4039
    %4535 = vmatprep.subr.bf16.mxu0 %v4048
    %4536 = vmatpush1.bf16.msra.mxu0 %v4047
    %4537 = vmatprep.subr.bf16.mxu0 %v4056
    %4538 = vmatpush1.bf16.msra.mxu0 %v4055
    %4539 = vmatprep.subr.bf16.mxu0 %v4064
    %4540 = vmatpush1.bf16.msra.mxu0 %v4063
    %4541 = vmatprep.subr.bf16.mxu0 %v4072
    %4542 = vmatpush1.bf16.msra.mxu0 %v4071
    %4543 = vmatprep.subr.bf16.mxu0 %v4080
    %4544 = vmatpush1.bf16.msra.mxu0 %v4079
    %4545 = vmatprep.subr.bf16.mxu0 %v4088
    %4546 = vmatpush1.bf16.msra.mxu0 %v4087
    %4547 = vmatprep.subr.bf16.mxu0 %v4096
    %4548 = vmatpush1.bf16.msra.mxu0 %v4095
    %4549 = vmatprep.subr.bf16.mxu0 %v4104
    %4550 = vmatpush1.bf16.msra.mxu0 %v4103
    %4551 = vmatprep.subr.bf16.mxu0 %v4112
    %4552 = vmatpush1.bf16.msra.mxu0 %v4111
    %4553 = vmatprep.subr.bf16.mxu0 %v4120
    %4554 = vmatpush1.bf16.msra.mxu0 %v4119
    %4555 = vmatprep.subr.bf16.mxu0 %v4128
    %4556 = vmatpush1.bf16.msra.mxu0 %v4127
    %4557 = vmatprep.subr.bf16.mxu0 %v4136
    %4558 = vmatpush1.bf16.msra.mxu0 %v4135
    %4559 = vmatprep.mubr.bf16.mxu0 %v2946
    %4560 = vmatmul.mubr.bf16.gmra.mrb[0].mxu0 %v2945
    %v4561 = vpop.f32.mrb[0].mxu0
    %v4562 = vadd.f32 %v3210, %v4561
    %v4563 = vpop.f32.mrb[0].mxu0
    %v4564 = vadd.f32 %v3214, %v4563
    %v4565 = vpop.f32.mrb[0].mxu0
    %v4566 = vpop.f32.mrb[0].mxu0
    %4567 = vdwg.mxu0
    %4568 = vmatprep.subr.bf16.mxu0 %v4144
    %4569 = vmatpush1.bf16.msra.mxu0 %v4143
    %4570 = vmatprep.subr.bf16.mxu0 %v4152
    %4571 = vmatpush1.bf16.msra.mxu0 %v4151
    %4572 = vmatprep.subr.bf16.mxu0 %v4160
    %4573 = vmatpush1.bf16.msra.mxu0 %v4159
    %4574 = vmatprep.subr.bf16.mxu0 %v4168
    %4575 = vmatpush1.bf16.msra.mxu0 %v4167
    %4576 = vmatprep.subr.bf16.mxu0 %v4176
    %4577 = vmatpush1.bf16.msra.mxu0 %v4175
    %4578 = vmatprep.subr.bf16.mxu0 %v4184
    %4579 = vmatpush1.bf16.msra.mxu0 %v4183
    %4580 = vmatprep.subr.bf16.mxu0 %v4192
    %4581 = vmatpush1.bf16.msra.mxu0 %v4191
    %4582 = vmatprep.subr.bf16.mxu0 %v4200
    %4583 = vmatpush1.bf16.msra.mxu0 %v4199
    %4584 = vmatprep.subr.bf16.mxu0 %v4208
    %4585 = vmatpush1.bf16.msra.mxu0 %v4207
    %4586 = vmatprep.subr.bf16.mxu0 %v4216
    %4587 = vmatpush1.bf16.msra.mxu0 %v4215
    %4588 = vmatprep.subr.bf16.mxu0 %v4224
    %4589 = vmatpush1.bf16.msra.mxu0 %v4223
    %4590 = vmatprep.subr.bf16.mxu0 %v4232
    %4591 = vmatpush1.bf16.msra.mxu0 %v4231
    %4592 = vmatprep.subr.bf16.mxu0 %v4240
    %4593 = vmatpush1.bf16.msra.mxu0 %v4239
    %4594 = vmatprep.subr.bf16.mxu0 %v4248
    %4595 = vmatpush1.bf16.msra.mxu0 %v4247
    %4596 = vmatprep.subr.bf16.mxu0 %v4256
    %4597 = vmatpush1.bf16.msra.mxu0 %v4255
    %4598 = vmatprep.subr.bf16.mxu0 %v4264
    %4599 = vmatpush1.bf16.msra.mxu0 %v4263
    %4600 = vmatprep.mubr.bf16.mxu0 %v2948
    %4601 = vmatmul.mubr.bf16.gmra.mrb[0].mxu0 %v2947
    %v4602 = vpop.f32.mrb[0].mxu0
    %v4603 = vadd.f32 %v4562, %v4602
    %v4604 = vpop.f32.mrb[0].mxu0
    %v4605 = vadd.f32 %v4564, %v4604
    %v4606 = vpop.f32.mrb[0].mxu0
    %v4607 = vpop.f32.mrb[0].mxu0
    %4608 = vdwg.mxu0
    %4609 = vmatprep.subr.bf16.mxu0 %v4018
    %4610 = vmatpush1.bf16.msra.mxu0 %v4017
    %4611 = vmatprep.subr.bf16.mxu0 %v4026
    %4612 = vmatpush1.bf16.msra.mxu0 %v4025
    %4613 = vmatprep.subr.bf16.mxu0 %v4034
    %4614 = vmatpush1.bf16.msra.mxu0 %v4033
    %4615 = vmatprep.subr.bf16.mxu0 %v4042
    %4616 = vmatpush1.bf16.msra.mxu0 %v4041
    %4617 = vmatprep.subr.bf16.mxu0 %v4050
    %4618 = vmatpush1.bf16.msra.mxu0 %v4049
    %4619 = vmatprep.subr.bf16.mxu0 %v4058
    %4620 = vmatpush1.bf16.msra.mxu0 %v4057
    %4621 = vmatprep.subr.bf16.mxu0 %v4066
    %4622 = vmatpush1.bf16.msra.mxu0 %v4065
    %4623 = vmatprep.subr.bf16.mxu0 %v4074
    %4624 = vmatpush1.bf16.msra.mxu0 %v4073
    %4625 = vmatprep.subr.bf16.mxu0 %v4082
    %4626 = vmatpush1.bf16.msra.mxu0 %v4081
    %4627 = vmatprep.subr.bf16.mxu0 %v4090
    %4628 = vmatpush1.bf16.msra.mxu0 %v4089
    %4629 = vmatprep.subr.bf16.mxu0 %v4098
    %4630 = vmatpush1.bf16.msra.mxu0 %v4097
    %4631 = vmatprep.subr.bf16.mxu0 %v4106
    %4632 = vmatpush1.bf16.msra.mxu0 %v4105
    %4633 = vmatprep.subr.bf16.mxu0 %v4114
    %4634 = vmatpush1.bf16.msra.mxu0 %v4113
    %4635 = vmatprep.subr.bf16.mxu0 %v4122
    %4636 = vmatpush1.bf16.msra.mxu0 %v4121
    %4637 = vmatprep.subr.bf16.mxu0 %v4130
    %4638 = vmatpush1.bf16.msra.mxu0 %v4129
    %4639 = vmatprep.subr.bf16.mxu0 %v4138
    %4640 = vmatpush1.bf16.msra.mxu0 %v4137
    %4641 = vmatprep.mubr.bf16.mxu0 %v2946
    %4642 = vmatmul.mubr.bf16.gmra.mrb[0].mxu0 %v2945
    %v4643 = vpop.f32.mrb[0].mxu0
    %v4644 = vadd.f32 %v3218, %v4643
    %v4645 = vpop.f32.mrb[0].mxu0
    %v4646 = vadd.f32 %v3222, %v4645
    %v4647 = vpop.f32.mrb[0].mxu0
    %v4648 = vpop.f32.mrb[0].mxu0
    %4649 = vdwg.mxu0
    %4650 = vmatprep.subr.bf16.mxu0 %v4146
    %4651 = vmatpush1.bf16.msra.mxu0 %v4145
    %4652 = vmatprep.subr.bf16.mxu0 %v4154
    %4653 = vmatpush1.bf16.msra.mxu0 %v4153
    %4654 = vmatprep.subr.bf16.mxu0 %v4162
    %4655 = vmatpush1.bf16.msra.mxu0 %v4161
    %4656 = vmatprep.subr.bf16.mxu0 %v4170
    %4657 = vmatpush1.bf16.msra.mxu0 %v4169
    %4658 = vmatprep.subr.bf16.mxu0 %v4178
    %4659 = vmatpush1.bf16.msra.mxu0 %v4177
    %4660 = vmatprep.subr.bf16.mxu0 %v4186
    %4661 = vmatpush1.bf16.msra.mxu0 %v4185
    %4662 = vmatprep.subr.bf16.mxu0 %v4194
    %4663 = vmatpush1.bf16.msra.mxu0 %v4193
    %4664 = vmatprep.subr.bf16.mxu0 %v4202
    %4665 = vmatpush1.bf16.msra.mxu0 %v4201
    %4666 = vmatprep.subr.bf16.mxu0 %v4210
    %4667 = vmatpush1.bf16.msra.mxu0 %v4209
    %4668 = vmatprep.subr.bf16.mxu0 %v4218
    %4669 = vmatpush1.bf16.msra.mxu0 %v4217
    %4670 = vmatprep.subr.bf16.mxu0 %v4226
    %4671 = vmatpush1.bf16.msra.mxu0 %v4225
    %4672 = vmatprep.subr.bf16.mxu0 %v4234
    %4673 = vmatpush1.bf16.msra.mxu0 %v4233
    %4674 = vmatprep.subr.bf16.mxu0 %v4242
    %4675 = vmatpush1.bf16.msra.mxu0 %v4241
    %4676 = vmatprep.subr.bf16.mxu0 %v4250
    %4677 = vmatpush1.bf16.msra.mxu0 %v4249
    %4678 = vmatprep.subr.bf16.mxu0 %v4258
    %4679 = vmatpush1.bf16.msra.mxu0 %v4257
    %4680 = vmatprep.subr.bf16.mxu0 %v4266
    %4681 = vmatpush1.bf16.msra.mxu0 %v4265
    %4682 = vmatprep.mubr.bf16.mxu0 %v2948
    %4683 = vmatmul.mubr.bf16.gmra.mrb[0].mxu0 %v2947
    %v4684 = vpop.f32.mrb[0].mxu0
    %v4685 = vadd.f32 %v4644, %v4684
    %v4686 = vpop.f32.mrb[0].mxu0
    %v4687 = vadd.f32 %v4646, %v4686
    %v4688 = vpop.f32.mrb[0].mxu0
    %v4689 = vpop.f32.mrb[0].mxu0
    %4690 = vdwg.mxu0
    %4691 = vmatprep.subr.bf16.mxu0 %v4020
    %4692 = vmatpush1.bf16.msra.mxu0 %v4019
    %4693 = vmatprep.subr.bf16.mxu0 %v4028
    %4694 = vmatpush1.bf16.msra.mxu0 %v4027
    %4695 = vmatprep.subr.bf16.mxu0 %v4036
    %4696 = vmatpush1.bf16.msra.mxu0 %v4035
    %4697 = vmatprep.subr.bf16.mxu0 %v4044
    %4698 = vmatpush1.bf16.msra.mxu0 %v4043
    %4699 = vmatprep.subr.bf16.mxu0 %v4052
    %4700 = vmatpush1.bf16.msra.mxu0 %v4051
    %4701 = vmatprep.subr.bf16.mxu0 %v4060
    %4702 = vmatpush1.bf16.msra.mxu0 %v4059
    %4703 = vmatprep.subr.bf16.mxu0 %v4068
    %4704 = vmatpush1.bf16.msra.mxu0 %v4067
    %4705 = vmatprep.subr.bf16.mxu0 %v4076
    %4706 = vmatpush1.bf16.msra.mxu0 %v4075
    %4707 = vmatprep.subr.bf16.mxu0 %v4084
    %4708 = vmatpush1.bf16.msra.mxu0 %v4083
    %4709 = vmatprep.subr.bf16.mxu0 %v4092
    %4710 = vmatpush1.bf16.msra.mxu0 %v4091
    %4711 = vmatprep.subr.bf16.mxu0 %v4100
    %4712 = vmatpush1.bf16.msra.mxu0 %v4099
    %4713 = vmatprep.subr.bf16.mxu0 %v4108
    %4714 = vmatpush1.bf16.msra.mxu0 %v4107
    %4715 = vmatprep.subr.bf16.mxu0 %v4116
    %4716 = vmatpush1.bf16.msra.mxu0 %v4115
    %4717 = vmatprep.subr.bf16.mxu0 %v4124
    %4718 = vmatpush1.bf16.msra.mxu0 %v4123
    %4719 = vmatprep.subr.bf16.mxu0 %v4132
    %4720 = vmatpush1.bf16.msra.mxu0 %v4131
    %4721 = vmatprep.subr.bf16.mxu0 %v4140
    %4722 = vmatpush1.bf16.msra.mxu0 %v4139
    %4723 = vmatprep.mubr.bf16.mxu0 %v2946
    %4724 = vmatmul.mubr.bf16.gmra.mrb[0].mxu0 %v2945
    %v4725 = vpop.f32.mrb[0].mxu0
    %v4726 = vadd.f32 %v3226, %v4725
    %v4727 = vpop.f32.mrb[0].mxu0
    %v4728 = vadd.f32 %v3230, %v4727
    %v4729 = vpop.f32.mrb[0].mxu0
    %v4730 = vpop.f32.mrb[0].mxu0
    %4731 = vdwg.mxu0
    %4732 = vmatprep.subr.bf16.mxu0 %v4148
    %4733 = vmatpush1.bf16.msra.mxu0 %v4147
    %4734 = vmatprep.subr.bf16.mxu0 %v4156
    %4735 = vmatpush1.bf16.msra.mxu0 %v4155
    %4736 = vmatprep.subr.bf16.mxu0 %v4164
    %4737 = vmatpush1.bf16.msra.mxu0 %v4163
    %4738 = vmatprep.subr.bf16.mxu0 %v4172
    %4739 = vmatpush1.bf16.msra.mxu0 %v4171
    %4740 = vmatprep.subr.bf16.mxu0 %v4180
    %4741 = vmatpush1.bf16.msra.mxu0 %v4179
    %4742 = vmatprep.subr.bf16.mxu0 %v4188
    %4743 = vmatpush1.bf16.msra.mxu0 %v4187
    %4744 = vmatprep.subr.bf16.mxu0 %v4196
    %4745 = vmatpush1.bf16.msra.mxu0 %v4195
    %4746 = vmatprep.subr.bf16.mxu0 %v4204
    %4747 = vmatpush1.bf16.msra.mxu0 %v4203
    %4748 = vmatprep.subr.bf16.mxu0 %v4212
    %4749 = vmatpush1.bf16.msra.mxu0 %v4211
    %4750 = vmatprep.subr.bf16.mxu0 %v4220
    %4751 = vmatpush1.bf16.msra.mxu0 %v4219
    %4752 = vmatprep.subr.bf16.mxu0 %v4228
    %4753 = vmatpush1.bf16.msra.mxu0 %v4227
    %4754 = vmatprep.subr.bf16.mxu0 %v4236
    %4755 = vmatpush1.bf16.msra.mxu0 %v4235
    %4756 = vmatprep.subr.bf16.mxu0 %v4244
    %4757 = vmatpush1.bf16.msra.mxu0 %v4243
    %4758 = vmatprep.subr.bf16.mxu0 %v4252
    %4759 = vmatpush1.bf16.msra.mxu0 %v4251
    %4760 = vmatprep.subr.bf16.mxu0 %v4260
    %4761 = vmatpush1.bf16.msra.mxu0 %v4259
    %4762 = vmatprep.subr.bf16.mxu0 %v4268
    %4763 = vmatpush1.bf16.msra.mxu0 %v4267
    %4764 = vmatprep.mubr.bf16.mxu0 %v2948
    %4765 = vmatmul.mubr.bf16.gmra.mrb[0].mxu0 %v2947
    %v4766 = vpop.f32.mrb[0].mxu0
    %v4767 = vadd.f32 %v4726, %v4766
    %v4768 = vpop.f32.mrb[0].mxu0
    %v4769 = vadd.f32 %v4728, %v4768
    %v4770 = vpop.f32.mrb[0].mxu0
    %v4771 = vpop.f32.mrb[0].mxu0
    %4772 = vdwg.mxu0
    %4773 = vmatprep.subr.bf16.mxu0 %v4022
    %4774 = vmatpush1.bf16.msra.mxu0 %v4021
    %4775 = vmatprep.subr.bf16.mxu0 %v4030
    %4776 = vmatpush1.bf16.msra.mxu0 %v4029
    %4777 = vmatprep.subr.bf16.mxu0 %v4038
    %4778 = vmatpush1.bf16.msra.mxu0 %v4037
    %4779 = vmatprep.subr.bf16.mxu0 %v4046
    %4780 = vmatpush1.bf16.msra.mxu0 %v4045
    %4781 = vmatprep.subr.bf16.mxu0 %v4054
    %4782 = vmatpush1.bf16.msra.mxu0 %v4053
    %4783 = vmatprep.subr.bf16.mxu0 %v4062
    %4784 = vmatpush1.bf16.msra.mxu0 %v4061
    %4785 = vmatprep.subr.bf16.mxu0 %v4070
    %4786 = vmatpush1.bf16.msra.mxu0 %v4069
    %4787 = vmatprep.subr.bf16.mxu0 %v4078
    %4788 = vmatpush1.bf16.msra.mxu0 %v4077
    %4789 = vmatprep.subr.bf16.mxu0 %v4086
    %4790 = vmatpush1.bf16.msra.mxu0 %v4085
    %4791 = vmatprep.subr.bf16.mxu0 %v4094
    %4792 = vmatpush1.bf16.msra.mxu0 %v4093
    %4793 = vmatprep.subr.bf16.mxu0 %v4102
    %4794 = vmatpush1.bf16.msra.mxu0 %v4101
    %4795 = vmatprep.subr.bf16.mxu0 %v4110
    %4796 = vmatpush1.bf16.msra.mxu0 %v4109
    %4797 = vmatprep.subr.bf16.mxu0 %v4118
    %4798 = vmatpush1.bf16.msra.mxu0 %v4117
    %4799 = vmatprep.subr.bf16.mxu0 %v4126
    %4800 = vmatpush1.bf16.msra.mxu0 %v4125
    %4801 = vmatprep.subr.bf16.mxu0 %v4134
    %4802 = vmatpush1.bf16.msra.mxu0 %v4133
    %4803 = vmatprep.subr.bf16.mxu0 %v4142
    %4804 = vmatpush1.bf16.msra.mxu0 %v4141
    %4805 = vmatprep.mubr.bf16.mxu0 %v2946
    %4806 = vmatmul.mubr.bf16.gmra.mrb[0].mxu0 %v2945
    %v4807 = vpop.f32.mrb[0].mxu0
    %v4808 = vadd.f32 %v3234, %v4807
    %v4809 = vpop.f32.mrb[0].mxu0
    %v4810 = vadd.f32 %v3238, %v4809
    %v4811 = vpop.f32.mrb[0].mxu0
    %v4812 = vpop.f32.mrb[0].mxu0
    %4813 = vdwg.mxu0
    %4814 = vmatprep.subr.bf16.mxu0 %v4150
    %4815 = vmatpush1.bf16.msra.mxu0 %v4149
    %4816 = vmatprep.subr.bf16.mxu0 %v4158
    %4817 = vmatpush1.bf16.msra.mxu0 %v4157
    %4818 = vmatprep.subr.bf16.mxu0 %v4166
    %4819 = vmatpush1.bf16.msra.mxu0 %v4165
    %4820 = vmatprep.subr.bf16.mxu0 %v4174
    %4821 = vmatpush1.bf16.msra.mxu0 %v4173
    %4822 = vmatprep.subr.bf16.mxu0 %v4182
    %4823 = vmatpush1.bf16.msra.mxu0 %v4181
    %4824 = vmatprep.subr.bf16.mxu0 %v4190
    %4825 = vmatpush1.bf16.msra.mxu0 %v4189
    %4826 = vmatprep.subr.bf16.mxu0 %v4198
    %4827 = vmatpush1.bf16.msra.mxu0 %v4197
    %4828 = vmatprep.subr.bf16.mxu0 %v4206
    %4829 = vmatpush1.bf16.msra.mxu0 %v4205
    %4830 = vmatprep.subr.bf16.mxu0 %v4214
    %4831 = vmatpush1.bf16.msra.mxu0 %v4213
    %4832 = vmatprep.subr.bf16.mxu0 %v4222
    %4833 = vmatpush1.bf16.msra.mxu0 %v4221
    %4834 = vmatprep.subr.bf16.mxu0 %v4230
    %4835 = vmatpush1.bf16.msra.mxu0 %v4229
    %4836 = vmatprep.subr.bf16.mxu0 %v4238
    %4837 = vmatpush1.bf16.msra.mxu0 %v4237
    %4838 = vmatprep.subr.bf16.mxu0 %v4246
    %4839 = vmatpush1.bf16.msra.mxu0 %v4245
    %4840 = vmatprep.subr.bf16.mxu0 %v4254
    %4841 = vmatpush1.bf16.msra.mxu0 %v4253
    %4842 = vmatprep.subr.bf16.mxu0 %v4262
    %4843 = vmatpush1.bf16.msra.mxu0 %v4261
    %4844 = vmatprep.subr.bf16.mxu0 %v4270
    %4845 = vmatpush1.bf16.msra.mxu0 %v4269
    %4846 = vmatprep.mubr.bf16.mxu0 %v2948
    %4847 = vmatmul.mubr.bf16.gmra.mrb[0].mxu0 %v2947
    %v4848 = vpop.f32.mrb[0].mxu0
    %v4849 = vadd.f32 %v4808, %v4848
    %v4850 = vpop.f32.mrb[0].mxu0
    %v4851 = vadd.f32 %v4810, %v4850
    %v4852 = vpop.f32.mrb[0].mxu0
    %v4853 = vpop.f32.mrb[0].mxu0
    %4854 = vdwg.mxu0
    %v4855 = vxor.u32 %v4603, 2147483648
    %v4856 = vxor.u32 %v4605, 2147483648
    %v4857 = vxor.u32 %v4685, 2147483648
    %v4858 = vxor.u32 %v4687, 2147483648
    %v4859 = vxor.u32 %v4767, 2147483648
    %v4860 = vxor.u32 %v4769, 2147483648
    %v4861 = vxor.u32 %v4849, 2147483648
    %v4862 = vxor.u32 %v4851, 2147483648
    %v4863 = vmul.f32 %v4855, 1.442695
    %v4864 = vpow.pop %v4863
    %v4865 = vmul.f32 %v4856, 1.442695
    %v4866 = vpow.pop %v4865
    %v4867 = vmul.f32 %v4857, 1.442695
    %v4868 = vpow.pop %v4867
    %v4869 = vmul.f32 %v4858, 1.442695
    %v4870 = vpow.pop %v4869
    %v4871 = vmul.f32 %v4859, 1.442695
    %v4872 = vpow.pop %v4871
    %v4873 = vmul.f32 %v4860, 1.442695
    %v4874 = vpow.pop %v4873
    %v4875 = vmul.f32 %v4861, 1.442695
    %v4876 = vpow.pop %v4875
    %v4877 = vmul.f32 %v4862, 1.442695
    %v4878 = vpow.pop %v4877
    %v4879 = vadd.f32 %v4864, 1.0
    %v4880 = vadd.f32 %v4866, 1.0
    %v4881 = vadd.f32 %v4868, 1.0
    %v4882 = vadd.f32 %v4870, 1.0
    %v4883 = vadd.f32 %v4872, 1.0
    %v4884 = vadd.f32 %v4874, 1.0
    %v4885 = vadd.f32 %v4876, 1.0
    %v4886 = vadd.f32 %v4878, 1.0
    %v4887 = vrcp.pop %v4879
    %v4888 = vmul.f32 1.0, %v4887
    %v4889 = vrcp.pop %v4880
    %v4890 = vmul.f32 1.0, %v4889
    %v4891 = vrcp.pop %v4881
    %v4892 = vmul.f32 1.0, %v4891
    %v4893 = vrcp.pop %v4882
    %v4894 = vmul.f32 1.0, %v4893
    %v4895 = vrcp.pop %v4883
    %v4896 = vmul.f32 1.0, %v4895
    %v4897 = vrcp.pop %v4884
    %v4898 = vmul.f32 1.0, %v4897
    %v4899 = vrcp.pop %v4885
    %v4900 = vmul.f32 1.0, %v4899
    %v4901 = vrcp.pop %v4886
    %v4902 = vmul.f32 1.0, %v4901
    %v4903 = vpack.c.bf16 %v4888, %v4888
    %v4904 = vpack.c.bf16 %v4890, %v4890
    %v4905 = vpack.c.bf16 %v4892, %v4892
    %v4906 = vpack.c.bf16 %v4894, %v4894
    %v4907 = vpack.c.bf16 %v4896, %v4896
    %v4908 = vpack.c.bf16 %v4898, %v4898
    %v4909 = vpack.c.bf16 %v4900, %v4900
    %v4910 = vpack.c.bf16 %v4902, %v4902
    %v4919 = vcombine.low %v4903, %v4904
    %v4920 = vcombine.low %v4905, %v4906
    %v4921 = vcombine.low %v4907, %v4908
    %v4922 = vcombine.low %v4909, %v4910
    %v4924 = vunpack.c.l.s4 1966171168
    %v4925 = vunpack.c.0.s8 %v4924
    %v4926 = vlaneseq
    %v4927 = vshrl.u32 %v4926, 7
    %v4928 = vsub.s32 %v4925, %v4927
    %v4929 = vrot.slane %v4919, %v4928
    %v4931 = vunpack.c.l.s4 1966171168
    %v4932 = vunpack.c.0.s8 %v4931
    %v4933 = vlaneseq
    %v4934 = vshrl.u32 %v4933, 7
    %v4935 = vsub.s32 %v4932, %v4934
    %v4936 = vrot.slane %v4920, %v4935
    %v4938 = vunpack.c.l.s4 1966171168
    %v4939 = vunpack.c.0.s8 %v4938
    %v4940 = vlaneseq
    %v4941 = vshrl.u32 %v4940, 7
    %v4942 = vsub.s32 %v4939, %v4941
    %v4943 = vrot.slane %v4921, %v4942
    %v4945 = vunpack.c.l.s4 1966171168
    %v4946 = vunpack.c.0.s8 %v4945
    %v4947 = vlaneseq
    %v4948 = vshrl.u32 %v4947, 7
    %v4949 = vsub.s32 %v4946, %v4948
    %v4950 = vrot.slane %v4922, %v4949
    %v4951 = vcombine.low %v4929, %v4936
    %v4952 = vcombine.low %v4943, %v4950
    %v4954 = vunpack.c.l.s4 1966171168
    %v4955 = vunpack.c.0.s8 %v4954
    %v4956 = vlaneseq
    %v4957 = vshrl.u32 %v4956, 7
    %v4958 = vsub.s32 %v4955, %v4957
    %v4959 = vrot.slane %v4951, %v4958
    %v4961 = vunpack.c.l.s4 1966171168
    %v4962 = vunpack.c.0.s8 %v4961
    %v4963 = vlaneseq
    %v4964 = vshrl.u32 %v4963, 7
    %v4965 = vsub.s32 %v4962, %v4964
    %v4966 = vrot.slane %v4952, %v4965
    %v4967 = vcombine.low %v4959, %v4966
    %4969 = vst [vmem:[%s12] sm:$0xff] %v4967
    %v4972 = vcombine.low %v2519, %v2521
    %v4974 = vunpack.c.l.s4 1983009808
    %v4975 = vunpack.c.0.s8 %v4974
    %v4976 = vlaneseq
    %v4977 = vshrl.u32 %v4976, 7
    %v4978 = vsub.s32 %v4975, %v4977
    %v4979 = vrot.slane %v4972, %v4978
    %4981 = vst [vmem:[%s13] sm:$0xf] %v4979
    // Predicated region
    $region66: #{vae_mlp_forward.1} parent=1 // pred_check
      _
    $region67: #{vae_mlp_forward.1} parent=1 // pred_check_branch
      %4983 = sbr.rel (0) target = $region69
    $region68: #{vae_mlp_forward.1} parent=1 // pred_region
      _
    $region69: #{vae_mlp_forward.1} parent=1 // pred_fallthru
      _
    // Predicated region
    $region70: #{vae_mlp_forward.1} parent=1 // pred_check
      _
    $region71: #{vae_mlp_forward.1} parent=1 // pred_check_branch
      %4985 = sbr.rel (0) target = $region73
    $region72: #{vae_mlp_forward.1} parent=1 // pred_region
      _
    $region73: #{vae_mlp_forward.1} parent=1 // pred_fallthru
      _
    // Predicated region
    $region74: #{vae_mlp_forward.1} parent=1 // pred_check
      _
    $region75: #{vae_mlp_forward.1} parent=1 // pred_check_branch
      %4987 = sbr.rel (0) target = $region77
    $region76: #{vae_mlp_forward.1} parent=1 // pred_region
      _
    $region77: #{vae_mlp_forward.1} parent=1 // pred_fallthru
      _
    // Predicated region
    $region78: #{vae_mlp_forward.1} parent=1 // pred_check
      _
    $region79: #{vae_mlp_forward.1} parent=1 // pred_check_branch
      %4989 = sbr.rel (0) target = $region81
    $region80: #{vae_mlp_forward.1} parent=1 // pred_region
      _
    $region81: #{vae_mlp_forward.1} parent=1 // pred_fallthru
      _
    %4990 = vsyncpa [#allocation3], 1
    %4991 = vsyncpa [#allocation5], 1
    %4992 = vsyncpa [#allocation8], 1

// kernel: vae_mlp_forward.1
$region0: #{vae_mlp_forward.1}
  #allocation0 [shape = 'u32[]', space=smem, size = 0x4, offset = 0x4, fixed_abs, tag = 'smem constant byte address 0x4 - core index']
  #allocation1 [shape = 'u32[144,128]{1,0:T(1,128)}', space=vmem, size = 0x12000, scoped, tag = 'internal scratch']
  %s0 = inlined_call_operand.vmem [shape: f32[2,1024], index: 0, kind: input, shape index: {}]
  %s1 = inlined_call_operand.vmem [shape: f32[2,128], index: 1, kind: input, shape index: {}]
  %s2 = inlined_call_operand.hbm [shape: bf16[1024,512], index: 2, kind: input, shape index: {}]
  %s3 = inlined_call_operand.vmem [shape: f32[1,512], index: 3, kind: input, shape index: {}]
  %s4 = inlined_call_operand.hbm [shape: bf16[512,256], index: 4, kind: input, shape index: {}]
  %s5 = inlined_call_operand.vmem [shape: f32[1,256], index: 5, kind: input, shape index: {}]
  %s6 = inlined_call_operand.vmem [shape: bf16[128,128], index: 6, kind: input, shape index: {}]
  %s7 = inlined_call_operand.vmem [shape: f32[1,128], index: 7, kind: input, shape index: {}]
  %s8 = inlined_call_operand.hbm [shape: bf16[128,512], index: 8, kind: input, shape index: {}]
  %s9 = inlined_call_operand.vmem [shape: f32[1,512], index: 9, kind: input, shape index: {}]
  %s10 = inlined_call_operand.hbm [shape: bf16[512,1024], index: 10, kind: input, shape index: {}]
  %s11 = inlined_call_operand.vmem [shape: f32[1,1024], index: 11, kind: input, shape index: {}]
  %s12 = inlined_call_operand.vmem [shape: bf16[2,1024], index: 12, kind: output, shape index: {0}]
  %s13 = inlined_call_operand.vmem [shape: f32[2,256], index: 13, kind: output, shape index: {1}]
  %14 = xla_tuple %s12, %s13
  %s15 = sld [smem:[#allocation0]]
  $region82: #{vae_mlp_forward.1} parent=0
    _
  %s17 = ssub.s32 1, %s15
  %s18 = scalar_select 0, %s17, %s15
  $region1: #{vae_mlp_forward.1} parent=0
    #allocation2 [shape = 'u8[1048576]{0}', space=vmem, size = 0x100000, scoped, tag = 'input window, operand 2, single buffered']
    #allocation3 [shape = 's32[1]{0}', space=sflag, size = 0x4, scoped, tag = 'scoped memory for vae_mlp_forward.1']
    #allocation4 [shape = 'u8[262144]{0}', space=vmem, size = 0x40000, scoped, tag = 'input window, operand 4, single buffered']
    #allocation5 [shape = 's32[1]{0}', space=sflag, size = 0x4, scoped, tag = 'scoped memory for vae_mlp_forward.1']
    #allocation6 [shape = 'u8[131072]{0}', space=vmem, size = 0x20000, scoped, tag = 'input window, operand 8, single buffered']
    #allocation7 [shape = 'u8[1048576]{0}', space=vmem, size = 0x100000, scoped, tag = 'input window, operand 10, single buffered']
    #allocation8 [shape = 's32[1]{0}', space=sflag, size = 0x4, scoped, tag = 'scoped memory for vae_mlp_forward.1']
    %19 = vsyncpa [#allocation3], 0
    %20 = vsyncpa [#allocation5], 0
    %21 = vsyncpa [#allocation8], 0
    // Predicated region
    $region2: #{vae_mlp_forward.1} parent=1 // pred_check
      _
    $region3: #{vae_mlp_forward.1} parent=1 // pred_check_branch
      %23 = sbr.rel (0) target = $region5
    $region4: #{vae_mlp_forward.1} parent=1 // pred_region
      _
    $region5: #{vae_mlp_forward.1} parent=1 // pred_fallthru
      _
    // Predicated region
    $region6: #{vae_mlp_forward.1} parent=1 // pred_check
      _
    $region7: #{vae_mlp_forward.1} parent=1 // pred_check_branch
      %25 = sbr.rel (0) target = $region9
    $region8: #{vae_mlp_forward.1} parent=1 // pred_region
      _
    $region9: #{vae_mlp_forward.1} parent=1 // pred_fallthru
      _
    // Predicated region
    $region10: #{vae_mlp_forward.1} parent=1 // pred_check
      _
    $region11: #{vae_mlp_forward.1} parent=1 // pred_check_branch
      %27 = sbr.rel (0) target = $region13
    $region12: #{vae_mlp_forward.1} parent=1 // pred_region
      %s29 = ssub.s32 32768, 32768
      %30 = vsyncadd [#allocation3], %s29
      %s31 = sshll.u32 [#allocation2], 4
      %s32 = int_to_ptr.vmem [resolvable:$true] %s31
      %37 = dma.hbm_to_vmem [thread:$0]  %s2, 32768, %s32, [#allocation3], 256, 256, 16
    $region13: #{vae_mlp_forward.1} parent=1 // pred_fallthru
      _
    // Predicated region
    $region14: #{vae_mlp_forward.1} parent=1 // pred_check
      _
    $region15: #{vae_mlp_forward.1} parent=1 // pred_check_branch
      %39 = sbr.rel (0) target = $region17
    $region16: #{vae_mlp_forward.1} parent=1 // pred_region
      _
    $region17: #{vae_mlp_forward.1} parent=1 // pred_fallthru
      _
    // Predicated region
    $region18: #{vae_mlp_forward.1} parent=1 // pred_check
      _
    $region19: #{vae_mlp_forward.1} parent=1 // pred_check_branch
      %41 = sbr.rel (0) target = $region21
    $region20: #{vae_mlp_forward.1} parent=1 // pred_region
      %s43 = ssub.s32 8192, 8192
      %44 = vsyncadd [#allocation5], %s43
      %s45 = sshll.u32 [#allocation4], 4
      %s46 = int_to_ptr.vmem [resolvable:$true] %s45
      %51 = dma.hbm_to_vmem [thread:$0]  %s4, 8192, %s46, [#allocation5], 128, 128, 8
    $region21: #{vae_mlp_forward.1} parent=1 // pred_fallthru
      _
    // Predicated region
    $region22: #{vae_mlp_forward.1} parent=1 // pred_check
      _
    $region23: #{vae_mlp_forward.1} parent=1 // pred_check_branch
      %53 = sbr.rel (0) target = $region25
    $region24: #{vae_mlp_forward.1} parent=1 // pred_region
      _
    $region25: #{vae_mlp_forward.1} parent=1 // pred_fallthru
      _
    // Predicated region
    $region26: #{vae_mlp_forward.1} parent=1 // pred_check
      _
    $region27: #{vae_mlp_forward.1} parent=1 // pred_check_branch
      %55 = sbr.rel (0) target = $region29
    $region28: #{vae_mlp_forward.1} parent=1 // pred_region
      _
    $region29: #{vae_mlp_forward.1} parent=1 // pred_fallthru
      _
    // Predicated region
    $region30: #{vae_mlp_forward.1} parent=1 // pred_check
      _
    $region31: #{vae_mlp_forward.1} parent=1 // pred_check_branch
      %57 = sbr.rel (0) target = $region33
    $region32: #{vae_mlp_forward.1} parent=1 // pred_region
      _
    $region33: #{vae_mlp_forward.1} parent=1 // pred_fallthru
      _
    // Predicated region
    $region34: #{vae_mlp_forward.1} parent=1 // pred_check
      _
    $region35: #{vae_mlp_forward.1} parent=1 // pred_check_branch
      %59 = sbr.rel (0) target = $region37
    $region36: #{vae_mlp_forward.1} parent=1 // pred_region
      %s61 = ssub.s32 4096, 4096
      %62 = vsyncadd [#allocation5], %s61
      %s63 = sshll.u32 [#allocation6], 4
      %s64 = int_to_ptr.vmem [resolvable:$true] %s63
      %69 = dma.hbm_to_vmem [thread:$0]  %s8, 4096, %s64, [#allocation5], 256, 256, 16
    $region37: #{vae_mlp_forward.1} parent=1 // pred_fallthru
      _
    // Predicated region
    $region38: #{vae_mlp_forward.1} parent=1 // pred_check
      _
    $region39: #{vae_mlp_forward.1} parent=1 // pred_check_branch
      %71 = sbr.rel (0) target = $region41
    $region40: #{vae_mlp_forward.1} parent=1 // pred_region
      _
    $region41: #{vae_mlp_forward.1} parent=1 // pred_fallthru
      _
    // Predicated region
    $region42: #{vae_mlp_forward.1} parent=1 // pred_check
      _
    $region43: #{vae_mlp_forward.1} parent=1 // pred_check_branch
      %73 = sbr.rel (0) target = $region45
    $region44: #{vae_mlp_forward.1} parent=1 // pred_region
      %s75 = ssub.s32 32768, 32768
      %76 = vsyncadd [#allocation8], %s75
      %s77 = sshll.u32 [#allocation7], 4
      %s78 = int_to_ptr.vmem [resolvable:$true] %s77
      %83 = dma.hbm_to_vmem [thread:$0]  %s10, 32768, %s78, [#allocation8], 512, 512, 32
    $region45: #{vae_mlp_forward.1} parent=1 // pred_fallthru
      _
    // Predicated region
    $region46: #{vae_mlp_forward.1} parent=1 // pred_check
      _
    $region47: #{vae_mlp_forward.1} parent=1 // pred_check_branch
      %85 = sbr.rel (0) target = $region49
    $region48: #{vae_mlp_forward.1} parent=1 // pred_region
      _
    $region49: #{vae_mlp_forward.1} parent=1 // pred_fallthru
      _
    // Predicated region
    $region50: #{vae_mlp_forward.1} parent=1 // pred_check
      _
    $region51: #{vae_mlp_forward.1} parent=1 // pred_check_branch
      %87 = sbr.rel (0) target = $region53
    $region52: #{vae_mlp_forward.1} parent=1 // pred_region
      %88 = dma.done [#allocation3], 32768
    $region53: #{vae_mlp_forward.1} parent=1 // pred_fallthru
      _
    // Predicated region
    $region54: #{vae_mlp_forward.1} parent=1 // pred_check
      _
    $region55: #{vae_mlp_forward.1} parent=1 // pred_check_branch
      %90 = sbr.rel (0) target = $region57
    $region56: #{vae_mlp_forward.1} parent=1 // pred_region
      %91 = dma.done [#allocation5], 8192
    $region57: #{vae_mlp_forward.1} parent=1 // pred_fallthru
      _
    // Predicated region
    $region58: #{vae_mlp_forward.1} parent=1 // pred_check
      _
    $region59: #{vae_mlp_forward.1} parent=1 // pred_check_branch
      %93 = sbr.rel (0) target = $region61
    $region60: #{vae_mlp_forward.1} parent=1 // pred_region
      %94 = dma.done [#allocation5], 4096
    $region61: #{vae_mlp_forward.1} parent=1 // pred_fallthru
      _
    // Predicated region
    $region62: #{vae_mlp_forward.1} parent=1 // pred_check
      _
    $region63: #{vae_mlp_forward.1} parent=1 // pred_check_branch
      %96 = sbr.rel (0) target = $region65
    $region64: #{vae_mlp_forward.1} parent=1 // pred_region
      %97 = dma.done [#allocation8], 32768
    $region65: #{vae_mlp_forward.1} parent=1 // pred_fallthru
      _
    %v99 = vld [vmem:[%s0] sm:$0xff]
    %v100 = vld [vmem:[%s0 + $0x8] sm:$0xff]
    %v103 = vcombine.high %v99, %v99
    %v105 = vunpack.c.l.s4 1983009808
    %v106 = vunpack.c.0.s8 %v105
    %v107 = vlaneseq
    %v108 = vshrl.u32 %v107, 7
    %v109 = vsub.s32 %v106, %v108
    %v110 = vrot.slane %v99, %v109
    %v112 = vunpack.c.l.s4 1983009808
    %v113 = vunpack.c.0.s8 %v112
    %v114 = vlaneseq
    %v115 = vshrl.u32 %v114, 7
    %v116 = vsub.s32 %v113, %v115
    %v117 = vrot.slane %v103, %v116
    %v118 = vcombine.high %v110, %v110
    %v119 = vcombine.high %v117, %v117
    %v120 = vcombine.high %v100, %v100
    %v122 = vunpack.c.l.s4 1983009808
    %v123 = vunpack.c.0.s8 %v122
    %v124 = vlaneseq
    %v125 = vshrl.u32 %v124, 7
    %v126 = vsub.s32 %v123, %v125
    %v127 = vrot.slane %v100, %v126
    %v129 = vunpack.c.l.s4 1983009808
    %v130 = vunpack.c.0.s8 %v129
    %v131 = vlaneseq
    %v132 = vshrl.u32 %v131, 7
    %v133 = vsub.s32 %v130, %v132
    %v134 = vrot.slane %v120, %v133
    %v135 = vcombine.high %v127, %v127
    %v136 = vcombine.high %v134, %v134
    %v145 = vpack.c.bf16 %v110, %v110
    %v146 = vpack.c.bf16 %v118, %v118
    %v147 = vpack.c.bf16 %v117, %v117
    %v148 = vpack.c.bf16 %v119, %v119
    %v149 = vpack.c.bf16 %v127, %v127
    %v150 = vpack.c.bf16 %v135, %v135
    %v151 = vpack.c.bf16 %v134, %v134
    %v152 = vpack.c.bf16 %v136, %v136
    %v153 = vld [vmem:[#allocation2] sm:$0xff]
    %v154 = vld [vmem:[#allocation2 + $0x8] sm:$0xff]
    %v155 = vld [vmem:[#allocation2 + $0x10] sm:$0xff]
    %v156 = vld [vmem:[#allocation2 + $0x18] sm:$0xff]
    %v157 = vld [vmem:[#allocation2 + $0x20] sm:$0xff]
    %v158 = vld [vmem:[#allocation2 + $0x28] sm:$0xff]
    %v159 = vld [vmem:[#allocation2 + $0x30] sm:$0xff]
    %v160 = vld [vmem:[#allocation2 + $0x38] sm:$0xff]
    %v161 = vld [vmem:[#allocation2 + $0x40] sm:$0xff]
    %v162 = vld [vmem:[#allocation2 + $0x48] sm:$0xff]
    %v163 = vld [vmem:[#allocation2 + $0x50] sm:$0xff]
    %v164 = vld [vmem:[#allocation2 + $0x58] sm:$0xff]
    %v165 = vld [vmem:[#allocation2 + $0x60] sm:$0xff]
    %v166 = vld [vmem:[#allocation2 + $0x68] sm:$0xff]
    %v167 = vld [vmem:[#allocation2 + $0x70] sm:$0xff]
    %v168 = vld [vmem:[#allocation2 + $0x78] sm:$0xff]
    %v169 = vld [vmem:[#allocation2 + $0x80] sm:$0xff]
    %v170 = vld [vmem:[#allocation2 + $0x88] sm:$0xff]
    %v171 = vld [vmem:[#allocation2 + $0x90] sm:$0xff]
    %v172 = vld [vmem:[#allocation2 + $0x98] sm:$0xff]
    %v173 = vld [vmem:[#allocation2 + $0xa0] sm:$0xff]
    %v174 = vld [vmem:[#allocation2 + $0xa8] sm:$0xff]
    %v175 = vld [vmem:[#allocation2 + $0xb0] sm:$0xff]
    %v176 = vld [vmem:[#allocation2 + $0xb8] sm:$0xff]
    %v177 = vld [vmem:[#allocation2 + $0xc0] sm:$0xff]
    %v178 = vld [vmem:[#allocation2 + $0xc8] sm:$0xff]
    %v179 = vld [vmem:[#allocation2 + $0xd0] sm:$0xff]
    %v180 = vld [vmem:[#allocation2 + $0xd8] sm:$0xff]
    %v181 = vld [vmem:[#allocation2 + $0xe0] sm:$0xff]
    %v182 = vld [vmem:[#allocation2 + $0xe8] sm:$0xff]
    %v183 = vld [vmem:[#allocation2 + $0xf0] sm:$0xff]
    %v184 = vld [vmem:[#allocation2 + $0xf8] sm:$0xff]
    %v185 = vld [vmem:[#allocation2 + $0x100] sm:$0xff]
    %v186 = vld [vmem:[#allocation2 + $0x108] sm:$0xff]
    %v187 = vld [vmem:[#allocation2 + $0x110] sm:$0xff]
    %v188 = vld [vmem:[#allocation2 + $0x118] sm:$0xff]
    %v189 = vld [vmem:[#allocation2 + $0x120] sm:$0xff]
    %v190 = vld [vmem:[#allocation2 + $0x128] sm:$0xff]
    %v191 = vld [vmem:[#allocation2 + $0x130] sm:$0xff]
    %v192 = vld [vmem:[#allocation2 + $0x138] sm:$0xff]
    %v193 = vld [vmem:[#allocation2 + $0x140] sm:$0xff]
    %v194 = vld [vmem:[#allocation2 + $0x148] sm:$0xff]
    %v195 = vld [vmem:[#allocation2 + $0x150] sm:$0xff]
    %v196 = vld [vmem:[#allocation2 + $0x158] sm:$0xff]
    %v197 = vld [vmem:[#allocation2 + $0x160] sm:$0xff]
    %v198 = vld [vmem:[#allocation2 + $0x168] sm:$0xff]
    %v199 = vld [vmem:[#allocation2 + $0x170] sm:$0xff]
    %v200 = vld [vmem:[#allocation2 + $0x178] sm:$0xff]
    %v201 = vld [vmem:[#allocation2 + $0x180] sm:$0xff]
    %v202 = vld [vmem:[#allocation2 + $0x188] sm:$0xff]
    %v203 = vld [vmem:[#allocation2 + $0x190] sm:$0xff]
    %v204 = vld [vmem:[#allocation2 + $0x198] sm:$0xff]
    %v205 = vld [vmem:[#allocation2 + $0x1a0] sm:$0xff]
    %v206 = vld [vmem:[#allocation2 + $0x1a8] sm:$0xff]
    %v207 = vld [vmem:[#allocation2 + $0x1b0] sm:$0xff]
    %v208 = vld [vmem:[#allocation2 + $0x1b8] sm:$0xff]
    %v209 = vld [vmem:[#allocation2 + $0x1c0] sm:$0xff]
    %v210 = vld [vmem:[#allocation2 + $0x1c8] sm:$0xff]
    %v211 = vld [vmem:[#allocation2 + $0x1d0] sm:$0xff]
    %v212 = vld [vmem:[#allocation2 + $0x1d8] sm:$0xff]
    %v213 = vld [vmem:[#allocation2 + $0x1e0] sm:$0xff]
    %v214 = vld [vmem:[#allocation2 + $0x1e8] sm:$0xff]
    %v215 = vld [vmem:[#allocation2 + $0x1f0] sm:$0xff]
    %v216 = vld [vmem:[#allocation2 + $0x1f8] sm:$0xff]
    %v217 = vld [vmem:[#allocation2 + $0x200] sm:$0xff]
    %v218 = vld [vmem:[#allocation2 + $0x208] sm:$0xff]
    %v219 = vld [vmem:[#allocation2 + $0x210] sm:$0xff]
    %v220 = vld [vmem:[#allocation2 + $0x218] sm:$0xff]
    %v221 = vld [vmem:[#allocation2 + $0x220] sm:$0xff]
    %v222 = vld [vmem:[#allocation2 + $0x228] sm:$0xff]
    %v223 = vld [vmem:[#allocation2 + $0x230] sm:$0xff]
    %v224 = vld [vmem:[#allocation2 + $0x238] sm:$0xff]
    %v225 = vld [vmem:[#allocation2 + $0x240] sm:$0xff]
    %v226 = vld [vmem:[#allocation2 + $0x248] sm:$0xff]
    %v227 = vld [vmem:[#allocation2 + $0x250] sm:$0xff]
    %v228 = vld [vmem:[#allocation2 + $0x258] sm:$0xff]
    %v229 = vld [vmem:[#allocation2 + $0x260] sm:$0xff]
    %v230 = vld [vmem:[#allocation2 + $0x268] sm:$0xff]
    %v231 = vld [vmem:[#allocation2 + $0x270] sm:$0xff]
    %v232 = vld [vmem:[#allocation2 + $0x278] sm:$0xff]
    %v233 = vld [vmem:[#allocation2 + $0x280] sm:$0xff]
    %v234 = vld [vmem:[#allocation2 + $0x288] sm:$0xff]
    %v235 = vld [vmem:[#allocation2 + $0x290] sm:$0xff]
    %v236 = vld [vmem:[#allocation2 + $0x298] sm:$0xff]
    %v237 = vld [vmem:[#allocation2 + $0x2a0] sm:$0xff]
    %v238 = vld [vmem:[#allocation2 + $0x2a8] sm:$0xff]
    %v239 = vld [vmem:[#allocation2 + $0x2b0] sm:$0xff]
    %v240 = vld [vmem:[#allocation2 + $0x2b8] sm:$0xff]
    %v241 = vld [vmem:[#allocation2 + $0x2c0] sm:$0xff]
    %v242 = vld [vmem:[#allocation2 + $0x2c8] sm:$0xff]
    %v243 = vld [vmem:[#allocation2 + $0x2d0] sm:$0xff]
    %v244 = vld [vmem:[#allocation2 + $0x2d8] sm:$0xff]
    %v245 = vld [vmem:[#allocation2 + $0x2e0] sm:$0xff]
    %v246 = vld [vmem:[#allocation2 + $0x2e8] sm:$0xff]
    %v247 = vld [vmem:[#allocation2 + $0x2f0] sm:$0xff]
    %v248 = vld [vmem:[#allocation2 + $0x2f8] sm:$0xff]
    %v249 = vld [vmem:[#allocation2 + $0x300] sm:$0xff]
    %v250 = vld [vmem:[#allocation2 + $0x308] sm:$0xff]
    %v251 = vld [vmem:[#allocation2 + $0x310] sm:$0xff]
    %v252 = vld [vmem:[#allocation2 + $0x318] sm:$0xff]
    %v253 = vld [vmem:[#allocation2 + $0x320] sm:$0xff]
    %v254 = vld [vmem:[#allocation2 + $0x328] sm:$0xff]
    %v255 = vld [vmem:[#allocation2 + $0x330] sm:$0xff]
    %v256 = vld [vmem:[#allocation2 + $0x338] sm:$0xff]
    %v257 = vld [vmem:[#allocation2 + $0x340] sm:$0xff]
    %v258 = vld [vmem:[#allocation2 + $0x348] sm:$0xff]
    %v259 = vld [vmem:[#allocation2 + $0x350] sm:$0xff]
    %v260 = vld [vmem:[#allocation2 + $0x358] sm:$0xff]
    %v261 = vld [vmem:[#allocation2 + $0x360] sm:$0xff]
    %v262 = vld [vmem:[#allocation2 + $0x368] sm:$0xff]
    %v263 = vld [vmem:[#allocation2 + $0x370] sm:$0xff]
    %v264 = vld [vmem:[#allocation2 + $0x378] sm:$0xff]
    %v265 = vld [vmem:[#allocation2 + $0x380] sm:$0xff]
    %v266 = vld [vmem:[#allocation2 + $0x388] sm:$0xff]
    %v267 = vld [vmem:[#allocation2 + $0x390] sm:$0xff]
    %v268 = vld [vmem:[#allocation2 + $0x398] sm:$0xff]
    %v269 = vld [vmem:[#allocation2 + $0x3a0] sm:$0xff]
    %v270 = vld [vmem:[#allocation2 + $0x3a8] sm:$0xff]
    %v271 = vld [vmem:[#allocation2 + $0x3b0] sm:$0xff]
    %v272 = vld [vmem:[#allocation2 + $0x3b8] sm:$0xff]
    %v273 = vld [vmem:[#allocation2 + $0x3c0] sm:$0xff]
    %v274 = vld [vmem:[#allocation2 + $0x3c8] sm:$0xff]
    %v275 = vld [vmem:[#allocation2 + $0x3d0] sm:$0xff]
    %v276 = vld [vmem:[#allocation2 + $0x3d8] sm:$0xff]
    %v277 = vld [vmem:[#allocation2 + $0x3e0] sm:$0xff]
    %v278 = vld [vmem:[#allocation2 + $0x3e8] sm:$0xff]
    %v279 = vld [vmem:[#allocation2 + $0x3f0] sm:$0xff]
    %v280 = vld [vmem:[#allocation2 + $0x3f8] sm:$0xff]
    %v281 = vld [vmem:[#allocation2 + $0x400] sm:$0xff]
    %v282 = vld [vmem:[#allocation2 + $0x408] sm:$0xff]
    %v283 = vld [vmem:[#allocation2 + $0x410] sm:$0xff]
    %v284 = vld [vmem:[#allocation2 + $0x418] sm:$0xff]
    %v285 = vld [vmem:[#allocation2 + $0x420] sm:$0xff]
    %v286 = vld [vmem:[#allocation2 + $0x428] sm:$0xff]
    %v287 = vld [vmem:[#allocation2 + $0x430] sm:$0xff]
    %v288 = vld [vmem:[#allocation2 + $0x438] sm:$0xff]
    %v289 = vld [vmem:[#allocation2 + $0x440] sm:$0xff]
    %v290 = vld [vmem:[#allocation2 + $0x448] sm:$0xff]
    %v291 = vld [vmem:[#allocation2 + $0x450] sm:$0xff]
    %v292 = vld [vmem:[#allocation2 + $0x458] sm:$0xff]
    %v293 = vld [vmem:[#allocation2 + $0x460] sm:$0xff]
    %v294 = vld [vmem:[#allocation2 + $0x468] sm:$0xff]
    %v295 = vld [vmem:[#allocation2 + $0x470] sm:$0xff]
    %v296 = vld [vmem:[#allocation2 + $0x478] sm:$0xff]
    %v297 = vld [vmem:[#allocation2 + $0x480] sm:$0xff]
    %v298 = vld [vmem:[#allocation2 + $0x488] sm:$0xff]
    %v299 = vld [vmem:[#allocation2 + $0x490] sm:$0xff]
    %v300 = vld [vmem:[#allocation2 + $0x498] sm:$0xff]
    %v301 = vld [vmem:[#allocation2 + $0x4a0] sm:$0xff]
    %v302 = vld [vmem:[#allocation2 + $0x4a8] sm:$0xff]
    %v303 = vld [vmem:[#allocation2 + $0x4b0] sm:$0xff]
    %v304 = vld [vmem:[#allocation2 + $0x4b8] sm:$0xff]
    %v305 = vld [vmem:[#allocation2 + $0x4c0] sm:$0xff]
    %v306 = vld [vmem:[#allocation2 + $0x4c8] sm:$0xff]
    %v307 = vld [vmem:[#allocation2 + $0x4d0] sm:$0xff]
    %v308 = vld [vmem:[#allocation2 + $0x4d8] sm:$0xff]
    %v309 = vld [vmem:[#allocation2 + $0x4e0] sm:$0xff]
    %v310 = vld [vmem:[#allocation2 + $0x4e8] sm:$0xff]
    %v311 = vld [vmem:[#allocation2 + $0x4f0] sm:$0xff]
    %v312 = vld [vmem:[#allocation2 + $0x4f8] sm:$0xff]
    %v313 = vld [vmem:[#allocation2 + $0x500] sm:$0xff]
    %v314 = vld [vmem:[#allocation2 + $0x508] sm:$0xff]
    %v315 = vld [vmem:[#allocation2 + $0x510] sm:$0xff]
    %v316 = vld [vmem:[#allocation2 + $0x518] sm:$0xff]
    %v317 = vld [vmem:[#allocation2 + $0x520] sm:$0xff]
    %v318 = vld [vmem:[#allocation2 + $0x528] sm:$0xff]
    %v319 = vld [vmem:[#allocation2 + $0x530] sm:$0xff]
    %v320 = vld [vmem:[#allocation2 + $0x538] sm:$0xff]
    %v321 = vld [vmem:[#allocation2 + $0x540] sm:$0xff]
    %v322 = vld [vmem:[#allocation2 + $0x548] sm:$0xff]
    %v323 = vld [vmem:[#allocation2 + $0x550] sm:$0xff]
    %v324 = vld [vmem:[#allocation2 + $0x558] sm:$0xff]
    %v325 = vld [vmem:[#allocation2 + $0x560] sm:$0xff]
    %v326 = vld [vmem:[#allocation2 + $0x568] sm:$0xff]
    %v327 = vld [vmem:[#allocation2 + $0x570] sm:$0xff]
    %v328 = vld [vmem:[#allocation2 + $0x578] sm:$0xff]
    %v329 = vld [vmem:[#allocation2 + $0x580] sm:$0xff]
    %v330 = vld [vmem:[#allocation2 + $0x588] sm:$0xff]
    %v331 = vld [vmem:[#allocation2 + $0x590] sm:$0xff]
    %v332 = vld [vmem:[#allocation2 + $0x598] sm:$0xff]
    %v333 = vld [vmem:[#allocation2 + $0x5a0] sm:$0xff]
    %v334 = vld [vmem:[#allocation2 + $0x5a8] sm:$0xff]
    %v335 = vld [vmem:[#allocation2 + $0x5b0] sm:$0xff]
    %v336 = vld [vmem:[#allocation2 + $0x5b8] sm:$0xff]
    %v337 = vld [vmem:[#allocation2 + $0x5c0] sm:$0xff]
    %v338 = vld [vmem:[#allocation2 + $0x5c8] sm:$0xff]
    %v339 = vld [vmem:[#allocation2 + $0x5d0] sm:$0xff]
    %v340 = vld [vmem:[#allocation2 + $0x5d8] sm:$0xff]
    %v341 = vld [vmem:[#allocation2 + $0x5e0] sm:$0xff]
    %v342 = vld [vmem:[#allocation2 + $0x5e8] sm:$0xff]
    %v343 = vld [vmem:[#allocation2 + $0x5f0] sm:$0xff]
    %v344 = vld [vmem:[#allocation2 + $0x5f8] sm:$0xff]
    %v345 = vld [vmem:[#allocation2 + $0x600] sm:$0xff]
    %v346 = vld [vmem:[#allocation2 + $0x608] sm:$0xff]
    %v347 = vld [vmem:[#allocation2 + $0x610] sm:$0xff]
    %v348 = vld [vmem:[#allocation2 + $0x618] sm:$0xff]
    %v349 = vld [vmem:[#allocation2 + $0x620] sm:$0xff]
    %v350 = vld [vmem:[#allocation2 + $0x628] sm:$0xff]
    %v351 = vld [vmem:[#allocation2 + $0x630] sm:$0xff]
    %v352 = vld [vmem:[#allocation2 + $0x638] sm:$0xff]
    %v353 = vld [vmem:[#allocation2 + $0x640] sm:$0xff]
    %v354 = vld [vmem:[#allocation2 + $0x648] sm:$0xff]
    %v355 = vld [vmem:[#allocation2 + $0x650] sm:$0xff]
    %v356 = vld [vmem:[#allocation2 + $0x658] sm:$0xff]
    %v357 = vld [vmem:[#allocation2 + $0x660] sm:$0xff]
    %v358 = vld [vmem:[#allocation2 + $0x668] sm:$0xff]
    %v359 = vld [vmem:[#allocation2 + $0x670] sm:$0xff]
    %v360 = vld [vmem:[#allocation2 + $0x678] sm:$0xff]
    %v361 = vld [vmem:[#allocation2 + $0x680] sm:$0xff]
    %v362 = vld [vmem:[#allocation2 + $0x688] sm:$0xff]
    %v363 = vld [vmem:[#allocation2 + $0x690] sm:$0xff]
    %v364 = vld [vmem:[#allocation2 + $0x698] sm:$0xff]
    %v365 = vld [vmem:[#allocation2 + $0x6a0] sm:$0xff]
    %v366 = vld [vmem:[#allocation2 + $0x6a8] sm:$0xff]
    %v367 = vld [vmem:[#allocation2 + $0x6b0] sm:$0xff]
    %v368 = vld [vmem:[#allocation2 + $0x6b8] sm:$0xff]
    %v369 = vld [vmem:[#allocation2 + $0x6c0] sm:$0xff]
    %v370 = vld [vmem:[#allocation2 + $0x6c8] sm:$0xff]
    %v371 = vld [vmem:[#allocation2 + $0x6d0] sm:$0xff]
    %v372 = vld [vmem:[#allocation2 + $0x6d8] sm:$0xff]
    %v373 = vld [vmem:[#allocation2 + $0x6e0] sm:$0xff]
    %v374 = vld [vmem:[#allocation2 + $0x6e8] sm:$0xff]
    %v375 = vld [vmem:[#allocation2 + $0x6f0] sm:$0xff]
    %v376 = vld [vmem:[#allocation2 + $0x6f8] sm:$0xff]
    %v377 = vld [vmem:[#allocation2 + $0x700] sm:$0xff]
    %v378 = vld [vmem:[#allocation2 + $0x708] sm:$0xff]
    %v379 = vld [vmem:[#allocation2 + $0x710] sm:$0xff]
    %v380 = vld [vmem:[#allocation2 + $0x718] sm:$0xff]
    %v381 = vld [vmem:[#allocation2 + $0x720] sm:$0xff]
    %v382 = vld [vmem:[#allocation2 + $0x728] sm:$0xff]
    %v383 = vld [vmem:[#allocation2 + $0x730] sm:$0xff]
    %v384 = vld [vmem:[#allocation2 + $0x738] sm:$0xff]
    %v385 = vld [vmem:[#allocation2 + $0x740] sm:$0xff]
    %v386 = vld [vmem:[#allocation2 + $0x748] sm:$0xff]
    %v387 = vld [vmem:[#allocation2 + $0x750] sm:$0xff]
    %v388 = vld [vmem:[#allocation2 + $0x758] sm:$0xff]
    %v389 = vld [vmem:[#allocation2 + $0x760] sm:$0xff]
    %v390 = vld [vmem:[#allocation2 + $0x768] sm:$0xff]
    %v391 = vld [vmem:[#allocation2 + $0x770] sm:$0xff]
    %v392 = vld [vmem:[#allocation2 + $0x778] sm:$0xff]
    %v393 = vld [vmem:[#allocation2 + $0x780] sm:$0xff]
    %v394 = vld [vmem:[#allocation2 + $0x788] sm:$0xff]
    %v395 = vld [vmem:[#allocation2 + $0x790] sm:$0xff]
    %v396 = vld [vmem:[#allocation2 + $0x798] sm:$0xff]
    %v397 = vld [vmem:[#allocation2 + $0x7a0] sm:$0xff]
    %v398 = vld [vmem:[#allocation2 + $0x7a8] sm:$0xff]
    %v399 = vld [vmem:[#allocation2 + $0x7b0] sm:$0xff]
    %v400 = vld [vmem:[#allocation2 + $0x7b8] sm:$0xff]
    %v401 = vld [vmem:[#allocation2 + $0x7c0] sm:$0xff]
    %v402 = vld [vmem:[#allocation2 + $0x7c8] sm:$0xff]
    %v403 = vld [vmem:[#allocation2 + $0x7d0] sm:$0xff]
    %v404 = vld [vmem:[#allocation2 + $0x7d8] sm:$0xff]
    %v405 = vld [vmem:[#allocation2 + $0x7e0] sm:$0xff]
    %v406 = vld [vmem:[#allocation2 + $0x7e8] sm:$0xff]
    %v407 = vld [vmem:[#allocation2 + $0x7f0] sm:$0xff]
    %v408 = vld [vmem:[#allocation2 + $0x7f8] sm:$0xff]
    %v409 = vld [vmem:[%s3] sm:$0xf]
    %v411 = vlaneseq
    %v412 = vshrl.u32 %v411, 7
    %v413 = vsub.s32 0, %v412
    %v414 = vrot.slane %v409, %v413
    %v415 = vlaneseq
    %v416 = vshrl.u32 %v415, 7
    %v417 = vsub.s32 1, %v416
    %v418 = vrot.slane %v409, %v417
    %v419 = vlaneseq
    %v420 = vshrl.u32 %v419, 7
    %v421 = vsub.s32 2, %v420
    %v422 = vrot.slane %v409, %v421
    %v423 = vlaneseq
    %v424 = vshrl.u32 %v423, 7
    %v425 = vsub.s32 3, %v424
    %v426 = vrot.slane %v409, %v425
    %v687 = vunpack.c.l.b16 %v153
    %v688 = vunpack.c.h.b16 %v153
    %v689 = vunpack.c.l.b16 %v154
    %v690 = vunpack.c.h.b16 %v154
    %v691 = vunpack.c.l.b16 %v155
    %v692 = vunpack.c.h.b16 %v155
    %v693 = vunpack.c.l.b16 %v156
    %v694 = vunpack.c.h.b16 %v156
    %v695 = vunpack.c.l.b16 %v157
    %v696 = vunpack.c.h.b16 %v157
    %v697 = vunpack.c.l.b16 %v158
    %v698 = vunpack.c.h.b16 %v158
    %v699 = vunpack.c.l.b16 %v159
    %v700 = vunpack.c.h.b16 %v159
    %v701 = vunpack.c.l.b16 %v160
    %v702 = vunpack.c.h.b16 %v160
    %v703 = vunpack.c.l.b16 %v161
    %v704 = vunpack.c.h.b16 %v161
    %v705 = vunpack.c.l.b16 %v162
    %v706 = vunpack.c.h.b16 %v162
    %v707 = vunpack.c.l.b16 %v163
    %v708 = vunpack.c.h.b16 %v163
    %v709 = vunpack.c.l.b16 %v164
    %v710 = vunpack.c.h.b16 %v164
    %v711 = vunpack.c.l.b16 %v165
    %v712 = vunpack.c.h.b16 %v165
    %v713 = vunpack.c.l.b16 %v166
    %v714 = vunpack.c.h.b16 %v166
    %v715 = vunpack.c.l.b16 %v167
    %v716 = vunpack.c.h.b16 %v167
    %v717 = vunpack.c.l.b16 %v168
    %v718 = vunpack.c.h.b16 %v168
    %v719 = vunpack.c.l.b16 %v169
    %v720 = vunpack.c.h.b16 %v169
    %v721 = vunpack.c.l.b16 %v170
    %v722 = vunpack.c.h.b16 %v170
    %v723 = vunpack.c.l.b16 %v171
    %v724 = vunpack.c.h.b16 %v171
    %v725 = vunpack.c.l.b16 %v172
    %v726 = vunpack.c.h.b16 %v172
    %v727 = vunpack.c.l.b16 %v173
    %v728 = vunpack.c.h.b16 %v173
    %v729 = vunpack.c.l.b16 %v174
    %v730 = vunpack.c.h.b16 %v174
    %v731 = vunpack.c.l.b16 %v175
    %v732 = vunpack.c.h.b16 %v175
    %v733 = vunpack.c.l.b16 %v176
    %v734 = vunpack.c.h.b16 %v176
    %v735 = vunpack.c.l.b16 %v177
    %v736 = vunpack.c.h.b16 %v177
    %v737 = vunpack.c.l.b16 %v178
    %v738 = vunpack.c.h.b16 %v178
    %v739 = vunpack.c.l.b16 %v179
    %v740 = vunpack.c.h.b16 %v179
    %v741 = vunpack.c.l.b16 %v180
    %v742 = vunpack.c.h.b16 %v180
    %v743 = vunpack.c.l.b16 %v181
    %v744 = vunpack.c.h.b16 %v181
    %v745 = vunpack.c.l.b16 %v182
    %v746 = vunpack.c.h.b16 %v182
    %v747 = vunpack.c.l.b16 %v183
    %v748 = vunpack.c.h.b16 %v183
    %v749 = vunpack.c.l.b16 %v184
    %v750 = vunpack.c.h.b16 %v184
    %v751 = vunpack.c.l.b16 %v185
    %v752 = vunpack.c.h.b16 %v185
    %v753 = vunpack.c.l.b16 %v186
    %v754 = vunpack.c.h.b16 %v186
    %v755 = vunpack.c.l.b16 %v187
    %v756 = vunpack.c.h.b16 %v187
    %v757 = vunpack.c.l.b16 %v188
    %v758 = vunpack.c.h.b16 %v188
    %v759 = vunpack.c.l.b16 %v189
    %v760 = vunpack.c.h.b16 %v189
    %v761 = vunpack.c.l.b16 %v190
    %v762 = vunpack.c.h.b16 %v190
    %v763 = vunpack.c.l.b16 %v191
    %v764 = vunpack.c.h.b16 %v191
    %v765 = vunpack.c.l.b16 %v192
    %v766 = vunpack.c.h.b16 %v192
    %v767 = vunpack.c.l.b16 %v193
    %v768 = vunpack.c.h.b16 %v193
    %v769 = vunpack.c.l.b16 %v194
    %v770 = vunpack.c.h.b16 %v194
    %v771 = vunpack.c.l.b16 %v195
    %v772 = vunpack.c.h.b16 %v195
    %v773 = vunpack.c.l.b16 %v196
    %v774 = vunpack.c.h.b16 %v196
    %v775 = vunpack.c.l.b16 %v197
    %v776 = vunpack.c.h.b16 %v197
    %v777 = vunpack.c.l.b16 %v198
    %v778 = vunpack.c.h.b16 %v198
    %v779 = vunpack.c.l.b16 %v199
    %v780 = vunpack.c.h.b16 %v199
    %v781 = vunpack.c.l.b16 %v200
    %v782 = vunpack.c.h.b16 %v200
    %v783 = vunpack.c.l.b16 %v201
    %v784 = vunpack.c.h.b16 %v201
    %v785 = vunpack.c.l.b16 %v202
    %v786 = vunpack.c.h.b16 %v202
    %v787 = vunpack.c.l.b16 %v203
    %v788 = vunpack.c.h.b16 %v203
    %v789 = vunpack.c.l.b16 %v204
    %v790 = vunpack.c.h.b16 %v204
    %v791 = vunpack.c.l.b16 %v205
    %v792 = vunpack.c.h.b16 %v205
    %v793 = vunpack.c.l.b16 %v206
    %v794 = vunpack.c.h.b16 %v206
    %v795 = vunpack.c.l.b16 %v207
    %v796 = vunpack.c.h.b16 %v207
    %v797 = vunpack.c.l.b16 %v208
    %v798 = vunpack.c.h.b16 %v208
    %v799 = vunpack.c.l.b16 %v209
    %v800 = vunpack.c.h.b16 %v209
    %v801 = vunpack.c.l.b16 %v210
    %v802 = vunpack.c.h.b16 %v210
    %v803 = vunpack.c.l.b16 %v211
    %v804 = vunpack.c.h.b16 %v211
    %v805 = vunpack.c.l.b16 %v212
    %v806 = vunpack.c.h.b16 %v212
    %v807 = vunpack.c.l.b16 %v213
    %v808 = vunpack.c.h.b16 %v213
    %v809 = vunpack.c.l.b16 %v214
    %v810 = vunpack.c.h.b16 %v214
    %v811 = vunpack.c.l.b16 %v215
    %v812 = vunpack.c.h.b16 %v215
    %v813 = vunpack.c.l.b16 %v216
    %v814 = vunpack.c.h.b16 %v216
    %v815 = vunpack.c.l.b16 %v217
    %v816 = vunpack.c.h.b16 %v217
    %v817 = vunpack.c.l.b16 %v218
    %v818 = vunpack.c.h.b16 %v218
    %v819 = vunpack.c.l.b16 %v219
    %v820 = vunpack.c.h.b16 %v219
    %v821 = vunpack.c.l.b16 %v220
    %v822 = vunpack.c.h.b16 %v220
    %v823 = vunpack.c.l.b16 %v221
    %v824 = vunpack.c.h.b16 %v221
    %v825 = vunpack.c.l.b16 %v222
    %v826 = vunpack.c.h.b16 %v222
    %v827 = vunpack.c.l.b16 %v223
    %v828 = vunpack.c.h.b16 %v223
    %v829 = vunpack.c.l.b16 %v224
    %v830 = vunpack.c.h.b16 %v224
    %v831 = vunpack.c.l.b16 %v225
    %v832 = vunpack.c.h.b16 %v225
    %v833 = vunpack.c.l.b16 %v226
    %v834 = vunpack.c.h.b16 %v226
    %v835 = vunpack.c.l.b16 %v227
    %v836 = vunpack.c.h.b16 %v227
    %v837 = vunpack.c.l.b16 %v228
    %v838 = vunpack.c.h.b16 %v228
    %v839 = vunpack.c.l.b16 %v229
    %v840 = vunpack.c.h.b16 %v229
    %v841 = vunpack.c.l.b16 %v230
    %v842 = vunpack.c.h.b16 %v230
    %v843 = vunpack.c.l.b16 %v231
    %v844 = vunpack.c.h.b16 %v231
    %v845 = vunpack.c.l.b16 %v232
    %v846 = vunpack.c.h.b16 %v232
    %v847 = vunpack.c.l.b16 %v233
    %v848 = vunpack.c.h.b16 %v233
    %v849 = vunpack.c.l.b16 %v234
    %v850 = vunpack.c.h.b16 %v234
    %v851 = vunpack.c.l.b16 %v235
    %v852 = vunpack.c.h.b16 %v235
    %v853 = vunpack.c.l.b16 %v236
    %v854 = vunpack.c.h.b16 %v236
    %v855 = vunpack.c.l.b16 %v237
    %v856 = vunpack.c.h.b16 %v237
    %v857 = vunpack.c.l.b16 %v238
    %v858 = vunpack.c.h.b16 %v238
    %v859 = vunpack.c.l.b16 %v239
    %v860 = vunpack.c.h.b16 %v239
    %v861 = vunpack.c.l.b16 %v240
    %v862 = vunpack.c.h.b16 %v240
    %v863 = vunpack.c.l.b16 %v241
    %v864 = vunpack.c.h.b16 %v241
    %v865 = vunpack.c.l.b16 %v242
    %v866 = vunpack.c.h.b16 %v242
    %v867 = vunpack.c.l.b16 %v243
    %v868 = vunpack.c.h.b16 %v243
    %v869 = vunpack.c.l.b16 %v244
    %v870 = vunpack.c.h.b16 %v244
    %v871 = vunpack.c.l.b16 %v245
    %v872 = vunpack.c.h.b16 %v245
    %v873 = vunpack.c.l.b16 %v246
    %v874 = vunpack.c.h.b16 %v246
    %v875 = vunpack.c.l.b16 %v247
    %v876 = vunpack.c.h.b16 %v247
    %v877 = vunpack.c.l.b16 %v248
    %v878 = vunpack.c.h.b16 %v248
    %v879 = vunpack.c.l.b16 %v249
    %v880 = vunpack.c.h.b16 %v249
    %v881 = vunpack.c.l.b16 %v250
    %v882 = vunpack.c.h.b16 %v250
    %v883 = vunpack.c.l.b16 %v251
    %v884 = vunpack.c.h.b16 %v251
    %v885 = vunpack.c.l.b16 %v252
    %v886 = vunpack.c.h.b16 %v252
    %v887 = vunpack.c.l.b16 %v253
    %v888 = vunpack.c.h.b16 %v253
    %v889 = vunpack.c.l.b16 %v254
    %v890 = vunpack.c.h.b16 %v254
    %v891 = vunpack.c.l.b16 %v255
    %v892 = vunpack.c.h.b16 %v255
    %v893 = vunpack.c.l.b16 %v256
    %v894 = vunpack.c.h.b16 %v256
    %v895 = vunpack.c.l.b16 %v257
    %v896 = vunpack.c.h.b16 %v257
    %v897 = vunpack.c.l.b16 %v258
    %v898 = vunpack.c.h.b16 %v258
    %v899 = vunpack.c.l.b16 %v259
    %v900 = vunpack.c.h.b16 %v259
    %v901 = vunpack.c.l.b16 %v260
    %v902 = vunpack.c.h.b16 %v260
    %v903 = vunpack.c.l.b16 %v261
    %v904 = vunpack.c.h.b16 %v261
    %v905 = vunpack.c.l.b16 %v262
    %v906 = vunpack.c.h.b16 %v262
    %v907 = vunpack.c.l.b16 %v263
    %v908 = vunpack.c.h.b16 %v263
    %v909 = vunpack.c.l.b16 %v264
    %v910 = vunpack.c.h.b16 %v264
    %v911 = vunpack.c.l.b16 %v265
    %v912 = vunpack.c.h.b16 %v265
    %v913 = vunpack.c.l.b16 %v266
    %v914 = vunpack.c.h.b16 %v266
    %v915 = vunpack.c.l.b16 %v267
    %v916 = vunpack.c.h.b16 %v267
    %v917 = vunpack.c.l.b16 %v268
    %v918 = vunpack.c.h.b16 %v268
    %v919 = vunpack.c.l.b16 %v269
    %v920 = vunpack.c.h.b16 %v269
    %v921 = vunpack.c.l.b16 %v270
    %v922 = vunpack.c.h.b16 %v270
    %v923 = vunpack.c.l.b16 %v271
    %v924 = vunpack.c.h.b16 %v271
    %v925 = vunpack.c.l.b16 %v272
    %v926 = vunpack.c.h.b16 %v272
    %v927 = vunpack.c.l.b16 %v273
    %v928 = vunpack.c.h.b16 %v273
    %v929 = vunpack.c.l.b16 %v274
    %v930 = vunpack.c.h.b16 %v274
    %v931 = vunpack.c.l.b16 %v275
    %v932 = vunpack.c.h.b16 %v275
    %v933 = vunpack.c.l.b16 %v276
    %v934 = vunpack.c.h.b16 %v276
    %v935 = vunpack.c.l.b16 %v277
    %v936 = vunpack.c.h.b16 %v277
    %v937 = vunpack.c.l.b16 %v278
    %v938 = vunpack.c.h.b16 %v278
    %v939 = vunpack.c.l.b16 %v279
    %v940 = vunpack.c.h.b16 %v279
    %v941 = vunpack.c.l.b16 %v280
    %v942 = vunpack.c.h.b16 %v280
    %v943 = vunpack.c.l.b16 %v281
    %v944 = vunpack.c.h.b16 %v281
    %v945 = vunpack.c.l.b16 %v282
    %v946 = vunpack.c.h.b16 %v282
    %v947 = vunpack.c.l.b16 %v283
    %v948 = vunpack.c.h.b16 %v283
    %v949 = vunpack.c.l.b16 %v284
    %v950 = vunpack.c.h.b16 %v284
    %v951 = vunpack.c.l.b16 %v285
    %v952 = vunpack.c.h.b16 %v285
    %v953 = vunpack.c.l.b16 %v286
    %v954 = vunpack.c.h.b16 %v286
    %v955 = vunpack.c.l.b16 %v287
    %v956 = vunpack.c.h.b16 %v287
    %v957 = vunpack.c.l.b16 %v288
    %v958 = vunpack.c.h.b16 %v288
    %v959 = vunpack.c.l.b16 %v289
    %v960 = vunpack.c.h.b16 %v289
    %v961 = vunpack.c.l.b16 %v290
    %v962 = vunpack.c.h.b16 %v290
    %v963 = vunpack.c.l.b16 %v291
    %v964 = vunpack.c.h.b16 %v291
    %v965 = vunpack.c.l.b16 %v292
    %v966 = vunpack.c.h.b16 %v292
    %v967 = vunpack.c.l.b16 %v293
    %v968 = vunpack.c.h.b16 %v293
    %v969 = vunpack.c.l.b16 %v294
    %v970 = vunpack.c.h.b16 %v294
    %v971 = vunpack.c.l.b16 %v295
    %v972 = vunpack.c.h.b16 %v295
    %v973 = vunpack.c.l.b16 %v296
    %v974 = vunpack.c.h.b16 %v296
    %v975 = vunpack.c.l.b16 %v297
    %v976 = vunpack.c.h.b16 %v297
    %v977 = vunpack.c.l.b16 %v298
    %v978 = vunpack.c.h.b16 %v298
    %v979 = vunpack.c.l.b16 %v299
    %v980 = vunpack.c.h.b16 %v299
    %v981 = vunpack.c.l.b16 %v300
    %v982 = vunpack.c.h.b16 %v300
    %v983 = vunpack.c.l.b16 %v301
    %v984 = vunpack.c.h.b16 %v301
    %v985 = vunpack.c.l.b16 %v302
    %v986 = vunpack.c.h.b16 %v302
    %v987 = vunpack.c.l.b16 %v303
    %v988 = vunpack.c.h.b16 %v303
    %v989 = vunpack.c.l.b16 %v304
    %v990 = vunpack.c.h.b16 %v304
    %v991 = vunpack.c.l.b16 %v305
    %v992 = vunpack.c.h.b16 %v305
    %v993 = vunpack.c.l.b16 %v306
    %v994 = vunpack.c.h.b16 %v306
    %v995 = vunpack.c.l.b16 %v307
    %v996 = vunpack.c.h.b16 %v307
    %v997 = vunpack.c.l.b16 %v308
    %v998 = vunpack.c.h.b16 %v308
    %v999 = vunpack.c.l.b16 %v309
    %v1000 = vunpack.c.h.b16 %v309
    %v1001 = vunpack.c.l.b16 %v310
    %v1002 = vunpack.c.h.b16 %v310
    %v1003 = vunpack.c.l.b16 %v311
    %v1004 = vunpack.c.h.b16 %v311
    %v1005 = vunpack.c.l.b16 %v312
    %v1006 = vunpack.c.h.b16 %v312
    %v1007 = vunpack.c.l.b16 %v313
    %v1008 = vunpack.c.h.b16 %v313
    %v1009 = vunpack.c.l.b16 %v314
    %v1010 = vunpack.c.h.b16 %v314
    %v1011 = vunpack.c.l.b16 %v315
    %v1012 = vunpack.c.h.b16 %v315
    %v1013 = vunpack.c.l.b16 %v316
    %v1014 = vunpack.c.h.b16 %v316
    %v1015 = vunpack.c.l.b16 %v317
    %v1016 = vunpack.c.h.b16 %v317
    %v1017 = vunpack.c.l.b16 %v318
    %v1018 = vunpack.c.h.b16 %v318
    %v1019 = vunpack.c.l.b16 %v319
    %v1020 = vunpack.c.h.b16 %v319
    %v1021 = vunpack.c.l.b16 %v320
    %v1022 = vunpack.c.h.b16 %v320
    %v1023 = vunpack.c.l.b16 %v321
    %v1024 = vunpack.c.h.b16 %v321
    %v1025 = vunpack.c.l.b16 %v322
    %v1026 = vunpack.c.h.b16 %v322
    %v1027 = vunpack.c.l.b16 %v323
    %v1028 = vunpack.c.h.b16 %v323
    %v1029 = vunpack.c.l.b16 %v324
    %v1030 = vunpack.c.h.b16 %v324
    %v1031 = vunpack.c.l.b16 %v325
    %v1032 = vunpack.c.h.b16 %v325
    %v1033 = vunpack.c.l.b16 %v326
    %v1034 = vunpack.c.h.b16 %v326
    %v1035 = vunpack.c.l.b16 %v327
    %v1036 = vunpack.c.h.b16 %v327
    %v1037 = vunpack.c.l.b16 %v328
    %v1038 = vunpack.c.h.b16 %v328
    %v1039 = vunpack.c.l.b16 %v329
    %v1040 = vunpack.c.h.b16 %v329
    %v1041 = vunpack.c.l.b16 %v330
    %v1042 = vunpack.c.h.b16 %v330
    %v1043 = vunpack.c.l.b16 %v331
    %v1044 = vunpack.c.h.b16 %v331
    %v1045 = vunpack.c.l.b16 %v332
    %v1046 = vunpack.c.h.b16 %v332
    %v1047 = vunpack.c.l.b16 %v333
    %v1048 = vunpack.c.h.b16 %v333
    %v1049 = vunpack.c.l.b16 %v334
    %v1050 = vunpack.c.h.b16 %v334
    %v1051 = vunpack.c.l.b16 %v335
    %v1052 = vunpack.c.h.b16 %v335
    %v1053 = vunpack.c.l.b16 %v336
    %v1054 = vunpack.c.h.b16 %v336
    %v1055 = vunpack.c.l.b16 %v337
    %v1056 = vunpack.c.h.b16 %v337
    %v1057 = vunpack.c.l.b16 %v338
    %v1058 = vunpack.c.h.b16 %v338
    %v1059 = vunpack.c.l.b16 %v339
    %v1060 = vunpack.c.h.b16 %v339
    %v1061 = vunpack.c.l.b16 %v340
    %v1062 = vunpack.c.h.b16 %v340
    %v1063 = vunpack.c.l.b16 %v341
    %v1064 = vunpack.c.h.b16 %v341
    %v1065 = vunpack.c.l.b16 %v342
    %v1066 = vunpack.c.h.b16 %v342
    %v1067 = vunpack.c.l.b16 %v343
    %v1068 = vunpack.c.h.b16 %v343
    %v1069 = vunpack.c.l.b16 %v344
    %v1070 = vunpack.c.h.b16 %v344
    %v1071 = vunpack.c.l.b16 %v345
    %v1072 = vunpack.c.h.b16 %v345
    %v1073 = vunpack.c.l.b16 %v346
    %v1074 = vunpack.c.h.b16 %v346
    %v1075 = vunpack.c.l.b16 %v347
    %v1076 = vunpack.c.h.b16 %v347
    %v1077 = vunpack.c.l.b16 %v348
    %v1078 = vunpack.c.h.b16 %v348
    %v1079 = vunpack.c.l.b16 %v349
    %v1080 = vunpack.c.h.b16 %v349
    %v1081 = vunpack.c.l.b16 %v350
    %v1082 = vunpack.c.h.b16 %v350
    %v1083 = vunpack.c.l.b16 %v351
    %v1084 = vunpack.c.h.b16 %v351
    %v1085 = vunpack.c.l.b16 %v352
    %v1086 = vunpack.c.h.b16 %v352
    %v1087 = vunpack.c.l.b16 %v353
    %v1088 = vunpack.c.h.b16 %v353
    %v1089 = vunpack.c.l.b16 %v354
    %v1090 = vunpack.c.h.b16 %v354
    %v1091 = vunpack.c.l.b16 %v355
    %v1092 = vunpack.c.h.b16 %v355
    %v1093 = vunpack.c.l.b16 %v356
    %v1094 = vunpack.c.h.b16 %v356
    %v1095 = vunpack.c.l.b16 %v357
    %v1096 = vunpack.c.h.b16 %v357
    %v1097 = vunpack.c.l.b16 %v358
    %v1098 = vunpack.c.h.b16 %v358
    %v1099 = vunpack.c.l.b16 %v359
    %v1100 = vunpack.c.h.b16 %v359
    %v1101 = vunpack.c.l.b16 %v360
    %v1102 = vunpack.c.h.b16 %v360
    %v1103 = vunpack.c.l.b16 %v361
    %v1104 = vunpack.c.h.b16 %v361
    %v1105 = vunpack.c.l.b16 %v362
    %v1106 = vunpack.c.h.b16 %v362
    %v1107 = vunpack.c.l.b16 %v363
    %v1108 = vunpack.c.h.b16 %v363
    %v1109 = vunpack.c.l.b16 %v364
    %v1110 = vunpack.c.h.b16 %v364
    %v1111 = vunpack.c.l.b16 %v365
    %v1112 = vunpack.c.h.b16 %v365
    %v1113 = vunpack.c.l.b16 %v366
    %v1114 = vunpack.c.h.b16 %v366
    %v1115 = vunpack.c.l.b16 %v367
    %v1116 = vunpack.c.h.b16 %v367
    %v1117 = vunpack.c.l.b16 %v368
    %v1118 = vunpack.c.h.b16 %v368
    %v1119 = vunpack.c.l.b16 %v369
    %v1120 = vunpack.c.h.b16 %v369
    %v1121 = vunpack.c.l.b16 %v370
    %v1122 = vunpack.c.h.b16 %v370
    %v1123 = vunpack.c.l.b16 %v371
    %v1124 = vunpack.c.h.b16 %v371
    %v1125 = vunpack.c.l.b16 %v372
    %v1126 = vunpack.c.h.b16 %v372
    %v1127 = vunpack.c.l.b16 %v373
    %v1128 = vunpack.c.h.b16 %v373
    %v1129 = vunpack.c.l.b16 %v374
    %v1130 = vunpack.c.h.b16 %v374
    %v1131 = vunpack.c.l.b16 %v375
    %v1132 = vunpack.c.h.b16 %v375
    %v1133 = vunpack.c.l.b16 %v376
    %v1134 = vunpack.c.h.b16 %v376
    %v1135 = vunpack.c.l.b16 %v377
    %v1136 = vunpack.c.h.b16 %v377
    %v1137 = vunpack.c.l.b16 %v378
    %v1138 = vunpack.c.h.b16 %v378
    %v1139 = vunpack.c.l.b16 %v379
    %v1140 = vunpack.c.h.b16 %v379
    %v1141 = vunpack.c.l.b16 %v380
    %v1142 = vunpack.c.h.b16 %v380
    %v1143 = vunpack.c.l.b16 %v381
    %v1144 = vunpack.c.h.b16 %v381
    %v1145 = vunpack.c.l.b16 %v382
    %v1146 = vunpack.c.h.b16 %v382
    %v1147 = vunpack.c.l.b16 %v383
    %v1148 = vunpack.c.h.b16 %v383
    %v1149 = vunpack.c.l.b16 %v384
    %v1150 = vunpack.c.h.b16 %v384
    %v1151 = vunpack.c.l.b16 %v385
    %v1152 = vunpack.c.h.b16 %v385
    %v1153 = vunpack.c.l.b16 %v386
    %v1154 = vunpack.c.h.b16 %v386
    %v1155 = vunpack.c.l.b16 %v387
    %v1156 = vunpack.c.h.b16 %v387
    %v1157 = vunpack.c.l.b16 %v388
    %v1158 = vunpack.c.h.b16 %v388
    %v1159 = vunpack.c.l.b16 %v389
    %v1160 = vunpack.c.h.b16 %v389
    %v1161 = vunpack.c.l.b16 %v390
    %v1162 = vunpack.c.h.b16 %v390
    %v1163 = vunpack.c.l.b16 %v391
    %v1164 = vunpack.c.h.b16 %v391
    %v1165 = vunpack.c.l.b16 %v392
    %v1166 = vunpack.c.h.b16 %v392
    %v1167 = vunpack.c.l.b16 %v393
    %v1168 = vunpack.c.h.b16 %v393
    %v1169 = vunpack.c.l.b16 %v394
    %v1170 = vunpack.c.h.b16 %v394
    %v1171 = vunpack.c.l.b16 %v395
    %v1172 = vunpack.c.h.b16 %v395
    %v1173 = vunpack.c.l.b16 %v396
    %v1174 = vunpack.c.h.b16 %v396
    %v1175 = vunpack.c.l.b16 %v397
    %v1176 = vunpack.c.h.b16 %v397
    %v1177 = vunpack.c.l.b16 %v398
    %v1178 = vunpack.c.h.b16 %v398
    %v1179 = vunpack.c.l.b16 %v399
    %v1180 = vunpack.c.h.b16 %v399
    %v1181 = vunpack.c.l.b16 %v400
    %v1182 = vunpack.c.h.b16 %v400
    %v1183 = vunpack.c.l.b16 %v401
    %v1184 = vunpack.c.h.b16 %v401
    %v1185 = vunpack.c.l.b16 %v402
    %v1186 = vunpack.c.h.b16 %v402
    %v1187 = vunpack.c.l.b16 %v403
    %v1188 = vunpack.c.h.b16 %v403
    %v1189 = vunpack.c.l.b16 %v404
    %v1190 = vunpack.c.h.b16 %v404
    %v1191 = vunpack.c.l.b16 %v405
    %v1192 = vunpack.c.h.b16 %v405
    %v1193 = vunpack.c.l.b16 %v406
    %v1194 = vunpack.c.h.b16 %v406
    %v1195 = vunpack.c.l.b16 %v407
    %v1196 = vunpack.c.h.b16 %v407
    %v1197 = vunpack.c.l.b16 %v408
    %v1198 = vunpack.c.h.b16 %v408
    %v1199 = vpack.c.b16 %v691, %v687
    %v1200 = vpack.c.b16 %v692, %v688
    %v1201 = vpack.c.b16 %v693, %v689
    %v1202 = vpack.c.b16 %v694, %v690
    %v1203 = vpack.c.b16 %v699, %v695
    %v1204 = vpack.c.b16 %v700, %v696
    %v1205 = vpack.c.b16 %v701, %v697
    %v1206 = vpack.c.b16 %v702, %v698
    %v1207 = vpack.c.b16 %v707, %v703
    %v1208 = vpack.c.b16 %v708, %v704
    %v1209 = vpack.c.b16 %v709, %v705
    %v1210 = vpack.c.b16 %v710, %v706
    %v1211 = vpack.c.b16 %v715, %v711
    %v1212 = vpack.c.b16 %v716, %v712
    %v1213 = vpack.c.b16 %v717, %v713
    %v1214 = vpack.c.b16 %v718, %v714
    %v1215 = vpack.c.b16 %v723, %v719
    %v1216 = vpack.c.b16 %v724, %v720
    %v1217 = vpack.c.b16 %v725, %v721
    %v1218 = vpack.c.b16 %v726, %v722
    %v1219 = vpack.c.b16 %v731, %v727
    %v1220 = vpack.c.b16 %v732, %v728
    %v1221 = vpack.c.b16 %v733, %v729
    %v1222 = vpack.c.b16 %v734, %v730
    %v1223 = vpack.c.b16 %v739, %v735
    %v1224 = vpack.c.b16 %v740, %v736
    %v1225 = vpack.c.b16 %v741, %v737
    %v1226 = vpack.c.b16 %v742, %v738
    %v1227 = vpack.c.b16 %v747, %v743
    %v1228 = vpack.c.b16 %v748, %v744
    %v1229 = vpack.c.b16 %v749, %v745
    %v1230 = vpack.c.b16 %v750, %v746
    %v1231 = vpack.c.b16 %v755, %v751
    %v1232 = vpack.c.b16 %v756, %v752
    %v1233 = vpack.c.b16 %v757, %v753
    %v1234 = vpack.c.b16 %v758, %v754
    %v1235 = vpack.c.b16 %v763, %v759
    %v1236 = vpack.c.b16 %v764, %v760
    %v1237 = vpack.c.b16 %v765, %v761
    %v1238 = vpack.c.b16 %v766, %v762
    %v1239 = vpack.c.b16 %v771, %v767
    %v1240 = vpack.c.b16 %v772, %v768
    %v1241 = vpack.c.b16 %v773, %v769
    %v1242 = vpack.c.b16 %v774, %v770
    %v1243 = vpack.c.b16 %v779, %v775
    %v1244 = vpack.c.b16 %v780, %v776
    %v1245 = vpack.c.b16 %v781, %v777
    %v1246 = vpack.c.b16 %v782, %v778
    %v1247 = vpack.c.b16 %v787, %v783
    %v1248 = vpack.c.b16 %v788, %v784
    %v1249 = vpack.c.b16 %v789, %v785
    %v1250 = vpack.c.b16 %v790, %v786
    %v1251 = vpack.c.b16 %v795, %v791
    %v1252 = vpack.c.b16 %v796, %v792
    %v1253 = vpack.c.b16 %v797, %v793
    %v1254 = vpack.c.b16 %v798, %v794
    %v1255 = vpack.c.b16 %v803, %v799
    %v1256 = vpack.c.b16 %v804, %v800
    %v1257 = vpack.c.b16 %v805, %v801
    %v1258 = vpack.c.b16 %v806, %v802
    %v1259 = vpack.c.b16 %v811, %v807
    %v1260 = vpack.c.b16 %v812, %v808
    %v1261 = vpack.c.b16 %v813, %v809
    %v1262 = vpack.c.b16 %v814, %v810
    %v1263 = vpack.c.b16 %v819, %v815
    %v1264 = vpack.c.b16 %v820, %v816
    %v1265 = vpack.c.b16 %v821, %v817
    %v1266 = vpack.c.b16 %v822, %v818
    %v1267 = vpack.c.b16 %v827, %v823
    %v1268 = vpack.c.b16 %v828, %v824
    %v1269 = vpack.c.b16 %v829, %v825
    %v1270 = vpack.c.b16 %v830, %v826
    %v1271 = vpack.c.b16 %v835, %v831
    %v1272 = vpack.c.b16 %v836, %v832
    %v1273 = vpack.c.b16 %v837, %v833
    %v1274 = vpack.c.b16 %v838, %v834
    %v1275 = vpack.c.b16 %v843, %v839
    %v1276 = vpack.c.b16 %v844, %v840
    %v1277 = vpack.c.b16 %v845, %v841
    %v1278 = vpack.c.b16 %v846, %v842
    %v1279 = vpack.c.b16 %v851, %v847
    %v1280 = vpack.c.b16 %v852, %v848
    %v1281 = vpack.c.b16 %v853, %v849
    %v1282 = vpack.c.b16 %v854, %v850
    %v1283 = vpack.c.b16 %v859, %v855
    %v1284 = vpack.c.b16 %v860, %v856
    %v1285 = vpack.c.b16 %v861, %v857
    %v1286 = vpack.c.b16 %v862, %v858
    %v1287 = vpack.c.b16 %v867, %v863
    %v1288 = vpack.c.b16 %v868, %v864
    %v1289 = vpack.c.b16 %v869, %v865
    %v1290 = vpack.c.b16 %v870, %v866
    %v1291 = vpack.c.b16 %v875, %v871
    %v1292 = vpack.c.b16 %v876, %v872
    %v1293 = vpack.c.b16 %v877, %v873
    %v1294 = vpack.c.b16 %v878, %v874
    %v1295 = vpack.c.b16 %v883, %v879
    %v1296 = vpack.c.b16 %v884, %v880
    %v1297 = vpack.c.b16 %v885, %v881
    %v1298 = vpack.c.b16 %v886, %v882
    %v1299 = vpack.c.b16 %v891, %v887
    %v1300 = vpack.c.b16 %v892, %v888
    %v1301 = vpack.c.b16 %v893, %v889
    %v1302 = vpack.c.b16 %v894, %v890
    %v1303 = vpack.c.b16 %v899, %v895
    %v1304 = vpack.c.b16 %v900, %v896
    %v1305 = vpack.c.b16 %v901, %v897
    %v1306 = vpack.c.b16 %v902, %v898
    %v1307 = vpack.c.b16 %v907, %v903
    %v1308 = vpack.c.b16 %v908, %v904
    %v1309 = vpack.c.b16 %v909, %v905
    %v1310 = vpack.c.b16 %v910, %v906
    %v1311 = vpack.c.b16 %v915, %v911
    %v1312 = vpack.c.b16 %v916, %v912
    %v1313 = vpack.c.b16 %v917, %v913
    %v1314 = vpack.c.b16 %v918, %v914
    %v1315 = vpack.c.b16 %v923, %v919
    %v1316 = vpack.c.b16 %v924, %v920
    %v1317 = vpack.c.b16 %v925, %v921
    %v1318 = vpack.c.b16 %v926, %v922
    %v1319 = vpack.c.b16 %v931, %v927
    %v1320 = vpack.c.b16 %v932, %v928
    %v1321 = vpack.c.b16 %v933, %v929
    %v1322 = vpack.c.b16 %v934, %v930
    %v1323 = vpack.c.b16 %v939, %v935
    %v1324 = vpack.c.b16 %v940, %v936
    %v1325 = vpack.c.b16 %v941, %v937
    %v1326 = vpack.c.b16 %v942, %v938
    %v1327 = vpack.c.b16 %v947, %v943
    %v1328 = vpack.c.b16 %v948, %v944
    %v1329 = vpack.c.b16 %v949, %v945
    %v1330 = vpack.c.b16 %v950, %v946
    %v1331 = vpack.c.b16 %v955, %v951
    %v1332 = vpack.c.b16 %v956, %v952
    %v1333 = vpack.c.b16 %v957, %v953
    %v1334 = vpack.c.b16 %v958, %v954
    %v1335 = vpack.c.b16 %v963, %v959
    %v1336 = vpack.c.b16 %v964, %v960
    %v1337 = vpack.c.b16 %v965, %v961
    %v1338 = vpack.c.b16 %v966, %v962
    %v1339 = vpack.c.b16 %v971, %v967
    %v1340 = vpack.c.b16 %v972, %v968
    %v1341 = vpack.c.b16 %v973, %v969
    %v1342 = vpack.c.b16 %v974, %v970
    %v1343 = vpack.c.b16 %v979, %v975
    %v1344 = vpack.c.b16 %v980, %v976
    %v1345 = vpack.c.b16 %v981, %v977
    %v1346 = vpack.c.b16 %v982, %v978
    %v1347 = vpack.c.b16 %v987, %v983
    %v1348 = vpack.c.b16 %v988, %v984
    %v1349 = vpack.c.b16 %v989, %v985
    %v1350 = vpack.c.b16 %v990, %v986
    %v1351 = vpack.c.b16 %v995, %v991
    %v1352 = vpack.c.b16 %v996, %v992
    %v1353 = vpack.c.b16 %v997, %v993
    %v1354 = vpack.c.b16 %v998, %v994
    %v1355 = vpack.c.b16 %v1003, %v999
    %v1356 = vpack.c.b16 %v1004, %v1000
    %v1357 = vpack.c.b16 %v1005, %v1001
    %v1358 = vpack.c.b16 %v1006, %v1002
    %v1359 = vpack.c.b16 %v1011, %v1007
    %v1360 = vpack.c.b16 %v1012, %v1008
    %v1361 = vpack.c.b16 %v1013, %v1009
    %v1362 = vpack.c.b16 %v1014, %v1010
    %v1363 = vpack.c.b16 %v1019, %v1015
    %v1364 = vpack.c.b16 %v1020, %v1016
    %v1365 = vpack.c.b16 %v1021, %v1017
    %v1366 = vpack.c.b16 %v1022, %v1018
    %v1367 = vpack.c.b16 %v1027, %v1023
    %v1368 = vpack.c.b16 %v1028, %v1024
    %v1369 = vpack.c.b16 %v1029, %v1025
    %v1370 = vpack.c.b16 %v1030, %v1026
    %v1371 = vpack.c.b16 %v1035, %v1031
    %v1372 = vpack.c.b16 %v1036, %v1032
    %v1373 = vpack.c.b16 %v1037, %v1033
    %v1374 = vpack.c.b16 %v1038, %v1034
    %v1375 = vpack.c.b16 %v1043, %v1039
    %v1376 = vpack.c.b16 %v1044, %v1040
    %v1377 = vpack.c.b16 %v1045, %v1041
    %v1378 = vpack.c.b16 %v1046, %v1042
    %v1379 = vpack.c.b16 %v1051, %v1047
    %v1380 = vpack.c.b16 %v1052, %v1048
    %v1381 = vpack.c.b16 %v1053, %v1049
    %v1382 = vpack.c.b16 %v1054, %v1050
    %v1383 = vpack.c.b16 %v1059, %v1055
    %v1384 = vpack.c.b16 %v1060, %v1056
    %v1385 = vpack.c.b16 %v1061, %v1057
    %v1386 = vpack.c.b16 %v1062, %v1058
    %v1387 = vpack.c.b16 %v1067, %v1063
    %v1388 = vpack.c.b16 %v1068, %v1064
    %v1389 = vpack.c.b16 %v1069, %v1065
    %v1390 = vpack.c.b16 %v1070, %v1066
    %v1391 = vpack.c.b16 %v1075, %v1071
    %v1392 = vpack.c.b16 %v1076, %v1072
    %v1393 = vpack.c.b16 %v1077, %v1073
    %v1394 = vpack.c.b16 %v1078, %v1074
    %v1395 = vpack.c.b16 %v1083, %v1079
    %v1396 = vpack.c.b16 %v1084, %v1080
    %v1397 = vpack.c.b16 %v1085, %v1081
    %v1398 = vpack.c.b16 %v1086, %v1082
    %v1399 = vpack.c.b16 %v1091, %v1087
    %v1400 = vpack.c.b16 %v1092, %v1088
    %v1401 = vpack.c.b16 %v1093, %v1089
    %v1402 = vpack.c.b16 %v1094, %v1090
    %v1403 = vpack.c.b16 %v1099, %v1095
    %v1404 = vpack.c.b16 %v1100, %v1096
    %v1405 = vpack.c.b16 %v1101, %v1097
    %v1406 = vpack.c.b16 %v1102, %v1098
    %v1407 = vpack.c.b16 %v1107, %v1103
    %v1408 = vpack.c.b16 %v1108, %v1104
    %v1409 = vpack.c.b16 %v1109, %v1105
    %v1410 = vpack.c.b16 %v1110, %v1106
    %v1411 = vpack.c.b16 %v1115, %v1111
    %v1412 = vpack.c.b16 %v1116, %v1112
    %v1413 = vpack.c.b16 %v1117, %v1113
    %v1414 = vpack.c.b16 %v1118, %v1114
    %v1415 = vpack.c.b16 %v1123, %v1119
    %v1416 = vpack.c.b16 %v1124, %v1120
    %v1417 = vpack.c.b16 %v1125, %v1121
    %v1418 = vpack.c.b16 %v1126, %v1122
    %v1419 = vpack.c.b16 %v1131, %v1127
    %v1420 = vpack.c.b16 %v1132, %v1128
    %v1421 = vpack.c.b16 %v1133, %v1129
    %v1422 = vpack.c.b16 %v1134, %v1130
    %v1423 = vpack.c.b16 %v1139, %v1135
    %v1424 = vpack.c.b16 %v1140, %v1136
    %v1425 = vpack.c.b16 %v1141, %v1137
    %v1426 = vpack.c.b16 %v1142, %v1138
    %v1427 = vpack.c.b16 %v1147, %v1143
    %v1428 = vpack.c.b16 %v1148, %v1144
    %v1429 = vpack.c.b16 %v1149, %v1145
    %v1430 = vpack.c.b16 %v1150, %v1146
    %v1431 = vpack.c.b16 %v1155, %v1151
    %v1432 = vpack.c.b16 %v1156, %v1152
    %v1433 = vpack.c.b16 %v1157, %v1153
    %v1434 = vpack.c.b16 %v1158, %v1154
    %v1435 = vpack.c.b16 %v1163, %v1159
    %v1436 = vpack.c.b16 %v1164, %v1160
    %v1437 = vpack.c.b16 %v1165, %v1161
    %v1438 = vpack.c.b16 %v1166, %v1162
    %v1439 = vpack.c.b16 %v1171, %v1167
    %v1440 = vpack.c.b16 %v1172, %v1168
    %v1441 = vpack.c.b16 %v1173, %v1169
    %v1442 = vpack.c.b16 %v1174, %v1170
    %v1443 = vpack.c.b16 %v1179, %v1175
    %v1444 = vpack.c.b16 %v1180, %v1176
    %v1445 = vpack.c.b16 %v1181, %v1177
    %v1446 = vpack.c.b16 %v1182, %v1178
    %v1447 = vpack.c.b16 %v1187, %v1183
    %v1448 = vpack.c.b16 %v1188, %v1184
    %v1449 = vpack.c.b16 %v1189, %v1185
    %v1450 = vpack.c.b16 %v1190, %v1186
    %v1451 = vpack.c.b16 %v1195, %v1191
    %v1452 = vpack.c.b16 %v1196, %v1192
    %v1453 = vpack.c.b16 %v1197, %v1193
    %v1454 = vpack.c.b16 %v1198, %v1194
    %1711 = vmatprep.subr.bf16.mxu0 %v1200
    %1712 = vmatpush1.bf16.msra.mxu0 %v1199
    %1713 = vmatprep.subr.bf16.mxu0 %v1204
    %1714 = vmatpush1.bf16.msra.mxu0 %v1203
    %1715 = vmatprep.subr.bf16.mxu0 %v1208
    %1716 = vmatpush1.bf16.msra.mxu0 %v1207
    %1717 = vmatprep.subr.bf16.mxu0 %v1212
    %1718 = vmatpush1.bf16.msra.mxu0 %v1211
    %1719 = vmatprep.subr.bf16.mxu0 %v1216
    %1720 = vmatpush1.bf16.msra.mxu0 %v1215
    %1721 = vmatprep.subr.bf16.mxu0 %v1220
    %1722 = vmatpush1.bf16.msra.mxu0 %v1219
    %1723 = vmatprep.subr.bf16.mxu0 %v1224
    %1724 = vmatpush1.bf16.msra.mxu0 %v1223
    %1725 = vmatprep.subr.bf16.mxu0 %v1228
    %1726 = vmatpush1.bf16.msra.mxu0 %v1227
    %1727 = vmatprep.subr.bf16.mxu0 %v1232
    %1728 = vmatpush1.bf16.msra.mxu0 %v1231
    %1729 = vmatprep.subr.bf16.mxu0 %v1236
    %1730 = vmatpush1.bf16.msra.mxu0 %v1235
    %1731 = vmatprep.subr.bf16.mxu0 %v1240
    %1732 = vmatpush1.bf16.msra.mxu0 %v1239
    %1733 = vmatprep.subr.bf16.mxu0 %v1244
    %1734 = vmatpush1.bf16.msra.mxu0 %v1243
    %1735 = vmatprep.subr.bf16.mxu0 %v1248
    %1736 = vmatpush1.bf16.msra.mxu0 %v1247
    %1737 = vmatprep.subr.bf16.mxu0 %v1252
    %1738 = vmatpush1.bf16.msra.mxu0 %v1251
    %1739 = vmatprep.subr.bf16.mxu0 %v1256
    %1740 = vmatpush1.bf16.msra.mxu0 %v1255
    %1741 = vmatprep.subr.bf16.mxu0 %v1260
    %1742 = vmatpush1.bf16.msra.mxu0 %v1259
    %1743 = vmatprep.mubr.bf16.mxu0 %v146
    %1744 = vmatmul.mubr.bf16.gmra.mrb[0].mxu0 %v145
    %v1745 = vpop.f32.mrb[0].mxu0
    %v1746 = vadd.f32 %v414, %v1745
    %v1747 = vpop.f32.mrb[0].mxu0
    %v1748 = vadd.f32 %v418, %v1747
    %v1749 = vpop.f32.mrb[0].mxu0
    %v1750 = vpop.f32.mrb[0].mxu0
    %1751 = vdwg.mxu0
    %1752 = vmatprep.subr.bf16.mxu0 %v1264
    %1753 = vmatpush1.bf16.msra.mxu0 %v1263
    %1754 = vmatprep.subr.bf16.mxu0 %v1268
    %1755 = vmatpush1.bf16.msra.mxu0 %v1267
    %1756 = vmatprep.subr.bf16.mxu0 %v1272
    %1757 = vmatpush1.bf16.msra.mxu0 %v1271
    %1758 = vmatprep.subr.bf16.mxu0 %v1276
    %1759 = vmatpush1.bf16.msra.mxu0 %v1275
    %1760 = vmatprep.subr.bf16.mxu0 %v1280
    %1761 = vmatpush1.bf16.msra.mxu0 %v1279
    %1762 = vmatprep.subr.bf16.mxu0 %v1284
    %1763 = vmatpush1.bf16.msra.mxu0 %v1283
    %1764 = vmatprep.subr.bf16.mxu0 %v1288
    %1765 = vmatpush1.bf16.msra.mxu0 %v1287
    %1766 = vmatprep.subr.bf16.mxu0 %v1292
    %1767 = vmatpush1.bf16.msra.mxu0 %v1291
    %1768 = vmatprep.subr.bf16.mxu0 %v1296
    %1769 = vmatpush1.bf16.msra.mxu0 %v1295
    %1770 = vmatprep.subr.bf16.mxu0 %v1300
    %1771 = vmatpush1.bf16.msra.mxu0 %v1299
    %1772 = vmatprep.subr.bf16.mxu0 %v1304
    %1773 = vmatpush1.bf16.msra.mxu0 %v1303
    %1774 = vmatprep.subr.bf16.mxu0 %v1308
    %1775 = vmatpush1.bf16.msra.mxu0 %v1307
    %1776 = vmatprep.subr.bf16.mxu0 %v1312
    %1777 = vmatpush1.bf16.msra.mxu0 %v1311
    %1778 = vmatprep.subr.bf16.mxu0 %v1316
    %1779 = vmatpush1.bf16.msra.mxu0 %v1315
    %1780 = vmatprep.subr.bf16.mxu0 %v1320
    %1781 = vmatpush1.bf16.msra.mxu0 %v1319
    %1782 = vmatprep.subr.bf16.mxu0 %v1324
    %1783 = vmatpush1.bf16.msra.mxu0 %v1323
    %1784 = vmatprep.mubr.bf16.mxu0 %v148
    %1785 = vmatmul.mubr.bf16.gmra.mrb[0].mxu0 %v147
    %v1786 = vpop.f32.mrb[0].mxu0
    %v1787 = vadd.f32 %v1746, %v1786
    %v1788 = vpop.f32.mrb[0].mxu0
    %v1789 = vadd.f32 %v1748, %v1788
    %v1790 = vpop.f32.mrb[0].mxu0
    %v1791 = vpop.f32.mrb[0].mxu0
    %1792 = vdwg.mxu0
    %1793 = vmatprep.subr.bf16.mxu0 %v1328
    %1794 = vmatpush1.bf16.msra.mxu0 %v1327
    %1795 = vmatprep.subr.bf16.mxu0 %v1332
    %1796 = vmatpush1.bf16.msra.mxu0 %v1331
    %1797 = vmatprep.subr.bf16.mxu0 %v1336
    %1798 = vmatpush1.bf16.msra.mxu0 %v1335
    %1799 = vmatprep.subr.bf16.mxu0 %v1340
    %1800 = vmatpush1.bf16.msra.mxu0 %v1339
    %1801 = vmatprep.subr.bf16.mxu0 %v1344
    %1802 = vmatpush1.bf16.msra.mxu0 %v1343
    %1803 = vmatprep.subr.bf16.mxu0 %v1348
    %1804 = vmatpush1.bf16.msra.mxu0 %v1347
    %1805 = vmatprep.subr.bf16.mxu0 %v1352
    %1806 = vmatpush1.bf16.msra.mxu0 %v1351
    %1807 = vmatprep.subr.bf16.mxu0 %v1356
    %1808 = vmatpush1.bf16.msra.mxu0 %v1355
    %1809 = vmatprep.subr.bf16.mxu0 %v1360
    %1810 = vmatpush1.bf16.msra.mxu0 %v1359
    %1811 = vmatprep.subr.bf16.mxu0 %v1364
    %1812 = vmatpush1.bf16.msra.mxu0 %v1363
    %1813 = vmatprep.subr.bf16.mxu0 %v1368
    %1814 = vmatpush1.bf16.msra.mxu0 %v1367
    %1815 = vmatprep.subr.bf16.mxu0 %v1372
    %1816 = vmatpush1.bf16.msra.mxu0 %v1371
    %1817 = vmatprep.subr.bf16.mxu0 %v1376
    %1818 = vmatpush1.bf16.msra.mxu0 %v1375
    %1819 = vmatprep.subr.bf16.mxu0 %v1380
    %1820 = vmatpush1.bf16.msra.mxu0 %v1379
    %1821 = vmatprep.subr.bf16.mxu0 %v1384
    %1822 = vmatpush1.bf16.msra.mxu0 %v1383
    %1823 = vmatprep.subr.bf16.mxu0 %v1388
    %1824 = vmatpush1.bf16.msra.mxu0 %v1387
    %1825 = vmatprep.mubr.bf16.mxu0 %v150
    %1826 = vmatmul.mubr.bf16.gmra.mrb[0].mxu0 %v149
    %v1827 = vpop.f32.mrb[0].mxu0
    %v1828 = vadd.f32 %v1787, %v1827
    %v1829 = vpop.f32.mrb[0].mxu0
    %v1830 = vadd.f32 %v1789, %v1829
    %v1831 = vpop.f32.mrb[0].mxu0
    %v1832 = vpop.f32.mrb[0].mxu0
    %1833 = vdwg.mxu0
    %1834 = vmatprep.subr.bf16.mxu0 %v1392
    %1835 = vmatpush1.bf16.msra.mxu0 %v1391
    %1836 = vmatprep.subr.bf16.mxu0 %v1396
    %1837 = vmatpush1.bf16.msra.mxu0 %v1395
    %1838 = vmatprep.subr.bf16.mxu0 %v1400
    %1839 = vmatpush1.bf16.msra.mxu0 %v1399
    %1840 = vmatprep.subr.bf16.mxu0 %v1404
    %1841 = vmatpush1.bf16.msra.mxu0 %v1403
    %1842 = vmatprep.subr.bf16.mxu0 %v1408
    %1843 = vmatpush1.bf16.msra.mxu0 %v1407
    %1844 = vmatprep.subr.bf16.mxu0 %v1412
    %1845 = vmatpush1.bf16.msra.mxu0 %v1411
    %1846 = vmatprep.subr.bf16.mxu0 %v1416
    %1847 = vmatpush1.bf16.msra.mxu0 %v1415
    %1848 = vmatprep.subr.bf16.mxu0 %v1420
    %1849 = vmatpush1.bf16.msra.mxu0 %v1419
    %1850 = vmatprep.subr.bf16.mxu0 %v1424
    %1851 = vmatpush1.bf16.msra.mxu0 %v1423
    %1852 = vmatprep.subr.bf16.mxu0 %v1428
    %1853 = vmatpush1.bf16.msra.mxu0 %v1427
    %1854 = vmatprep.subr.bf16.mxu0 %v1432
    %1855 = vmatpush1.bf16.msra.mxu0 %v1431
    %1856 = vmatprep.subr.bf16.mxu0 %v1436
    %1857 = vmatpush1.bf16.msra.mxu0 %v1435
    %1858 = vmatprep.subr.bf16.mxu0 %v1440
    %1859 = vmatpush1.bf16.msra.mxu0 %v1439
    %1860 = vmatprep.subr.bf16.mxu0 %v1444
    %1861 = vmatpush1.bf16.msra.mxu0 %v1443
    %1862 = vmatprep.subr.bf16.mxu0 %v1448
    %1863 = vmatpush1.bf16.msra.mxu0 %v1447
    %1864 = vmatprep.subr.bf16.mxu0 %v1452
    %1865 = vmatpush1.bf16.msra.mxu0 %v1451
    %1866 = vmatprep.mubr.bf16.mxu0 %v152
    %1867 = vmatmul.mubr.bf16.gmra.mrb[0].mxu0 %v151
    %v1868 = vpop.f32.mrb[0].mxu0
    %v1869 = vadd.f32 %v1828, %v1868
    %v1870 = vpop.f32.mrb[0].mxu0
    %v1871 = vadd.f32 %v1830, %v1870
    %v1872 = vpop.f32.mrb[0].mxu0
    %v1873 = vpop.f32.mrb[0].mxu0
    %1874 = vdwg.mxu0
    %1875 = vmatprep.subr.bf16.mxu0 %v1202
    %1876 = vmatpush1.bf16.msra.mxu0 %v1201
    %1877 = vmatprep.subr.bf16.mxu0 %v1206
    %1878 = vmatpush1.bf16.msra.mxu0 %v1205
    %1879 = vmatprep.subr.bf16.mxu0 %v1210
    %1880 = vmatpush1.bf16.msra.mxu0 %v1209
    %1881 = vmatprep.subr.bf16.mxu0 %v1214
    %1882 = vmatpush1.bf16.msra.mxu0 %v1213
    %1883 = vmatprep.subr.bf16.mxu0 %v1218
    %1884 = vmatpush1.bf16.msra.mxu0 %v1217
    %1885 = vmatprep.subr.bf16.mxu0 %v1222
    %1886 = vmatpush1.bf16.msra.mxu0 %v1221
    %1887 = vmatprep.subr.bf16.mxu0 %v1226
    %1888 = vmatpush1.bf16.msra.mxu0 %v1225
    %1889 = vmatprep.subr.bf16.mxu0 %v1230
    %1890 = vmatpush1.bf16.msra.mxu0 %v1229
    %1891 = vmatprep.subr.bf16.mxu0 %v1234
    %1892 = vmatpush1.bf16.msra.mxu0 %v1233
    %1893 = vmatprep.subr.bf16.mxu0 %v1238
    %1894 = vmatpush1.bf16.msra.mxu0 %v1237
    %1895 = vmatprep.subr.bf16.mxu0 %v1242
    %1896 = vmatpush1.bf16.msra.mxu0 %v1241
    %1897 = vmatprep.subr.bf16.mxu0 %v1246
    %1898 = vmatpush1.bf16.msra.mxu0 %v1245
    %1899 = vmatprep.subr.bf16.mxu0 %v1250
    %1900 = vmatpush1.bf16.msra.mxu0 %v1249
    %1901 = vmatprep.subr.bf16.mxu0 %v1254
    %1902 = vmatpush1.bf16.msra.mxu0 %v1253
    %1903 = vmatprep.subr.bf16.mxu0 %v1258
    %1904 = vmatpush1.bf16.msra.mxu0 %v1257
    %1905 = vmatprep.subr.bf16.mxu0 %v1262
    %1906 = vmatpush1.bf16.msra.mxu0 %v1261
    %1907 = vmatprep.mubr.bf16.mxu0 %v146
    %1908 = vmatmul.mubr.bf16.gmra.mrb[0].mxu0 %v145
    %v1909 = vpop.f32.mrb[0].mxu0
    %v1910 = vadd.f32 %v422, %v1909
    %v1911 = vpop.f32.mrb[0].mxu0
    %v1912 = vadd.f32 %v426, %v1911
    %v1913 = vpop.f32.mrb[0].mxu0
    %v1914 = vpop.f32.mrb[0].mxu0
    %1915 = vdwg.mxu0
    %1916 = vmatprep.subr.bf16.mxu0 %v1266
    %1917 = vmatpush1.bf16.msra.mxu0 %v1265
    %1918 = vmatprep.subr.bf16.mxu0 %v1270
    %1919 = vmatpush1.bf16.msra.mxu0 %v1269
    %1920 = vmatprep.subr.bf16.mxu0 %v1274
    %1921 = vmatpush1.bf16.msra.mxu0 %v1273
    %1922 = vmatprep.subr.bf16.mxu0 %v1278
    %1923 = vmatpush1.bf16.msra.mxu0 %v1277
    %1924 = vmatprep.subr.bf16.mxu0 %v1282
    %1925 = vmatpush1.bf16.msra.mxu0 %v1281
    %1926 = vmatprep.subr.bf16.mxu0 %v1286
    %1927 = vmatpush1.bf16.msra.mxu0 %v1285
    %1928 = vmatprep.subr.bf16.mxu0 %v1290
    %1929 = vmatpush1.bf16.msra.mxu0 %v1289
    %1930 = vmatprep.subr.bf16.mxu0 %v1294
    %1931 = vmatpush1.bf16.msra.mxu0 %v1293
    %1932 = vmatprep.subr.bf16.mxu0 %v1298
    %1933 = vmatpush1.bf16.msra.mxu0 %v1297
    %1934 = vmatprep.subr.bf16.mxu0 %v1302
    %1935 = vmatpush1.bf16.msra.mxu0 %v1301
    %1936 = vmatprep.subr.bf16.mxu0 %v1306
    %1937 = vmatpush1.bf16.msra.mxu0 %v1305
    %1938 = vmatprep.subr.bf16.mxu0 %v1310
    %1939 = vmatpush1.bf16.msra.mxu0 %v1309
    %1940 = vmatprep.subr.bf16.mxu0 %v1314
    %1941 = vmatpush1.bf16.msra.mxu0 %v1313
    %1942 = vmatprep.subr.bf16.mxu0 %v1318
    %1943 = vmatpush1.bf16.msra.mxu0 %v1317
    %1944 = vmatprep.subr.bf16.mxu0 %v1322
    %1945 = vmatpush1.bf16.msra.mxu0 %v1321
    %1946 = vmatprep.subr.bf16.mxu0 %v1326
    %1947 = vmatpush1.bf16.msra.mxu0 %v1325
    %1948 = vmatprep.mubr.bf16.mxu0 %v148
    %1949 = vmatmul.mubr.bf16.gmra.mrb[0].mxu0 %v147
    %v1950 = vpop.f32.mrb[0].mxu0
    %v1951 = vadd.f32 %v1910, %v1950
    %v1952 = vpop.f32.mrb[0].mxu0
    %v1953 = vadd.f32 %v1912, %v1952
    %v1954 = vpop.f32.mrb[0].mxu0
    %v1955 = vpop.f32.mrb[0].mxu0
    %1956 = vdwg.mxu0
    %1957 = vmatprep.subr.bf16.mxu0 %v1330
    %1958 = vmatpush1.bf16.msra.mxu0 %v1329
    %1959 = vmatprep.subr.bf16.mxu0 %v1334
    %1960 = vmatpush1.bf16.msra.mxu0 %v1333
    %1961 = vmatprep.subr.bf16.mxu0 %v1338
    %1962 = vmatpush1.bf16.msra.mxu0 %v1337
    %1963 = vmatprep.subr.bf16.mxu0 %v1342
    %1964 = vmatpush1.bf16.msra.mxu0 %v1341
    %1965 = vmatprep.subr.bf16.mxu0 %v1346
    %1966 = vmatpush1.bf16.msra.mxu0 %v1345
    %1967 = vmatprep.subr.bf16.mxu0 %v1350
    %1968 = vmatpush1.bf16.msra.mxu0 %v1349
    %1969 = vmatprep.subr.bf16.mxu0 %v1354
    %1970 = vmatpush1.bf16.msra.mxu0 %v1353
    %1971 = vmatprep.subr.bf16.mxu0 %v1358
    %1972 = vmatpush1.bf16.msra.mxu0 %v1357
    %1973 = vmatprep.subr.bf16.mxu0 %v1362
    %1974 = vmatpush1.bf16.msra.mxu0 %v1361
    %1975 = vmatprep.subr.bf16.mxu0 %v1366
    %1976 = vmatpush1.bf16.msra.mxu0 %v1365
    %1977 = vmatprep.subr.bf16.mxu0 %v1370
    %1978 = vmatpush1.bf16.msra.mxu0 %v1369
    %1979 = vmatprep.subr.bf16.mxu0 %v1374
    %1980 = vmatpush1.bf16.msra.mxu0 %v1373
    %1981 = vmatprep.subr.bf16.mxu0 %v1378
    %1982 = vmatpush1.bf16.msra.mxu0 %v1377
    %1983 = vmatprep.subr.bf16.mxu0 %v1382
    %1984 = vmatpush1.bf16.msra.mxu0 %v1381
    %1985 = vmatprep.subr.bf16.mxu0 %v1386
    %1986 = vmatpush1.bf16.msra.mxu0 %v1385
    %1987 = vmatprep.subr.bf16.mxu0 %v1390
    %1988 = vmatpush1.bf16.msra.mxu0 %v1389
    %1989 = vmatprep.mubr.bf16.mxu0 %v150
    %1990 = vmatmul.mubr.bf16.gmra.mrb[0].mxu0 %v149
    %v1991 = vpop.f32.mrb[0].mxu0
    %v1992 = vadd.f32 %v1951, %v1991
    %v1993 = vpop.f32.mrb[0].mxu0
    %v1994 = vadd.f32 %v1953, %v1993
    %v1995 = vpop.f32.mrb[0].mxu0
    %v1996 = vpop.f32.mrb[0].mxu0
    %1997 = vdwg.mxu0
    %1998 = vmatprep.subr.bf16.mxu0 %v1394
    %1999 = vmatpush1.bf16.msra.mxu0 %v1393
    %2000 = vmatprep.subr.bf16.mxu0 %v1398
    %2001 = vmatpush1.bf16.msra.mxu0 %v1397
    %2002 = vmatprep.subr.bf16.mxu0 %v1402
    %2003 = vmatpush1.bf16.msra.mxu0 %v1401
    %2004 = vmatprep.subr.bf16.mxu0 %v1406
    %2005 = vmatpush1.bf16.msra.mxu0 %v1405
    %2006 = vmatprep.subr.bf16.mxu0 %v1410
    %2007 = vmatpush1.bf16.msra.mxu0 %v1409
    %2008 = vmatprep.subr.bf16.mxu0 %v1414
    %2009 = vmatpush1.bf16.msra.mxu0 %v1413
    %2010 = vmatprep.subr.bf16.mxu0 %v1418
    %2011 = vmatpush1.bf16.msra.mxu0 %v1417
    %2012 = vmatprep.subr.bf16.mxu0 %v1422
    %2013 = vmatpush1.bf16.msra.mxu0 %v1421
    %2014 = vmatprep.subr.bf16.mxu0 %v1426
    %2015 = vmatpush1.bf16.msra.mxu0 %v1425
    %2016 = vmatprep.subr.bf16.mxu0 %v1430
    %2017 = vmatpush1.bf16.msra.mxu0 %v1429
    %2018 = vmatprep.subr.bf16.mxu0 %v1434
    %2019 = vmatpush1.bf16.msra.mxu0 %v1433
    %2020 = vmatprep.subr.bf16.mxu0 %v1438
    %2021 = vmatpush1.bf16.msra.mxu0 %v1437
    %2022 = vmatprep.subr.bf16.mxu0 %v1442
    %2023 = vmatpush1.bf16.msra.mxu0 %v1441
    %2024 = vmatprep.subr.bf16.mxu0 %v1446
    %2025 = vmatpush1.bf16.msra.mxu0 %v1445
    %2026 = vmatprep.subr.bf16.mxu0 %v1450
    %2027 = vmatpush1.bf16.msra.mxu0 %v1449
    %2028 = vmatprep.subr.bf16.mxu0 %v1454
    %2029 = vmatpush1.bf16.msra.mxu0 %v1453
    %2030 = vmatprep.mubr.bf16.mxu0 %v152
    %2031 = vmatmul.mubr.bf16.gmra.mrb[0].mxu0 %v151
    %v2032 = vpop.f32.mrb[0].mxu0
    %v2033 = vadd.f32 %v1992, %v2032
    %v2034 = vpop.f32.mrb[0].mxu0
    %v2035 = vadd.f32 %v1994, %v2034
    %v2036 = vpop.f32.mrb[0].mxu0
    %v2037 = vpop.f32.mrb[0].mxu0
    %2038 = vdwg.mxu0
    %v2039 = vmax.f32 %v1869, 0.0
    %v2040 = vmax.f32 %v1871, 0.0
    %v2041 = vmax.f32 %v2033, 0.0
    %v2042 = vmax.f32 %v2035, 0.0
    %v2043 = vpack.c.bf16 %v2039, %v2039
    %v2044 = vpack.c.bf16 %v2040, %v2040
    %v2045 = vpack.c.bf16 %v2041, %v2041
    %v2046 = vpack.c.bf16 %v2042, %v2042
    %v2047 = vld [vmem:[#allocation4] sm:$0xff]
    %v2048 = vld [vmem:[#allocation4 + $0x8] sm:$0xff]
    %v2049 = vld [vmem:[#allocation4 + $0x10] sm:$0xff]
    %v2050 = vld [vmem:[#allocation4 + $0x18] sm:$0xff]
    %v2051 = vld [vmem:[#allocation4 + $0x20] sm:$0xff]
    %v2052 = vld [vmem:[#allocation4 + $0x28] sm:$0xff]
    %v2053 = vld [vmem:[#allocation4 + $0x30] sm:$0xff]
    %v2054 = vld [vmem:[#allocation4 + $0x38] sm:$0xff]
    %v2055 = vld [vmem:[#allocation4 + $0x40] sm:$0xff]
    %v2056 = vld [vmem:[#allocation4 + $0x48] sm:$0xff]
    %v2057 = vld [vmem:[#allocation4 + $0x50] sm:$0xff]
    %v2058 = vld [vmem:[#allocation4 + $0x58] sm:$0xff]
    %v2059 = vld [vmem:[#allocation4 + $0x60] sm:$0xff]
    %v2060 = vld [vmem:[#allocation4 + $0x68] sm:$0xff]
    %v2061 = vld [vmem:[#allocation4 + $0x70] sm:$0xff]
    %v2062 = vld [vmem:[#allocation4 + $0x78] sm:$0xff]
    %v2063 = vld [vmem:[#allocation4 + $0x80] sm:$0xff]
    %v2064 = vld [vmem:[#allocation4 + $0x88] sm:$0xff]
    %v2065 = vld [vmem:[#allocation4 + $0x90] sm:$0xff]
    %v2066 = vld [vmem:[#allocation4 + $0x98] sm:$0xff]
    %v2067 = vld [vmem:[#allocation4 + $0xa0] sm:$0xff]
    %v2068 = vld [vmem:[#allocation4 + $0xa8] sm:$0xff]
    %v2069 = vld [vmem:[#allocation4 + $0xb0] sm:$0xff]
    %v2070 = vld [vmem:[#allocation4 + $0xb8] sm:$0xff]
    %v2071 = vld [vmem:[#allocation4 + $0xc0] sm:$0xff]
    %v2072 = vld [vmem:[#allocation4 + $0xc8] sm:$0xff]
    %v2073 = vld [vmem:[#allocation4 + $0xd0] sm:$0xff]
    %v2074 = vld [vmem:[#allocation4 + $0xd8] sm:$0xff]
    %v2075 = vld [vmem:[#allocation4 + $0xe0] sm:$0xff]
    %v2076 = vld [vmem:[#allocation4 + $0xe8] sm:$0xff]
    %v2077 = vld [vmem:[#allocation4 + $0xf0] sm:$0xff]
    %v2078 = vld [vmem:[#allocation4 + $0xf8] sm:$0xff]
    %v2079 = vld [vmem:[#allocation4 + $0x100] sm:$0xff]
    %v2080 = vld [vmem:[#allocation4 + $0x108] sm:$0xff]
    %v2081 = vld [vmem:[#allocation4 + $0x110] sm:$0xff]
    %v2082 = vld [vmem:[#allocation4 + $0x118] sm:$0xff]
    %v2083 = vld [vmem:[#allocation4 + $0x120] sm:$0xff]
    %v2084 = vld [vmem:[#allocation4 + $0x128] sm:$0xff]
    %v2085 = vld [vmem:[#allocation4 + $0x130] sm:$0xff]
    %v2086 = vld [vmem:[#allocation4 + $0x138] sm:$0xff]
    %v2087 = vld [vmem:[#allocation4 + $0x140] sm:$0xff]
    %v2088 = vld [vmem:[#allocation4 + $0x148] sm:$0xff]
    %v2089 = vld [vmem:[#allocation4 + $0x150] sm:$0xff]
    %v2090 = vld [vmem:[#allocation4 + $0x158] sm:$0xff]
    %v2091 = vld [vmem:[#allocation4 + $0x160] sm:$0xff]
    %v2092 = vld [vmem:[#allocation4 + $0x168] sm:$0xff]
    %v2093 = vld [vmem:[#allocation4 + $0x170] sm:$0xff]
    %v2094 = vld [vmem:[#allocation4 + $0x178] sm:$0xff]
    %v2095 = vld [vmem:[#allocation4 + $0x180] sm:$0xff]
    %v2096 = vld [vmem:[#allocation4 + $0x188] sm:$0xff]
    %v2097 = vld [vmem:[#allocation4 + $0x190] sm:$0xff]
    %v2098 = vld [vmem:[#allocation4 + $0x198] sm:$0xff]
    %v2099 = vld [vmem:[#allocation4 + $0x1a0] sm:$0xff]
    %v2100 = vld [vmem:[#allocation4 + $0x1a8] sm:$0xff]
    %v2101 = vld [vmem:[#allocation4 + $0x1b0] sm:$0xff]
    %v2102 = vld [vmem:[#allocation4 + $0x1b8] sm:$0xff]
    %v2103 = vld [vmem:[#allocation4 + $0x1c0] sm:$0xff]
    %v2104 = vld [vmem:[#allocation4 + $0x1c8] sm:$0xff]
    %v2105 = vld [vmem:[#allocation4 + $0x1d0] sm:$0xff]
    %v2106 = vld [vmem:[#allocation4 + $0x1d8] sm:$0xff]
    %v2107 = vld [vmem:[#allocation4 + $0x1e0] sm:$0xff]
    %v2108 = vld [vmem:[#allocation4 + $0x1e8] sm:$0xff]
    %v2109 = vld [vmem:[#allocation4 + $0x1f0] sm:$0xff]
    %v2110 = vld [vmem:[#allocation4 + $0x1f8] sm:$0xff]
    %v2111 = vld [vmem:[%s5] sm:$0x3]
    %v2113 = vlaneseq
    %v2114 = vshrl.u32 %v2113, 7
    %v2115 = vsub.s32 0, %v2114
    %v2116 = vrot.slane %v2111, %v2115
    %v2117 = vlaneseq
    %v2118 = vshrl.u32 %v2117, 7
    %v2119 = vsub.s32 1, %v2118
    %v2120 = vrot.slane %v2111, %v2119
    %v2187 = vunpack.c.l.b16 %v2047
    %v2188 = vunpack.c.h.b16 %v2047
    %v2189 = vunpack.c.l.b16 %v2048
    %v2190 = vunpack.c.h.b16 %v2048
    %v2191 = vunpack.c.l.b16 %v2049
    %v2192 = vunpack.c.h.b16 %v2049
    %v2193 = vunpack.c.l.b16 %v2050
    %v2194 = vunpack.c.h.b16 %v2050
    %v2195 = vunpack.c.l.b16 %v2051
    %v2196 = vunpack.c.h.b16 %v2051
    %v2197 = vunpack.c.l.b16 %v2052
    %v2198 = vunpack.c.h.b16 %v2052
    %v2199 = vunpack.c.l.b16 %v2053
    %v2200 = vunpack.c.h.b16 %v2053
    %v2201 = vunpack.c.l.b16 %v2054
    %v2202 = vunpack.c.h.b16 %v2054
    %v2203 = vunpack.c.l.b16 %v2055
    %v2204 = vunpack.c.h.b16 %v2055
    %v2205 = vunpack.c.l.b16 %v2056
    %v2206 = vunpack.c.h.b16 %v2056
    %v2207 = vunpack.c.l.b16 %v2057
    %v2208 = vunpack.c.h.b16 %v2057
    %v2209 = vunpack.c.l.b16 %v2058
    %v2210 = vunpack.c.h.b16 %v2058
    %v2211 = vunpack.c.l.b16 %v2059
    %v2212 = vunpack.c.h.b16 %v2059
    %v2213 = vunpack.c.l.b16 %v2060
    %v2214 = vunpack.c.h.b16 %v2060
    %v2215 = vunpack.c.l.b16 %v2061
    %v2216 = vunpack.c.h.b16 %v2061
    %v2217 = vunpack.c.l.b16 %v2062
    %v2218 = vunpack.c.h.b16 %v2062
    %v2219 = vunpack.c.l.b16 %v2063
    %v2220 = vunpack.c.h.b16 %v2063
    %v2221 = vunpack.c.l.b16 %v2064
    %v2222 = vunpack.c.h.b16 %v2064
    %v2223 = vunpack.c.l.b16 %v2065
    %v2224 = vunpack.c.h.b16 %v2065
    %v2225 = vunpack.c.l.b16 %v2066
    %v2226 = vunpack.c.h.b16 %v2066
    %v2227 = vunpack.c.l.b16 %v2067
    %v2228 = vunpack.c.h.b16 %v2067
    %v2229 = vunpack.c.l.b16 %v2068
    %v2230 = vunpack.c.h.b16 %v2068
    %v2231 = vunpack.c.l.b16 %v2069
    %v2232 = vunpack.c.h.b16 %v2069
    %v2233 = vunpack.c.l.b16 %v2070
    %v2234 = vunpack.c.h.b16 %v2070
    %v2235 = vunpack.c.l.b16 %v2071
    %v2236 = vunpack.c.h.b16 %v2071
    %v2237 = vunpack.c.l.b16 %v2072
    %v2238 = vunpack.c.h.b16 %v2072
    %v2239 = vunpack.c.l.b16 %v2073
    %v2240 = vunpack.c.h.b16 %v2073
    %v2241 = vunpack.c.l.b16 %v2074
    %v2242 = vunpack.c.h.b16 %v2074
    %v2243 = vunpack.c.l.b16 %v2075
    %v2244 = vunpack.c.h.b16 %v2075
    %v2245 = vunpack.c.l.b16 %v2076
    %v2246 = vunpack.c.h.b16 %v2076
    %v2247 = vunpack.c.l.b16 %v2077
    %v2248 = vunpack.c.h.b16 %v2077
    %v2249 = vunpack.c.l.b16 %v2078
    %v2250 = vunpack.c.h.b16 %v2078
    %v2251 = vunpack.c.l.b16 %v2079
    %v2252 = vunpack.c.h.b16 %v2079
    %v2253 = vunpack.c.l.b16 %v2080
    %v2254 = vunpack.c.h.b16 %v2080
    %v2255 = vunpack.c.l.b16 %v2081
    %v2256 = vunpack.c.h.b16 %v2081
    %v2257 = vunpack.c.l.b16 %v2082
    %v2258 = vunpack.c.h.b16 %v2082
    %v2259 = vunpack.c.l.b16 %v2083
    %v2260 = vunpack.c.h.b16 %v2083
    %v2261 = vunpack.c.l.b16 %v2084
    %v2262 = vunpack.c.h.b16 %v2084
    %v2263 = vunpack.c.l.b16 %v2085
    %v2264 = vunpack.c.h.b16 %v2085
    %v2265 = vunpack.c.l.b16 %v2086
    %v2266 = vunpack.c.h.b16 %v2086
    %v2267 = vunpack.c.l.b16 %v2087
    %v2268 = vunpack.c.h.b16 %v2087
    %v2269 = vunpack.c.l.b16 %v2088
    %v2270 = vunpack.c.h.b16 %v2088
    %v2271 = vunpack.c.l.b16 %v2089
    %v2272 = vunpack.c.h.b16 %v2089
    %v2273 = vunpack.c.l.b16 %v2090
    %v2274 = vunpack.c.h.b16 %v2090
    %v2275 = vunpack.c.l.b16 %v2091
    %v2276 = vunpack.c.h.b16 %v2091
    %v2277 = vunpack.c.l.b16 %v2092
    %v2278 = vunpack.c.h.b16 %v2092
    %v2279 = vunpack.c.l.b16 %v2093
    %v2280 = vunpack.c.h.b16 %v2093
    %v2281 = vunpack.c.l.b16 %v2094
    %v2282 = vunpack.c.h.b16 %v2094
    %v2283 = vunpack.c.l.b16 %v2095
    %v2284 = vunpack.c.h.b16 %v2095
    %v2285 = vunpack.c.l.b16 %v2096
    %v2286 = vunpack.c.h.b16 %v2096
    %v2287 = vunpack.c.l.b16 %v2097
    %v2288 = vunpack.c.h.b16 %v2097
    %v2289 = vunpack.c.l.b16 %v2098
    %v2290 = vunpack.c.h.b16 %v2098
    %v2291 = vunpack.c.l.b16 %v2099
    %v2292 = vunpack.c.h.b16 %v2099
    %v2293 = vunpack.c.l.b16 %v2100
    %v2294 = vunpack.c.h.b16 %v2100
    %v2295 = vunpack.c.l.b16 %v2101
    %v2296 = vunpack.c.h.b16 %v2101
    %v2297 = vunpack.c.l.b16 %v2102
    %v2298 = vunpack.c.h.b16 %v2102
    %v2299 = vunpack.c.l.b16 %v2103
    %v2300 = vunpack.c.h.b16 %v2103
    %v2301 = vunpack.c.l.b16 %v2104
    %v2302 = vunpack.c.h.b16 %v2104
    %v2303 = vunpack.c.l.b16 %v2105
    %v2304 = vunpack.c.h.b16 %v2105
    %v2305 = vunpack.c.l.b16 %v2106
    %v2306 = vunpack.c.h.b16 %v2106
    %v2307 = vunpack.c.l.b16 %v2107
    %v2308 = vunpack.c.h.b16 %v2107
    %v2309 = vunpack.c.l.b16 %v2108
    %v2310 = vunpack.c.h.b16 %v2108
    %v2311 = vunpack.c.l.b16 %v2109
    %v2312 = vunpack.c.h.b16 %v2109
    %v2313 = vunpack.c.l.b16 %v2110
    %v2314 = vunpack.c.h.b16 %v2110
    %v2315 = vpack.c.b16 %v2189, %v2187
    %v2316 = vpack.c.b16 %v2190, %v2188
    %v2317 = vpack.c.b16 %v2193, %v2191
    %v2318 = vpack.c.b16 %v2194, %v2192
    %v2319 = vpack.c.b16 %v2197, %v2195
    %v2320 = vpack.c.b16 %v2198, %v2196
    %v2321 = vpack.c.b16 %v2201, %v2199
    %v2322 = vpack.c.b16 %v2202, %v2200
    %v2323 = vpack.c.b16 %v2205, %v2203
    %v2324 = vpack.c.b16 %v2206, %v2204
    %v2325 = vpack.c.b16 %v2209, %v2207
    %v2326 = vpack.c.b16 %v2210, %v2208
    %v2327 = vpack.c.b16 %v2213, %v2211
    %v2328 = vpack.c.b16 %v2214, %v2212
    %v2329 = vpack.c.b16 %v2217, %v2215
    %v2330 = vpack.c.b16 %v2218, %v2216
    %v2331 = vpack.c.b16 %v2221, %v2219
    %v2332 = vpack.c.b16 %v2222, %v2220
    %v2333 = vpack.c.b16 %v2225, %v2223
    %v2334 = vpack.c.b16 %v2226, %v2224
    %v2335 = vpack.c.b16 %v2229, %v2227
    %v2336 = vpack.c.b16 %v2230, %v2228
    %v2337 = vpack.c.b16 %v2233, %v2231
    %v2338 = vpack.c.b16 %v2234, %v2232
    %v2339 = vpack.c.b16 %v2237, %v2235
    %v2340 = vpack.c.b16 %v2238, %v2236
    %v2341 = vpack.c.b16 %v2241, %v2239
    %v2342 = vpack.c.b16 %v2242, %v2240
    %v2343 = vpack.c.b16 %v2245, %v2243
    %v2344 = vpack.c.b16 %v2246, %v2244
    %v2345 = vpack.c.b16 %v2249, %v2247
    %v2346 = vpack.c.b16 %v2250, %v2248
    %v2347 = vpack.c.b16 %v2253, %v2251
    %v2348 = vpack.c.b16 %v2254, %v2252
    %v2349 = vpack.c.b16 %v2257, %v2255
    %v2350 = vpack.c.b16 %v2258, %v2256
    %v2351 = vpack.c.b16 %v2261, %v2259
    %v2352 = vpack.c.b16 %v2262, %v2260
    %v2353 = vpack.c.b16 %v2265, %v2263
    %v2354 = vpack.c.b16 %v2266, %v2264
    %v2355 = vpack.c.b16 %v2269, %v2267
    %v2356 = vpack.c.b16 %v2270, %v2268
    %v2357 = vpack.c.b16 %v2273, %v2271
    %v2358 = vpack.c.b16 %v2274, %v2272
    %v2359 = vpack.c.b16 %v2277, %v2275
    %v2360 = vpack.c.b16 %v2278, %v2276
    %v2361 = vpack.c.b16 %v2281, %v2279
    %v2362 = vpack.c.b16 %v2282, %v2280
    %v2363 = vpack.c.b16 %v2285, %v2283
    %v2364 = vpack.c.b16 %v2286, %v2284
    %v2365 = vpack.c.b16 %v2289, %v2287
    %v2366 = vpack.c.b16 %v2290, %v2288
    %v2367 = vpack.c.b16 %v2293, %v2291
    %v2368 = vpack.c.b16 %v2294, %v2292
    %v2369 = vpack.c.b16 %v2297, %v2295
    %v2370 = vpack.c.b16 %v2298, %v2296
    %v2371 = vpack.c.b16 %v2301, %v2299
    %v2372 = vpack.c.b16 %v2302, %v2300
    %v2373 = vpack.c.b16 %v2305, %v2303
    %v2374 = vpack.c.b16 %v2306, %v2304
    %v2375 = vpack.c.b16 %v2309, %v2307
    %v2376 = vpack.c.b16 %v2310, %v2308
    %v2377 = vpack.c.b16 %v2313, %v2311
    %v2378 = vpack.c.b16 %v2314, %v2312
    %2443 = vmatprep.subr.bf16.mxu0 %v2316
    %2444 = vmatpush1.bf16.msra.mxu0 %v2315
    %2445 = vmatprep.subr.bf16.mxu0 %v2318
    %2446 = vmatpush1.bf16.msra.mxu0 %v2317
    %2447 = vmatprep.subr.bf16.mxu0 %v2320
    %2448 = vmatpush1.bf16.msra.mxu0 %v2319
    %2449 = vmatprep.subr.bf16.mxu0 %v2322
    %2450 = vmatpush1.bf16.msra.mxu0 %v2321
    %2451 = vmatprep.subr.bf16.mxu0 %v2324
    %2452 = vmatpush1.bf16.msra.mxu0 %v2323
    %2453 = vmatprep.subr.bf16.mxu0 %v2326
    %2454 = vmatpush1.bf16.msra.mxu0 %v2325
    %2455 = vmatprep.subr.bf16.mxu0 %v2328
    %2456 = vmatpush1.bf16.msra.mxu0 %v2327
    %2457 = vmatprep.subr.bf16.mxu0 %v2330
    %2458 = vmatpush1.bf16.msra.mxu0 %v2329
    %2459 = vmatprep.subr.bf16.mxu0 %v2332
    %2460 = vmatpush1.bf16.msra.mxu0 %v2331
    %2461 = vmatprep.subr.bf16.mxu0 %v2334
    %2462 = vmatpush1.bf16.msra.mxu0 %v2333
    %2463 = vmatprep.subr.bf16.mxu0 %v2336
    %2464 = vmatpush1.bf16.msra.mxu0 %v2335
    %2465 = vmatprep.subr.bf16.mxu0 %v2338
    %2466 = vmatpush1.bf16.msra.mxu0 %v2337
    %2467 = vmatprep.subr.bf16.mxu0 %v2340
    %2468 = vmatpush1.bf16.msra.mxu0 %v2339
    %2469 = vmatprep.subr.bf16.mxu0 %v2342
    %2470 = vmatpush1.bf16.msra.mxu0 %v2341
    %2471 = vmatprep.subr.bf16.mxu0 %v2344
    %2472 = vmatpush1.bf16.msra.mxu0 %v2343
    %2473 = vmatprep.subr.bf16.mxu0 %v2346
    %2474 = vmatpush1.bf16.msra.mxu0 %v2345
    %2475 = vmatprep.mubr.bf16.mxu0 %v2044
    %2476 = vmatmul.mubr.bf16.gmra.mrb[0].mxu0 %v2043
    %v2477 = vpop.f32.mrb[0].mxu0
    %v2478 = vadd.f32 %v2116, %v2477
    %v2479 = vpop.f32.mrb[0].mxu0
    %v2480 = vadd.f32 %v2120, %v2479
    %v2481 = vpop.f32.mrb[0].mxu0
    %v2482 = vpop.f32.mrb[0].mxu0
    %2483 = vdwg.mxu0
    %2484 = vmatprep.subr.bf16.mxu0 %v2348
    %2485 = vmatpush1.bf16.msra.mxu0 %v2347
    %2486 = vmatprep.subr.bf16.mxu0 %v2350
    %2487 = vmatpush1.bf16.msra.mxu0 %v2349
    %2488 = vmatprep.subr.bf16.mxu0 %v2352
    %2489 = vmatpush1.bf16.msra.mxu0 %v2351
    %2490 = vmatprep.subr.bf16.mxu0 %v2354
    %2491 = vmatpush1.bf16.msra.mxu0 %v2353
    %2492 = vmatprep.subr.bf16.mxu0 %v2356
    %2493 = vmatpush1.bf16.msra.mxu0 %v2355
    %2494 = vmatprep.subr.bf16.mxu0 %v2358
    %2495 = vmatpush1.bf16.msra.mxu0 %v2357
    %2496 = vmatprep.subr.bf16.mxu0 %v2360
    %2497 = vmatpush1.bf16.msra.mxu0 %v2359
    %2498 = vmatprep.subr.bf16.mxu0 %v2362
    %2499 = vmatpush1.bf16.msra.mxu0 %v2361
    %2500 = vmatprep.subr.bf16.mxu0 %v2364
    %2501 = vmatpush1.bf16.msra.mxu0 %v2363
    %2502 = vmatprep.subr.bf16.mxu0 %v2366
    %2503 = vmatpush1.bf16.msra.mxu0 %v2365
    %2504 = vmatprep.subr.bf16.mxu0 %v2368
    %2505 = vmatpush1.bf16.msra.mxu0 %v2367
    %2506 = vmatprep.subr.bf16.mxu0 %v2370
    %2507 = vmatpush1.bf16.msra.mxu0 %v2369
    %2508 = vmatprep.subr.bf16.mxu0 %v2372
    %2509 = vmatpush1.bf16.msra.mxu0 %v2371
    %2510 = vmatprep.subr.bf16.mxu0 %v2374
    %2511 = vmatpush1.bf16.msra.mxu0 %v2373
    %2512 = vmatprep.subr.bf16.mxu0 %v2376
    %2513 = vmatpush1.bf16.msra.mxu0 %v2375
    %2514 = vmatprep.subr.bf16.mxu0 %v2378
    %2515 = vmatpush1.bf16.msra.mxu0 %v2377
    %2516 = vmatprep.mubr.bf16.mxu0 %v2046
    %2517 = vmatmul.mubr.bf16.gmra.mrb[0].mxu0 %v2045
    %v2518 = vpop.f32.mrb[0].mxu0
    %v2519 = vadd.f32 %v2478, %v2518
    %v2520 = vpop.f32.mrb[0].mxu0
    %v2521 = vadd.f32 %v2480, %v2520
    %v2522 = vpop.f32.mrb[0].mxu0
    %v2523 = vpop.f32.mrb[0].mxu0
    %2524 = vdwg.mxu0
    %v2525 = vmul.f32 %v2521, 0.5
    %v2526 = vmul.f32 %v2525, 1.442695
    %v2527 = vpow.pop %v2526
    %v2528 = vld [vmem:[%s1] sm:$0x3]
    %v2529 = vmul.f32 %v2528, %v2527
    %v2530 = vadd.f32 %v2519, %v2529
    %v2531 = vpack.c.bf16 %v2530, %v2530
    %v2532 = vld [vmem:[%s6] sm:$0xf]
    %v2533 = vld [vmem:[%s6 + $0x4] sm:$0xf]
    %v2534 = vld [vmem:[%s6 + $0x8] sm:$0xf]
    %v2535 = vld [vmem:[%s6 + $0xc] sm:$0xf]
    %v2536 = vld [vmem:[%s6 + $0x10] sm:$0xf]
    %v2537 = vld [vmem:[%s6 + $0x14] sm:$0xf]
    %v2538 = vld [vmem:[%s6 + $0x18] sm:$0xf]
    %v2539 = vld [vmem:[%s6 + $0x1c] sm:$0xf]
    %v2540 = vld [vmem:[%s6 + $0x20] sm:$0xf]
    %v2541 = vld [vmem:[%s6 + $0x24] sm:$0xf]
    %v2542 = vld [vmem:[%s6 + $0x28] sm:$0xf]
    %v2543 = vld [vmem:[%s6 + $0x2c] sm:$0xf]
    %v2544 = vld [vmem:[%s6 + $0x30] sm:$0xf]
    %v2545 = vld [vmem:[%s6 + $0x34] sm:$0xf]
    %v2546 = vld [vmem:[%s6 + $0x38] sm:$0xf]
    %v2547 = vld [vmem:[%s6 + $0x3c] sm:$0xf]
    %v2548 = vld [vmem:[%s7] sm:$0x1]
    %v2550 = vlaneseq
    %v2551 = vshrl.u32 %v2550, 7
    %v2552 = vsub.s32 0, %v2551
    %v2553 = vrot.slane %v2548, %v2552
    %v2571 = vunpack.c.l.b16 %v2532
    %v2572 = vunpack.c.l.b16 %v2533
    %v2573 = vunpack.c.l.b16 %v2534
    %v2574 = vunpack.c.l.b16 %v2535
    %v2575 = vunpack.c.l.b16 %v2536
    %v2576 = vunpack.c.l.b16 %v2537
    %v2577 = vunpack.c.l.b16 %v2538
    %v2578 = vunpack.c.l.b16 %v2539
    %v2579 = vunpack.c.l.b16 %v2540
    %v2580 = vunpack.c.l.b16 %v2541
    %v2581 = vunpack.c.l.b16 %v2542
    %v2582 = vunpack.c.l.b16 %v2543
    %v2583 = vunpack.c.l.b16 %v2544
    %v2584 = vunpack.c.l.b16 %v2545
    %v2585 = vunpack.c.l.b16 %v2546
    %v2586 = vunpack.c.l.b16 %v2547
    %v2587 = vpack.c.b16 %v2572, %v2571
    %v2588 = vpack.c.b16 %v2574, %v2573
    %v2589 = vpack.c.b16 %v2576, %v2575
    %v2590 = vpack.c.b16 %v2578, %v2577
    %v2591 = vpack.c.b16 %v2580, %v2579
    %v2592 = vpack.c.b16 %v2582, %v2581
    %v2593 = vpack.c.b16 %v2584, %v2583
    %v2594 = vpack.c.b16 %v2586, %v2585
    %2603 = vmatprep.subr.bf16.mxu0 0
    %2604 = vmatpush1.bf16.msra.mxu0 %v2587
    %2605 = vmatprep.subr.bf16.mxu0 0
    %2606 = vmatpush1.bf16.msra.mxu0 %v2588
    %2607 = vmatprep.subr.bf16.mxu0 0
    %2608 = vmatpush1.bf16.msra.mxu0 %v2589
    %2609 = vmatprep.subr.bf16.mxu0 0
    %2610 = vmatpush1.bf16.msra.mxu0 %v2590
    %2611 = vmatprep.subr.bf16.mxu0 0
    %2612 = vmatpush1.bf16.msra.mxu0 %v2591
    %2613 = vmatprep.subr.bf16.mxu0 0
    %2614 = vmatpush1.bf16.msra.mxu0 %v2592
    %2615 = vmatprep.subr.bf16.mxu0 0
    %2616 = vmatpush1.bf16.msra.mxu0 %v2593
    %2617 = vmatprep.subr.bf16.mxu0 0
    %2618 = vmatpush1.bf16.msra.mxu0 %v2594
    %2619 = vmatprep.subr.bf16.mxu0 0
    %2620 = vmatpush1.bf16.msra.mxu0 0
    %2621 = vmatprep.subr.bf16.mxu0 0
    %2622 = vmatpush1.bf16.msra.mxu0 0
    %2623 = vmatprep.subr.bf16.mxu0 0
    %2624 = vmatpush1.bf16.msra.mxu0 0
    %2625 = vmatprep.subr.bf16.mxu0 0
    %2626 = vmatpush1.bf16.msra.mxu0 0
    %2627 = vmatprep.subr.bf16.mxu0 0
    %2628 = vmatpush1.bf16.msra.mxu0 0
    %2629 = vmatprep.subr.bf16.mxu0 0
    %2630 = vmatpush1.bf16.msra.mxu0 0
    %2631 = vmatprep.subr.bf16.mxu0 0
    %2632 = vmatpush1.bf16.msra.mxu0 0
    %2633 = vmatprep.subr.bf16.mxu0 0
    %2634 = vmatpush1.bf16.msra.mxu0 0
    %2635 = vmatprep.mubr.bf16.mxu0 0
    %2636 = vmatmul.mubr.bf16.gmra.mrb[0].mxu0 %v2531
    %v2637 = vpop.f32.mrb[0].mxu0
    %v2638 = vadd.f32 %v2553, %v2637
    %v2639 = vpop.f32.mrb[0].mxu0
    %v2640 = vpop.f32.mrb[0].mxu0
    %v2641 = vpop.f32.mrb[0].mxu0
    %2642 = vdwg.mxu0
    %v2643 = vmax.f32 %v2638, 0.0
    %v2644 = vpack.c.bf16 %v2643, %v2643
    %v2645 = vld [vmem:[#allocation6] sm:$0xff]
    %v2646 = vld [vmem:[#allocation6 + $0x8] sm:$0xff]
    %v2647 = vld [vmem:[#allocation6 + $0x10] sm:$0xff]
    %v2648 = vld [vmem:[#allocation6 + $0x18] sm:$0xff]
    %v2649 = vld [vmem:[#allocation6 + $0x20] sm:$0xff]
    %v2650 = vld [vmem:[#allocation6 + $0x28] sm:$0xff]
    %v2651 = vld [vmem:[#allocation6 + $0x30] sm:$0xff]
    %v2652 = vld [vmem:[#allocation6 + $0x38] sm:$0xff]
    %v2653 = vld [vmem:[#allocation6 + $0x40] sm:$0xff]
    %v2654 = vld [vmem:[#allocation6 + $0x48] sm:$0xff]
    %v2655 = vld [vmem:[#allocation6 + $0x50] sm:$0xff]
    %v2656 = vld [vmem:[#allocation6 + $0x58] sm:$0xff]
    %v2657 = vld [vmem:[#allocation6 + $0x60] sm:$0xff]
    %v2658 = vld [vmem:[#allocation6 + $0x68] sm:$0xff]
    %v2659 = vld [vmem:[#allocation6 + $0x70] sm:$0xff]
    %v2660 = vld [vmem:[#allocation6 + $0x78] sm:$0xff]
    %v2661 = vld [vmem:[#allocation6 + $0x80] sm:$0xff]
    %v2662 = vld [vmem:[#allocation6 + $0x88] sm:$0xff]
    %v2663 = vld [vmem:[#allocation6 + $0x90] sm:$0xff]
    %v2664 = vld [vmem:[#allocation6 + $0x98] sm:$0xff]
    %v2665 = vld [vmem:[#allocation6 + $0xa0] sm:$0xff]
    %v2666 = vld [vmem:[#allocation6 + $0xa8] sm:$0xff]
    %v2667 = vld [vmem:[#allocation6 + $0xb0] sm:$0xff]
    %v2668 = vld [vmem:[#allocation6 + $0xb8] sm:$0xff]
    %v2669 = vld [vmem:[#allocation6 + $0xc0] sm:$0xff]
    %v2670 = vld [vmem:[#allocation6 + $0xc8] sm:$0xff]
    %v2671 = vld [vmem:[#allocation6 + $0xd0] sm:$0xff]
    %v2672 = vld [vmem:[#allocation6 + $0xd8] sm:$0xff]
    %v2673 = vld [vmem:[#allocation6 + $0xe0] sm:$0xff]
    %v2674 = vld [vmem:[#allocation6 + $0xe8] sm:$0xff]
    %v2675 = vld [vmem:[#allocation6 + $0xf0] sm:$0xff]
    %v2676 = vld [vmem:[#allocation6 + $0xf8] sm:$0xff]
    %v2677 = vld [vmem:[%s9] sm:$0xf]
    %v2679 = vlaneseq
    %v2680 = vshrl.u32 %v2679, 7
    %v2681 = vsub.s32 0, %v2680
    %v2682 = vrot.slane %v2677, %v2681
    %v2683 = vlaneseq
    %v2684 = vshrl.u32 %v2683, 7
    %v2685 = vsub.s32 1, %v2684
    %v2686 = vrot.slane %v2677, %v2685
    %v2687 = vlaneseq
    %v2688 = vshrl.u32 %v2687, 7
    %v2689 = vsub.s32 2, %v2688
    %v2690 = vrot.slane %v2677, %v2689
    %v2691 = vlaneseq
    %v2692 = vshrl.u32 %v2691, 7
    %v2693 = vsub.s32 3, %v2692
    %v2694 = vrot.slane %v2677, %v2693
    %v2731 = vunpack.c.l.b16 %v2645
    %v2732 = vunpack.c.h.b16 %v2645
    %v2733 = vunpack.c.l.b16 %v2646
    %v2734 = vunpack.c.h.b16 %v2646
    %v2735 = vunpack.c.l.b16 %v2647
    %v2736 = vunpack.c.h.b16 %v2647
    %v2737 = vunpack.c.l.b16 %v2648
    %v2738 = vunpack.c.h.b16 %v2648
    %v2739 = vunpack.c.l.b16 %v2649
    %v2740 = vunpack.c.h.b16 %v2649
    %v2741 = vunpack.c.l.b16 %v2650
    %v2742 = vunpack.c.h.b16 %v2650
    %v2743 = vunpack.c.l.b16 %v2651
    %v2744 = vunpack.c.h.b16 %v2651
    %v2745 = vunpack.c.l.b16 %v2652
    %v2746 = vunpack.c.h.b16 %v2652
    %v2747 = vunpack.c.l.b16 %v2653
    %v2748 = vunpack.c.h.b16 %v2653
    %v2749 = vunpack.c.l.b16 %v2654
    %v2750 = vunpack.c.h.b16 %v2654
    %v2751 = vunpack.c.l.b16 %v2655
    %v2752 = vunpack.c.h.b16 %v2655
    %v2753 = vunpack.c.l.b16 %v2656
    %v2754 = vunpack.c.h.b16 %v2656
    %v2755 = vunpack.c.l.b16 %v2657
    %v2756 = vunpack.c.h.b16 %v2657
    %v2757 = vunpack.c.l.b16 %v2658
    %v2758 = vunpack.c.h.b16 %v2658
    %v2759 = vunpack.c.l.b16 %v2659
    %v2760 = vunpack.c.h.b16 %v2659
    %v2761 = vunpack.c.l.b16 %v2660
    %v2762 = vunpack.c.h.b16 %v2660
    %v2763 = vunpack.c.l.b16 %v2661
    %v2764 = vunpack.c.h.b16 %v2661
    %v2765 = vunpack.c.l.b16 %v2662
    %v2766 = vunpack.c.h.b16 %v2662
    %v2767 = vunpack.c.l.b16 %v2663
    %v2768 = vunpack.c.h.b16 %v2663
    %v2769 = vunpack.c.l.b16 %v2664
    %v2770 = vunpack.c.h.b16 %v2664
    %v2771 = vunpack.c.l.b16 %v2665
    %v2772 = vunpack.c.h.b16 %v2665
    %v2773 = vunpack.c.l.b16 %v2666
    %v2774 = vunpack.c.h.b16 %v2666
    %v2775 = vunpack.c.l.b16 %v2667
    %v2776 = vunpack.c.h.b16 %v2667
    %v2777 = vunpack.c.l.b16 %v2668
    %v2778 = vunpack.c.h.b16 %v2668
    %v2779 = vunpack.c.l.b16 %v2669
    %v2780 = vunpack.c.h.b16 %v2669
    %v2781 = vunpack.c.l.b16 %v2670
    %v2782 = vunpack.c.h.b16 %v2670
    %v2783 = vunpack.c.l.b16 %v2671
    %v2784 = vunpack.c.h.b16 %v2671
    %v2785 = vunpack.c.l.b16 %v2672
    %v2786 = vunpack.c.h.b16 %v2672
    %v2787 = vunpack.c.l.b16 %v2673
    %v2788 = vunpack.c.h.b16 %v2673
    %v2789 = vunpack.c.l.b16 %v2674
    %v2790 = vunpack.c.h.b16 %v2674
    %v2791 = vunpack.c.l.b16 %v2675
    %v2792 = vunpack.c.h.b16 %v2675
    %v2793 = vunpack.c.l.b16 %v2676
    %v2794 = vunpack.c.h.b16 %v2676
    %v2795 = vpack.c.b16 %v2735, %v2731
    %v2796 = vpack.c.b16 %v2736, %v2732
    %v2797 = vpack.c.b16 %v2737, %v2733
    %v2798 = vpack.c.b16 %v2738, %v2734
    %v2799 = vpack.c.b16 %v2743, %v2739
    %v2800 = vpack.c.b16 %v2744, %v2740
    %v2801 = vpack.c.b16 %v2745, %v2741
    %v2802 = vpack.c.b16 %v2746, %v2742
    %v2803 = vpack.c.b16 %v2751, %v2747
    %v2804 = vpack.c.b16 %v2752, %v2748
    %v2805 = vpack.c.b16 %v2753, %v2749
    %v2806 = vpack.c.b16 %v2754, %v2750
    %v2807 = vpack.c.b16 %v2759, %v2755
    %v2808 = vpack.c.b16 %v2760, %v2756
    %v2809 = vpack.c.b16 %v2761, %v2757
    %v2810 = vpack.c.b16 %v2762, %v2758
    %v2811 = vpack.c.b16 %v2767, %v2763
    %v2812 = vpack.c.b16 %v2768, %v2764
    %v2813 = vpack.c.b16 %v2769, %v2765
    %v2814 = vpack.c.b16 %v2770, %v2766
    %v2815 = vpack.c.b16 %v2775, %v2771
    %v2816 = vpack.c.b16 %v2776, %v2772
    %v2817 = vpack.c.b16 %v2777, %v2773
    %v2818 = vpack.c.b16 %v2778, %v2774
    %v2819 = vpack.c.b16 %v2783, %v2779
    %v2820 = vpack.c.b16 %v2784, %v2780
    %v2821 = vpack.c.b16 %v2785, %v2781
    %v2822 = vpack.c.b16 %v2786, %v2782
    %v2823 = vpack.c.b16 %v2791, %v2787
    %v2824 = vpack.c.b16 %v2792, %v2788
    %v2825 = vpack.c.b16 %v2793, %v2789
    %v2826 = vpack.c.b16 %v2794, %v2790
    %2859 = vmatprep.subr.bf16.mxu0 %v2796
    %2860 = vmatpush1.bf16.msra.mxu0 %v2795
    %2861 = vmatprep.subr.bf16.mxu0 %v2800
    %2862 = vmatpush1.bf16.msra.mxu0 %v2799
    %2863 = vmatprep.subr.bf16.mxu0 %v2804
    %2864 = vmatpush1.bf16.msra.mxu0 %v2803
    %2865 = vmatprep.subr.bf16.mxu0 %v2808
    %2866 = vmatpush1.bf16.msra.mxu0 %v2807
    %2867 = vmatprep.subr.bf16.mxu0 %v2812
    %2868 = vmatpush1.bf16.msra.mxu0 %v2811
    %2869 = vmatprep.subr.bf16.mxu0 %v2816
    %2870 = vmatpush1.bf16.msra.mxu0 %v2815
    %2871 = vmatprep.subr.bf16.mxu0 %v2820
    %2872 = vmatpush1.bf16.msra.mxu0 %v2819
    %2873 = vmatprep.subr.bf16.mxu0 %v2824
    %2874 = vmatpush1.bf16.msra.mxu0 %v2823
    %2875 = vmatprep.subr.bf16.mxu0 0
    %2876 = vmatpush1.bf16.msra.mxu0 0
    %2877 = vmatprep.subr.bf16.mxu0 0
    %2878 = vmatpush1.bf16.msra.mxu0 0
    %2879 = vmatprep.subr.bf16.mxu0 0
    %2880 = vmatpush1.bf16.msra.mxu0 0
    %2881 = vmatprep.subr.bf16.mxu0 0
    %2882 = vmatpush1.bf16.msra.mxu0 0
    %2883 = vmatprep.subr.bf16.mxu0 0
    %2884 = vmatpush1.bf16.msra.mxu0 0
    %2885 = vmatprep.subr.bf16.mxu0 0
    %2886 = vmatpush1.bf16.msra.mxu0 0
    %2887 = vmatprep.subr.bf16.mxu0 0
    %2888 = vmatpush1.bf16.msra.mxu0 0
    %2889 = vmatprep.subr.bf16.mxu0 0
    %2890 = vmatpush1.bf16.msra.mxu0 0
    %2891 = vmatprep.mubr.bf16.mxu0 0
    %2892 = vmatmul.mubr.bf16.gmra.mrb[0].mxu0 %v2644
    %v2893 = vpop.f32.mrb[0].mxu0
    %v2894 = vadd.f32 %v2682, %v2893
    %v2895 = vpop.f32.mrb[0].mxu0
    %v2896 = vadd.f32 %v2686, %v2895
    %v2897 = vpop.f32.mrb[0].mxu0
    %v2898 = vpop.f32.mrb[0].mxu0
    %2899 = vdwg.mxu0
    %2900 = vmatprep.subr.bf16.mxu0 %v2798
    %2901 = vmatpush1.bf16.msra.mxu0 %v2797
    %2902 = vmatprep.subr.bf16.mxu0 %v2802
    %2903 = vmatpush1.bf16.msra.mxu0 %v2801
    %2904 = vmatprep.subr.bf16.mxu0 %v2806
    %2905 = vmatpush1.bf16.msra.mxu0 %v2805
    %2906 = vmatprep.subr.bf16.mxu0 %v2810
    %2907 = vmatpush1.bf16.msra.mxu0 %v2809
    %2908 = vmatprep.subr.bf16.mxu0 %v2814
    %2909 = vmatpush1.bf16.msra.mxu0 %v2813
    %2910 = vmatprep.subr.bf16.mxu0 %v2818
    %2911 = vmatpush1.bf16.msra.mxu0 %v2817
    %2912 = vmatprep.subr.bf16.mxu0 %v2822
    %2913 = vmatpush1.bf16.msra.mxu0 %v2821
    %2914 = vmatprep.subr.bf16.mxu0 %v2826
    %2915 = vmatpush1.bf16.msra.mxu0 %v2825
    %2916 = vmatprep.subr.bf16.mxu0 0
    %2917 = vmatpush1.bf16.msra.mxu0 0
    %2918 = vmatprep.subr.bf16.mxu0 0
    %2919 = vmatpush1.bf16.msra.mxu0 0
    %2920 = vmatprep.subr.bf16.mxu0 0
    %2921 = vmatpush1.bf16.msra.mxu0 0
    %2922 = vmatprep.subr.bf16.mxu0 0
    %2923 = vmatpush1.bf16.msra.mxu0 0
    %2924 = vmatprep.subr.bf16.mxu0 0
    %2925 = vmatpush1.bf16.msra.mxu0 0
    %2926 = vmatprep.subr.bf16.mxu0 0
    %2927 = vmatpush1.bf16.msra.mxu0 0
    %2928 = vmatprep.subr.bf16.mxu0 0
    %2929 = vmatpush1.bf16.msra.mxu0 0
    %2930 = vmatprep.subr.bf16.mxu0 0
    %2931 = vmatpush1.bf16.msra.mxu0 0
    %2932 = vmatprep.mubr.bf16.mxu0 0
    %2933 = vmatmul.mubr.bf16.gmra.mrb[0].mxu0 %v2644
    %v2934 = vpop.f32.mrb[0].mxu0
    %v2935 = vadd.f32 %v2690, %v2934
    %v2936 = vpop.f32.mrb[0].mxu0
    %v2937 = vadd.f32 %v2694, %v2936
    %v2938 = vpop.f32.mrb[0].mxu0
    %v2939 = vpop.f32.mrb[0].mxu0
    %2940 = vdwg.mxu0
    %v2941 = vmax.f32 %v2894, 0.0
    %v2942 = vmax.f32 %v2896, 0.0
    %v2943 = vmax.f32 %v2935, 0.0
    %v2944 = vmax.f32 %v2937, 0.0
    %v2945 = vpack.c.bf16 %v2941, %v2941
    %v2946 = vpack.c.bf16 %v2942, %v2942
    %v2947 = vpack.c.bf16 %v2943, %v2943
    %v2948 = vpack.c.bf16 %v2944, %v2944
    %v2949 = vld [vmem:[#allocation7] sm:$0xff]
    %v2950 = vld [vmem:[#allocation7 + $0x8] sm:$0xff]
    %v2951 = vld [vmem:[#allocation7 + $0x10] sm:$0xff]
    %v2952 = vld [vmem:[#allocation7 + $0x18] sm:$0xff]
    %v2953 = vld [vmem:[#allocation7 + $0x20] sm:$0xff]
    %v2954 = vld [vmem:[#allocation7 + $0x28] sm:$0xff]
    %v2955 = vld [vmem:[#allocation7 + $0x30] sm:$0xff]
    %v2956 = vld [vmem:[#allocation7 + $0x38] sm:$0xff]
    %v2957 = vld [vmem:[#allocation7 + $0x40] sm:$0xff]
    %v2958 = vld [vmem:[#allocation7 + $0x48] sm:$0xff]
    %v2959 = vld [vmem:[#allocation7 + $0x50] sm:$0xff]
    %v2960 = vld [vmem:[#allocation7 + $0x58] sm:$0xff]
    %v2961 = vld [vmem:[#allocation7 + $0x60] sm:$0xff]
    %v2962 = vld [vmem:[#allocation7 + $0x68] sm:$0xff]
    %v2963 = vld [vmem:[#allocation7 + $0x70] sm:$0xff]
    %v2964 = vld [vmem:[#allocation7 + $0x78] sm:$0xff]
    %v2965 = vld [vmem:[#allocation7 + $0x80] sm:$0xff]
    %v2966 = vld [vmem:[#allocation7 + $0x88] sm:$0xff]
    %v2967 = vld [vmem:[#allocation7 + $0x90] sm:$0xff]
    %v2968 = vld [vmem:[#allocation7 + $0x98] sm:$0xff]
    %v2969 = vld [vmem:[#allocation7 + $0xa0] sm:$0xff]
    %v2970 = vld [vmem:[#allocation7 + $0xa8] sm:$0xff]
    %v2971 = vld [vmem:[#allocation7 + $0xb0] sm:$0xff]
    %v2972 = vld [vmem:[#allocation7 + $0xb8] sm:$0xff]
    %v2973 = vld [vmem:[#allocation7 + $0xc0] sm:$0xff]
    %v2974 = vld [vmem:[#allocation7 + $0xc8] sm:$0xff]
    %v2975 = vld [vmem:[#allocation7 + $0xd0] sm:$0xff]
    %v2976 = vld [vmem:[#allocation7 + $0xd8] sm:$0xff]
    %v2977 = vld [vmem:[#allocation7 + $0xe0] sm:$0xff]
    %v2978 = vld [vmem:[#allocation7 + $0xe8] sm:$0xff]
    %v2979 = vld [vmem:[#allocation7 + $0xf0] sm:$0xff]
    %v2980 = vld [vmem:[#allocation7 + $0xf8] sm:$0xff]
    %v2981 = vld [vmem:[#allocation7 + $0x100] sm:$0xff]
    %v2982 = vld [vmem:[#allocation7 + $0x108] sm:$0xff]
    %v2983 = vld [vmem:[#allocation7 + $0x110] sm:$0xff]
    %v2984 = vld [vmem:[#allocation7 + $0x118] sm:$0xff]
    %v2985 = vld [vmem:[#allocation7 + $0x120] sm:$0xff]
    %v2986 = vld [vmem:[#allocation7 + $0x128] sm:$0xff]
    %v2987 = vld [vmem:[#allocation7 + $0x130] sm:$0xff]
    %v2988 = vld [vmem:[#allocation7 + $0x138] sm:$0xff]
    %v2989 = vld [vmem:[#allocation7 + $0x140] sm:$0xff]
    %v2990 = vld [vmem:[#allocation7 + $0x148] sm:$0xff]
    %v2991 = vld [vmem:[#allocation7 + $0x150] sm:$0xff]
    %v2992 = vld [vmem:[#allocation7 + $0x158] sm:$0xff]
    %v2993 = vld [vmem:[#allocation7 + $0x160] sm:$0xff]
    %v2994 = vld [vmem:[#allocation7 + $0x168] sm:$0xff]
    %v2995 = vld [vmem:[#allocation7 + $0x170] sm:$0xff]
    %v2996 = vld [vmem:[#allocation7 + $0x178] sm:$0xff]
    %v2997 = vld [vmem:[#allocation7 + $0x180] sm:$0xff]
    %v2998 = vld [vmem:[#allocation7 + $0x188] sm:$0xff]
    %v2999 = vld [vmem:[#allocation7 + $0x190] sm:$0xff]
    %v3000 = vld [vmem:[#allocation7 + $0x198] sm:$0xff]
    %v3001 = vld [vmem:[#allocation7 + $0x1a0] sm:$0xff]
    %v3002 = vld [vmem:[#allocation7 + $0x1a8] sm:$0xff]
    %v3003 = vld [vmem:[#allocation7 + $0x1b0] sm:$0xff]
    %v3004 = vld [vmem:[#allocation7 + $0x1b8] sm:$0xff]
    %v3005 = vld [vmem:[#allocation7 + $0x1c0] sm:$0xff]
    %v3006 = vld [vmem:[#allocation7 + $0x1c8] sm:$0xff]
    %v3007 = vld [vmem:[#allocation7 + $0x1d0] sm:$0xff]
    %v3008 = vld [vmem:[#allocation7 + $0x1d8] sm:$0xff]
    %v3009 = vld [vmem:[#allocation7 + $0x1e0] sm:$0xff]
    %v3010 = vld [vmem:[#allocation7 + $0x1e8] sm:$0xff]
    %v3011 = vld [vmem:[#allocation7 + $0x1f0] sm:$0xff]
    %v3012 = vld [vmem:[#allocation7 + $0x1f8] sm:$0xff]
    %v3013 = vld [vmem:[#allocation7 + $0x200] sm:$0xff]
    %v3014 = vld [vmem:[#allocation7 + $0x208] sm:$0xff]
    %v3015 = vld [vmem:[#allocation7 + $0x210] sm:$0xff]
    %v3016 = vld [vmem:[#allocation7 + $0x218] sm:$0xff]
    %v3017 = vld [vmem:[#allocation7 + $0x220] sm:$0xff]
    %v3018 = vld [vmem:[#allocation7 + $0x228] sm:$0xff]
    %v3019 = vld [vmem:[#allocation7 + $0x230] sm:$0xff]
    %v3020 = vld [vmem:[#allocation7 + $0x238] sm:$0xff]
    %v3021 = vld [vmem:[#allocation7 + $0x240] sm:$0xff]
    %v3022 = vld [vmem:[#allocation7 + $0x248] sm:$0xff]
    %v3023 = vld [vmem:[#allocation7 + $0x250] sm:$0xff]
    %v3024 = vld [vmem:[#allocation7 + $0x258] sm:$0xff]
    %v3025 = vld [vmem:[#allocation7 + $0x260] sm:$0xff]
    %v3026 = vld [vmem:[#allocation7 + $0x268] sm:$0xff]
    %v3027 = vld [vmem:[#allocation7 + $0x270] sm:$0xff]
    %v3028 = vld [vmem:[#allocation7 + $0x278] sm:$0xff]
    %v3029 = vld [vmem:[#allocation7 + $0x280] sm:$0xff]
    %v3030 = vld [vmem:[#allocation7 + $0x288] sm:$0xff]
    %v3031 = vld [vmem:[#allocation7 + $0x290] sm:$0xff]
    %v3032 = vld [vmem:[#allocation7 + $0x298] sm:$0xff]
    %v3033 = vld [vmem:[#allocation7 + $0x2a0] sm:$0xff]
    %v3034 = vld [vmem:[#allocation7 + $0x2a8] sm:$0xff]
    %v3035 = vld [vmem:[#allocation7 + $0x2b0] sm:$0xff]
    %v3036 = vld [vmem:[#allocation7 + $0x2b8] sm:$0xff]
    %v3037 = vld [vmem:[#allocation7 + $0x2c0] sm:$0xff]
    %v3038 = vld [vmem:[#allocation7 + $0x2c8] sm:$0xff]
    %v3039 = vld [vmem:[#allocation7 + $0x2d0] sm:$0xff]
    %v3040 = vld [vmem:[#allocation7 + $0x2d8] sm:$0xff]
    %v3041 = vld [vmem:[#allocation7 + $0x2e0] sm:$0xff]
    %v3042 = vld [vmem:[#allocation7 + $0x2e8] sm:$0xff]
    %v3043 = vld [vmem:[#allocation7 + $0x2f0] sm:$0xff]
    %v3044 = vld [vmem:[#allocation7 + $0x2f8] sm:$0xff]
    %v3045 = vld [vmem:[#allocation7 + $0x300] sm:$0xff]
    %v3046 = vld [vmem:[#allocation7 + $0x308] sm:$0xff]
    %v3047 = vld [vmem:[#allocation7 + $0x310] sm:$0xff]
    %v3048 = vld [vmem:[#allocation7 + $0x318] sm:$0xff]
    %v3049 = vld [vmem:[#allocation7 + $0x320] sm:$0xff]
    %v3050 = vld [vmem:[#allocation7 + $0x328] sm:$0xff]
    %v3051 = vld [vmem:[#allocation7 + $0x330] sm:$0xff]
    %v3052 = vld [vmem:[#allocation7 + $0x338] sm:$0xff]
    %v3053 = vld [vmem:[#allocation7 + $0x340] sm:$0xff]
    %v3054 = vld [vmem:[#allocation7 + $0x348] sm:$0xff]
    %v3055 = vld [vmem:[#allocation7 + $0x350] sm:$0xff]
    %v3056 = vld [vmem:[#allocation7 + $0x358] sm:$0xff]
    %v3057 = vld [vmem:[#allocation7 + $0x360] sm:$0xff]
    %v3058 = vld [vmem:[#allocation7 + $0x368] sm:$0xff]
    %v3059 = vld [vmem:[#allocation7 + $0x370] sm:$0xff]
    %v3060 = vld [vmem:[#allocation7 + $0x378] sm:$0xff]
    %v3061 = vld [vmem:[#allocation7 + $0x380] sm:$0xff]
    %v3062 = vld [vmem:[#allocation7 + $0x388] sm:$0xff]
    %v3063 = vld [vmem:[#allocation7 + $0x390] sm:$0xff]
    %v3064 = vld [vmem:[#allocation7 + $0x398] sm:$0xff]
    %v3065 = vld [vmem:[#allocation7 + $0x3a0] sm:$0xff]
    %v3066 = vld [vmem:[#allocation7 + $0x3a8] sm:$0xff]
    %v3067 = vld [vmem:[#allocation7 + $0x3b0] sm:$0xff]
    %v3068 = vld [vmem:[#allocation7 + $0x3b8] sm:$0xff]
    %v3069 = vld [vmem:[#allocation7 + $0x3c0] sm:$0xff]
    %v3070 = vld [vmem:[#allocation7 + $0x3c8] sm:$0xff]
    %v3071 = vld [vmem:[#allocation7 + $0x3d0] sm:$0xff]
    %v3072 = vld [vmem:[#allocation7 + $0x3d8] sm:$0xff]
    %v3073 = vld [vmem:[#allocation7 + $0x3e0] sm:$0xff]
    %v3074 = vld [vmem:[#allocation7 + $0x3e8] sm:$0xff]
    %v3075 = vld [vmem:[#allocation7 + $0x3f0] sm:$0xff]
    %v3076 = vld [vmem:[#allocation7 + $0x3f8] sm:$0xff]
    %v3077 = vld [vmem:[#allocation7 + $0x400] sm:$0xff]
    %v3078 = vld [vmem:[#allocation7 + $0x408] sm:$0xff]
    %v3079 = vld [vmem:[#allocation7 + $0x410] sm:$0xff]
    %v3080 = vld [vmem:[#allocation7 + $0x418] sm:$0xff]
    %v3081 = vld [vmem:[#allocation7 + $0x420] sm:$0xff]
    %v3082 = vld [vmem:[#allocation7 + $0x428] sm:$0xff]
    %v3083 = vld [vmem:[#allocation7 + $0x430] sm:$0xff]
    %v3084 = vld [vmem:[#allocation7 + $0x438] sm:$0xff]
    %v3085 = vld [vmem:[#allocation7 + $0x440] sm:$0xff]
    %v3086 = vld [vmem:[#allocation7 + $0x448] sm:$0xff]
    %v3087 = vld [vmem:[#allocation7 + $0x450] sm:$0xff]
    %v3088 = vld [vmem:[#allocation7 + $0x458] sm:$0xff]
    %v3089 = vld [vmem:[#allocation7 + $0x460] sm:$0xff]
    %v3090 = vld [vmem:[#allocation7 + $0x468] sm:$0xff]
    %v3091 = vld [vmem:[#allocation7 + $0x470] sm:$0xff]
    %v3092 = vld [vmem:[#allocation7 + $0x478] sm:$0xff]
    %v3093 = vld [vmem:[#allocation7 + $0x480] sm:$0xff]
    %v3094 = vld [vmem:[#allocation7 + $0x488] sm:$0xff]
    %v3095 = vld [vmem:[#allocation7 + $0x490] sm:$0xff]
    %v3096 = vld [vmem:[#allocation7 + $0x498] sm:$0xff]
    %v3097 = vld [vmem:[#allocation7 + $0x4a0] sm:$0xff]
    %v3098 = vld [vmem:[#allocation7 + $0x4a8] sm:$0xff]
    %v3099 = vld [vmem:[#allocation7 + $0x4b0] sm:$0xff]
    %v3100 = vld [vmem:[#allocation7 + $0x4b8] sm:$0xff]
    %v3101 = vld [vmem:[#allocation7 + $0x4c0] sm:$0xff]
    %v3102 = vld [vmem:[#allocation7 + $0x4c8] sm:$0xff]
    %v3103 = vld [vmem:[#allocation7 + $0x4d0] sm:$0xff]
    %v3104 = vld [vmem:[#allocation7 + $0x4d8] sm:$0xff]
    %v3105 = vld [vmem:[#allocation7 + $0x4e0] sm:$0xff]
    %v3106 = vld [vmem:[#allocation7 + $0x4e8] sm:$0xff]
    %v3107 = vld [vmem:[#allocation7 + $0x4f0] sm:$0xff]
    %v3108 = vld [vmem:[#allocation7 + $0x4f8] sm:$0xff]
    %v3109 = vld [vmem:[#allocation7 + $0x500] sm:$0xff]
    %v3110 = vld [vmem:[#allocation7 + $0x508] sm:$0xff]
    %v3111 = vld [vmem:[#allocation7 + $0x510] sm:$0xff]
    %v3112 = vld [vmem:[#allocation7 + $0x518] sm:$0xff]
    %v3113 = vld [vmem:[#allocation7 + $0x520] sm:$0xff]
    %v3114 = vld [vmem:[#allocation7 + $0x528] sm:$0xff]
    %v3115 = vld [vmem:[#allocation7 + $0x530] sm:$0xff]
    %v3116 = vld [vmem:[#allocation7 + $0x538] sm:$0xff]
    %v3117 = vld [vmem:[#allocation7 + $0x540] sm:$0xff]
    %v3118 = vld [vmem:[#allocation7 + $0x548] sm:$0xff]
    %v3119 = vld [vmem:[#allocation7 + $0x550] sm:$0xff]
    %v3120 = vld [vmem:[#allocation7 + $0x558] sm:$0xff]
    %v3121 = vld [vmem:[#allocation7 + $0x560] sm:$0xff]
    %v3122 = vld [vmem:[#allocation7 + $0x568] sm:$0xff]
    %v3123 = vld [vmem:[#allocation7 + $0x570] sm:$0xff]
    %v3124 = vld [vmem:[#allocation7 + $0x578] sm:$0xff]
    %v3125 = vld [vmem:[#allocation7 + $0x580] sm:$0xff]
    %v3126 = vld [vmem:[#allocation7 + $0x588] sm:$0xff]
    %v3127 = vld [vmem:[#allocation7 + $0x590] sm:$0xff]
    %v3128 = vld [vmem:[#allocation7 + $0x598] sm:$0xff]
    %v3129 = vld [vmem:[#allocation7 + $0x5a0] sm:$0xff]
    %v3130 = vld [vmem:[#allocation7 + $0x5a8] sm:$0xff]
    %v3131 = vld [vmem:[#allocation7 + $0x5b0] sm:$0xff]
    %v3132 = vld [vmem:[#allocation7 + $0x5b8] sm:$0xff]
    %v3133 = vld [vmem:[#allocation7 + $0x5c0] sm:$0xff]
    %v3134 = vld [vmem:[#allocation7 + $0x5c8] sm:$0xff]
    %v3135 = vld [vmem:[#allocation7 + $0x5d0] sm:$0xff]
    %v3136 = vld [vmem:[#allocation7 + $0x5d8] sm:$0xff]
    %v3137 = vld [vmem:[#allocation7 + $0x5e0] sm:$0xff]
    %v3138 = vld [vmem:[#allocation7 + $0x5e8] sm:$0xff]
    %v3139 = vld [vmem:[#allocation7 + $0x5f0] sm:$0xff]
    %v3140 = vld [vmem:[#allocation7 + $0x5f8] sm:$0xff]
    %v3141 = vld [vmem:[#allocation7 + $0x600] sm:$0xff]
    %v3142 = vld [vmem:[#allocation7 + $0x608] sm:$0xff]
    %v3143 = vld [vmem:[#allocation7 + $0x610] sm:$0xff]
    %v3144 = vld [vmem:[#allocation7 + $0x618] sm:$0xff]
    %v3145 = vld [vmem:[#allocation7 + $0x620] sm:$0xff]
    %v3146 = vld [vmem:[#allocation7 + $0x628] sm:$0xff]
    %v3147 = vld [vmem:[#allocation7 + $0x630] sm:$0xff]
    %v3148 = vld [vmem:[#allocation7 + $0x638] sm:$0xff]
    %v3149 = vld [vmem:[#allocation7 + $0x640] sm:$0xff]
    %v3150 = vld [vmem:[#allocation7 + $0x648] sm:$0xff]
    %v3151 = vld [vmem:[#allocation7 + $0x650] sm:$0xff]
    %v3152 = vld [vmem:[#allocation7 + $0x658] sm:$0xff]
    %v3153 = vld [vmem:[#allocation7 + $0x660] sm:$0xff]
    %v3154 = vld [vmem:[#allocation7 + $0x668] sm:$0xff]
    %v3155 = vld [vmem:[#allocation7 + $0x670] sm:$0xff]
    %v3156 = vld [vmem:[#allocation7 + $0x678] sm:$0xff]
    %v3157 = vld [vmem:[#allocation7 + $0x680] sm:$0xff]
    %v3158 = vld [vmem:[#allocation7 + $0x688] sm:$0xff]
    %v3159 = vld [vmem:[#allocation7 + $0x690] sm:$0xff]
    %v3160 = vld [vmem:[#allocation7 + $0x698] sm:$0xff]
    %v3161 = vld [vmem:[#allocation7 + $0x6a0] sm:$0xff]
    %v3162 = vld [vmem:[#allocation7 + $0x6a8] sm:$0xff]
    %v3163 = vld [vmem:[#allocation7 + $0x6b0] sm:$0xff]
    %v3164 = vld [vmem:[#allocation7 + $0x6b8] sm:$0xff]
    %v3165 = vld [vmem:[#allocation7 + $0x6c0] sm:$0xff]
    %v3166 = vld [vmem:[#allocation7 + $0x6c8] sm:$0xff]
    %v3167 = vld [vmem:[#allocation7 + $0x6d0] sm:$0xff]
    %v3168 = vld [vmem:[#allocation7 + $0x6d8] sm:$0xff]
    %v3169 = vld [vmem:[#allocation7 + $0x6e0] sm:$0xff]
    %v3170 = vld [vmem:[#allocation7 + $0x6e8] sm:$0xff]
    %v3171 = vld [vmem:[#allocation7 + $0x6f0] sm:$0xff]
    %v3172 = vld [vmem:[#allocation7 + $0x6f8] sm:$0xff]
    %v3173 = vld [vmem:[#allocation7 + $0x700] sm:$0xff]
    %v3174 = vld [vmem:[#allocation7 + $0x708] sm:$0xff]
    %v3175 = vld [vmem:[#allocation7 + $0x710] sm:$0xff]
    %v3176 = vld [vmem:[#allocation7 + $0x718] sm:$0xff]
    %v3177 = vld [vmem:[#allocation7 + $0x720] sm:$0xff]
    %v3178 = vld [vmem:[#allocation7 + $0x728] sm:$0xff]
    %v3179 = vld [vmem:[#allocation7 + $0x730] sm:$0xff]
    %v3180 = vld [vmem:[#allocation7 + $0x738] sm:$0xff]
    %v3181 = vld [vmem:[#allocation7 + $0x740] sm:$0xff]
    %v3182 = vld [vmem:[#allocation7 + $0x748] sm:$0xff]
    %v3183 = vld [vmem:[#allocation7 + $0x750] sm:$0xff]
    %v3184 = vld [vmem:[#allocation7 + $0x758] sm:$0xff]
    %v3185 = vld [vmem:[#allocation7 + $0x760] sm:$0xff]
    %v3186 = vld [vmem:[#allocation7 + $0x768] sm:$0xff]
    %v3187 = vld [vmem:[#allocation7 + $0x770] sm:$0xff]
    %v3188 = vld [vmem:[#allocation7 + $0x778] sm:$0xff]
    %v3189 = vld [vmem:[#allocation7 + $0x780] sm:$0xff]
    %v3190 = vld [vmem:[#allocation7 + $0x788] sm:$0xff]
    %v3191 = vld [vmem:[#allocation7 + $0x790] sm:$0xff]
    %v3192 = vld [vmem:[#allocation7 + $0x798] sm:$0xff]
    %v3193 = vld [vmem:[#allocation7 + $0x7a0] sm:$0xff]
    %v3194 = vld [vmem:[#allocation7 + $0x7a8] sm:$0xff]
    %v3195 = vld [vmem:[#allocation7 + $0x7b0] sm:$0xff]
    %v3196 = vld [vmem:[#allocation7 + $0x7b8] sm:$0xff]
    %v3197 = vld [vmem:[#allocation7 + $0x7c0] sm:$0xff]
    %v3198 = vld [vmem:[#allocation7 + $0x7c8] sm:$0xff]
    %v3199 = vld [vmem:[#allocation7 + $0x7d0] sm:$0xff]
    %v3200 = vld [vmem:[#allocation7 + $0x7d8] sm:$0xff]
    %v3201 = vld [vmem:[#allocation7 + $0x7e0] sm:$0xff]
    %v3202 = vld [vmem:[#allocation7 + $0x7e8] sm:$0xff]
    %v3203 = vld [vmem:[#allocation7 + $0x7f0] sm:$0xff]
    %v3204 = vld [vmem:[#allocation7 + $0x7f8] sm:$0xff]
    %v3205 = vld [vmem:[%s11] sm:$0xff]
    %v3207 = vlaneseq
    %v3208 = vshrl.u32 %v3207, 7
    %v3209 = vsub.s32 0, %v3208
    %v3210 = vrot.slane %v3205, %v3209
    %v3211 = vlaneseq
    %v3212 = vshrl.u32 %v3211, 7
    %v3213 = vsub.s32 1, %v3212
    %v3214 = vrot.slane %v3205, %v3213
    %v3215 = vlaneseq
    %v3216 = vshrl.u32 %v3215, 7
    %v3217 = vsub.s32 2, %v3216
    %v3218 = vrot.slane %v3205, %v3217
    %v3219 = vlaneseq
    %v3220 = vshrl.u32 %v3219, 7
    %v3221 = vsub.s32 3, %v3220
    %v3222 = vrot.slane %v3205, %v3221
    %v3223 = vlaneseq
    %v3224 = vshrl.u32 %v3223, 7
    %v3225 = vsub.s32 4, %v3224
    %v3226 = vrot.slane %v3205, %v3225
    %v3227 = vlaneseq
    %v3228 = vshrl.u32 %v3227, 7
    %v3229 = vsub.s32 5, %v3228
    %v3230 = vrot.slane %v3205, %v3229
    %v3231 = vlaneseq
    %v3232 = vshrl.u32 %v3231, 7
    %v3233 = vsub.s32 6, %v3232
    %v3234 = vrot.slane %v3205, %v3233
    %v3235 = vlaneseq
    %v3236 = vshrl.u32 %v3235, 7
    %v3237 = vsub.s32 7, %v3236
    %v3238 = vrot.slane %v3205, %v3237
    %v3503 = vunpack.c.l.b16 %v2949
    %v3504 = vunpack.c.h.b16 %v2949
    %v3505 = vunpack.c.l.b16 %v2950
    %v3506 = vunpack.c.h.b16 %v2950
    %v3507 = vunpack.c.l.b16 %v2951
    %v3508 = vunpack.c.h.b16 %v2951
    %v3509 = vunpack.c.l.b16 %v2952
    %v3510 = vunpack.c.h.b16 %v2952
    %v3511 = vunpack.c.l.b16 %v2953
    %v3512 = vunpack.c.h.b16 %v2953
    %v3513 = vunpack.c.l.b16 %v2954
    %v3514 = vunpack.c.h.b16 %v2954
    %v3515 = vunpack.c.l.b16 %v2955
    %v3516 = vunpack.c.h.b16 %v2955
    %v3517 = vunpack.c.l.b16 %v2956
    %v3518 = vunpack.c.h.b16 %v2956
    %v3519 = vunpack.c.l.b16 %v2957
    %v3520 = vunpack.c.h.b16 %v2957
    %v3521 = vunpack.c.l.b16 %v2958
    %v3522 = vunpack.c.h.b16 %v2958
    %v3523 = vunpack.c.l.b16 %v2959
    %v3524 = vunpack.c.h.b16 %v2959
    %v3525 = vunpack.c.l.b16 %v2960
    %v3526 = vunpack.c.h.b16 %v2960
    %v3527 = vunpack.c.l.b16 %v2961
    %v3528 = vunpack.c.h.b16 %v2961
    %v3529 = vunpack.c.l.b16 %v2962
    %v3530 = vunpack.c.h.b16 %v2962
    %v3531 = vunpack.c.l.b16 %v2963
    %v3532 = vunpack.c.h.b16 %v2963
    %v3533 = vunpack.c.l.b16 %v2964
    %v3534 = vunpack.c.h.b16 %v2964
    %v3535 = vunpack.c.l.b16 %v2965
    %v3536 = vunpack.c.h.b16 %v2965
    %v3537 = vunpack.c.l.b16 %v2966
    %v3538 = vunpack.c.h.b16 %v2966
    %v3539 = vunpack.c.l.b16 %v2967
    %v3540 = vunpack.c.h.b16 %v2967
    %v3541 = vunpack.c.l.b16 %v2968
    %v3542 = vunpack.c.h.b16 %v2968
    %v3543 = vunpack.c.l.b16 %v2969
    %v3544 = vunpack.c.h.b16 %v2969
    %v3545 = vunpack.c.l.b16 %v2970
    %v3546 = vunpack.c.h.b16 %v2970
    %v3547 = vunpack.c.l.b16 %v2971
    %v3548 = vunpack.c.h.b16 %v2971
    %v3549 = vunpack.c.l.b16 %v2972
    %v3550 = vunpack.c.h.b16 %v2972
    %v3551 = vunpack.c.l.b16 %v2973
    %v3552 = vunpack.c.h.b16 %v2973
    %v3553 = vunpack.c.l.b16 %v2974
    %v3554 = vunpack.c.h.b16 %v2974
    %v3555 = vunpack.c.l.b16 %v2975
    %v3556 = vunpack.c.h.b16 %v2975
    %v3557 = vunpack.c.l.b16 %v2976
    %v3558 = vunpack.c.h.b16 %v2976
    %v3559 = vunpack.c.l.b16 %v2977
    %v3560 = vunpack.c.h.b16 %v2977
    %v3561 = vunpack.c.l.b16 %v2978
    %v3562 = vunpack.c.h.b16 %v2978
    %v3563 = vunpack.c.l.b16 %v2979
    %v3564 = vunpack.c.h.b16 %v2979
    %v3565 = vunpack.c.l.b16 %v2980
    %v3566 = vunpack.c.h.b16 %v2980
    %v3567 = vunpack.c.l.b16 %v2981
    %v3568 = vunpack.c.h.b16 %v2981
    %v3569 = vunpack.c.l.b16 %v2982
    %v3570 = vunpack.c.h.b16 %v2982
    %v3571 = vunpack.c.l.b16 %v2983
    %v3572 = vunpack.c.h.b16 %v2983
    %v3573 = vunpack.c.l.b16 %v2984
    %v3574 = vunpack.c.h.b16 %v2984
    %v3575 = vunpack.c.l.b16 %v2985
    %v3576 = vunpack.c.h.b16 %v2985
    %v3577 = vunpack.c.l.b16 %v2986
    %v3578 = vunpack.c.h.b16 %v2986
    %v3579 = vunpack.c.l.b16 %v2987
    %v3580 = vunpack.c.h.b16 %v2987
    %v3581 = vunpack.c.l.b16 %v2988
    %v3582 = vunpack.c.h.b16 %v2988
    %v3583 = vunpack.c.l.b16 %v2989
    %v3584 = vunpack.c.h.b16 %v2989
    %v3585 = vunpack.c.l.b16 %v2990
    %v3586 = vunpack.c.h.b16 %v2990
    %v3587 = vunpack.c.l.b16 %v2991
    %v3588 = vunpack.c.h.b16 %v2991
    %v3589 = vunpack.c.l.b16 %v2992
    %v3590 = vunpack.c.h.b16 %v2992
    %v3591 = vunpack.c.l.b16 %v2993
    %v3592 = vunpack.c.h.b16 %v2993
    %v3593 = vunpack.c.l.b16 %v2994
    %v3594 = vunpack.c.h.b16 %v2994
    %v3595 = vunpack.c.l.b16 %v2995
    %v3596 = vunpack.c.h.b16 %v2995
    %v3597 = vunpack.c.l.b16 %v2996
    %v3598 = vunpack.c.h.b16 %v2996
    %v3599 = vunpack.c.l.b16 %v2997
    %v3600 = vunpack.c.h.b16 %v2997
    %v3601 = vunpack.c.l.b16 %v2998
    %v3602 = vunpack.c.h.b16 %v2998
    %v3603 = vunpack.c.l.b16 %v2999
    %v3604 = vunpack.c.h.b16 %v2999
    %v3605 = vunpack.c.l.b16 %v3000
    %v3606 = vunpack.c.h.b16 %v3000
    %v3607 = vunpack.c.l.b16 %v3001
    %v3608 = vunpack.c.h.b16 %v3001
    %v3609 = vunpack.c.l.b16 %v3002
    %v3610 = vunpack.c.h.b16 %v3002
    %v3611 = vunpack.c.l.b16 %v3003
    %v3612 = vunpack.c.h.b16 %v3003
    %v3613 = vunpack.c.l.b16 %v3004
    %v3614 = vunpack.c.h.b16 %v3004
    %v3615 = vunpack.c.l.b16 %v3005
    %v3616 = vunpack.c.h.b16 %v3005
    %v3617 = vunpack.c.l.b16 %v3006
    %v3618 = vunpack.c.h.b16 %v3006
    %v3619 = vunpack.c.l.b16 %v3007
    %v3620 = vunpack.c.h.b16 %v3007
    %v3621 = vunpack.c.l.b16 %v3008
    %v3622 = vunpack.c.h.b16 %v3008
    %v3623 = vunpack.c.l.b16 %v3009
    %v3624 = vunpack.c.h.b16 %v3009
    %v3625 = vunpack.c.l.b16 %v3010
    %v3626 = vunpack.c.h.b16 %v3010
    %v3627 = vunpack.c.l.b16 %v3011
    %v3628 = vunpack.c.h.b16 %v3011
    %v3629 = vunpack.c.l.b16 %v3012
    %v3630 = vunpack.c.h.b16 %v3012
    %v3631 = vunpack.c.l.b16 %v3013
    %v3632 = vunpack.c.h.b16 %v3013
    %v3633 = vunpack.c.l.b16 %v3014
    %v3634 = vunpack.c.h.b16 %v3014
    %v3635 = vunpack.c.l.b16 %v3015
    %v3636 = vunpack.c.h.b16 %v3015
    %v3637 = vunpack.c.l.b16 %v3016
    %v3638 = vunpack.c.h.b16 %v3016
    %v3639 = vunpack.c.l.b16 %v3017
    %v3640 = vunpack.c.h.b16 %v3017
    %v3641 = vunpack.c.l.b16 %v3018
    %v3642 = vunpack.c.h.b16 %v3018
    %v3643 = vunpack.c.l.b16 %v3019
    %v3644 = vunpack.c.h.b16 %v3019
    %v3645 = vunpack.c.l.b16 %v3020
    %v3646 = vunpack.c.h.b16 %v3020
    %v3647 = vunpack.c.l.b16 %v3021
    %v3648 = vunpack.c.h.b16 %v3021
    %v3649 = vunpack.c.l.b16 %v3022
    %v3650 = vunpack.c.h.b16 %v3022
    %v3651 = vunpack.c.l.b16 %v3023
    %v3652 = vunpack.c.h.b16 %v3023
    %v3653 = vunpack.c.l.b16 %v3024
    %v3654 = vunpack.c.h.b16 %v3024
    %v3655 = vunpack.c.l.b16 %v3025
    %v3656 = vunpack.c.h.b16 %v3025
    %v3657 = vunpack.c.l.b16 %v3026
    %v3658 = vunpack.c.h.b16 %v3026
    %v3659 = vunpack.c.l.b16 %v3027
    %v3660 = vunpack.c.h.b16 %v3027
    %v3661 = vunpack.c.l.b16 %v3028
    %v3662 = vunpack.c.h.b16 %v3028
    %v3663 = vunpack.c.l.b16 %v3029
    %v3664 = vunpack.c.h.b16 %v3029
    %v3665 = vunpack.c.l.b16 %v3030
    %v3666 = vunpack.c.h.b16 %v3030
    %v3667 = vunpack.c.l.b16 %v3031
    %v3668 = vunpack.c.h.b16 %v3031
    %v3669 = vunpack.c.l.b16 %v3032
    %v3670 = vunpack.c.h.b16 %v3032
    %v3671 = vunpack.c.l.b16 %v3033
    %v3672 = vunpack.c.h.b16 %v3033
    %v3673 = vunpack.c.l.b16 %v3034
    %v3674 = vunpack.c.h.b16 %v3034
    %v3675 = vunpack.c.l.b16 %v3035
    %v3676 = vunpack.c.h.b16 %v3035
    %v3677 = vunpack.c.l.b16 %v3036
    %v3678 = vunpack.c.h.b16 %v3036
    %v3679 = vunpack.c.l.b16 %v3037
    %v3680 = vunpack.c.h.b16 %v3037
    %v3681 = vunpack.c.l.b16 %v3038
    %v3682 = vunpack.c.h.b16 %v3038
    %v3683 = vunpack.c.l.b16 %v3039
    %v3684 = vunpack.c.h.b16 %v3039
    %v3685 = vunpack.c.l.b16 %v3040
    %v3686 = vunpack.c.h.b16 %v3040
    %v3687 = vunpack.c.l.b16 %v3041
    %v3688 = vunpack.c.h.b16 %v3041
    %v3689 = vunpack.c.l.b16 %v3042
    %v3690 = vunpack.c.h.b16 %v3042
    %v3691 = vunpack.c.l.b16 %v3043
    %v3692 = vunpack.c.h.b16 %v3043
    %v3693 = vunpack.c.l.b16 %v3044
    %v3694 = vunpack.c.h.b16 %v3044
    %v3695 = vunpack.c.l.b16 %v3045
    %v3696 = vunpack.c.h.b16 %v3045
    %v3697 = vunpack.c.l.b16 %v3046
    %v3698 = vunpack.c.h.b16 %v3046
    %v3699 = vunpack.c.l.b16 %v3047
    %v3700 = vunpack.c.h.b16 %v3047
    %v3701 = vunpack.c.l.b16 %v3048
    %v3702 = vunpack.c.h.b16 %v3048
    %v3703 = vunpack.c.l.b16 %v3049
    %v3704 = vunpack.c.h.b16 %v3049
    %v3705 = vunpack.c.l.b16 %v3050
    %v3706 = vunpack.c.h.b16 %v3050
    %v3707 = vunpack.c.l.b16 %v3051
    %v3708 = vunpack.c.h.b16 %v3051
    %v3709 = vunpack.c.l.b16 %v3052
    %v3710 = vunpack.c.h.b16 %v3052
    %v3711 = vunpack.c.l.b16 %v3053
    %v3712 = vunpack.c.h.b16 %v3053
    %v3713 = vunpack.c.l.b16 %v3054
    %v3714 = vunpack.c.h.b16 %v3054
    %v3715 = vunpack.c.l.b16 %v3055
    %v3716 = vunpack.c.h.b16 %v3055
    %v3717 = vunpack.c.l.b16 %v3056
    %v3718 = vunpack.c.h.b16 %v3056
    %v3719 = vunpack.c.l.b16 %v3057
    %v3720 = vunpack.c.h.b16 %v3057
    %v3721 = vunpack.c.l.b16 %v3058
    %v3722 = vunpack.c.h.b16 %v3058
    %v3723 = vunpack.c.l.b16 %v3059
    %v3724 = vunpack.c.h.b16 %v3059
    %v3725 = vunpack.c.l.b16 %v3060
    %v3726 = vunpack.c.h.b16 %v3060
    %v3727 = vunpack.c.l.b16 %v3061
    %v3728 = vunpack.c.h.b16 %v3061
    %v3729 = vunpack.c.l.b16 %v3062
    %v3730 = vunpack.c.h.b16 %v3062
    %v3731 = vunpack.c.l.b16 %v3063
    %v3732 = vunpack.c.h.b16 %v3063
    %v3733 = vunpack.c.l.b16 %v3064
    %v3734 = vunpack.c.h.b16 %v3064
    %v3735 = vunpack.c.l.b16 %v3065
    %v3736 = vunpack.c.h.b16 %v3065
    %v3737 = vunpack.c.l.b16 %v3066
    %v3738 = vunpack.c.h.b16 %v3066
    %v3739 = vunpack.c.l.b16 %v3067
    %v3740 = vunpack.c.h.b16 %v3067
    %v3741 = vunpack.c.l.b16 %v3068
    %v3742 = vunpack.c.h.b16 %v3068
    %v3743 = vunpack.c.l.b16 %v3069
    %v3744 = vunpack.c.h.b16 %v3069
    %v3745 = vunpack.c.l.b16 %v3070
    %v3746 = vunpack.c.h.b16 %v3070
    %v3747 = vunpack.c.l.b16 %v3071
    %v3748 = vunpack.c.h.b16 %v3071
    %v3749 = vunpack.c.l.b16 %v3072
    %v3750 = vunpack.c.h.b16 %v3072
    %v3751 = vunpack.c.l.b16 %v3073
    %v3752 = vunpack.c.h.b16 %v3073
    %v3753 = vunpack.c.l.b16 %v3074
    %v3754 = vunpack.c.h.b16 %v3074
    %v3755 = vunpack.c.l.b16 %v3075
    %v3756 = vunpack.c.h.b16 %v3075
    %v3757 = vunpack.c.l.b16 %v3076
    %v3758 = vunpack.c.h.b16 %v3076
    %v3759 = vunpack.c.l.b16 %v3077
    %v3760 = vunpack.c.h.b16 %v3077
    %v3761 = vunpack.c.l.b16 %v3078
    %v3762 = vunpack.c.h.b16 %v3078
    %v3763 = vunpack.c.l.b16 %v3079
    %v3764 = vunpack.c.h.b16 %v3079
    %v3765 = vunpack.c.l.b16 %v3080
    %v3766 = vunpack.c.h.b16 %v3080
    %v3767 = vunpack.c.l.b16 %v3081
    %v3768 = vunpack.c.h.b16 %v3081
    %v3769 = vunpack.c.l.b16 %v3082
    %v3770 = vunpack.c.h.b16 %v3082
    %v3771 = vunpack.c.l.b16 %v3083
    %v3772 = vunpack.c.h.b16 %v3083
    %v3773 = vunpack.c.l.b16 %v3084
    %v3774 = vunpack.c.h.b16 %v3084
    %v3775 = vunpack.c.l.b16 %v3085
    %v3776 = vunpack.c.h.b16 %v3085
    %v3777 = vunpack.c.l.b16 %v3086
    %v3778 = vunpack.c.h.b16 %v3086
    %v3779 = vunpack.c.l.b16 %v3087
    %v3780 = vunpack.c.h.b16 %v3087
    %v3781 = vunpack.c.l.b16 %v3088
    %v3782 = vunpack.c.h.b16 %v3088
    %v3783 = vunpack.c.l.b16 %v3089
    %v3784 = vunpack.c.h.b16 %v3089
    %v3785 = vunpack.c.l.b16 %v3090
    %v3786 = vunpack.c.h.b16 %v3090
    %v3787 = vunpack.c.l.b16 %v3091
    %v3788 = vunpack.c.h.b16 %v3091
    %v3789 = vunpack.c.l.b16 %v3092
    %v3790 = vunpack.c.h.b16 %v3092
    %v3791 = vunpack.c.l.b16 %v3093
    %v3792 = vunpack.c.h.b16 %v3093
    %v3793 = vunpack.c.l.b16 %v3094
    %v3794 = vunpack.c.h.b16 %v3094
    %v3795 = vunpack.c.l.b16 %v3095
    %v3796 = vunpack.c.h.b16 %v3095
    %v3797 = vunpack.c.l.b16 %v3096
    %v3798 = vunpack.c.h.b16 %v3096
    %v3799 = vunpack.c.l.b16 %v3097
    %v3800 = vunpack.c.h.b16 %v3097
    %v3801 = vunpack.c.l.b16 %v3098
    %v3802 = vunpack.c.h.b16 %v3098
    %v3803 = vunpack.c.l.b16 %v3099
    %v3804 = vunpack.c.h.b16 %v3099
    %v3805 = vunpack.c.l.b16 %v3100
    %v3806 = vunpack.c.h.b16 %v3100
    %v3807 = vunpack.c.l.b16 %v3101
    %v3808 = vunpack.c.h.b16 %v3101
    %v3809 = vunpack.c.l.b16 %v3102
    %v3810 = vunpack.c.h.b16 %v3102
    %v3811 = vunpack.c.l.b16 %v3103
    %v3812 = vunpack.c.h.b16 %v3103
    %v3813 = vunpack.c.l.b16 %v3104
    %v3814 = vunpack.c.h.b16 %v3104
    %v3815 = vunpack.c.l.b16 %v3105
    %v3816 = vunpack.c.h.b16 %v3105
    %v3817 = vunpack.c.l.b16 %v3106
    %v3818 = vunpack.c.h.b16 %v3106
    %v3819 = vunpack.c.l.b16 %v3107
    %v3820 = vunpack.c.h.b16 %v3107
    %v3821 = vunpack.c.l.b16 %v3108
    %v3822 = vunpack.c.h.b16 %v3108
    %v3823 = vunpack.c.l.b16 %v3109
    %v3824 = vunpack.c.h.b16 %v3109
    %v3825 = vunpack.c.l.b16 %v3110
    %v3826 = vunpack.c.h.b16 %v3110
    %v3827 = vunpack.c.l.b16 %v3111
    %v3828 = vunpack.c.h.b16 %v3111
    %v3829 = vunpack.c.l.b16 %v3112
    %v3830 = vunpack.c.h.b16 %v3112
    %v3831 = vunpack.c.l.b16 %v3113
    %v3832 = vunpack.c.h.b16 %v3113
    %v3833 = vunpack.c.l.b16 %v3114
    %v3834 = vunpack.c.h.b16 %v3114
    %v3835 = vunpack.c.l.b16 %v3115
    %v3836 = vunpack.c.h.b16 %v3115
    %v3837 = vunpack.c.l.b16 %v3116
    %v3838 = vunpack.c.h.b16 %v3116
    %v3839 = vunpack.c.l.b16 %v3117
    %v3840 = vunpack.c.h.b16 %v3117
    %v3841 = vunpack.c.l.b16 %v3118
    %v3842 = vunpack.c.h.b16 %v3118
    %v3843 = vunpack.c.l.b16 %v3119
    %v3844 = vunpack.c.h.b16 %v3119
    %v3845 = vunpack.c.l.b16 %v3120
    %v3846 = vunpack.c.h.b16 %v3120
    %v3847 = vunpack.c.l.b16 %v3121
    %v3848 = vunpack.c.h.b16 %v3121
    %v3849 = vunpack.c.l.b16 %v3122
    %v3850 = vunpack.c.h.b16 %v3122
    %v3851 = vunpack.c.l.b16 %v3123
    %v3852 = vunpack.c.h.b16 %v3123
    %v3853 = vunpack.c.l.b16 %v3124
    %v3854 = vunpack.c.h.b16 %v3124
    %v3855 = vunpack.c.l.b16 %v3125
    %v3856 = vunpack.c.h.b16 %v3125
    %v3857 = vunpack.c.l.b16 %v3126
    %v3858 = vunpack.c.h.b16 %v3126
    %v3859 = vunpack.c.l.b16 %v3127
    %v3860 = vunpack.c.h.b16 %v3127
    %v3861 = vunpack.c.l.b16 %v3128
    %v3862 = vunpack.c.h.b16 %v3128
    %v3863 = vunpack.c.l.b16 %v3129
    %v3864 = vunpack.c.h.b16 %v3129
    %v3865 = vunpack.c.l.b16 %v3130
    %v3866 = vunpack.c.h.b16 %v3130
    %v3867 = vunpack.c.l.b16 %v3131
    %v3868 = vunpack.c.h.b16 %v3131
    %v3869 = vunpack.c.l.b16 %v3132
    %v3870 = vunpack.c.h.b16 %v3132
    %v3871 = vunpack.c.l.b16 %v3133
    %v3872 = vunpack.c.h.b16 %v3133
    %v3873 = vunpack.c.l.b16 %v3134
    %v3874 = vunpack.c.h.b16 %v3134
    %v3875 = vunpack.c.l.b16 %v3135
    %v3876 = vunpack.c.h.b16 %v3135
    %v3877 = vunpack.c.l.b16 %v3136
    %v3878 = vunpack.c.h.b16 %v3136
    %v3879 = vunpack.c.l.b16 %v3137
    %v3880 = vunpack.c.h.b16 %v3137
    %v3881 = vunpack.c.l.b16 %v3138
    %v3882 = vunpack.c.h.b16 %v3138
    %v3883 = vunpack.c.l.b16 %v3139
    %v3884 = vunpack.c.h.b16 %v3139
    %v3885 = vunpack.c.l.b16 %v3140
    %v3886 = vunpack.c.h.b16 %v3140
    %v3887 = vunpack.c.l.b16 %v3141
    %v3888 = vunpack.c.h.b16 %v3141
    %v3889 = vunpack.c.l.b16 %v3142
    %v3890 = vunpack.c.h.b16 %v3142
    %v3891 = vunpack.c.l.b16 %v3143
    %v3892 = vunpack.c.h.b16 %v3143
    %v3893 = vunpack.c.l.b16 %v3144
    %v3894 = vunpack.c.h.b16 %v3144
    %v3895 = vunpack.c.l.b16 %v3145
    %v3896 = vunpack.c.h.b16 %v3145
    %v3897 = vunpack.c.l.b16 %v3146
    %v3898 = vunpack.c.h.b16 %v3146
    %v3899 = vunpack.c.l.b16 %v3147
    %v3900 = vunpack.c.h.b16 %v3147
    %v3901 = vunpack.c.l.b16 %v3148
    %v3902 = vunpack.c.h.b16 %v3148
    %v3903 = vunpack.c.l.b16 %v3149
    %v3904 = vunpack.c.h.b16 %v3149
    %v3905 = vunpack.c.l.b16 %v3150
    %v3906 = vunpack.c.h.b16 %v3150
    %v3907 = vunpack.c.l.b16 %v3151
    %v3908 = vunpack.c.h.b16 %v3151
    %v3909 = vunpack.c.l.b16 %v3152
    %v3910 = vunpack.c.h.b16 %v3152
    %v3911 = vunpack.c.l.b16 %v3153
    %v3912 = vunpack.c.h.b16 %v3153
    %v3913 = vunpack.c.l.b16 %v3154
    %v3914 = vunpack.c.h.b16 %v3154
    %v3915 = vunpack.c.l.b16 %v3155
    %v3916 = vunpack.c.h.b16 %v3155
    %v3917 = vunpack.c.l.b16 %v3156
    %v3918 = vunpack.c.h.b16 %v3156
    %v3919 = vunpack.c.l.b16 %v3157
    %v3920 = vunpack.c.h.b16 %v3157
    %v3921 = vunpack.c.l.b16 %v3158
    %v3922 = vunpack.c.h.b16 %v3158
    %v3923 = vunpack.c.l.b16 %v3159
    %v3924 = vunpack.c.h.b16 %v3159
    %v3925 = vunpack.c.l.b16 %v3160
    %v3926 = vunpack.c.h.b16 %v3160
    %v3927 = vunpack.c.l.b16 %v3161
    %v3928 = vunpack.c.h.b16 %v3161
    %v3929 = vunpack.c.l.b16 %v3162
    %v3930 = vunpack.c.h.b16 %v3162
    %v3931 = vunpack.c.l.b16 %v3163
    %v3932 = vunpack.c.h.b16 %v3163
    %v3933 = vunpack.c.l.b16 %v3164
    %v3934 = vunpack.c.h.b16 %v3164
    %v3935 = vunpack.c.l.b16 %v3165
    %v3936 = vunpack.c.h.b16 %v3165
    %v3937 = vunpack.c.l.b16 %v3166
    %v3938 = vunpack.c.h.b16 %v3166
    %v3939 = vunpack.c.l.b16 %v3167
    %v3940 = vunpack.c.h.b16 %v3167
    %v3941 = vunpack.c.l.b16 %v3168
    %v3942 = vunpack.c.h.b16 %v3168
    %v3943 = vunpack.c.l.b16 %v3169
    %v3944 = vunpack.c.h.b16 %v3169
    %v3945 = vunpack.c.l.b16 %v3170
    %v3946 = vunpack.c.h.b16 %v3170
    %v3947 = vunpack.c.l.b16 %v3171
    %v3948 = vunpack.c.h.b16 %v3171
    %v3949 = vunpack.c.l.b16 %v3172
    %v3950 = vunpack.c.h.b16 %v3172
    %v3951 = vunpack.c.l.b16 %v3173
    %v3952 = vunpack.c.h.b16 %v3173
    %v3953 = vunpack.c.l.b16 %v3174
    %v3954 = vunpack.c.h.b16 %v3174
    %v3955 = vunpack.c.l.b16 %v3175
    %v3956 = vunpack.c.h.b16 %v3175
    %v3957 = vunpack.c.l.b16 %v3176
    %v3958 = vunpack.c.h.b16 %v3176
    %v3959 = vunpack.c.l.b16 %v3177
    %v3960 = vunpack.c.h.b16 %v3177
    %v3961 = vunpack.c.l.b16 %v3178
    %v3962 = vunpack.c.h.b16 %v3178
    %v3963 = vunpack.c.l.b16 %v3179
    %v3964 = vunpack.c.h.b16 %v3179
    %v3965 = vunpack.c.l.b16 %v3180
    %v3966 = vunpack.c.h.b16 %v3180
    %v3967 = vunpack.c.l.b16 %v3181
    %v3968 = vunpack.c.h.b16 %v3181
    %v3969 = vunpack.c.l.b16 %v3182
    %v3970 = vunpack.c.h.b16 %v3182
    %v3971 = vunpack.c.l.b16 %v3183
    %v3972 = vunpack.c.h.b16 %v3183
    %v3973 = vunpack.c.l.b16 %v3184
    %v3974 = vunpack.c.h.b16 %v3184
    %v3975 = vunpack.c.l.b16 %v3185
    %v3976 = vunpack.c.h.b16 %v3185
    %v3977 = vunpack.c.l.b16 %v3186
    %v3978 = vunpack.c.h.b16 %v3186
    %v3979 = vunpack.c.l.b16 %v3187
    %v3980 = vunpack.c.h.b16 %v3187
    %v3981 = vunpack.c.l.b16 %v3188
    %v3982 = vunpack.c.h.b16 %v3188
    %v3983 = vunpack.c.l.b16 %v3189
    %v3984 = vunpack.c.h.b16 %v3189
    %v3985 = vunpack.c.l.b16 %v3190
    %v3986 = vunpack.c.h.b16 %v3190
    %v3987 = vunpack.c.l.b16 %v3191
    %v3988 = vunpack.c.h.b16 %v3191
    %v3989 = vunpack.c.l.b16 %v3192
    %v3990 = vunpack.c.h.b16 %v3192
    %v3991 = vunpack.c.l.b16 %v3193
    %v3992 = vunpack.c.h.b16 %v3193
    %v3993 = vunpack.c.l.b16 %v3194
    %v3994 = vunpack.c.h.b16 %v3194
    %v3995 = vunpack.c.l.b16 %v3195
    %v3996 = vunpack.c.h.b16 %v3195
    %v3997 = vunpack.c.l.b16 %v3196
    %v3998 = vunpack.c.h.b16 %v3196
    %v3999 = vunpack.c.l.b16 %v3197
    %v4000 = vunpack.c.h.b16 %v3197
    %v4001 = vunpack.c.l.b16 %v3198
    %v4002 = vunpack.c.h.b16 %v3198
    %v4003 = vunpack.c.l.b16 %v3199
    %v4004 = vunpack.c.h.b16 %v3199
    %v4005 = vunpack.c.l.b16 %v3200
    %v4006 = vunpack.c.h.b16 %v3200
    %v4007 = vunpack.c.l.b16 %v3201
    %v4008 = vunpack.c.h.b16 %v3201
    %v4009 = vunpack.c.l.b16 %v3202
    %v4010 = vunpack.c.h.b16 %v3202
    %v4011 = vunpack.c.l.b16 %v3203
    %v4012 = vunpack.c.h.b16 %v3203
    %v4013 = vunpack.c.l.b16 %v3204
    %v4014 = vunpack.c.h.b16 %v3204
    %v4015 = vpack.c.b16 %v3511, %v3503
    %v4016 = vpack.c.b16 %v3512, %v3504
    %v4017 = vpack.c.b16 %v3513, %v3505
    %v4018 = vpack.c.b16 %v3514, %v3506
    %v4019 = vpack.c.b16 %v3515, %v3507
    %v4020 = vpack.c.b16 %v3516, %v3508
    %v4021 = vpack.c.b16 %v3517, %v3509
    %v4022 = vpack.c.b16 %v3518, %v3510
    %v4023 = vpack.c.b16 %v3527, %v3519
    %v4024 = vpack.c.b16 %v3528, %v3520
    %v4025 = vpack.c.b16 %v3529, %v3521
    %v4026 = vpack.c.b16 %v3530, %v3522
    %v4027 = vpack.c.b16 %v3531, %v3523
    %v4028 = vpack.c.b16 %v3532, %v3524
    %v4029 = vpack.c.b16 %v3533, %v3525
    %v4030 = vpack.c.b16 %v3534, %v3526
    %v4031 = vpack.c.b16 %v3543, %v3535
    %v4032 = vpack.c.b16 %v3544, %v3536
    %v4033 = vpack.c.b16 %v3545, %v3537
    %v4034 = vpack.c.b16 %v3546, %v3538
    %v4035 = vpack.c.b16 %v3547, %v3539
    %v4036 = vpack.c.b16 %v3548, %v3540
    %v4037 = vpack.c.b16 %v3549, %v3541
    %v4038 = vpack.c.b16 %v3550, %v3542
    %v4039 = vpack.c.b16 %v3559, %v3551
    %v4040 = vpack.c.b16 %v3560, %v3552
    %v4041 = vpack.c.b16 %v3561, %v3553
    %v4042 = vpack.c.b16 %v3562, %v3554
    %v4043 = vpack.c.b16 %v3563, %v3555
    %v4044 = vpack.c.b16 %v3564, %v3556
    %v4045 = vpack.c.b16 %v3565, %v3557
    %v4046 = vpack.c.b16 %v3566, %v3558
    %v4047 = vpack.c.b16 %v3575, %v3567
    %v4048 = vpack.c.b16 %v3576, %v3568
    %v4049 = vpack.c.b16 %v3577, %v3569
    %v4050 = vpack.c.b16 %v3578, %v3570
    %v4051 = vpack.c.b16 %v3579, %v3571
    %v4052 = vpack.c.b16 %v3580, %v3572
    %v4053 = vpack.c.b16 %v3581, %v3573
    %v4054 = vpack.c.b16 %v3582, %v3574
    %v4055 = vpack.c.b16 %v3591, %v3583
    %v4056 = vpack.c.b16 %v3592, %v3584
    %v4057 = vpack.c.b16 %v3593, %v3585
    %v4058 = vpack.c.b16 %v3594, %v3586
    %v4059 = vpack.c.b16 %v3595, %v3587
    %v4060 = vpack.c.b16 %v3596, %v3588
    %v4061 = vpack.c.b16 %v3597, %v3589
    %v4062 = vpack.c.b16 %v3598, %v3590
    %v4063 = vpack.c.b16 %v3607, %v3599
    %v4064 = vpack.c.b16 %v3608, %v3600
    %v4065 = vpack.c.b16 %v3609, %v3601
    %v4066 = vpack.c.b16 %v3610, %v3602
    %v4067 = vpack.c.b16 %v3611, %v3603
    %v4068 = vpack.c.b16 %v3612, %v3604
    %v4069 = vpack.c.b16 %v3613, %v3605
    %v4070 = vpack.c.b16 %v3614, %v3606
    %v4071 = vpack.c.b16 %v3623, %v3615
    %v4072 = vpack.c.b16 %v3624, %v3616
    %v4073 = vpack.c.b16 %v3625, %v3617
    %v4074 = vpack.c.b16 %v3626, %v3618
    %v4075 = vpack.c.b16 %v3627, %v3619
    %v4076 = vpack.c.b16 %v3628, %v3620
    %v4077 = vpack.c.b16 %v3629, %v3621
    %v4078 = vpack.c.b16 %v3630, %v3622
    %v4079 = vpack.c.b16 %v3639, %v3631
    %v4080 = vpack.c.b16 %v3640, %v3632
    %v4081 = vpack.c.b16 %v3641, %v3633
    %v4082 = vpack.c.b16 %v3642, %v3634
    %v4083 = vpack.c.b16 %v3643, %v3635
    %v4084 = vpack.c.b16 %v3644, %v3636
    %v4085 = vpack.c.b16 %v3645, %v3637
    %v4086 = vpack.c.b16 %v3646, %v3638
    %v4087 = vpack.c.b16 %v3655, %v3647
    %v4088 = vpack.c.b16 %v3656, %v3648
    %v4089 = vpack.c.b16 %v3657, %v3649
    %v4090 = vpack.c.b16 %v3658, %v3650
    %v4091 = vpack.c.b16 %v3659, %v3651
    %v4092 = vpack.c.b16 %v3660, %v3652
    %v4093 = vpack.c.b16 %v3661, %v3653
    %v4094 = vpack.c.b16 %v3662, %v3654
    %v4095 = vpack.c.b16 %v3671, %v3663
    %v4096 = vpack.c.b16 %v3672, %v3664
    %v4097 = vpack.c.b16 %v3673, %v3665
    %v4098 = vpack.c.b16 %v3674, %v3666
    %v4099 = vpack.c.b16 %v3675, %v3667
    %v4100 = vpack.c.b16 %v3676, %v3668
    %v4101 = vpack.c.b16 %v3677, %v3669
    %v4102 = vpack.c.b16 %v3678, %v3670
    %v4103 = vpack.c.b16 %v3687, %v3679
    %v4104 = vpack.c.b16 %v3688, %v3680
    %v4105 = vpack.c.b16 %v3689, %v3681
    %v4106 = vpack.c.b16 %v3690, %v3682
    %v4107 = vpack.c.b16 %v3691, %v3683
    %v4108 = vpack.c.b16 %v3692, %v3684
    %v4109 = vpack.c.b16 %v3693, %v3685
    %v4110 = vpack.c.b16 %v3694, %v3686
    %v4111 = vpack.c.b16 %v3703, %v3695
    %v4112 = vpack.c.b16 %v3704, %v3696
    %v4113 = vpack.c.b16 %v3705, %v3697
    %v4114 = vpack.c.b16 %v3706, %v3698
    %v4115 = vpack.c.b16 %v3707, %v3699
    %v4116 = vpack.c.b16 %v3708, %v3700
    %v4117 = vpack.c.b16 %v3709, %v3701
    %v4118 = vpack.c.b16 %v3710, %v3702
    %v4119 = vpack.c.b16 %v3719, %v3711
    %v4120 = vpack.c.b16 %v3720, %v3712
    %v4121 = vpack.c.b16 %v3721, %v3713
    %v4122 = vpack.c.b16 %v3722, %v3714
    %v4123 = vpack.c.b16 %v3723, %v3715
    %v4124 = vpack.c.b16 %v3724, %v3716
    %v4125 = vpack.c.b16 %v3725, %v3717
    %v4126 = vpack.c.b16 %v3726, %v3718
    %v4127 = vpack.c.b16 %v3735, %v3727
    %v4128 = vpack.c.b16 %v3736, %v3728
    %v4129 = vpack.c.b16 %v3737, %v3729
    %v4130 = vpack.c.b16 %v3738, %v3730
    %v4131 = vpack.c.b16 %v3739, %v3731
    %v4132 = vpack.c.b16 %v3740, %v3732
    %v4133 = vpack.c.b16 %v3741, %v3733
    %v4134 = vpack.c.b16 %v3742, %v3734
    %v4135 = vpack.c.b16 %v3751, %v3743
    %v4136 = vpack.c.b16 %v3752, %v3744
    %v4137 = vpack.c.b16 %v3753, %v3745
    %v4138 = vpack.c.b16 %v3754, %v3746
    %v4139 = vpack.c.b16 %v3755, %v3747
    %v4140 = vpack.c.b16 %v3756, %v3748
    %v4141 = vpack.c.b16 %v3757, %v3749
    %v4142 = vpack.c.b16 %v3758, %v3750
    %v4143 = vpack.c.b16 %v3767, %v3759
    %v4144 = vpack.c.b16 %v3768, %v3760
    %v4145 = vpack.c.b16 %v3769, %v3761
    %v4146 = vpack.c.b16 %v3770, %v3762
    %v4147 = vpack.c.b16 %v3771, %v3763
    %v4148 = vpack.c.b16 %v3772, %v3764
    %v4149 = vpack.c.b16 %v3773, %v3765
    %v4150 = vpack.c.b16 %v3774, %v3766
    %v4151 = vpack.c.b16 %v3783, %v3775
    %v4152 = vpack.c.b16 %v3784, %v3776
    %v4153 = vpack.c.b16 %v3785, %v3777
    %v4154 = vpack.c.b16 %v3786, %v3778
    %v4155 = vpack.c.b16 %v3787, %v3779
    %v4156 = vpack.c.b16 %v3788, %v3780
    %v4157 = vpack.c.b16 %v3789, %v3781
    %v4158 = vpack.c.b16 %v3790, %v3782
    %v4159 = vpack.c.b16 %v3799, %v3791
    %v4160 = vpack.c.b16 %v3800, %v3792
    %v4161 = vpack.c.b16 %v3801, %v3793
    %v4162 = vpack.c.b16 %v3802, %v3794
    %v4163 = vpack.c.b16 %v3803, %v3795
    %v4164 = vpack.c.b16 %v3804, %v3796
    %v4165 = vpack.c.b16 %v3805, %v3797
    %v4166 = vpack.c.b16 %v3806, %v3798
    %v4167 = vpack.c.b16 %v3815, %v3807
    %v4168 = vpack.c.b16 %v3816, %v3808
    %v4169 = vpack.c.b16 %v3817, %v3809
    %v4170 = vpack.c.b16 %v3818, %v3810
    %v4171 = vpack.c.b16 %v3819, %v3811
    %v4172 = vpack.c.b16 %v3820, %v3812
    %v4173 = vpack.c.b16 %v3821, %v3813
    %v4174 = vpack.c.b16 %v3822, %v3814
    %v4175 = vpack.c.b16 %v3831, %v3823
    %v4176 = vpack.c.b16 %v3832, %v3824
    %v4177 = vpack.c.b16 %v3833, %v3825
    %v4178 = vpack.c.b16 %v3834, %v3826
    %v4179 = vpack.c.b16 %v3835, %v3827
    %v4180 = vpack.c.b16 %v3836, %v3828
    %v4181 = vpack.c.b16 %v3837, %v3829
    %v4182 = vpack.c.b16 %v3838, %v3830
    %v4183 = vpack.c.b16 %v3847, %v3839
    %v4184 = vpack.c.b16 %v3848, %v3840
    %v4185 = vpack.c.b16 %v3849, %v3841
    %v4186 = vpack.c.b16 %v3850, %v3842
    %v4187 = vpack.c.b16 %v3851, %v3843
    %v4188 = vpack.c.b16 %v3852, %v3844
    %v4189 = vpack.c.b16 %v3853, %v3845
    %v4190 = vpack.c.b16 %v3854, %v3846
    %v4191 = vpack.c.b16 %v3863, %v3855
    %v4192 = vpack.c.b16 %v3864, %v3856
    %v4193 = vpack.c.b16 %v3865, %v3857
    %v4194 = vpack.c.b16 %v3866, %v3858
    %v4195 = vpack.c.b16 %v3867, %v3859
    %v4196 = vpack.c.b16 %v3868, %v3860
    %v4197 = vpack.c.b16 %v3869, %v3861
    %v4198 = vpack.c.b16 %v3870, %v3862
    %v4199 = vpack.c.b16 %v3879, %v3871
    %v4200 = vpack.c.b16 %v3880, %v3872
    %v4201 = vpack.c.b16 %v3881, %v3873
    %v4202 = vpack.c.b16 %v3882, %v3874
    %v4203 = vpack.c.b16 %v3883, %v3875
    %v4204 = vpack.c.b16 %v3884, %v3876
    %v4205 = vpack.c.b16 %v3885, %v3877
    %v4206 = vpack.c.b16 %v3886, %v3878
    %v4207 = vpack.c.b16 %v3895, %v3887
    %v4208 = vpack.c.b16 %v3896, %v3888
    %v4209 = vpack.c.b16 %v3897, %v3889
    %v4210 = vpack.c.b16 %v3898, %v3890
    %v4211 = vpack.c.b16 %v3899, %v3891
    %v4212 = vpack.c.b16 %v3900, %v3892
    %v4213 = vpack.c.b16 %v3901, %v3893
    %v4214 = vpack.c.b16 %v3902, %v3894
    %v4215 = vpack.c.b16 %v3911, %v3903
    %v4216 = vpack.c.b16 %v3912, %v3904
    %v4217 = vpack.c.b16 %v3913, %v3905
    %v4218 = vpack.c.b16 %v3914, %v3906
    %v4219 = vpack.c.b16 %v3915, %v3907
    %v4220 = vpack.c.b16 %v3916, %v3908
    %v4221 = vpack.c.b16 %v3917, %v3909
    %v4222 = vpack.c.b16 %v3918, %v3910
    %v4223 = vpack.c.b16 %v3927, %v3919
    %v4224 = vpack.c.b16 %v3928, %v3920
    %v4225 = vpack.c.b16 %v3929, %v3921
    %v4226 = vpack.c.b16 %v3930, %v3922
    %v4227 = vpack.c.b16 %v3931, %v3923
    %v4228 = vpack.c.b16 %v3932, %v3924
    %v4229 = vpack.c.b16 %v3933, %v3925
    %v4230 = vpack.c.b16 %v3934, %v3926
    %v4231 = vpack.c.b16 %v3943, %v3935
    %v4232 = vpack.c.b16 %v3944, %v3936
    %v4233 = vpack.c.b16 %v3945, %v3937
    %v4234 = vpack.c.b16 %v3946, %v3938
    %v4235 = vpack.c.b16 %v3947, %v3939
    %v4236 = vpack.c.b16 %v3948, %v3940
    %v4237 = vpack.c.b16 %v3949, %v3941
    %v4238 = vpack.c.b16 %v3950, %v3942
    %v4239 = vpack.c.b16 %v3959, %v3951
    %v4240 = vpack.c.b16 %v3960, %v3952
    %v4241 = vpack.c.b16 %v3961, %v3953
    %v4242 = vpack.c.b16 %v3962, %v3954
    %v4243 = vpack.c.b16 %v3963, %v3955
    %v4244 = vpack.c.b16 %v3964, %v3956
    %v4245 = vpack.c.b16 %v3965, %v3957
    %v4246 = vpack.c.b16 %v3966, %v3958
    %v4247 = vpack.c.b16 %v3975, %v3967
    %v4248 = vpack.c.b16 %v3976, %v3968
    %v4249 = vpack.c.b16 %v3977, %v3969
    %v4250 = vpack.c.b16 %v3978, %v3970
    %v4251 = vpack.c.b16 %v3979, %v3971
    %v4252 = vpack.c.b16 %v3980, %v3972
    %v4253 = vpack.c.b16 %v3981, %v3973
    %v4254 = vpack.c.b16 %v3982, %v3974
    %v4255 = vpack.c.b16 %v3991, %v3983
    %v4256 = vpack.c.b16 %v3992, %v3984
    %v4257 = vpack.c.b16 %v3993, %v3985
    %v4258 = vpack.c.b16 %v3994, %v3986
    %v4259 = vpack.c.b16 %v3995, %v3987
    %v4260 = vpack.c.b16 %v3996, %v3988
    %v4261 = vpack.c.b16 %v3997, %v3989
    %v4262 = vpack.c.b16 %v3998, %v3990
    %v4263 = vpack.c.b16 %v4007, %v3999
    %v4264 = vpack.c.b16 %v4008, %v4000
    %v4265 = vpack.c.b16 %v4009, %v4001
    %v4266 = vpack.c.b16 %v4010, %v4002
    %v4267 = vpack.c.b16 %v4011, %v4003
    %v4268 = vpack.c.b16 %v4012, %v4004
    %v4269 = vpack.c.b16 %v4013, %v4005
    %v4270 = vpack.c.b16 %v4014, %v4006
    %4527 = vmatprep.subr.bf16.mxu0 %v4016
    %4528 = vmatpush1.bf16.msra.mxu0 %v4015
    %4529 = vmatprep.subr.bf16.mxu0 %v4024
    %4530 = vmatpush1.bf16.msra.mxu0 %v4023
    %4531 = vmatprep.subr.bf16.mxu0 %v4032
    %4532 = vmatpush1.bf16.msra.mxu0 %v4031
    %4533 = vmatprep.subr.bf16.mxu0 %v4040
    %4534 = vmatpush1.bf16.msra.mxu0 %v4039
    %4535 = vmatprep.subr.bf16.mxu0 %v4048
    %4536 = vmatpush1.bf16.msra.mxu0 %v4047
    %4537 = vmatprep.subr.bf16.mxu0 %v4056
    %4538 = vmatpush1.bf16.msra.mxu0 %v4055
    %4539 = vmatprep.subr.bf16.mxu0 %v4064
    %4540 = vmatpush1.bf16.msra.mxu0 %v4063
    %4541 = vmatprep.subr.bf16.mxu0 %v4072
    %4542 = vmatpush1.bf16.msra.mxu0 %v4071
    %4543 = vmatprep.subr.bf16.mxu0 %v4080
    %4544 = vmatpush1.bf16.msra.mxu0 %v4079
    %4545 = vmatprep.subr.bf16.mxu0 %v4088
    %4546 = vmatpush1.bf16.msra.mxu0 %v4087
    %4547 = vmatprep.subr.bf16.mxu0 %v4096
    %4548 = vmatpush1.bf16.msra.mxu0 %v4095
    %4549 = vmatprep.subr.bf16.mxu0 %v4104
    %4550 = vmatpush1.bf16.msra.mxu0 %v4103
    %4551 = vmatprep.subr.bf16.mxu0 %v4112
    %4552 = vmatpush1.bf16.msra.mxu0 %v4111
    %4553 = vmatprep.subr.bf16.mxu0 %v4120
    %4554 = vmatpush1.bf16.msra.mxu0 %v4119
    %4555 = vmatprep.subr.bf16.mxu0 %v4128
    %4556 = vmatpush1.bf16.msra.mxu0 %v4127
    %4557 = vmatprep.subr.bf16.mxu0 %v4136
    %4558 = vmatpush1.bf16.msra.mxu0 %v4135
    %4559 = vmatprep.mubr.bf16.mxu0 %v2946
    %4560 = vmatmul.mubr.bf16.gmra.mrb[0].mxu0 %v2945
    %v4561 = vpop.f32.mrb[0].mxu0
    %v4562 = vadd.f32 %v3210, %v4561
    %v4563 = vpop.f32.mrb[0].mxu0
    %v4564 = vadd.f32 %v3214, %v4563
    %v4565 = vpop.f32.mrb[0].mxu0
    %v4566 = vpop.f32.mrb[0].mxu0
    %4567 = vdwg.mxu0
    %4568 = vmatprep.subr.bf16.mxu0 %v4144
    %4569 = vmatpush1.bf16.msra.mxu0 %v4143
    %4570 = vmatprep.subr.bf16.mxu0 %v4152
    %4571 = vmatpush1.bf16.msra.mxu0 %v4151
    %4572 = vmatprep.subr.bf16.mxu0 %v4160
    %4573 = vmatpush1.bf16.msra.mxu0 %v4159
    %4574 = vmatprep.subr.bf16.mxu0 %v4168
    %4575 = vmatpush1.bf16.msra.mxu0 %v4167
    %4576 = vmatprep.subr.bf16.mxu0 %v4176
    %4577 = vmatpush1.bf16.msra.mxu0 %v4175
    %4578 = vmatprep.subr.bf16.mxu0 %v4184
    %4579 = vmatpush1.bf16.msra.mxu0 %v4183
    %4580 = vmatprep.subr.bf16.mxu0 %v4192
    %4581 = vmatpush1.bf16.msra.mxu0 %v4191
    %4582 = vmatprep.subr.bf16.mxu0 %v4200
    %4583 = vmatpush1.bf16.msra.mxu0 %v4199
    %4584 = vmatprep.subr.bf16.mxu0 %v4208
    %4585 = vmatpush1.bf16.msra.mxu0 %v4207
    %4586 = vmatprep.subr.bf16.mxu0 %v4216
    %4587 = vmatpush1.bf16.msra.mxu0 %v4215
    %4588 = vmatprep.subr.bf16.mxu0 %v4224
    %4589 = vmatpush1.bf16.msra.mxu0 %v4223
    %4590 = vmatprep.subr.bf16.mxu0 %v4232
    %4591 = vmatpush1.bf16.msra.mxu0 %v4231
    %4592 = vmatprep.subr.bf16.mxu0 %v4240
    %4593 = vmatpush1.bf16.msra.mxu0 %v4239
    %4594 = vmatprep.subr.bf16.mxu0 %v4248
    %4595 = vmatpush1.bf16.msra.mxu0 %v4247
    %4596 = vmatprep.subr.bf16.mxu0 %v4256
    %4597 = vmatpush1.bf16.msra.mxu0 %v4255
    %4598 = vmatprep.subr.bf16.mxu0 %v4264
    %4599 = vmatpush1.bf16.msra.mxu0 %v4263
    %4600 = vmatprep.mubr.bf16.mxu0 %v2948
    %4601 = vmatmul.mubr.bf16.gmra.mrb[0].mxu0 %v2947
    %v4602 = vpop.f32.mrb[0].mxu0
    %v4603 = vadd.f32 %v4562, %v4602
    %v4604 = vpop.f32.mrb[0].mxu0
    %v4605 = vadd.f32 %v4564, %v4604
    %v4606 = vpop.f32.mrb[0].mxu0
    %v4607 = vpop.f32.mrb[0].mxu0
    %4608 = vdwg.mxu0
    %4609 = vmatprep.subr.bf16.mxu0 %v4018
    %4610 = vmatpush1.bf16.msra.mxu0 %v4017
    %4611 = vmatprep.subr.bf16.mxu0 %v4026
    %4612 = vmatpush1.bf16.msra.mxu0 %v4025
    %4613 = vmatprep.subr.bf16.mxu0 %v4034
    %4614 = vmatpush1.bf16.msra.mxu0 %v4033
    %4615 = vmatprep.subr.bf16.mxu0 %v4042
    %4616 = vmatpush1.bf16.msra.mxu0 %v4041
    %4617 = vmatprep.subr.bf16.mxu0 %v4050
    %4618 = vmatpush1.bf16.msra.mxu0 %v4049
    %4619 = vmatprep.subr.bf16.mxu0 %v4058
    %4620 = vmatpush1.bf16.msra.mxu0 %v4057
    %4621 = vmatprep.subr.bf16.mxu0 %v4066
    %4622 = vmatpush1.bf16.msra.mxu0 %v4065
    %4623 = vmatprep.subr.bf16.mxu0 %v4074
    %4624 = vmatpush1.bf16.msra.mxu0 %v4073
    %4625 = vmatprep.subr.bf16.mxu0 %v4082
    %4626 = vmatpush1.bf16.msra.mxu0 %v4081
    %4627 = vmatprep.subr.bf16.mxu0 %v4090
    %4628 = vmatpush1.bf16.msra.mxu0 %v4089
    %4629 = vmatprep.subr.bf16.mxu0 %v4098
    %4630 = vmatpush1.bf16.msra.mxu0 %v4097
    %4631 = vmatprep.subr.bf16.mxu0 %v4106
    %4632 = vmatpush1.bf16.msra.mxu0 %v4105
    %4633 = vmatprep.subr.bf16.mxu0 %v4114
    %4634 = vmatpush1.bf16.msra.mxu0 %v4113
    %4635 = vmatprep.subr.bf16.mxu0 %v4122
    %4636 = vmatpush1.bf16.msra.mxu0 %v4121
    %4637 = vmatprep.subr.bf16.mxu0 %v4130
    %4638 = vmatpush1.bf16.msra.mxu0 %v4129
    %4639 = vmatprep.subr.bf16.mxu0 %v4138
    %4640 = vmatpush1.bf16.msra.mxu0 %v4137
    %4641 = vmatprep.mubr.bf16.mxu0 %v2946
    %4642 = vmatmul.mubr.bf16.gmra.mrb[0].mxu0 %v2945
    %v4643 = vpop.f32.mrb[0].mxu0
    %v4644 = vadd.f32 %v3218, %v4643
    %v4645 = vpop.f32.mrb[0].mxu0
    %v4646 = vadd.f32 %v3222, %v4645
    %v4647 = vpop.f32.mrb[0].mxu0
    %v4648 = vpop.f32.mrb[0].mxu0
    %4649 = vdwg.mxu0
    %4650 = vmatprep.subr.bf16.mxu0 %v4146
    %4651 = vmatpush1.bf16.msra.mxu0 %v4145
    %4652 = vmatprep.subr.bf16.mxu0 %v4154
    %4653 = vmatpush1.bf16.msra.mxu0 %v4153
    %4654 = vmatprep.subr.bf16.mxu0 %v4162
    %4655 = vmatpush1.bf16.msra.mxu0 %v4161
    %4656 = vmatprep.subr.bf16.mxu0 %v4170
    %4657 = vmatpush1.bf16.msra.mxu0 %v4169
    %4658 = vmatprep.subr.bf16.mxu0 %v4178
    %4659 = vmatpush1.bf16.msra.mxu0 %v4177
    %4660 = vmatprep.subr.bf16.mxu0 %v4186
    %4661 = vmatpush1.bf16.msra.mxu0 %v4185
    %4662 = vmatprep.subr.bf16.mxu0 %v4194
    %4663 = vmatpush1.bf16.msra.mxu0 %v4193
    %4664 = vmatprep.subr.bf16.mxu0 %v4202
    %4665 = vmatpush1.bf16.msra.mxu0 %v4201
    %4666 = vmatprep.subr.bf16.mxu0 %v4210
    %4667 = vmatpush1.bf16.msra.mxu0 %v4209
    %4668 = vmatprep.subr.bf16.mxu0 %v4218
    %4669 = vmatpush1.bf16.msra.mxu0 %v4217
    %4670 = vmatprep.subr.bf16.mxu0 %v4226
    %4671 = vmatpush1.bf16.msra.mxu0 %v4225
    %4672 = vmatprep.subr.bf16.mxu0 %v4234
    %4673 = vmatpush1.bf16.msra.mxu0 %v4233
    %4674 = vmatprep.subr.bf16.mxu0 %v4242
    %4675 = vmatpush1.bf16.msra.mxu0 %v4241
    %4676 = vmatprep.subr.bf16.mxu0 %v4250
    %4677 = vmatpush1.bf16.msra.mxu0 %v4249
    %4678 = vmatprep.subr.bf16.mxu0 %v4258
    %4679 = vmatpush1.bf16.msra.mxu0 %v4257
    %4680 = vmatprep.subr.bf16.mxu0 %v4266
    %4681 = vmatpush1.bf16.msra.mxu0 %v4265
    %4682 = vmatprep.mubr.bf16.mxu0 %v2948
    %4683 = vmatmul.mubr.bf16.gmra.mrb[0].mxu0 %v2947
    %v4684 = vpop.f32.mrb[0].mxu0
    %v4685 = vadd.f32 %v4644, %v4684
    %v4686 = vpop.f32.mrb[0].mxu0
    %v4687 = vadd.f32 %v4646, %v4686
    %v4688 = vpop.f32.mrb[0].mxu0
    %v4689 = vpop.f32.mrb[0].mxu0
    %4690 = vdwg.mxu0
    %4691 = vmatprep.subr.bf16.mxu0 %v4020
    %4692 = vmatpush1.bf16.msra.mxu0 %v4019
    %4693 = vmatprep.subr.bf16.mxu0 %v4028
    %4694 = vmatpush1.bf16.msra.mxu0 %v4027
    %4695 = vmatprep.subr.bf16.mxu0 %v4036
    %4696 = vmatpush1.bf16.msra.mxu0 %v4035
    %4697 = vmatprep.subr.bf16.mxu0 %v4044
    %4698 = vmatpush1.bf16.msra.mxu0 %v4043
    %4699 = vmatprep.subr.bf16.mxu0 %v4052
    %4700 = vmatpush1.bf16.msra.mxu0 %v4051
    %4701 = vmatprep.subr.bf16.mxu0 %v4060
    %4702 = vmatpush1.bf16.msra.mxu0 %v4059
    %4703 = vmatprep.subr.bf16.mxu0 %v4068
    %4704 = vmatpush1.bf16.msra.mxu0 %v4067
    %4705 = vmatprep.subr.bf16.mxu0 %v4076
    %4706 = vmatpush1.bf16.msra.mxu0 %v4075
    %4707 = vmatprep.subr.bf16.mxu0 %v4084
    %4708 = vmatpush1.bf16.msra.mxu0 %v4083
    %4709 = vmatprep.subr.bf16.mxu0 %v4092
    %4710 = vmatpush1.bf16.msra.mxu0 %v4091
    %4711 = vmatprep.subr.bf16.mxu0 %v4100
    %4712 = vmatpush1.bf16.msra.mxu0 %v4099
    %4713 = vmatprep.subr.bf16.mxu0 %v4108
    %4714 = vmatpush1.bf16.msra.mxu0 %v4107
    %4715 = vmatprep.subr.bf16.mxu0 %v4116
    %4716 = vmatpush1.bf16.msra.mxu0 %v4115
    %4717 = vmatprep.subr.bf16.mxu0 %v4124
    %4718 = vmatpush1.bf16.msra.mxu0 %v4123
    %4719 = vmatprep.subr.bf16.mxu0 %v4132
    %4720 = vmatpush1.bf16.msra.mxu0 %v4131
    %4721 = vmatprep.subr.bf16.mxu0 %v4140
    %4722 = vmatpush1.bf16.msra.mxu0 %v4139
    %4723 = vmatprep.mubr.bf16.mxu0 %v2946
    %4724 = vmatmul.mubr.bf16.gmra.mrb[0].mxu0 %v2945
    %v4725 = vpop.f32.mrb[0].mxu0
    %v4726 = vadd.f32 %v3226, %v4725
    %v4727 = vpop.f32.mrb[0].mxu0
    %v4728 = vadd.f32 %v3230, %v4727
    %v4729 = vpop.f32.mrb[0].mxu0
    %v4730 = vpop.f32.mrb[0].mxu0
    %4731 = vdwg.mxu0
    %4732 = vmatprep.subr.bf16.mxu0 %v4148
    %4733 = vmatpush1.bf16.msra.mxu0 %v4147
    %4734 = vmatprep.subr.bf16.mxu0 %v4156
    %4735 = vmatpush1.bf16.msra.mxu0 %v4155
    %4736 = vmatprep.subr.bf16.mxu0 %v4164
    %4737 = vmatpush1.bf16.msra.mxu0 %v4163
    %4738 = vmatprep.subr.bf16.mxu0 %v4172
    %4739 = vmatpush1.bf16.msra.mxu0 %v4171
    %4740 = vmatprep.subr.bf16.mxu0 %v4180
    %4741 = vmatpush1.bf16.msra.mxu0 %v4179
    %4742 = vmatprep.subr.bf16.mxu0 %v4188
    %4743 = vmatpush1.bf16.msra.mxu0 %v4187
    %4744 = vmatprep.subr.bf16.mxu0 %v4196
    %4745 = vmatpush1.bf16.msra.mxu0 %v4195
    %4746 = vmatprep.subr.bf16.mxu0 %v4204
    %4747 = vmatpush1.bf16.msra.mxu0 %v4203
    %4748 = vmatprep.subr.bf16.mxu0 %v4212
    %4749 = vmatpush1.bf16.msra.mxu0 %v4211
    %4750 = vmatprep.subr.bf16.mxu0 %v4220
    %4751 = vmatpush1.bf16.msra.mxu0 %v4219
    %4752 = vmatprep.subr.bf16.mxu0 %v4228
    %4753 = vmatpush1.bf16.msra.mxu0 %v4227
    %4754 = vmatprep.subr.bf16.mxu0 %v4236
    %4755 = vmatpush1.bf16.msra.mxu0 %v4235
    %4756 = vmatprep.subr.bf16.mxu0 %v4244
    %4757 = vmatpush1.bf16.msra.mxu0 %v4243
    %4758 = vmatprep.subr.bf16.mxu0 %v4252
    %4759 = vmatpush1.bf16.msra.mxu0 %v4251
    %4760 = vmatprep.subr.bf16.mxu0 %v4260
    %4761 = vmatpush1.bf16.msra.mxu0 %v4259
    %4762 = vmatprep.subr.bf16.mxu0 %v4268
    %4763 = vmatpush1.bf16.msra.mxu0 %v4267
    %4764 = vmatprep.mubr.bf16.mxu0 %v2948
    %4765 = vmatmul.mubr.bf16.gmra.mrb[0].mxu0 %v2947
    %v4766 = vpop.f32.mrb[0].mxu0
    %v4767 = vadd.f32 %v4726, %v4766
    %v4768 = vpop.f32.mrb[0].mxu0
    %v4769 = vadd.f32 %v4728, %v4768
    %v4770 = vpop.f32.mrb[0].mxu0
    %v4771 = vpop.f32.mrb[0].mxu0
    %4772 = vdwg.mxu0
    %4773 = vmatprep.subr.bf16.mxu0 %v4022
    %4774 = vmatpush1.bf16.msra.mxu0 %v4021
    %4775 = vmatprep.subr.bf16.mxu0 %v4030
    %4776 = vmatpush1.bf16.msra.mxu0 %v4029
    %4777 = vmatprep.subr.bf16.mxu0 %v4038
    %4778 = vmatpush1.bf16.msra.mxu0 %v4037
    %4779 = vmatprep.subr.bf16.mxu0 %v4046
    %4780 = vmatpush1.bf16.msra.mxu0 %v4045
    %4781 = vmatprep.subr.bf16.mxu0 %v4054
    %4782 = vmatpush1.bf16.msra.mxu0 %v4053
    %4783 = vmatprep.subr.bf16.mxu0 %v4062
    %4784 = vmatpush1.bf16.msra.mxu0 %v4061
    %4785 = vmatprep.subr.bf16.mxu0 %v4070
    %4786 = vmatpush1.bf16.msra.mxu0 %v4069
    %4787 = vmatprep.subr.bf16.mxu0 %v4078
    %4788 = vmatpush1.bf16.msra.mxu0 %v4077
    %4789 = vmatprep.subr.bf16.mxu0 %v4086
    %4790 = vmatpush1.bf16.msra.mxu0 %v4085
    %4791 = vmatprep.subr.bf16.mxu0 %v4094
    %4792 = vmatpush1.bf16.msra.mxu0 %v4093
    %4793 = vmatprep.subr.bf16.mxu0 %v4102
    %4794 = vmatpush1.bf16.msra.mxu0 %v4101
    %4795 = vmatprep.subr.bf16.mxu0 %v4110
    %4796 = vmatpush1.bf16.msra.mxu0 %v4109
    %4797 = vmatprep.subr.bf16.mxu0 %v4118
    %4798 = vmatpush1.bf16.msra.mxu0 %v4117
    %4799 = vmatprep.subr.bf16.mxu0 %v4126
    %4800 = vmatpush1.bf16.msra.mxu0 %v4125
    %4801 = vmatprep.subr.bf16.mxu0 %v4134
    %4802 = vmatpush1.bf16.msra.mxu0 %v4133
    %4803 = vmatprep.subr.bf16.mxu0 %v4142
    %4804 = vmatpush1.bf16.msra.mxu0 %v4141
    %4805 = vmatprep.mubr.bf16.mxu0 %v2946
    %4806 = vmatmul.mubr.bf16.gmra.mrb[0].mxu0 %v2945
    %v4807 = vpop.f32.mrb[0].mxu0
    %v4808 = vadd.f32 %v3234, %v4807
    %v4809 = vpop.f32.mrb[0].mxu0
    %v4810 = vadd.f32 %v3238, %v4809
    %v4811 = vpop.f32.mrb[0].mxu0
    %v4812 = vpop.f32.mrb[0].mxu0
    %4813 = vdwg.mxu0
    %4814 = vmatprep.subr.bf16.mxu0 %v4150
    %4815 = vmatpush1.bf16.msra.mxu0 %v4149
    %4816 = vmatprep.subr.bf16.mxu0 %v4158
    %4817 = vmatpush1.bf16.msra.mxu0 %v4157
    %4818 = vmatprep.subr.bf16.mxu0 %v4166
    %4819 = vmatpush1.bf16.msra.mxu0 %v4165
    %4820 = vmatprep.subr.bf16.mxu0 %v4174
    %4821 = vmatpush1.bf16.msra.mxu0 %v4173
    %4822 = vmatprep.subr.bf16.mxu0 %v4182
    %4823 = vmatpush1.bf16.msra.mxu0 %v4181
    %4824 = vmatprep.subr.bf16.mxu0 %v4190
    %4825 = vmatpush1.bf16.msra.mxu0 %v4189
    %4826 = vmatprep.subr.bf16.mxu0 %v4198
    %4827 = vmatpush1.bf16.msra.mxu0 %v4197
    %4828 = vmatprep.subr.bf16.mxu0 %v4206
    %4829 = vmatpush1.bf16.msra.mxu0 %v4205
    %4830 = vmatprep.subr.bf16.mxu0 %v4214
    %4831 = vmatpush1.bf16.msra.mxu0 %v4213
    %4832 = vmatprep.subr.bf16.mxu0 %v4222
    %4833 = vmatpush1.bf16.msra.mxu0 %v4221
    %4834 = vmatprep.subr.bf16.mxu0 %v4230
    %4835 = vmatpush1.bf16.msra.mxu0 %v4229
    %4836 = vmatprep.subr.bf16.mxu0 %v4238
    %4837 = vmatpush1.bf16.msra.mxu0 %v4237
    %4838 = vmatprep.subr.bf16.mxu0 %v4246
    %4839 = vmatpush1.bf16.msra.mxu0 %v4245
    %4840 = vmatprep.subr.bf16.mxu0 %v4254
    %4841 = vmatpush1.bf16.msra.mxu0 %v4253
    %4842 = vmatprep.subr.bf16.mxu0 %v4262
    %4843 = vmatpush1.bf16.msra.mxu0 %v4261
    %4844 = vmatprep.subr.bf16.mxu0 %v4270
    %4845 = vmatpush1.bf16.msra.mxu0 %v4269
    %4846 = vmatprep.mubr.bf16.mxu0 %v2948
    %4847 = vmatmul.mubr.bf16.gmra.mrb[0].mxu0 %v2947
    %v4848 = vpop.f32.mrb[0].mxu0
    %v4849 = vadd.f32 %v4808, %v4848
    %v4850 = vpop.f32.mrb[0].mxu0
    %v4851 = vadd.f32 %v4810, %v4850
    %v4852 = vpop.f32.mrb[0].mxu0
    %v4853 = vpop.f32.mrb[0].mxu0
    %4854 = vdwg.mxu0
    %v4855 = vxor.u32 %v4603, 2147483648
    %v4856 = vxor.u32 %v4605, 2147483648
    %v4857 = vxor.u32 %v4685, 2147483648
    %v4858 = vxor.u32 %v4687, 2147483648
    %v4859 = vxor.u32 %v4767, 2147483648
    %v4860 = vxor.u32 %v4769, 2147483648
    %v4861 = vxor.u32 %v4849, 2147483648
    %v4862 = vxor.u32 %v4851, 2147483648
    %v4863 = vmul.f32 %v4855, 1.442695
    %v4864 = vpow.pop %v4863
    %v4865 = vmul.f32 %v4856, 1.442695
    %v4866 = vpow.pop %v4865
    %v4867 = vmul.f32 %v4857, 1.442695
    %v4868 = vpow.pop %v4867
    %v4869 = vmul.f32 %v4858, 1.442695
    %v4870 = vpow.pop %v4869
    %v4871 = vmul.f32 %v4859, 1.442695
    %v4872 = vpow.pop %v4871
    %v4873 = vmul.f32 %v4860, 1.442695
    %v4874 = vpow.pop %v4873
    %v4875 = vmul.f32 %v4861, 1.442695
    %v4876 = vpow.pop %v4875
    %v4877 = vmul.f32 %v4862, 1.442695
    %v4878 = vpow.pop %v4877
    %v4879 = vadd.f32 %v4864, 1.0
    %v4880 = vadd.f32 %v4866, 1.0
    %v4881 = vadd.f32 %v4868, 1.0
    %v4882 = vadd.f32 %v4870, 1.0
    %v4883 = vadd.f32 %v4872, 1.0
    %v4884 = vadd.f32 %v4874, 1.0
    %v4885 = vadd.f32 %v4876, 1.0
    %v4886 = vadd.f32 %v4878, 1.0
    %v4887 = vrcp.pop %v4879
    %v4888 = vmul.f32 1.0, %v4887
    %v4889 = vrcp.pop %v4880
    %v4890 = vmul.f32 1.0, %v4889
    %v4891 = vrcp.pop %v4881
    %v4892 = vmul.f32 1.0, %v4891
    %v4893 = vrcp.pop %v4882
    %v4894 = vmul.f32 1.0, %v4893
    %v4895 = vrcp.pop %v4883
    %v4896 = vmul.f32 1.0, %v4895
    %v4897 = vrcp.pop %v4884
    %v4898 = vmul.f32 1.0, %v4897
    %v4899 = vrcp.pop %v4885
    %v4900 = vmul.f32 1.0, %v4899
    %v4901 = vrcp.pop %v4886
    %v4902 = vmul.f32 1.0, %v4901
    %v4903 = vpack.c.bf16 %v4888, %v4888
    %v4904 = vpack.c.bf16 %v4890, %v4890
    %v4905 = vpack.c.bf16 %v4892, %v4892
    %v4906 = vpack.c.bf16 %v4894, %v4894
    %v4907 = vpack.c.bf16 %v4896, %v4896
    %v4908 = vpack.c.bf16 %v4898, %v4898
    %v4909 = vpack.c.bf16 %v4900, %v4900
    %v4910 = vpack.c.bf16 %v4902, %v4902
    %v4919 = vcombine.low %v4903, %v4904
    %v4920 = vcombine.low %v4905, %v4906
    %v4921 = vcombine.low %v4907, %v4908
    %v4922 = vcombine.low %v4909, %v4910
    %v4924 = vunpack.c.l.s4 1966171168
    %v4925 = vunpack.c.0.s8 %v4924
    %v4926 = vlaneseq
    %v4927 = vshrl.u32 %v4926, 7
    %v4928 = vsub.s32 %v4925, %v4927
    %v4929 = vrot.slane %v4919, %v4928
    %v4931 = vunpack.c.l.s4 1966171168
    %v4932 = vunpack.c.0.s8 %v4931
    %v4933 = vlaneseq
    %v4934 = vshrl.u32 %v4933, 7
    %v4935 = vsub.s32 %v4932, %v4934
    %v4936 = vrot.slane %v4920, %v4935
    %v4938 = vunpack.c.l.s4 1966171168
    %v4939 = vunpack.c.0.s8 %v4938
    %v4940 = vlaneseq
    %v4941 = vshrl.u32 %v4940, 7
    %v4942 = vsub.s32 %v4939, %v4941
    %v4943 = vrot.slane %v4921, %v4942
    %v4945 = vunpack.c.l.s4 1966171168
    %v4946 = vunpack.c.0.s8 %v4945
    %v4947 = vlaneseq
    %v4948 = vshrl.u32 %v4947, 7
    %v4949 = vsub.s32 %v4946, %v4948
    %v4950 = vrot.slane %v4922, %v4949
    %v4951 = vcombine.low %v4929, %v4936
    %v4952 = vcombine.low %v4943, %v4950
    %v4954 = vunpack.c.l.s4 1966171168
    %v4955 = vunpack.c.0.s8 %v4954
    %v4956 = vlaneseq
    %v4957 = vshrl.u32 %v4956, 7
    %v4958 = vsub.s32 %v4955, %v4957
    %v4959 = vrot.slane %v4951, %v4958
    %v4961 = vunpack.c.l.s4 1966171168
    %v4962 = vunpack.c.0.s8 %v4961
    %v4963 = vlaneseq
    %v4964 = vshrl.u32 %v4963, 7
    %v4965 = vsub.s32 %v4962, %v4964
    %v4966 = vrot.slane %v4952, %v4965
    %v4967 = vcombine.low %v4959, %v4966
    %4969 = vst [vmem:[%s12] sm:$0xff] %v4967
    %v4972 = vcombine.low %v2519, %v2521
    %v4974 = vunpack.c.l.s4 1983009808
    %v4975 = vunpack.c.0.s8 %v4974
    %v4976 = vlaneseq
    %v4977 = vshrl.u32 %v4976, 7
    %v4978 = vsub.s32 %v4975, %v4977
    %v4979 = vrot.slane %v4972, %v4978
    %4981 = vst [vmem:[%s13] sm:$0xf] %v4979
    // Predicated region
    $region66: #{vae_mlp_forward.1} parent=1 // pred_check
      _
    $region67: #{vae_mlp_forward.1} parent=1 // pred_check_branch
      %4983 = sbr.rel (0) target = $region69
    $region68: #{vae_mlp_forward.1} parent=1 // pred_region
      _
    $region69: #{vae_mlp_forward.1} parent=1 // pred_fallthru
      _
    // Predicated region
    $region70: #{vae_mlp_forward.1} parent=1 // pred_check
      _
    $region71: #{vae_mlp_forward.1} parent=1 // pred_check_branch
      %4985 = sbr.rel (0) target = $region73
    $region72: #{vae_mlp_forward.1} parent=1 // pred_region
      _
    $region73: #{vae_mlp_forward.1} parent=1 // pred_fallthru
      _
    // Predicated region
    $region74: #{vae_mlp_forward.1} parent=1 // pred_check
      _
    $region75: #{vae_mlp_forward.1} parent=1 // pred_check_branch
      %4987 = sbr.rel (0) target = $region77
    $region76: #{vae_mlp_forward.1} parent=1 // pred_region
      _
    $region77: #{vae_mlp_forward.1} parent=1 // pred_fallthru
      _
    // Predicated region
    $region78: #{vae_mlp_forward.1} parent=1 // pred_check
      _
    $region79: #{vae_mlp_forward.1} parent=1 // pred_check_branch
      %4989 = sbr.rel (0) target = $region81
    $region80: #{vae_mlp_forward.1} parent=1 // pred_region
      _
    $region81: #{vae_mlp_forward.1} parent=1 // pred_fallthru
      _
    %4990 = vsyncpa [#allocation3], 1
    %4991 = vsyncpa [#allocation5], 1
    %4992 = vsyncpa [#allocation8], 1

</llo_original>
